<compile_context>
chip_gen: v6e
topology: v6e:2x2x1
jax: 0.10.0
libtpu: 0.0.40
codegen_flags: <defaults>
</compile_context>

<pallas_src>
import functools

import jax
import jax.numpy as jnp
from jax import lax
from jax.experimental import pallas as pl
from jax.experimental.pallas import tpu as pltpu


# ---------------------------------------------------------------------------
# Pallas kernel: per-image Wiener-Kolmogorov deconvolution via matmul DFTs
# ---------------------------------------------------------------------------
def _wiener_kernel(stack_ref, lam_ref, fwc_ref, fws_ref, fh_ref,
                   iwc_ref, iws_ref, out_ref, *, C, N, H, W, Wh):
    # Default precision: single-pass bf16 MXU with f32 accumulation.
    dot = functools.partial(jnp.dot, preferred_element_type=jnp.float32)
    bf16 = jnp.bfloat16

    lam = lam_ref[0, 0]                       # exp(alpha), SMEM scalar
    stack = stack_ref[0]                      # (S*H, W) bf16: [y | psf | g]
    cosw = fwc_ref[...]                       # (W, Wh)   cos(2*pi*n*k/W)
    msinw = fws_ref[...]                      # (W, Wh)  -sin(2*pi*n*k/W)
    fh = fh_ref[...]                          # (2H, H)  [cosH ; sinH]
    iwc = iwc_ref[...]                        # (Wh, W)  Hermitian inverse (cos)
    iws = iws_ref[...]                        # (Wh, W)  Hermitian inverse (sin)

    # ---- forward rDFT along W for all S slices: two big stacked matmuls ----
    t_re = dot(stack, cosw).astype(bf16)      # (S*H, Wh)
    t_im = dot(stack, msinw).astype(bf16)     # (S*H, Wh)

    def row_fft(s):
        # forward complex DFT along H of slice s (static sublane-aligned rows)
        tr = t_re[s * H:(s + 1) * H, :]
        ti = t_im[s * H:(s + 1) * H, :]
        r1 = dot(fh, tr)                      # rows [0:H]=cos@tr, [H:2H]=sin@tr
        r2 = dot(fh, ti)
        sr = r1[:H, :] + r2[H:, :]            # Re{(cos - i sin)(tr + i ti)}
        si = r2[:H, :] - r1[H:, :]            # Im{...}
        return sr, si

    # regularizer spectral energy, shared across channels:  sum_n |G_n|^2
    gg = jnp.zeros((H, Wh), jnp.float32)
    for n in range(N):
        gr, gi = row_fft(2 * C + n)
        gg = gg + gr * gr + gi * gi
    lgg = lam * gg

    for c in range(C):
        yr, yi = row_fft(c)                   # Y spectrum, channel c
        hr, hi = row_fft(C + c)               # PSF spectrum, channel c
        inv = pl.reciprocal(hr * hr + hi * hi + lgg, approx=True)
        xr = ((hr * yr + hi * yi) * inv).astype(bf16)   # conj(H)*Y / denom
        xi = ((hr * yi - hi * yr) * inv).astype(bf16)
        # inverse complex DFT along H (the 1/H factor is folded into iwc/iws)
        q1 = dot(fh, xr)
        q2 = dot(fh, xi)
        ur = (q1[:H, :] - q2[H:, :]).astype(bf16)
        ui = (q2[:H, :] + q1[H:, :]).astype(bf16)
        # inverse Hermitian rDFT along W -> real (H, W) image, lane-dense store
        out_c = dot(ur, iwc) + dot(ui, iws)
        out_ref[0, c * H:(c + 1) * H, :] = out_c.astype(out_ref.dtype)


def wiener_filter_pallas(stack, lam, cosw, msinw, fh, iwc, iws,
                         *, C, N, H, W, out_dtype=jnp.float32):
    B, SH, _ = stack.shape
    Wh = W // 2 + 1
    CH = C * H
    kernel = functools.partial(_wiener_kernel, C=C, N=N, H=H, W=W, Wh=Wh)

    # Explicit scoped-VMEM budget: double-buffered stack/out blocks + bases +
    # f32/bf16 temporaries, with 2x headroom (clamped well under v7x's 64 MiB).
    est = (2 * SH * W * 2                 # stack block, bf16, 2 buffers
           + 2 * CH * W * 4               # output block, f32, 2 buffers
           + 2 * (2 * W * Wh + 2 * H * H + 2 * Wh * W) * 2   # bf16 bases
           + 2 * SH * Wh * 4              # t_re / t_im before the bf16 cast
           + 16 * H * Wh * 4              # per-channel spectral temporaries
           + H * W * 4)
    vmem_limit = int(min(56 * 1024 * 1024, max(32 * 1024 * 1024, 2 * est)))

    def build(single_buffer_bases):
        kw = {"pipeline_mode": pl.Buffered(1)} if single_buffer_bases else {}

        def const_spec(shape):
            # constant index_map -> basis stays resident across grid steps
            return pl.BlockSpec(shape, lambda b: (0,) * len(shape), **kw)

        return pl.pallas_call(
            kernel,
            out_shape=jax.ShapeDtypeStruct((B, CH, W), out_dtype),
            grid=(B,),
            in_specs=[
                pl.BlockSpec((1, SH, W), lambda b: (b, 0, 0)),       # slab
                pl.BlockSpec(memory_space=pltpu.MemorySpace.SMEM),   # exp(alpha)
                const_spec((W, Wh)),                                 # cosW
                const_spec((W, Wh)),                                 # -sinW
                const_spec((2 * H, H)),                              # [cosH;sinH]
                const_spec((Wh, W)),                                 # inv cos
                const_spec((Wh, W)),                                 # inv sin
            ],
            out_specs=pl.BlockSpec((1, CH, W), lambda b: (b, 0, 0)),
            compiler_params=pltpu.CompilerParams(
                dimension_semantics=("parallel",),   # B>=2 -> both v7x cores
                vmem_limit_bytes=vmem_limit),
        )

    try:
        return build(True)(stack, lam, cosw, msinw, fh, iwc, iws)
    except Exception:
        # pl.Buffered(1) not supported on this jax version -> default buffering
        return build(False)(stack, lam, cosw, msinw, fh, iwc, iws)


# ---------------------------------------------------------------------------
# Host-side DFT bases (bf16), psf2otf padding, KPN surrogate, normalization
# ---------------------------------------------------------------------------
def rdft_bases(H, W, dtype=jnp.bfloat16):
    Wh = W // 2 + 1
    n = jnp.arange(W)
    k = jnp.arange(Wh)
    h = jnp.arange(H)

    ang_w = (2.0 * jnp.pi / W) * ((n[:, None] * k[None, :]) % W).astype(jnp.float32)
    cosw = jnp.cos(ang_w)                                   # (W, Wh)
    msinw = -jnp.sin(ang_w)

    ang_h = (2.0 * jnp.pi / H) * ((h[:, None] * h[None, :]) % H).astype(jnp.float32)
    fh = jnp.concatenate([jnp.cos(ang_h), jnp.sin(ang_h)], axis=0)   # (2H, H)

    # Hermitian-weighted inverse rDFT along W, 1/(H*W) folded in.
    c = jnp.where(k == 0, 1.0, 2.0).astype(jnp.float32)
    if W % 2 == 0:
        c = c.at[W // 2].set(1.0)
    ang_i = (2.0 * jnp.pi / W) * ((k[:, None] * n[None, :]) % W).astype(jnp.float32)
    iwc = (c[:, None] * jnp.cos(ang_i)) / (H * W)           # (Wh, W)
    iws = (-c[:, None] * jnp.sin(ang_i)) / (H * W)

    return (cosw.astype(dtype), msinw.astype(dtype), fh.astype(dtype),
            iwc.astype(dtype), iws.astype(dtype))


def pad_and_shift(kern, H, W):
    """Zero-pad (..., kh, kw) -> (..., H, W), circular-shift the kernel center
    to the origin (psf2otf convention)."""
    *lead, kh, kw = kern.shape
    pad = [(0, 0)] * len(lead) + [(0, H - kh), (0, W - kw)]
    kp = jnp.pad(kern, pad)
    return jnp.roll(kp, shift=(-(kh // 2), -(kw // 2)), axis=(-2, -1))


def init_kpn_params(key, in_ch, n_filters, filter_size, hidden=8):
    k1, k2, k3 = jax.random.split(key, 3)
    return {
        "w1": 0.1 * jax.random.normal(k1, (hidden, in_ch, 3, 3), jnp.float32),
        "b1": jnp.zeros((hidden,), jnp.float32),
        "w2": 0.1 * jax.random.normal(k2, (hidden, hidden, 3, 3), jnp.float32),
        "b2": jnp.zeros((hidden,), jnp.float32),
        "wfc": 0.1 * jax.random.normal(
            k3, (hidden, n_filters * filter_size ** 2), jnp.float32),
        "bfc": jnp.full((n_filters * filter_size ** 2,),
                        1.0 / filter_size ** 2, jnp.float32),
    }


def kpn_forward(params, y, n_filters, filter_size):
    # TODO(synk): the exact KPN(mode='instance') architecture is not specified
    # in the reference; this is a deterministic conv->pool->fc surrogate that
    # predicts per-image kernel groups of shape (B, N, 1, K, K).
    dn = ("NCHW", "OIHW", "NCHW")
    x = lax.conv_general_dilated(y, params["w1"], (1, 1), "SAME",
                                 dimension_numbers=dn)
    x = jax.nn.relu(x + params["b1"][None, :, None, None])
    x = lax.conv_general_dilated(x, params["w2"], (1, 1), "SAME",
                                 dimension_numbers=dn)
    x = jax.nn.relu(x + params["b2"][None, :, None, None])
    pooled = jnp.mean(x, axis=(2, 3))                     # (B, hidden)
    k = pooled @ params["wfc"] + params["bfc"]            # (B, N*K*K)
    B = y.shape[0]
    return k.reshape(B, n_filters, 1, filter_size, filter_size)


def normalize_kernels_l1(res, n_filters, filter_size):
    # F.normalize(g.reshape(nf, -1), p=1, dim=1)
    B = res.shape[0]
    g = res.reshape(B, n_filters, -1)
    g = g / jnp.maximum(jnp.sum(jnp.abs(g), axis=-1, keepdims=True), 1e-12)
    return g.reshape(B, n_filters, filter_size, filter_size)


def wiener_filter_kpn_forward(params, alpha, y, ker, n_filters, filter_size):
    """Equivalent of WienerFilterKPN.forward((y, ker)) -> (B, C, H, W)."""
    B, C, H, W = y.shape
    assert H % 8 == 0, "per-slice row slicing assumes H is a multiple of 8"

    res = kpn_forward(params, y, n_filters, filter_size)          # (B,N,1,K,K)
    g = normalize_kernels_l1(res, n_filters, filter_size)         # (B,N,K,K)

    psf_pad = pad_and_shift(ker, H, W)                            # (B,C,H,W)
    g_pad = pad_and_shift(g, H, W)                                # (B,N,H,W)

    # stack [y | psf | g] per image along rows -> one bf16 slab per grid step
    S = 2 * C + n_filters
    stack = jnp.concatenate([y, psf_pad, g_pad], axis=1)          # (B,S,H,W)
    stack = stack.reshape(B, S * H, W).astype(jnp.bfloat16)

    lam = jnp.exp(alpha).astype(jnp.float32).reshape(1, 1)
    cosw, msinw, fh, iwc, iws = rdft_bases(H, W)

    out = wiener_filter_pallas(stack, lam, cosw, msinw, fh, iwc, iws,
                               C=C, N=n_filters, H=H, W=W, out_dtype=y.dtype)
    return out.reshape(B, C, H, W)


def wiener_reference(y, psf_pad, g_pad, lam):
    """jnp.fft reference of the same Wiener-Kolmogorov filter (for checking)."""
    Yf = jnp.fft.fft2(y)
    Hf = jnp.fft.fft2(psf_pad)
    Gf = jnp.fft.fft2(g_pad)
    gg = jnp.sum(jnp.abs(Gf) ** 2, axis=1, keepdims=True)
    denom = jnp.abs(Hf) ** 2 + lam.reshape(()) * gg
    Xf = jnp.conj(Hf) * Yf / denom
    return jnp.real(jnp.fft.ifft2(Xf)).astype(y.dtype)


if __name__ == "__main__":
    key = jax.random.PRNGKey(0)
    B, C, H, W = 2, 4, 16, 16
    n_filters, filter_size = 3, 5
    psf_size = 5

    k_y, k_psf, k_kpn = jax.random.split(key, 3)
    y = jax.random.normal(k_y, (B, C, H, W), jnp.float32)
    psf = jax.random.uniform(k_psf, (B, C, psf_size, psf_size),
                             jnp.float32) + 0.1
    psf = psf / jnp.sum(psf, axis=(-2, -1), keepdims=True)  # unit-mass PSFs

    params = init_kpn_params(k_kpn, C, n_filters, filter_size)
    alpha = jnp.zeros((1, 1), jnp.float32)  # nn.Parameter([0.0]).unsqueeze(-1)

    out = wiener_filter_kpn_forward(params, alpha, y, psf,
                                    n_filters, filter_size)
    out = jax.block_until_ready(out)
    assert out.shape == (B, C, H, W)

    # sanity check against a jnp.fft reference.  Tolerance relaxed vs the f32
    # reference because the kernel uses default (single-pass bf16) MXU
    # precision, bf16 bases/slab, and an approx EUP reciprocal.
    res = kpn_forward(params, y, n_filters, filter_size)
    g = normalize_kernels_l1(res, n_filters, filter_size)
    ref = wiener_reference(y, pad_and_shift(psf, H, W),
                           pad_and_shift(g, H, W), jnp.exp(alpha))
    err = float(jnp.max(jnp.abs(out - ref)))
    scale = float(jnp.max(jnp.abs(ref))) + 1e-6
    assert err / scale < 5e-2, f"mismatch: rel err {err / scale}"

    print("KERNEL_OK")
</pallas_src>

<mosaic_0001>
module attributes {stable_mosaic.version = 11 : i64} {
  func.func @_wiener_kernel(%arg0: i32, %arg1: memref<1x176x16xbf16, #tpu.memory_space<vmem>>, %arg2: memref<1x1xf32, #tpu.memory_space<smem>>, %arg3: memref<16x9xbf16, #tpu.memory_space<vmem>>, %arg4: memref<16x9xbf16, #tpu.memory_space<vmem>>, %arg5: memref<32x16xbf16, #tpu.memory_space<vmem>>, %arg6: memref<9x16xbf16, #tpu.memory_space<vmem>>, %arg7: memref<9x16xbf16, #tpu.memory_space<vmem>>, %arg8: memref<1x64x16xf32, #tpu.memory_space<vmem>>) attributes {dimension_semantics = [#tpu.dimension_semantics<parallel>], iteration_bounds = array<i64: 2>, scalar_prefetch = 0 : i64, scratch_operands = 0 : i64, tpu.core_type = #tpu.core_type<tc>, window_params = [{transform_indices = @transform_0, window_bounds = array<i64: 1, 176, 16>}, {transform_indices = @transform_1, window_bounds = array<i64: 1, 1>}, {pipeline_mode = #tpu.pipeline_mode<synchronous>, transform_indices = @transform_2, window_bounds = array<i64: 16, 9>}, {pipeline_mode = #tpu.pipeline_mode<synchronous>, transform_indices = @transform_3, window_bounds = array<i64: 16, 9>}, {pipeline_mode = #tpu.pipeline_mode<synchronous>, transform_indices = @transform_4, window_bounds = array<i64: 32, 16>}, {pipeline_mode = #tpu.pipeline_mode<synchronous>, transform_indices = @transform_5, window_bounds = array<i64: 9, 16>}, {pipeline_mode = #tpu.pipeline_mode<synchronous>, transform_indices = @transform_6, window_bounds = array<i64: 9, 16>}, {transform_indices = @transform_7, window_bounds = array<i64: 1, 64, 16>}]} {
    %c0 = arith.constant 0 : index
    %c0_0 = arith.constant 0 : index
    %0 = memref.load %arg2[%c0, %c0_0] : memref<1x1xf32, #tpu.memory_space<smem>>
    %c0_1 = arith.constant 0 : index
    %c0_2 = arith.constant 0 : index
    %c0_3 = arith.constant 0 : index
    %1 = vector.load %arg1[%c0_1, %c0_2, %c0_3] : memref<1x176x16xbf16, #tpu.memory_space<vmem>>, vector<1x176x16xbf16>
    %2 = vector.shape_cast %1 : vector<1x176x16xbf16> to vector<176x16xbf16>
    %c0_4 = arith.constant 0 : index
    %c0_5 = arith.constant 0 : index
    %3 = vector.load %arg3[%c0_4, %c0_5] : memref<16x9xbf16, #tpu.memory_space<vmem>>, vector<16x9xbf16>
    %c0_6 = arith.constant 0 : index
    %c0_7 = arith.constant 0 : index
    %4 = vector.load %arg4[%c0_6, %c0_7] : memref<16x9xbf16, #tpu.memory_space<vmem>>, vector<16x9xbf16>
    %c0_8 = arith.constant 0 : index
    %c0_9 = arith.constant 0 : index
    %5 = vector.load %arg5[%c0_8, %c0_9] : memref<32x16xbf16, #tpu.memory_space<vmem>>, vector<32x16xbf16>
    %c0_10 = arith.constant 0 : index
    %c0_11 = arith.constant 0 : index
    %6 = vector.load %arg6[%c0_10, %c0_11] : memref<9x16xbf16, #tpu.memory_space<vmem>>, vector<9x16xbf16>
    %c0_12 = arith.constant 0 : index
    %c0_13 = arith.constant 0 : index
    %7 = vector.load %arg7[%c0_12, %c0_13] : memref<9x16xbf16, #tpu.memory_space<vmem>>, vector<9x16xbf16>
    %cst = arith.constant dense<0.000000e+00> : vector<176x9xf32>
    %8 = tpu.matmul %2, %3, %cst {dimension_numbers = #tpu.dot_dimension_numbers<[1], [0], [0], [1], [0, 0, 1, 1], [], []>} : vector<176x16xbf16>, vector<16x9xbf16>, vector<176x9xf32> -> vector<176x9xf32>
    %9 = arith.truncf %8 : vector<176x9xf32> to vector<176x9xbf16>
    %cst_14 = arith.constant dense<0.000000e+00> : vector<176x9xf32>
    %10 = tpu.matmul %2, %4, %cst_14 {dimension_numbers = #tpu.dot_dimension_numbers<[1], [0], [0], [1], [0, 0, 1, 1], [], []>} : vector<176x16xbf16>, vector<16x9xbf16>, vector<176x9xf32> -> vector<176x9xf32>
    %11 = arith.truncf %10 : vector<176x9xf32> to vector<176x9xbf16>
    %cst_15 = arith.constant 0.000000e+00 : f32
    %12 = vector.broadcast %cst_15 : f32 to vector<16x9xf32>
    %13 = vector.extract_strided_slice %9 {offsets = [128, 0], sizes = [16, 9], strides = [1, 1]} : vector<176x9xbf16> to vector<16x9xbf16>
    %14 = vector.extract_strided_slice %11 {offsets = [128, 0], sizes = [16, 9], strides = [1, 1]} : vector<176x9xbf16> to vector<16x9xbf16>
    %cst_16 = arith.constant dense<0.000000e+00> : vector<32x9xf32>
    %15 = tpu.matmul %5, %13, %cst_16 {dimension_numbers = #tpu.dot_dimension_numbers<[1], [0], [0], [1], [0, 0, 1, 1], [], []>} : vector<32x16xbf16>, vector<16x9xbf16>, vector<32x9xf32> -> vector<32x9xf32>
    %cst_17 = arith.constant dense<0.000000e+00> : vector<32x9xf32>
    %16 = tpu.matmul %5, %14, %cst_17 {dimension_numbers = #tpu.dot_dimension_numbers<[1], [0], [0], [1], [0, 0, 1, 1], [], []>} : vector<32x16xbf16>, vector<16x9xbf16>, vector<32x9xf32> -> vector<32x9xf32>
    %17 = vector.extract_strided_slice %15 {offsets = [0, 0], sizes = [16, 9], strides = [1, 1]} : vector<32x9xf32> to vector<16x9xf32>
    %18 = vector.extract_strided_slice %16 {offsets = [16, 0], sizes = [16, 9], strides = [1, 1]} : vector<32x9xf32> to vector<16x9xf32>
    %19 = arith.addf %17, %18 : vector<16x9xf32>
    %20 = vector.extract_strided_slice %16 {offsets = [0, 0], sizes = [16, 9], strides = [1, 1]} : vector<32x9xf32> to vector<16x9xf32>
    %21 = vector.extract_strided_slice %15 {offsets = [16, 0], sizes = [16, 9], strides = [1, 1]} : vector<32x9xf32> to vector<16x9xf32>
    %22 = arith.subf %20, %21 : vector<16x9xf32>
    %23 = arith.mulf %19, %19 : vector<16x9xf32>
    %24 = arith.addf %12, %23 : vector<16x9xf32>
    %25 = arith.mulf %22, %22 : vector<16x9xf32>
    %26 = arith.addf %24, %25 : vector<16x9xf32>
    %27 = vector.extract_strided_slice %9 {offsets = [144, 0], sizes = [16, 9], strides = [1, 1]} : vector<176x9xbf16> to vector<16x9xbf16>
    %28 = vector.extract_strided_slice %11 {offsets = [144, 0], sizes = [16, 9], strides = [1, 1]} : vector<176x9xbf16> to vector<16x9xbf16>
    %cst_18 = arith.constant dense<0.000000e+00> : vector<32x9xf32>
    %29 = tpu.matmul %5, %27, %cst_18 {dimension_numbers = #tpu.dot_dimension_numbers<[1], [0], [0], [1], [0, 0, 1, 1], [], []>} : vector<32x16xbf16>, vector<16x9xbf16>, vector<32x9xf32> -> vector<32x9xf32>
    %cst_19 = arith.constant dense<0.000000e+00> : vector<32x9xf32>
    %30 = tpu.matmul %5, %28, %cst_19 {dimension_numbers = #tpu.dot_dimension_numbers<[1], [0], [0], [1], [0, 0, 1, 1], [], []>} : vector<32x16xbf16>, vector<16x9xbf16>, vector<32x9xf32> -> vector<32x9xf32>
    %31 = vector.extract_strided_slice %29 {offsets = [0, 0], sizes = [16, 9], strides = [1, 1]} : vector<32x9xf32> to vector<16x9xf32>
    %32 = vector.extract_strided_slice %30 {offsets = [16, 0], sizes = [16, 9], strides = [1, 1]} : vector<32x9xf32> to vector<16x9xf32>
    %33 = arith.addf %31, %32 : vector<16x9xf32>
    %34 = vector.extract_strided_slice %30 {offsets = [0, 0], sizes = [16, 9], strides = [1, 1]} : vector<32x9xf32> to vector<16x9xf32>
    %35 = vector.extract_strided_slice %29 {offsets = [16, 0], sizes = [16, 9], strides = [1, 1]} : vector<32x9xf32> to vector<16x9xf32>
    %36 = arith.subf %34, %35 : vector<16x9xf32>
    %37 = arith.mulf %33, %33 : vector<16x9xf32>
    %38 = arith.addf %26, %37 : vector<16x9xf32>
    %39 = arith.mulf %36, %36 : vector<16x9xf32>
    %40 = arith.addf %38, %39 : vector<16x9xf32>
    %41 = vector.extract_strided_slice %9 {offsets = [160, 0], sizes = [16, 9], strides = [1, 1]} : vector<176x9xbf16> to vector<16x9xbf16>
    %42 = vector.extract_strided_slice %11 {offsets = [160, 0], sizes = [16, 9], strides = [1, 1]} : vector<176x9xbf16> to vector<16x9xbf16>
    %cst_20 = arith.constant dense<0.000000e+00> : vector<32x9xf32>
    %43 = tpu.matmul %5, %41, %cst_20 {dimension_numbers = #tpu.dot_dimension_numbers<[1], [0], [0], [1], [0, 0, 1, 1], [], []>} : vector<32x16xbf16>, vector<16x9xbf16>, vector<32x9xf32> -> vector<32x9xf32>
    %cst_21 = arith.constant dense<0.000000e+00> : vector<32x9xf32>
    %44 = tpu.matmul %5, %42, %cst_21 {dimension_numbers = #tpu.dot_dimension_numbers<[1], [0], [0], [1], [0, 0, 1, 1], [], []>} : vector<32x16xbf16>, vector<16x9xbf16>, vector<32x9xf32> -> vector<32x9xf32>
    %45 = vector.extract_strided_slice %43 {offsets = [0, 0], sizes = [16, 9], strides = [1, 1]} : vector<32x9xf32> to vector<16x9xf32>
    %46 = vector.extract_strided_slice %44 {offsets = [16, 0], sizes = [16, 9], strides = [1, 1]} : vector<32x9xf32> to vector<16x9xf32>
    %47 = arith.addf %45, %46 : vector<16x9xf32>
    %48 = vector.extract_strided_slice %44 {offsets = [0, 0], sizes = [16, 9], strides = [1, 1]} : vector<32x9xf32> to vector<16x9xf32>
    %49 = vector.extract_strided_slice %43 {offsets = [16, 0], sizes = [16, 9], strides = [1, 1]} : vector<32x9xf32> to vector<16x9xf32>
    %50 = arith.subf %48, %49 : vector<16x9xf32>
    %51 = arith.mulf %47, %47 : vector<16x9xf32>
    %52 = arith.addf %40, %51 : vector<16x9xf32>
    %53 = arith.mulf %50, %50 : vector<16x9xf32>
    %54 = arith.addf %52, %53 : vector<16x9xf32>
    %55 = vector.broadcast %0 : f32 to vector<16x9xf32>
    %56 = arith.mulf %55, %54 : vector<16x9xf32>
    %57 = vector.extract_strided_slice %9 {offsets = [0, 0], sizes = [16, 9], strides = [1, 1]} : vector<176x9xbf16> to vector<16x9xbf16>
    %58 = vector.extract_strided_slice %11 {offsets = [0, 0], sizes = [16, 9], strides = [1, 1]} : vector<176x9xbf16> to vector<16x9xbf16>
    %cst_22 = arith.constant dense<0.000000e+00> : vector<32x9xf32>
    %59 = tpu.matmul %5, %57, %cst_22 {dimension_numbers = #tpu.dot_dimension_numbers<[1], [0], [0], [1], [0, 0, 1, 1], [], []>} : vector<32x16xbf16>, vector<16x9xbf16>, vector<32x9xf32> -> vector<32x9xf32>
    %cst_23 = arith.constant dense<0.000000e+00> : vector<32x9xf32>
    %60 = tpu.matmul %5, %58, %cst_23 {dimension_numbers = #tpu.dot_dimension_numbers<[1], [0], [0], [1], [0, 0, 1, 1], [], []>} : vector<32x16xbf16>, vector<16x9xbf16>, vector<32x9xf32> -> vector<32x9xf32>
    %61 = vector.extract_strided_slice %59 {offsets = [0, 0], sizes = [16, 9], strides = [1, 1]} : vector<32x9xf32> to vector<16x9xf32>
    %62 = vector.extract_strided_slice %60 {offsets = [16, 0], sizes = [16, 9], strides = [1, 1]} : vector<32x9xf32> to vector<16x9xf32>
    %63 = arith.addf %61, %62 : vector<16x9xf32>
    %64 = vector.extract_strided_slice %60 {offsets = [0, 0], sizes = [16, 9], strides = [1, 1]} : vector<32x9xf32> to vector<16x9xf32>
    %65 = vector.extract_strided_slice %59 {offsets = [16, 0], sizes = [16, 9], strides = [1, 1]} : vector<32x9xf32> to vector<16x9xf32>
    %66 = arith.subf %64, %65 : vector<16x9xf32>
    %67 = vector.extract_strided_slice %9 {offsets = [64, 0], sizes = [16, 9], strides = [1, 1]} : vector<176x9xbf16> to vector<16x9xbf16>
    %68 = vector.extract_strided_slice %11 {offsets = [64, 0], sizes = [16, 9], strides = [1, 1]} : vector<176x9xbf16> to vector<16x9xbf16>
    %cst_24 = arith.constant dense<0.000000e+00> : vector<32x9xf32>
    %69 = tpu.matmul %5, %67, %cst_24 {dimension_numbers = #tpu.dot_dimension_numbers<[1], [0], [0], [1], [0, 0, 1, 1], [], []>} : vector<32x16xbf16>, vector<16x9xbf16>, vector<32x9xf32> -> vector<32x9xf32>
    %cst_25 = arith.constant dense<0.000000e+00> : vector<32x9xf32>
    %70 = tpu.matmul %5, %68, %cst_25 {dimension_numbers = #tpu.dot_dimension_numbers<[1], [0], [0], [1], [0, 0, 1, 1], [], []>} : vector<32x16xbf16>, vector<16x9xbf16>, vector<32x9xf32> -> vector<32x9xf32>
    %71 = vector.extract_strided_slice %69 {offsets = [0, 0], sizes = [16, 9], strides = [1, 1]} : vector<32x9xf32> to vector<16x9xf32>
    %72 = vector.extract_strided_slice %70 {offsets = [16, 0], sizes = [16, 9], strides = [1, 1]} : vector<32x9xf32> to vector<16x9xf32>
    %73 = arith.addf %71, %72 : vector<16x9xf32>
    %74 = vector.extract_strided_slice %70 {offsets = [0, 0], sizes = [16, 9], strides = [1, 1]} : vector<32x9xf32> to vector<16x9xf32>
    %75 = vector.extract_strided_slice %69 {offsets = [16, 0], sizes = [16, 9], strides = [1, 1]} : vector<32x9xf32> to vector<16x9xf32>
    %76 = arith.subf %74, %75 : vector<16x9xf32>
    %77 = arith.mulf %73, %73 : vector<16x9xf32>
    %78 = arith.mulf %76, %76 : vector<16x9xf32>
    %79 = arith.addf %77, %78 : vector<16x9xf32>
    %80 = arith.addf %79, %56 : vector<16x9xf32>
    %81 = tpu.reciprocal %80 {approx = true} : vector<16x9xf32> -> vector<16x9xf32>
    %82 = arith.mulf %73, %63 : vector<16x9xf32>
    %83 = arith.mulf %76, %66 : vector<16x9xf32>
    %84 = arith.addf %82, %83 : vector<16x9xf32>
    %85 = arith.mulf %84, %81 : vector<16x9xf32>
    %86 = arith.truncf %85 : vector<16x9xf32> to vector<16x9xbf16>
    %87 = arith.mulf %73, %66 : vector<16x9xf32>
    %88 = arith.mulf %76, %63 : vector<16x9xf32>
    %89 = arith.subf %87, %88 : vector<16x9xf32>
    %90 = arith.mulf %89, %81 : vector<16x9xf32>
    %91 = arith.truncf %90 : vector<16x9xf32> to vector<16x9xbf16>
    %cst_26 = arith.constant dense<0.000000e+00> : vector<32x9xf32>
    %92 = tpu.matmul %5, %86, %cst_26 {dimension_numbers = #tpu.dot_dimension_numbers<[1], [0], [0], [1], [0, 0, 1, 1], [], []>} : vector<32x16xbf16>, vector<16x9xbf16>, vector<32x9xf32> -> vector<32x9xf32>
    %cst_27 = arith.constant dense<0.000000e+00> : vector<32x9xf32>
    %93 = tpu.matmul %5, %91, %cst_27 {dimension_numbers = #tpu.dot_dimension_numbers<[1], [0], [0], [1], [0, 0, 1, 1], [], []>} : vector<32x16xbf16>, vector<16x9xbf16>, vector<32x9xf32> -> vector<32x9xf32>
    %94 = vector.extract_strided_slice %92 {offsets = [0, 0], sizes = [16, 9], strides = [1, 1]} : vector<32x9xf32> to vector<16x9xf32>
    %95 = vector.extract_strided_slice %93 {offsets = [16, 0], sizes = [16, 9], strides = [1, 1]} : vector<32x9xf32> to vector<16x9xf32>
    %96 = arith.subf %94, %95 : vector<16x9xf32>
    %97 = arith.truncf %96 : vector<16x9xf32> to vector<16x9xbf16>
    %98 = vector.extract_strided_slice %93 {offsets = [0, 0], sizes = [16, 9], strides = [1, 1]} : vector<32x9xf32> to vector<16x9xf32>
    %99 = vector.extract_strided_slice %92 {offsets = [16, 0], sizes = [16, 9], strides = [1, 1]} : vector<32x9xf32> to vector<16x9xf32>
    %100 = arith.addf %98, %99 : vector<16x9xf32>
    %101 = arith.truncf %100 : vector<16x9xf32> to vector<16x9xbf16>
    %cst_28 = arith.constant dense<0.000000e+00> : vector<16x16xf32>
    %102 = tpu.matmul %97, %6, %cst_28 {dimension_numbers = #tpu.dot_dimension_numbers<[1], [0], [0], [1], [0, 0, 1, 1], [], []>} : vector<16x9xbf16>, vector<9x16xbf16>, vector<16x16xf32> -> vector<16x16xf32>
    %cst_29 = arith.constant dense<0.000000e+00> : vector<16x16xf32>
    %103 = tpu.matmul %101, %7, %cst_29 {dimension_numbers = #tpu.dot_dimension_numbers<[1], [0], [0], [1], [0, 0, 1, 1], [], []>} : vector<16x9xbf16>, vector<9x16xbf16>, vector<16x16xf32> -> vector<16x16xf32>
    %104 = arith.addf %102, %103 : vector<16x16xf32>
    %c0_30 = arith.constant 0 : index
    %c0_31 = arith.constant 0 : index
    %c0_32 = arith.constant 0 : index
    %105 = vector.load %arg8[%c0_30, %c0_31, %c0_32] : memref<1x64x16xf32, #tpu.memory_space<vmem>>, vector<1x16x16xf32>
    %106 = vector.shape_cast %105 : vector<1x16x16xf32> to vector<16x16xf32>
    %107 = vector.shape_cast %104 : vector<16x16xf32> to vector<1x16x16xf32>
    tpu.vector_store %arg8[%c0_30, %c0_31, %c0_32], %107 {strides = array<i32>} : memref<1x64x16xf32, #tpu.memory_space<vmem>>, vector<1x16x16xf32>,
    %108 = vector.extract_strided_slice %9 {offsets = [16, 0], sizes = [16, 9], strides = [1, 1]} : vector<176x9xbf16> to vector<16x9xbf16>
    %109 = vector.extract_strided_slice %11 {offsets = [16, 0], sizes = [16, 9], strides = [1, 1]} : vector<176x9xbf16> to vector<16x9xbf16>
    %cst_33 = arith.constant dense<0.000000e+00> : vector<32x9xf32>
    %110 = tpu.matmul %5, %108, %cst_33 {dimension_numbers = #tpu.dot_dimension_numbers<[1], [0], [0], [1], [0, 0, 1, 1], [], []>} : vector<32x16xbf16>, vector<16x9xbf16>, vector<32x9xf32> -> vector<32x9xf32>
    %cst_34 = arith.constant dense<0.000000e+00> : vector<32x9xf32>
    %111 = tpu.matmul %5, %109, %cst_34 {dimension_numbers = #tpu.dot_dimension_numbers<[1], [0], [0], [1], [0, 0, 1, 1], [], []>} : vector<32x16xbf16>, vector<16x9xbf16>, vector<32x9xf32> -> vector<32x9xf32>
    %112 = vector.extract_strided_slice %110 {offsets = [0, 0], sizes = [16, 9], strides = [1, 1]} : vector<32x9xf32> to vector<16x9xf32>
    %113 = vector.extract_strided_slice %111 {offsets = [16, 0], sizes = [16, 9], strides = [1, 1]} : vector<32x9xf32> to vector<16x9xf32>
    %114 = arith.addf %112, %113 : vector<16x9xf32>
    %115 = vector.extract_strided_slice %111 {offsets = [0, 0], sizes = [16, 9], strides = [1, 1]} : vector<32x9xf32> to vector<16x9xf32>
    %116 = vector.extract_strided_slice %110 {offsets = [16, 0], sizes = [16, 9], strides = [1, 1]} : vector<32x9xf32> to vector<16x9xf32>
    %117 = arith.subf %115, %116 : vector<16x9xf32>
    %118 = vector.extract_strided_slice %9 {offsets = [80, 0], sizes = [16, 9], strides = [1, 1]} : vector<176x9xbf16> to vector<16x9xbf16>
    %119 = vector.extract_strided_slice %11 {offsets = [80, 0], sizes = [16, 9], strides = [1, 1]} : vector<176x9xbf16> to vector<16x9xbf16>
    %cst_35 = arith.constant dense<0.000000e+00> : vector<32x9xf32>
    %120 = tpu.matmul %5, %118, %cst_35 {dimension_numbers = #tpu.dot_dimension_numbers<[1], [0], [0], [1], [0, 0, 1, 1], [], []>} : vector<32x16xbf16>, vector<16x9xbf16>, vector<32x9xf32> -> vector<32x9xf32>
    %cst_36 = arith.constant dense<0.000000e+00> : vector<32x9xf32>
    %121 = tpu.matmul %5, %119, %cst_36 {dimension_numbers = #tpu.dot_dimension_numbers<[1], [0], [0], [1], [0, 0, 1, 1], [], []>} : vector<32x16xbf16>, vector<16x9xbf16>, vector<32x9xf32> -> vector<32x9xf32>
    %122 = vector.extract_strided_slice %120 {offsets = [0, 0], sizes = [16, 9], strides = [1, 1]} : vector<32x9xf32> to vector<16x9xf32>
    %123 = vector.extract_strided_slice %121 {offsets = [16, 0], sizes = [16, 9], strides = [1, 1]} : vector<32x9xf32> to vector<16x9xf32>
    %124 = arith.addf %122, %123 : vector<16x9xf32>
    %125 = vector.extract_strided_slice %121 {offsets = [0, 0], sizes = [16, 9], strides = [1, 1]} : vector<32x9xf32> to vector<16x9xf32>
    %126 = vector.extract_strided_slice %120 {offsets = [16, 0], sizes = [16, 9], strides = [1, 1]} : vector<32x9xf32> to vector<16x9xf32>
    %127 = arith.subf %125, %126 : vector<16x9xf32>
    %128 = arith.mulf %124, %124 : vector<16x9xf32>
    %129 = arith.mulf %127, %127 : vector<16x9xf32>
    %130 = arith.addf %128, %129 : vector<16x9xf32>
    %131 = arith.addf %130, %56 : vector<16x9xf32>
    %132 = tpu.reciprocal %131 {approx = true} : vector<16x9xf32> -> vector<16x9xf32>
    %133 = arith.mulf %124, %114 : vector<16x9xf32>
    %134 = arith.mulf %127, %117 : vector<16x9xf32>
    %135 = arith.addf %133, %134 : vector<16x9xf32>
    %136 = arith.mulf %135, %132 : vector<16x9xf32>
    %137 = arith.truncf %136 : vector<16x9xf32> to vector<16x9xbf16>
    %138 = arith.mulf %124, %117 : vector<16x9xf32>
    %139 = arith.mulf %127, %114 : vector<16x9xf32>
    %140 = arith.subf %138, %139 : vector<16x9xf32>
    %141 = arith.mulf %140, %132 : vector<16x9xf32>
    %142 = arith.truncf %141 : vector<16x9xf32> to vector<16x9xbf16>
    %cst_37 = arith.constant dense<0.000000e+00> : vector<32x9xf32>
    %143 = tpu.matmul %5, %137, %cst_37 {dimension_numbers = #tpu.dot_dimension_numbers<[1], [0], [0], [1], [0, 0, 1, 1], [], []>} : vector<32x16xbf16>, vector<16x9xbf16>, vector<32x9xf32> -> vector<32x9xf32>
    %cst_38 = arith.constant dense<0.000000e+00> : vector<32x9xf32>
    %144 = tpu.matmul %5, %142, %cst_38 {dimension_numbers = #tpu.dot_dimension_numbers<[1], [0], [0], [1], [0, 0, 1, 1], [], []>} : vector<32x16xbf16>, vector<16x9xbf16>, vector<32x9xf32> -> vector<32x9xf32>
    %145 = vector.extract_strided_slice %143 {offsets = [0, 0], sizes = [16, 9], strides = [1, 1]} : vector<32x9xf32> to vector<16x9xf32>
    %146 = vector.extract_strided_slice %144 {offsets = [16, 0], sizes = [16, 9], strides = [1, 1]} : vector<32x9xf32> to vector<16x9xf32>
    %147 = arith.subf %145, %146 : vector<16x9xf32>
    %148 = arith.truncf %147 : vector<16x9xf32> to vector<16x9xbf16>
    %149 = vector.extract_strided_slice %144 {offsets = [0, 0], sizes = [16, 9], strides = [1, 1]} : vector<32x9xf32> to vector<16x9xf32>
    %150 = vector.extract_strided_slice %143 {offsets = [16, 0], sizes = [16, 9], strides = [1, 1]} : vector<32x9xf32> to vector<16x9xf32>
    %151 = arith.addf %149, %150 : vector<16x9xf32>
    %152 = arith.truncf %151 : vector<16x9xf32> to vector<16x9xbf16>
    %cst_39 = arith.constant dense<0.000000e+00> : vector<16x16xf32>
    %153 = tpu.matmul %148, %6, %cst_39 {dimension_numbers = #tpu.dot_dimension_numbers<[1], [0], [0], [1], [0, 0, 1, 1], [], []>} : vector<16x9xbf16>, vector<9x16xbf16>, vector<16x16xf32> -> vector<16x16xf32>
    %cst_40 = arith.constant dense<0.000000e+00> : vector<16x16xf32>
    %154 = tpu.matmul %152, %7, %cst_40 {dimension_numbers = #tpu.dot_dimension_numbers<[1], [0], [0], [1], [0, 0, 1, 1], [], []>} : vector<16x9xbf16>, vector<9x16xbf16>, vector<16x16xf32> -> vector<16x16xf32>
    %155 = arith.addf %153, %154 : vector<16x16xf32>
    %c0_41 = arith.constant 0 : index
    %c16 = arith.constant 16 : index
    %c0_42 = arith.constant 0 : index
    %156 = vector.load %arg8[%c0_41, %c16, %c0_42] : memref<1x64x16xf32, #tpu.memory_space<vmem>>, vector<1x16x16xf32>
    %157 = vector.shape_cast %156 : vector<1x16x16xf32> to vector<16x16xf32>
    %158 = vector.shape_cast %155 : vector<16x16xf32> to vector<1x16x16xf32>
    tpu.vector_store %arg8[%c0_41, %c16, %c0_42], %158 {strides = array<i32>} : memref<1x64x16xf32, #tpu.memory_space<vmem>>, vector<1x16x16xf32>,
    %159 = vector.extract_strided_slice %9 {offsets = [32, 0], sizes = [16, 9], strides = [1, 1]} : vector<176x9xbf16> to vector<16x9xbf16>
    %160 = vector.extract_strided_slice %11 {offsets = [32, 0], sizes = [16, 9], strides = [1, 1]} : vector<176x9xbf16> to vector<16x9xbf16>
    %cst_43 = arith.constant dense<0.000000e+00> : vector<32x9xf32>
    %161 = tpu.matmul %5, %159, %cst_43 {dimension_numbers = #tpu.dot_dimension_numbers<[1], [0], [0], [1], [0, 0, 1, 1], [], []>} : vector<32x16xbf16>, vector<16x9xbf16>, vector<32x9xf32> -> vector<32x9xf32>
    %cst_44 = arith.constant dense<0.000000e+00> : vector<32x9xf32>
    %162 = tpu.matmul %5, %160, %cst_44 {dimension_numbers = #tpu.dot_dimension_numbers<[1], [0], [0], [1], [0, 0, 1, 1], [], []>} : vector<32x16xbf16>, vector<16x9xbf16>, vector<32x9xf32> -> vector<32x9xf32>
    %163 = vector.extract_strided_slice %161 {offsets = [0, 0], sizes = [16, 9], strides = [1, 1]} : vector<32x9xf32> to vector<16x9xf32>
    %164 = vector.extract_strided_slice %162 {offsets = [16, 0], sizes = [16, 9], strides = [1, 1]} : vector<32x9xf32> to vector<16x9xf32>
    %165 = arith.addf %163, %164 : vector<16x9xf32>
    %166 = vector.extract_strided_slice %162 {offsets = [0, 0], sizes = [16, 9], strides = [1, 1]} : vector<32x9xf32> to vector<16x9xf32>
    %167 = vector.extract_strided_slice %161 {offsets = [16, 0], sizes = [16, 9], strides = [1, 1]} : vector<32x9xf32> to vector<16x9xf32>
    %168 = arith.subf %166, %167 : vector<16x9xf32>
    %169 = vector.extract_strided_slice %9 {offsets = [96, 0], sizes = [16, 9], strides = [1, 1]} : vector<176x9xbf16> to vector<16x9xbf16>
    %170 = vector.extract_strided_slice %11 {offsets = [96, 0], sizes = [16, 9], strides = [1, 1]} : vector<176x9xbf16> to vector<16x9xbf16>
    %cst_45 = arith.constant dense<0.000000e+00> : vector<32x9xf32>
    %171 = tpu.matmul %5, %169, %cst_45 {dimension_numbers = #tpu.dot_dimension_numbers<[1], [0], [0], [1], [0, 0, 1, 1], [], []>} : vector<32x16xbf16>, vector<16x9xbf16>, vector<32x9xf32> -> vector<32x9xf32>
    %cst_46 = arith.constant dense<0.000000e+00> : vector<32x9xf32>
    %172 = tpu.matmul %5, %170, %cst_46 {dimension_numbers = #tpu.dot_dimension_numbers<[1], [0], [0], [1], [0, 0, 1, 1], [], []>} : vector<32x16xbf16>, vector<16x9xbf16>, vector<32x9xf32> -> vector<32x9xf32>
    %173 = vector.extract_strided_slice %171 {offsets = [0, 0], sizes = [16, 9], strides = [1, 1]} : vector<32x9xf32> to vector<16x9xf32>
    %174 = vector.extract_strided_slice %172 {offsets = [16, 0], sizes = [16, 9], strides = [1, 1]} : vector<32x9xf32> to vector<16x9xf32>
    %175 = arith.addf %173, %174 : vector<16x9xf32>
    %176 = vector.extract_strided_slice %172 {offsets = [0, 0], sizes = [16, 9], strides = [1, 1]} : vector<32x9xf32> to vector<16x9xf32>
    %177 = vector.extract_strided_slice %171 {offsets = [16, 0], sizes = [16, 9], strides = [1, 1]} : vector<32x9xf32> to vector<16x9xf32>
    %178 = arith.subf %176, %177 : vector<16x9xf32>
    %179 = arith.mulf %175, %175 : vector<16x9xf32>
    %180 = arith.mulf %178, %178 : vector<16x9xf32>
    %181 = arith.addf %179, %180 : vector<16x9xf32>
    %182 = arith.addf %181, %56 : vector<16x9xf32>
    %183 = tpu.reciprocal %182 {approx = true} : vector<16x9xf32> -> vector<16x9xf32>
    %184 = arith.mulf %175, %165 : vector<16x9xf32>
    %185 = arith.mulf %178, %168 : vector<16x9xf32>
    %186 = arith.addf %184, %185 : vector<16x9xf32>
    %187 = arith.mulf %186, %183 : vector<16x9xf32>
    %188 = arith.truncf %187 : vector<16x9xf32> to vector<16x9xbf16>
    %189 = arith.mulf %175, %168 : vector<16x9xf32>
    %190 = arith.mulf %178, %165 : vector<16x9xf32>
    %191 = arith.subf %189, %190 : vector<16x9xf32>
    %192 = arith.mulf %191, %183 : vector<16x9xf32>
    %193 = arith.truncf %192 : vector<16x9xf32> to vector<16x9xbf16>
    %cst_47 = arith.constant dense<0.000000e+00> : vector<32x9xf32>
    %194 = tpu.matmul %5, %188, %cst_47 {dimension_numbers = #tpu.dot_dimension_numbers<[1], [0], [0], [1], [0, 0, 1, 1], [], []>} : vector<32x16xbf16>, vector<16x9xbf16>, vector<32x9xf32> -> vector<32x9xf32>
    %cst_48 = arith.constant dense<0.000000e+00> : vector<32x9xf32>
    %195 = tpu.matmul %5, %193, %cst_48 {dimension_numbers = #tpu.dot_dimension_numbers<[1], [0], [0], [1], [0, 0, 1, 1], [], []>} : vector<32x16xbf16>, vector<16x9xbf16>, vector<32x9xf32> -> vector<32x9xf32>
    %196 = vector.extract_strided_slice %194 {offsets = [0, 0], sizes = [16, 9], strides = [1, 1]} : vector<32x9xf32> to vector<16x9xf32>
    %197 = vector.extract_strided_slice %195 {offsets = [16, 0], sizes = [16, 9], strides = [1, 1]} : vector<32x9xf32> to vector<16x9xf32>
    %198 = arith.subf %196, %197 : vector<16x9xf32>
    %199 = arith.truncf %198 : vector<16x9xf32> to vector<16x9xbf16>
    %200 = vector.extract_strided_slice %195 {offsets = [0, 0], sizes = [16, 9], strides = [1, 1]} : vector<32x9xf32> to vector<16x9xf32>
    %201 = vector.extract_strided_slice %194 {offsets = [16, 0], sizes = [16, 9], strides = [1, 1]} : vector<32x9xf32> to vector<16x9xf32>
    %202 = arith.addf %200, %201 : vector<16x9xf32>
    %203 = arith.truncf %202 : vector<16x9xf32> to vector<16x9xbf16>
    %cst_49 = arith.constant dense<0.000000e+00> : vector<16x16xf32>
    %204 = tpu.matmul %199, %6, %cst_49 {dimension_numbers = #tpu.dot_dimension_numbers<[1], [0], [0], [1], [0, 0, 1, 1], [], []>} : vector<16x9xbf16>, vector<9x16xbf16>, vector<16x16xf32> -> vector<16x16xf32>
    %cst_50 = arith.constant dense<0.000000e+00> : vector<16x16xf32>
    %205 = tpu.matmul %203, %7, %cst_50 {dimension_numbers = #tpu.dot_dimension_numbers<[1], [0], [0], [1], [0, 0, 1, 1], [], []>} : vector<16x9xbf16>, vector<9x16xbf16>, vector<16x16xf32> -> vector<16x16xf32>
    %206 = arith.addf %204, %205 : vector<16x16xf32>
    %c0_51 = arith.constant 0 : index
    %c32 = arith.constant 32 : index
    %c0_52 = arith.constant 0 : index
    %207 = vector.load %arg8[%c0_51, %c32, %c0_52] : memref<1x64x16xf32, #tpu.memory_space<vmem>>, vector<1x16x16xf32>
    %208 = vector.shape_cast %207 : vector<1x16x16xf32> to vector<16x16xf32>
    %209 = vector.shape_cast %206 : vector<16x16xf32> to vector<1x16x16xf32>
    tpu.vector_store %arg8[%c0_51, %c32, %c0_52], %209 {strides = array<i32>} : memref<1x64x16xf32, #tpu.memory_space<vmem>>, vector<1x16x16xf32>,
    %210 = vector.extract_strided_slice %9 {offsets = [48, 0], sizes = [16, 9], strides = [1, 1]} : vector<176x9xbf16> to vector<16x9xbf16>
    %211 = vector.extract_strided_slice %11 {offsets = [48, 0], sizes = [16, 9], strides = [1, 1]} : vector<176x9xbf16> to vector<16x9xbf16>
    %cst_53 = arith.constant dense<0.000000e+00> : vector<32x9xf32>
    %212 = tpu.matmul %5, %210, %cst_53 {dimension_numbers = #tpu.dot_dimension_numbers<[1], [0], [0], [1], [0, 0, 1, 1], [], []>} : vector<32x16xbf16>, vector<16x9xbf16>, vector<32x9xf32> -> vector<32x9xf32>
    %cst_54 = arith.constant dense<0.000000e+00> : vector<32x9xf32>
    %213 = tpu.matmul %5, %211, %cst_54 {dimension_numbers = #tpu.dot_dimension_numbers<[1], [0], [0], [1], [0, 0, 1, 1], [], []>} : vector<32x16xbf16>, vector<16x9xbf16>, vector<32x9xf32> -> vector<32x9xf32>
    %214 = vector.extract_strided_slice %212 {offsets = [0, 0], sizes = [16, 9], strides = [1, 1]} : vector<32x9xf32> to vector<16x9xf32>
    %215 = vector.extract_strided_slice %213 {offsets = [16, 0], sizes = [16, 9], strides = [1, 1]} : vector<32x9xf32> to vector<16x9xf32>
    %216 = arith.addf %214, %215 : vector<16x9xf32>
    %217 = vector.extract_strided_slice %213 {offsets = [0, 0], sizes = [16, 9], strides = [1, 1]} : vector<32x9xf32> to vector<16x9xf32>
    %218 = vector.extract_strided_slice %212 {offsets = [16, 0], sizes = [16, 9], strides = [1, 1]} : vector<32x9xf32> to vector<16x9xf32>
    %219 = arith.subf %217, %218 : vector<16x9xf32>
    %220 = vector.extract_strided_slice %9 {offsets = [112, 0], sizes = [16, 9], strides = [1, 1]} : vector<176x9xbf16> to vector<16x9xbf16>
    %221 = vector.extract_strided_slice %11 {offsets = [112, 0], sizes = [16, 9], strides = [1, 1]} : vector<176x9xbf16> to vector<16x9xbf16>
    %cst_55 = arith.constant dense<0.000000e+00> : vector<32x9xf32>
    %222 = tpu.matmul %5, %220, %cst_55 {dimension_numbers = #tpu.dot_dimension_numbers<[1], [0], [0], [1], [0, 0, 1, 1], [], []>} : vector<32x16xbf16>, vector<16x9xbf16>, vector<32x9xf32> -> vector<32x9xf32>
    %cst_56 = arith.constant dense<0.000000e+00> : vector<32x9xf32>
    %223 = tpu.matmul %5, %221, %cst_56 {dimension_numbers = #tpu.dot_dimension_numbers<[1], [0], [0], [1], [0, 0, 1, 1], [], []>} : vector<32x16xbf16>, vector<16x9xbf16>, vector<32x9xf32> -> vector<32x9xf32>
    %224 = vector.extract_strided_slice %222 {offsets = [0, 0], sizes = [16, 9], strides = [1, 1]} : vector<32x9xf32> to vector<16x9xf32>
    %225 = vector.extract_strided_slice %223 {offsets = [16, 0], sizes = [16, 9], strides = [1, 1]} : vector<32x9xf32> to vector<16x9xf32>
    %226 = arith.addf %224, %225 : vector<16x9xf32>
    %227 = vector.extract_strided_slice %223 {offsets = [0, 0], sizes = [16, 9], strides = [1, 1]} : vector<32x9xf32> to vector<16x9xf32>
    %228 = vector.extract_strided_slice %222 {offsets = [16, 0], sizes = [16, 9], strides = [1, 1]} : vector<32x9xf32> to vector<16x9xf32>
    %229 = arith.subf %227, %228 : vector<16x9xf32>
    %230 = arith.mulf %226, %226 : vector<16x9xf32>
    %231 = arith.mulf %229, %229 : vector<16x9xf32>
    %232 = arith.addf %230, %231 : vector<16x9xf32>
    %233 = arith.addf %232, %56 : vector<16x9xf32>
    %234 = tpu.reciprocal %233 {approx = true} : vector<16x9xf32> -> vector<16x9xf32>
    %235 = arith.mulf %226, %216 : vector<16x9xf32>
    %236 = arith.mulf %229, %219 : vector<16x9xf32>
    %237 = arith.addf %235, %236 : vector<16x9xf32>
    %238 = arith.mulf %237, %234 : vector<16x9xf32>
    %239 = arith.truncf %238 : vector<16x9xf32> to vector<16x9xbf16>
    %240 = arith.mulf %226, %219 : vector<16x9xf32>
    %241 = arith.mulf %229, %216 : vector<16x9xf32>
    %242 = arith.subf %240, %241 : vector<16x9xf32>
    %243 = arith.mulf %242, %234 : vector<16x9xf32>
    %244 = arith.truncf %243 : vector<16x9xf32> to vector<16x9xbf16>
    %cst_57 = arith.constant dense<0.000000e+00> : vector<32x9xf32>
    %245 = tpu.matmul %5, %239, %cst_57 {dimension_numbers = #tpu.dot_dimension_numbers<[1], [0], [0], [1], [0, 0, 1, 1], [], []>} : vector<32x16xbf16>, vector<16x9xbf16>, vector<32x9xf32> -> vector<32x9xf32>
    %cst_58 = arith.constant dense<0.000000e+00> : vector<32x9xf32>
    %246 = tpu.matmul %5, %244, %cst_58 {dimension_numbers = #tpu.dot_dimension_numbers<[1], [0], [0], [1], [0, 0, 1, 1], [], []>} : vector<32x16xbf16>, vector<16x9xbf16>, vector<32x9xf32> -> vector<32x9xf32>
    %247 = vector.extract_strided_slice %245 {offsets = [0, 0], sizes = [16, 9], strides = [1, 1]} : vector<32x9xf32> to vector<16x9xf32>
    %248 = vector.extract_strided_slice %246 {offsets = [16, 0], sizes = [16, 9], strides = [1, 1]} : vector<32x9xf32> to vector<16x9xf32>
    %249 = arith.subf %247, %248 : vector<16x9xf32>
    %250 = arith.truncf %249 : vector<16x9xf32> to vector<16x9xbf16>
    %251 = vector.extract_strided_slice %246 {offsets = [0, 0], sizes = [16, 9], strides = [1, 1]} : vector<32x9xf32> to vector<16x9xf32>
    %252 = vector.extract_strided_slice %245 {offsets = [16, 0], sizes = [16, 9], strides = [1, 1]} : vector<32x9xf32> to vector<16x9xf32>
    %253 = arith.addf %251, %252 : vector<16x9xf32>
    %254 = arith.truncf %253 : vector<16x9xf32> to vector<16x9xbf16>
    %cst_59 = arith.constant dense<0.000000e+00> : vector<16x16xf32>
    %255 = tpu.matmul %250, %6, %cst_59 {dimension_numbers = #tpu.dot_dimension_numbers<[1], [0], [0], [1], [0, 0, 1, 1], [], []>} : vector<16x9xbf16>, vector<9x16xbf16>, vector<16x16xf32> -> vector<16x16xf32>
    %cst_60 = arith.constant dense<0.000000e+00> : vector<16x16xf32>
    %256 = tpu.matmul %254, %7, %cst_60 {dimension_numbers = #tpu.dot_dimension_numbers<[1], [0], [0], [1], [0, 0, 1, 1], [], []>} : vector<16x9xbf16>, vector<9x16xbf16>, vector<16x16xf32> -> vector<16x16xf32>
    %257 = arith.addf %255, %256 : vector<16x16xf32>
    %c0_61 = arith.constant 0 : index
    %c48 = arith.constant 48 : index
    %c0_62 = arith.constant 0 : index
    %258 = vector.load %arg8[%c0_61, %c48, %c0_62] : memref<1x64x16xf32, #tpu.memory_space<vmem>>, vector<1x16x16xf32>
    %259 = vector.shape_cast %258 : vector<1x16x16xf32> to vector<16x16xf32>
    %260 = vector.shape_cast %257 : vector<16x16xf32> to vector<1x16x16xf32>
    tpu.vector_store %arg8[%c0_61, %c48, %c0_62], %260 {strides = array<i32>} : memref<1x64x16xf32, #tpu.memory_space<vmem>>, vector<1x16x16xf32>,
    return
  }
  func.func @transform_0(%arg0: i32) -> (i32, i32, i32) {
    %c0_i32 = arith.constant 0 : i32
    %c0_i32_0 = arith.constant 0 : i32
    %c0_i32_1 = arith.constant 0 : i32
    return %arg0, %c0_i32, %c0_i32_0 : i32, i32, i32
  }
  func.func @transform_1(%arg0: i32) -> (i32, i32) {
    %c0_i32 = arith.constant 0 : i32
    %c0_i32_0 = arith.constant 0 : i32
    %c0_i32_1 = arith.constant 0 : i32
    return %c0_i32, %c0_i32_0 : i32, i32
  }
  func.func @transform_2(%arg0: i32) -> (i32, i32) {
    %c0_i32 = arith.constant 0 : i32
    %c0_i32_0 = arith.constant 0 : i32
    %c0_i32_1 = arith.constant 0 : i32
    return %c0_i32, %c0_i32_0 : i32, i32
  }
  func.func @transform_3(%arg0: i32) -> (i32, i32) {
    %c0_i32 = arith.constant 0 : i32
    %c0_i32_0 = arith.constant 0 : i32
    %c0_i32_1 = arith.constant 0 : i32
    return %c0_i32, %c0_i32_0 : i32, i32
  }
  func.func @transform_4(%arg0: i32) -> (i32, i32) {
    %c0_i32 = arith.constant 0 : i32
    %c0_i32_0 = arith.constant 0 : i32
    %c0_i32_1 = arith.constant 0 : i32
    return %c0_i32, %c0_i32_0 : i32, i32
  }
  func.func @transform_5(%arg0: i32) -> (i32, i32) {
    %c0_i32 = arith.constant 0 : i32
    %c0_i32_0 = arith.constant 0 : i32
    %c0_i32_1 = arith.constant 0 : i32
    return %c0_i32, %c0_i32_0 : i32, i32
  }
  func.func @transform_6(%arg0: i32) -> (i32, i32) {
    %c0_i32 = arith.constant 0 : i32
    %c0_i32_0 = arith.constant 0 : i32
    %c0_i32_1 = arith.constant 0 : i32
    return %c0_i32, %c0_i32_0 : i32, i32
  }
  func.func @transform_7(%arg0: i32) -> (i32, i32, i32) {
    %c0_i32 = arith.constant 0 : i32
    %c0_i32_0 = arith.constant 0 : i32
    %c0_i32_1 = arith.constant 0 : i32
    return %arg0, %c0_i32, %c0_i32_0 : i32, i32, i32
  }
}

module attributes {stable_mosaic.version = 11 : i64} {
  func.func @_wiener_kernel(%arg0: i32, %arg1: memref<1x176x16xbf16, #tpu.memory_space<vmem>>, %arg2: memref<1x1xf32, #tpu.memory_space<smem>>, %arg3: memref<16x9xbf16, #tpu.memory_space<vmem>>, %arg4: memref<16x9xbf16, #tpu.memory_space<vmem>>, %arg5: memref<32x16xbf16, #tpu.memory_space<vmem>>, %arg6: memref<9x16xbf16, #tpu.memory_space<vmem>>, %arg7: memref<9x16xbf16, #tpu.memory_space<vmem>>, %arg8: memref<1x64x16xf32, #tpu.memory_space<vmem>>) attributes {dimension_semantics = [#tpu.dimension_semantics<parallel>], iteration_bounds = array<i64: 2>, scalar_prefetch = 0 : i64, scratch_operands = 0 : i64, tpu.core_type = #tpu.core_type<tc>, window_params = [{transform_indices = @transform_0, window_bounds = array<i64: 1, 176, 16>}, {transform_indices = @transform_1, window_bounds = array<i64: 1, 1>}, {pipeline_mode = #tpu.pipeline_mode<synchronous>, transform_indices = @transform_2, window_bounds = array<i64: 16, 9>}, {pipeline_mode = #tpu.pipeline_mode<synchronous>, transform_indices = @transform_3, window_bounds = array<i64: 16, 9>}, {pipeline_mode = #tpu.pipeline_mode<synchronous>, transform_indices = @transform_4, window_bounds = array<i64: 32, 16>}, {pipeline_mode = #tpu.pipeline_mode<synchronous>, transform_indices = @transform_5, window_bounds = array<i64: 9, 16>}, {pipeline_mode = #tpu.pipeline_mode<synchronous>, transform_indices = @transform_6, window_bounds = array<i64: 9, 16>}, {transform_indices = @transform_7, window_bounds = array<i64: 1, 64, 16>}]} {
    %c0 = arith.constant 0 : index
    %c0_0 = arith.constant 0 : index
    %0 = memref.load %arg2[%c0, %c0_0] : memref<1x1xf32, #tpu.memory_space<smem>>
    %c0_1 = arith.constant 0 : index
    %c0_2 = arith.constant 0 : index
    %c0_3 = arith.constant 0 : index
    %1 = vector.load %arg1[%c0_1, %c0_2, %c0_3] : memref<1x176x16xbf16, #tpu.memory_space<vmem>>, vector<1x176x16xbf16>
    %2 = vector.shape_cast %1 : vector<1x176x16xbf16> to vector<176x16xbf16>
    %c0_4 = arith.constant 0 : index
    %c0_5 = arith.constant 0 : index
    %3 = vector.load %arg3[%c0_4, %c0_5] : memref<16x9xbf16, #tpu.memory_space<vmem>>, vector<16x9xbf16>
    %c0_6 = arith.constant 0 : index
    %c0_7 = arith.constant 0 : index
    %4 = vector.load %arg4[%c0_6, %c0_7] : memref<16x9xbf16, #tpu.memory_space<vmem>>, vector<16x9xbf16>
    %c0_8 = arith.constant 0 : index
    %c0_9 = arith.constant 0 : index
    %5 = vector.load %arg5[%c0_8, %c0_9] : memref<32x16xbf16, #tpu.memory_space<vmem>>, vector<32x16xbf16>
    %c0_10 = arith.constant 0 : index
    %c0_11 = arith.constant 0 : index
    %6 = vector.load %arg6[%c0_10, %c0_11] : memref<9x16xbf16, #tpu.memory_space<vmem>>, vector<9x16xbf16>
    %c0_12 = arith.constant 0 : index
    %c0_13 = arith.constant 0 : index
    %7 = vector.load %arg7[%c0_12, %c0_13] : memref<9x16xbf16, #tpu.memory_space<vmem>>, vector<9x16xbf16>
    %cst = arith.constant dense<0.000000e+00> : vector<176x9xf32>
    %8 = tpu.matmul %2, %3, %cst {dimension_numbers = #tpu.dot_dimension_numbers<[1], [0], [0], [1], [0, 0, 1, 1], [], []>} : vector<176x16xbf16>, vector<16x9xbf16>, vector<176x9xf32> -> vector<176x9xf32>
    %9 = arith.truncf %8 : vector<176x9xf32> to vector<176x9xbf16>
    %cst_14 = arith.constant dense<0.000000e+00> : vector<176x9xf32>
    %10 = tpu.matmul %2, %4, %cst_14 {dimension_numbers = #tpu.dot_dimension_numbers<[1], [0], [0], [1], [0, 0, 1, 1], [], []>} : vector<176x16xbf16>, vector<16x9xbf16>, vector<176x9xf32> -> vector<176x9xf32>
    %11 = arith.truncf %10 : vector<176x9xf32> to vector<176x9xbf16>
    %cst_15 = arith.constant 0.000000e+00 : f32
    %12 = vector.broadcast %cst_15 : f32 to vector<16x9xf32>
    %13 = vector.extract_strided_slice %9 {offsets = [128, 0], sizes = [16, 9], strides = [1, 1]} : vector<176x9xbf16> to vector<16x9xbf16>
    %14 = vector.extract_strided_slice %11 {offsets = [128, 0], sizes = [16, 9], strides = [1, 1]} : vector<176x9xbf16> to vector<16x9xbf16>
    %cst_16 = arith.constant dense<0.000000e+00> : vector<32x9xf32>
    %15 = tpu.matmul %5, %13, %cst_16 {dimension_numbers = #tpu.dot_dimension_numbers<[1], [0], [0], [1], [0, 0, 1, 1], [], []>} : vector<32x16xbf16>, vector<16x9xbf16>, vector<32x9xf32> -> vector<32x9xf32>
    %cst_17 = arith.constant dense<0.000000e+00> : vector<32x9xf32>
    %16 = tpu.matmul %5, %14, %cst_17 {dimension_numbers = #tpu.dot_dimension_numbers<[1], [0], [0], [1], [0, 0, 1, 1], [], []>} : vector<32x16xbf16>, vector<16x9xbf16>, vector<32x9xf32> -> vector<32x9xf32>
    %17 = vector.extract_strided_slice %15 {offsets = [0, 0], sizes = [16, 9], strides = [1, 1]} : vector<32x9xf32> to vector<16x9xf32>
    %18 = vector.extract_strided_slice %16 {offsets = [16, 0], sizes = [16, 9], strides = [1, 1]} : vector<32x9xf32> to vector<16x9xf32>
    %19 = arith.addf %17, %18 : vector<16x9xf32>
    %20 = vector.extract_strided_slice %16 {offsets = [0, 0], sizes = [16, 9], strides = [1, 1]} : vector<32x9xf32> to vector<16x9xf32>
    %21 = vector.extract_strided_slice %15 {offsets = [16, 0], sizes = [16, 9], strides = [1, 1]} : vector<32x9xf32> to vector<16x9xf32>
    %22 = arith.subf %20, %21 : vector<16x9xf32>
    %23 = arith.mulf %19, %19 : vector<16x9xf32>
    %24 = arith.addf %12, %23 : vector<16x9xf32>
    %25 = arith.mulf %22, %22 : vector<16x9xf32>
    %26 = arith.addf %24, %25 : vector<16x9xf32>
    %27 = vector.extract_strided_slice %9 {offsets = [144, 0], sizes = [16, 9], strides = [1, 1]} : vector<176x9xbf16> to vector<16x9xbf16>
    %28 = vector.extract_strided_slice %11 {offsets = [144, 0], sizes = [16, 9], strides = [1, 1]} : vector<176x9xbf16> to vector<16x9xbf16>
    %cst_18 = arith.constant dense<0.000000e+00> : vector<32x9xf32>
    %29 = tpu.matmul %5, %27, %cst_18 {dimension_numbers = #tpu.dot_dimension_numbers<[1], [0], [0], [1], [0, 0, 1, 1], [], []>} : vector<32x16xbf16>, vector<16x9xbf16>, vector<32x9xf32> -> vector<32x9xf32>
    %cst_19 = arith.constant dense<0.000000e+00> : vector<32x9xf32>
    %30 = tpu.matmul %5, %28, %cst_19 {dimension_numbers = #tpu.dot_dimension_numbers<[1], [0], [0], [1], [0, 0, 1, 1], [], []>} : vector<32x16xbf16>, vector<16x9xbf16>, vector<32x9xf32> -> vector<32x9xf32>
    %31 = vector.extract_strided_slice %29 {offsets = [0, 0], sizes = [16, 9], strides = [1, 1]} : vector<32x9xf32> to vector<16x9xf32>
    %32 = vector.extract_strided_slice %30 {offsets = [16, 0], sizes = [16, 9], strides = [1, 1]} : vector<32x9xf32> to vector<16x9xf32>
    %33 = arith.addf %31, %32 : vector<16x9xf32>
    %34 = vector.extract_strided_slice %30 {offsets = [0, 0], sizes = [16, 9], strides = [1, 1]} : vector<32x9xf32> to vector<16x9xf32>
    %35 = vector.extract_strided_slice %29 {offsets = [16, 0], sizes = [16, 9], strides = [1, 1]} : vector<32x9xf32> to vector<16x9xf32>
    %36 = arith.subf %34, %35 : vector<16x9xf32>
    %37 = arith.mulf %33, %33 : vector<16x9xf32>
    %38 = arith.addf %26, %37 : vector<16x9xf32>
    %39 = arith.mulf %36, %36 : vector<16x9xf32>
    %40 = arith.addf %38, %39 : vector<16x9xf32>
    %41 = vector.extract_strided_slice %9 {offsets = [160, 0], sizes = [16, 9], strides = [1, 1]} : vector<176x9xbf16> to vector<16x9xbf16>
    %42 = vector.extract_strided_slice %11 {offsets = [160, 0], sizes = [16, 9], strides = [1, 1]} : vector<176x9xbf16> to vector<16x9xbf16>
    %cst_20 = arith.constant dense<0.000000e+00> : vector<32x9xf32>
    %43 = tpu.matmul %5, %41, %cst_20 {dimension_numbers = #tpu.dot_dimension_numbers<[1], [0], [0], [1], [0, 0, 1, 1], [], []>} : vector<32x16xbf16>, vector<16x9xbf16>, vector<32x9xf32> -> vector<32x9xf32>
    %cst_21 = arith.constant dense<0.000000e+00> : vector<32x9xf32>
    %44 = tpu.matmul %5, %42, %cst_21 {dimension_numbers = #tpu.dot_dimension_numbers<[1], [0], [0], [1], [0, 0, 1, 1], [], []>} : vector<32x16xbf16>, vector<16x9xbf16>, vector<32x9xf32> -> vector<32x9xf32>
    %45 = vector.extract_strided_slice %43 {offsets = [0, 0], sizes = [16, 9], strides = [1, 1]} : vector<32x9xf32> to vector<16x9xf32>
    %46 = vector.extract_strided_slice %44 {offsets = [16, 0], sizes = [16, 9], strides = [1, 1]} : vector<32x9xf32> to vector<16x9xf32>
    %47 = arith.addf %45, %46 : vector<16x9xf32>
    %48 = vector.extract_strided_slice %44 {offsets = [0, 0], sizes = [16, 9], strides = [1, 1]} : vector<32x9xf32> to vector<16x9xf32>
    %49 = vector.extract_strided_slice %43 {offsets = [16, 0], sizes = [16, 9], strides = [1, 1]} : vector<32x9xf32> to vector<16x9xf32>
    %50 = arith.subf %48, %49 : vector<16x9xf32>
    %51 = arith.mulf %47, %47 : vector<16x9xf32>
    %52 = arith.addf %40, %51 : vector<16x9xf32>
    %53 = arith.mulf %50, %50 : vector<16x9xf32>
    %54 = arith.addf %52, %53 : vector<16x9xf32>
    %55 = vector.broadcast %0 : f32 to vector<16x9xf32>
    %56 = arith.mulf %55, %54 : vector<16x9xf32>
    %57 = vector.extract_strided_slice %9 {offsets = [0, 0], sizes = [16, 9], strides = [1, 1]} : vector<176x9xbf16> to vector<16x9xbf16>
    %58 = vector.extract_strided_slice %11 {offsets = [0, 0], sizes = [16, 9], strides = [1, 1]} : vector<176x9xbf16> to vector<16x9xbf16>
    %cst_22 = arith.constant dense<0.000000e+00> : vector<32x9xf32>
    %59 = tpu.matmul %5, %57, %cst_22 {dimension_numbers = #tpu.dot_dimension_numbers<[1], [0], [0], [1], [0, 0, 1, 1], [], []>} : vector<32x16xbf16>, vector<16x9xbf16>, vector<32x9xf32> -> vector<32x9xf32>
    %cst_23 = arith.constant dense<0.000000e+00> : vector<32x9xf32>
    %60 = tpu.matmul %5, %58, %cst_23 {dimension_numbers = #tpu.dot_dimension_numbers<[1], [0], [0], [1], [0, 0, 1, 1], [], []>} : vector<32x16xbf16>, vector<16x9xbf16>, vector<32x9xf32> -> vector<32x9xf32>
    %61 = vector.extract_strided_slice %59 {offsets = [0, 0], sizes = [16, 9], strides = [1, 1]} : vector<32x9xf32> to vector<16x9xf32>
    %62 = vector.extract_strided_slice %60 {offsets = [16, 0], sizes = [16, 9], strides = [1, 1]} : vector<32x9xf32> to vector<16x9xf32>
    %63 = arith.addf %61, %62 : vector<16x9xf32>
    %64 = vector.extract_strided_slice %60 {offsets = [0, 0], sizes = [16, 9], strides = [1, 1]} : vector<32x9xf32> to vector<16x9xf32>
    %65 = vector.extract_strided_slice %59 {offsets = [16, 0], sizes = [16, 9], strides = [1, 1]} : vector<32x9xf32> to vector<16x9xf32>
    %66 = arith.subf %64, %65 : vector<16x9xf32>
    %67 = vector.extract_strided_slice %9 {offsets = [64, 0], sizes = [16, 9], strides = [1, 1]} : vector<176x9xbf16> to vector<16x9xbf16>
    %68 = vector.extract_strided_slice %11 {offsets = [64, 0], sizes = [16, 9], strides = [1, 1]} : vector<176x9xbf16> to vector<16x9xbf16>
    %cst_24 = arith.constant dense<0.000000e+00> : vector<32x9xf32>
    %69 = tpu.matmul %5, %67, %cst_24 {dimension_numbers = #tpu.dot_dimension_numbers<[1], [0], [0], [1], [0, 0, 1, 1], [], []>} : vector<32x16xbf16>, vector<16x9xbf16>, vector<32x9xf32> -> vector<32x9xf32>
    %cst_25 = arith.constant dense<0.000000e+00> : vector<32x9xf32>
    %70 = tpu.matmul %5, %68, %cst_25 {dimension_numbers = #tpu.dot_dimension_numbers<[1], [0], [0], [1], [0, 0, 1, 1], [], []>} : vector<32x16xbf16>, vector<16x9xbf16>, vector<32x9xf32> -> vector<32x9xf32>
    %71 = vector.extract_strided_slice %69 {offsets = [0, 0], sizes = [16, 9], strides = [1, 1]} : vector<32x9xf32> to vector<16x9xf32>
    %72 = vector.extract_strided_slice %70 {offsets = [16, 0], sizes = [16, 9], strides = [1, 1]} : vector<32x9xf32> to vector<16x9xf32>
    %73 = arith.addf %71, %72 : vector<16x9xf32>
    %74 = vector.extract_strided_slice %70 {offsets = [0, 0], sizes = [16, 9], strides = [1, 1]} : vector<32x9xf32> to vector<16x9xf32>
    %75 = vector.extract_strided_slice %69 {offsets = [16, 0], sizes = [16, 9], strides = [1, 1]} : vector<32x9xf32> to vector<16x9xf32>
    %76 = arith.subf %74, %75 : vector<16x9xf32>
    %77 = arith.mulf %73, %73 : vector<16x9xf32>
    %78 = arith.mulf %76, %76 : vector<16x9xf32>
    %79 = arith.addf %77, %78 : vector<16x9xf32>
    %80 = arith.addf %79, %56 : vector<16x9xf32>
    %81 = tpu.reciprocal %80 {approx = true} : vector<16x9xf32> -> vector<16x9xf32>
    %82 = arith.mulf %73, %63 : vector<16x9xf32>
    %83 = arith.mulf %76, %66 : vector<16x9xf32>
    %84 = arith.addf %82, %83 : vector<16x9xf32>
    %85 = arith.mulf %84, %81 : vector<16x9xf32>
    %86 = arith.truncf %85 : vector<16x9xf32> to vector<16x9xbf16>
    %87 = arith.mulf %73, %66 : vector<16x9xf32>
    %88 = arith.mulf %76, %63 : vector<16x9xf32>
    %89 = arith.subf %87, %88 : vector<16x9xf32>
    %90 = arith.mulf %89, %81 : vector<16x9xf32>
    %91 = arith.truncf %90 : vector<16x9xf32> to vector<16x9xbf16>
    %cst_26 = arith.constant dense<0.000000e+00> : vector<32x9xf32>
    %92 = tpu.matmul %5, %86, %cst_26 {dimension_numbers = #tpu.dot_dimension_numbers<[1], [0], [0], [1], [0, 0, 1, 1], [], []>} : vector<32x16xbf16>, vector<16x9xbf16>, vector<32x9xf32> -> vector<32x9xf32>
    %cst_27 = arith.constant dense<0.000000e+00> : vector<32x9xf32>
    %93 = tpu.matmul %5, %91, %cst_27 {dimension_numbers = #tpu.dot_dimension_numbers<[1], [0], [0], [1], [0, 0, 1, 1], [], []>} : vector<32x16xbf16>, vector<16x9xbf16>, vector<32x9xf32> -> vector<32x9xf32>
    %94 = vector.extract_strided_slice %92 {offsets = [0, 0], sizes = [16, 9], strides = [1, 1]} : vector<32x9xf32> to vector<16x9xf32>
    %95 = vector.extract_strided_slice %93 {offsets = [16, 0], sizes = [16, 9], strides = [1, 1]} : vector<32x9xf32> to vector<16x9xf32>
    %96 = arith.subf %94, %95 : vector<16x9xf32>
    %97 = arith.truncf %96 : vector<16x9xf32> to vector<16x9xbf16>
    %98 = vector.extract_strided_slice %93 {offsets = [0, 0], sizes = [16, 9], strides = [1, 1]} : vector<32x9xf32> to vector<16x9xf32>
    %99 = vector.extract_strided_slice %92 {offsets = [16, 0], sizes = [16, 9], strides = [1, 1]} : vector<32x9xf32> to vector<16x9xf32>
    %100 = arith.addf %98, %99 : vector<16x9xf32>
    %101 = arith.truncf %100 : vector<16x9xf32> to vector<16x9xbf16>
    %cst_28 = arith.constant dense<0.000000e+00> : vector<16x16xf32>
    %102 = tpu.matmul %97, %6, %cst_28 {dimension_numbers = #tpu.dot_dimension_numbers<[1], [0], [0], [1], [0, 0, 1, 1], [], []>} : vector<16x9xbf16>, vector<9x16xbf16>, vector<16x16xf32> -> vector<16x16xf32>
    %cst_29 = arith.constant dense<0.000000e+00> : vector<16x16xf32>
    %103 = tpu.matmul %101, %7, %cst_29 {dimension_numbers = #tpu.dot_dimension_numbers<[1], [0], [0], [1], [0, 0, 1, 1], [], []>} : vector<16x9xbf16>, vector<9x16xbf16>, vector<16x16xf32> -> vector<16x16xf32>
    %104 = arith.addf %102, %103 : vector<16x16xf32>
    %c0_30 = arith.constant 0 : index
    %c0_31 = arith.constant 0 : index
    %c0_32 = arith.constant 0 : index
    %105 = vector.load %arg8[%c0_30, %c0_31, %c0_32] : memref<1x64x16xf32, #tpu.memory_space<vmem>>, vector<1x16x16xf32>
    %106 = vector.shape_cast %105 : vector<1x16x16xf32> to vector<16x16xf32>
    %107 = vector.shape_cast %104 : vector<16x16xf32> to vector<1x16x16xf32>
    tpu.vector_store %arg8[%c0_30, %c0_31, %c0_32], %107 {strides = array<i32>} : memref<1x64x16xf32, #tpu.memory_space<vmem>>, vector<1x16x16xf32>,
    %108 = vector.extract_strided_slice %9 {offsets = [16, 0], sizes = [16, 9], strides = [1, 1]} : vector<176x9xbf16> to vector<16x9xbf16>
    %109 = vector.extract_strided_slice %11 {offsets = [16, 0], sizes = [16, 9], strides = [1, 1]} : vector<176x9xbf16> to vector<16x9xbf16>
    %cst_33 = arith.constant dense<0.000000e+00> : vector<32x9xf32>
    %110 = tpu.matmul %5, %108, %cst_33 {dimension_numbers = #tpu.dot_dimension_numbers<[1], [0], [0], [1], [0, 0, 1, 1], [], []>} : vector<32x16xbf16>, vector<16x9xbf16>, vector<32x9xf32> -> vector<32x9xf32>
    %cst_34 = arith.constant dense<0.000000e+00> : vector<32x9xf32>
    %111 = tpu.matmul %5, %109, %cst_34 {dimension_numbers = #tpu.dot_dimension_numbers<[1], [0], [0], [1], [0, 0, 1, 1], [], []>} : vector<32x16xbf16>, vector<16x9xbf16>, vector<32x9xf32> -> vector<32x9xf32>
    %112 = vector.extract_strided_slice %110 {offsets = [0, 0], sizes = [16, 9], strides = [1, 1]} : vector<32x9xf32> to vector<16x9xf32>
    %113 = vector.extract_strided_slice %111 {offsets = [16, 0], sizes = [16, 9], strides = [1, 1]} : vector<32x9xf32> to vector<16x9xf32>
    %114 = arith.addf %112, %113 : vector<16x9xf32>
    %115 = vector.extract_strided_slice %111 {offsets = [0, 0], sizes = [16, 9], strides = [1, 1]} : vector<32x9xf32> to vector<16x9xf32>
    %116 = vector.extract_strided_slice %110 {offsets = [16, 0], sizes = [16, 9], strides = [1, 1]} : vector<32x9xf32> to vector<16x9xf32>
    %117 = arith.subf %115, %116 : vector<16x9xf32>
    %118 = vector.extract_strided_slice %9 {offsets = [80, 0], sizes = [16, 9], strides = [1, 1]} : vector<176x9xbf16> to vector<16x9xbf16>
    %119 = vector.extract_strided_slice %11 {offsets = [80, 0], sizes = [16, 9], strides = [1, 1]} : vector<176x9xbf16> to vector<16x9xbf16>
    %cst_35 = arith.constant dense<0.000000e+00> : vector<32x9xf32>
    %120 = tpu.matmul %5, %118, %cst_35 {dimension_numbers = #tpu.dot_dimension_numbers<[1], [0], [0], [1], [0, 0, 1, 1], [], []>} : vector<32x16xbf16>, vector<16x9xbf16>, vector<32x9xf32> -> vector<32x9xf32>
    %cst_36 = arith.constant dense<0.000000e+00> : vector<32x9xf32>
    %121 = tpu.matmul %5, %119, %cst_36 {dimension_numbers = #tpu.dot_dimension_numbers<[1], [0], [0], [1], [0, 0, 1, 1], [], []>} : vector<32x16xbf16>, vector<16x9xbf16>, vector<32x9xf32> -> vector<32x9xf32>
    %122 = vector.extract_strided_slice %120 {offsets = [0, 0], sizes = [16, 9], strides = [1, 1]} : vector<32x9xf32> to vector<16x9xf32>
    %123 = vector.extract_strided_slice %121 {offsets = [16, 0], sizes = [16, 9], strides = [1, 1]} : vector<32x9xf32> to vector<16x9xf32>
    %124 = arith.addf %122, %123 : vector<16x9xf32>
    %125 = vector.extract_strided_slice %121 {offsets = [0, 0], sizes = [16, 9], strides = [1, 1]} : vector<32x9xf32> to vector<16x9xf32>
    %126 = vector.extract_strided_slice %120 {offsets = [16, 0], sizes = [16, 9], strides = [1, 1]} : vector<32x9xf32> to vector<16x9xf32>
    %127 = arith.subf %125, %126 : vector<16x9xf32>
    %128 = arith.mulf %124, %124 : vector<16x9xf32>
    %129 = arith.mulf %127, %127 : vector<16x9xf32>
    %130 = arith.addf %128, %129 : vector<16x9xf32>
    %131 = arith.addf %130, %56 : vector<16x9xf32>
    %132 = tpu.reciprocal %131 {approx = true} : vector<16x9xf32> -> vector<16x9xf32>
    %133 = arith.mulf %124, %114 : vector<16x9xf32>
    %134 = arith.mulf %127, %117 : vector<16x9xf32>
    %135 = arith.addf %133, %134 : vector<16x9xf32>
    %136 = arith.mulf %135, %132 : vector<16x9xf32>
    %137 = arith.truncf %136 : vector<16x9xf32> to vector<16x9xbf16>
    %138 = arith.mulf %124, %117 : vector<16x9xf32>
    %139 = arith.mulf %127, %114 : vector<16x9xf32>
    %140 = arith.subf %138, %139 : vector<16x9xf32>
    %141 = arith.mulf %140, %132 : vector<16x9xf32>
    %142 = arith.truncf %141 : vector<16x9xf32> to vector<16x9xbf16>
    %cst_37 = arith.constant dense<0.000000e+00> : vector<32x9xf32>
    %143 = tpu.matmul %5, %137, %cst_37 {dimension_numbers = #tpu.dot_dimension_numbers<[1], [0], [0], [1], [0, 0, 1, 1], [], []>} : vector<32x16xbf16>, vector<16x9xbf16>, vector<32x9xf32> -> vector<32x9xf32>
    %cst_38 = arith.constant dense<0.000000e+00> : vector<32x9xf32>
    %144 = tpu.matmul %5, %142, %cst_38 {dimension_numbers = #tpu.dot_dimension_numbers<[1], [0], [0], [1], [0, 0, 1, 1], [], []>} : vector<32x16xbf16>, vector<16x9xbf16>, vector<32x9xf32> -> vector<32x9xf32>
    %145 = vector.extract_strided_slice %143 {offsets = [0, 0], sizes = [16, 9], strides = [1, 1]} : vector<32x9xf32> to vector<16x9xf32>
    %146 = vector.extract_strided_slice %144 {offsets = [16, 0], sizes = [16, 9], strides = [1, 1]} : vector<32x9xf32> to vector<16x9xf32>
    %147 = arith.subf %145, %146 : vector<16x9xf32>
    %148 = arith.truncf %147 : vector<16x9xf32> to vector<16x9xbf16>
    %149 = vector.extract_strided_slice %144 {offsets = [0, 0], sizes = [16, 9], strides = [1, 1]} : vector<32x9xf32> to vector<16x9xf32>
    %150 = vector.extract_strided_slice %143 {offsets = [16, 0], sizes = [16, 9], strides = [1, 1]} : vector<32x9xf32> to vector<16x9xf32>
    %151 = arith.addf %149, %150 : vector<16x9xf32>
    %152 = arith.truncf %151 : vector<16x9xf32> to vector<16x9xbf16>
    %cst_39 = arith.constant dense<0.000000e+00> : vector<16x16xf32>
    %153 = tpu.matmul %148, %6, %cst_39 {dimension_numbers = #tpu.dot_dimension_numbers<[1], [0], [0], [1], [0, 0, 1, 1], [], []>} : vector<16x9xbf16>, vector<9x16xbf16>, vector<16x16xf32> -> vector<16x16xf32>
    %cst_40 = arith.constant dense<0.000000e+00> : vector<16x16xf32>
    %154 = tpu.matmul %152, %7, %cst_40 {dimension_numbers = #tpu.dot_dimension_numbers<[1], [0], [0], [1], [0, 0, 1, 1], [], []>} : vector<16x9xbf16>, vector<9x16xbf16>, vector<16x16xf32> -> vector<16x16xf32>
    %155 = arith.addf %153, %154 : vector<16x16xf32>
    %c0_41 = arith.constant 0 : index
    %c16 = arith.constant 16 : index
    %c0_42 = arith.constant 0 : index
    %156 = vector.load %arg8[%c0_41, %c16, %c0_42] : memref<1x64x16xf32, #tpu.memory_space<vmem>>, vector<1x16x16xf32>
    %157 = vector.shape_cast %156 : vector<1x16x16xf32> to vector<16x16xf32>
    %158 = vector.shape_cast %155 : vector<16x16xf32> to vector<1x16x16xf32>
    tpu.vector_store %arg8[%c0_41, %c16, %c0_42], %158 {strides = array<i32>} : memref<1x64x16xf32, #tpu.memory_space<vmem>>, vector<1x16x16xf32>,
    %159 = vector.extract_strided_slice %9 {offsets = [32, 0], sizes = [16, 9], strides = [1, 1]} : vector<176x9xbf16> to vector<16x9xbf16>
    %160 = vector.extract_strided_slice %11 {offsets = [32, 0], sizes = [16, 9], strides = [1, 1]} : vector<176x9xbf16> to vector<16x9xbf16>
    %cst_43 = arith.constant dense<0.000000e+00> : vector<32x9xf32>
    %161 = tpu.matmul %5, %159, %cst_43 {dimension_numbers = #tpu.dot_dimension_numbers<[1], [0], [0], [1], [0, 0, 1, 1], [], []>} : vector<32x16xbf16>, vector<16x9xbf16>, vector<32x9xf32> -> vector<32x9xf32>
    %cst_44 = arith.constant dense<0.000000e+00> : vector<32x9xf32>
    %162 = tpu.matmul %5, %160, %cst_44 {dimension_numbers = #tpu.dot_dimension_numbers<[1], [0], [0], [1], [0, 0, 1, 1], [], []>} : vector<32x16xbf16>, vector<16x9xbf16>, vector<32x9xf32> -> vector<32x9xf32>
    %163 = vector.extract_strided_slice %161 {offsets = [0, 0], sizes = [16, 9], strides = [1, 1]} : vector<32x9xf32> to vector<16x9xf32>
    %164 = vector.extract_strided_slice %162 {offsets = [16, 0], sizes = [16, 9], strides = [1, 1]} : vector<32x9xf32> to vector<16x9xf32>
    %165 = arith.addf %163, %164 : vector<16x9xf32>
    %166 = vector.extract_strided_slice %162 {offsets = [0, 0], sizes = [16, 9], strides = [1, 1]} : vector<32x9xf32> to vector<16x9xf32>
    %167 = vector.extract_strided_slice %161 {offsets = [16, 0], sizes = [16, 9], strides = [1, 1]} : vector<32x9xf32> to vector<16x9xf32>
    %168 = arith.subf %166, %167 : vector<16x9xf32>
    %169 = vector.extract_strided_slice %9 {offsets = [96, 0], sizes = [16, 9], strides = [1, 1]} : vector<176x9xbf16> to vector<16x9xbf16>
    %170 = vector.extract_strided_slice %11 {offsets = [96, 0], sizes = [16, 9], strides = [1, 1]} : vector<176x9xbf16> to vector<16x9xbf16>
    %cst_45 = arith.constant dense<0.000000e+00> : vector<32x9xf32>
    %171 = tpu.matmul %5, %169, %cst_45 {dimension_numbers = #tpu.dot_dimension_numbers<[1], [0], [0], [1], [0, 0, 1, 1], [], []>} : vector<32x16xbf16>, vector<16x9xbf16>, vector<32x9xf32> -> vector<32x9xf32>
    %cst_46 = arith.constant dense<0.000000e+00> : vector<32x9xf32>
    %172 = tpu.matmul %5, %170, %cst_46 {dimension_numbers = #tpu.dot_dimension_numbers<[1], [0], [0], [1], [0, 0, 1, 1], [], []>} : vector<32x16xbf16>, vector<16x9xbf16>, vector<32x9xf32> -> vector<32x9xf32>
    %173 = vector.extract_strided_slice %171 {offsets = [0, 0], sizes = [16, 9], strides = [1, 1]} : vector<32x9xf32> to vector<16x9xf32>
    %174 = vector.extract_strided_slice %172 {offsets = [16, 0], sizes = [16, 9], strides = [1, 1]} : vector<32x9xf32> to vector<16x9xf32>
    %175 = arith.addf %173, %174 : vector<16x9xf32>
    %176 = vector.extract_strided_slice %172 {offsets = [0, 0], sizes = [16, 9], strides = [1, 1]} : vector<32x9xf32> to vector<16x9xf32>
    %177 = vector.extract_strided_slice %171 {offsets = [16, 0], sizes = [16, 9], strides = [1, 1]} : vector<32x9xf32> to vector<16x9xf32>
    %178 = arith.subf %176, %177 : vector<16x9xf32>
    %179 = arith.mulf %175, %175 : vector<16x9xf32>
    %180 = arith.mulf %178, %178 : vector<16x9xf32>
    %181 = arith.addf %179, %180 : vector<16x9xf32>
    %182 = arith.addf %181, %56 : vector<16x9xf32>
    %183 = tpu.reciprocal %182 {approx = true} : vector<16x9xf32> -> vector<16x9xf32>
    %184 = arith.mulf %175, %165 : vector<16x9xf32>
    %185 = arith.mulf %178, %168 : vector<16x9xf32>
    %186 = arith.addf %184, %185 : vector<16x9xf32>
    %187 = arith.mulf %186, %183 : vector<16x9xf32>
    %188 = arith.truncf %187 : vector<16x9xf32> to vector<16x9xbf16>
    %189 = arith.mulf %175, %168 : vector<16x9xf32>
    %190 = arith.mulf %178, %165 : vector<16x9xf32>
    %191 = arith.subf %189, %190 : vector<16x9xf32>
    %192 = arith.mulf %191, %183 : vector<16x9xf32>
    %193 = arith.truncf %192 : vector<16x9xf32> to vector<16x9xbf16>
    %cst_47 = arith.constant dense<0.000000e+00> : vector<32x9xf32>
    %194 = tpu.matmul %5, %188, %cst_47 {dimension_numbers = #tpu.dot_dimension_numbers<[1], [0], [0], [1], [0, 0, 1, 1], [], []>} : vector<32x16xbf16>, vector<16x9xbf16>, vector<32x9xf32> -> vector<32x9xf32>
    %cst_48 = arith.constant dense<0.000000e+00> : vector<32x9xf32>
    %195 = tpu.matmul %5, %193, %cst_48 {dimension_numbers = #tpu.dot_dimension_numbers<[1], [0], [0], [1], [0, 0, 1, 1], [], []>} : vector<32x16xbf16>, vector<16x9xbf16>, vector<32x9xf32> -> vector<32x9xf32>
    %196 = vector.extract_strided_slice %194 {offsets = [0, 0], sizes = [16, 9], strides = [1, 1]} : vector<32x9xf32> to vector<16x9xf32>
    %197 = vector.extract_strided_slice %195 {offsets = [16, 0], sizes = [16, 9], strides = [1, 1]} : vector<32x9xf32> to vector<16x9xf32>
    %198 = arith.subf %196, %197 : vector<16x9xf32>
    %199 = arith.truncf %198 : vector<16x9xf32> to vector<16x9xbf16>
    %200 = vector.extract_strided_slice %195 {offsets = [0, 0], sizes = [16, 9], strides = [1, 1]} : vector<32x9xf32> to vector<16x9xf32>
    %201 = vector.extract_strided_slice %194 {offsets = [16, 0], sizes = [16, 9], strides = [1, 1]} : vector<32x9xf32> to vector<16x9xf32>
    %202 = arith.addf %200, %201 : vector<16x9xf32>
    %203 = arith.truncf %202 : vector<16x9xf32> to vector<16x9xbf16>
    %cst_49 = arith.constant dense<0.000000e+00> : vector<16x16xf32>
    %204 = tpu.matmul %199, %6, %cst_49 {dimension_numbers = #tpu.dot_dimension_numbers<[1], [0], [0], [1], [0, 0, 1, 1], [], []>} : vector<16x9xbf16>, vector<9x16xbf16>, vector<16x16xf32> -> vector<16x16xf32>
    %cst_50 = arith.constant dense<0.000000e+00> : vector<16x16xf32>
    %205 = tpu.matmul %203, %7, %cst_50 {dimension_numbers = #tpu.dot_dimension_numbers<[1], [0], [0], [1], [0, 0, 1, 1], [], []>} : vector<16x9xbf16>, vector<9x16xbf16>, vector<16x16xf32> -> vector<16x16xf32>
    %206 = arith.addf %204, %205 : vector<16x16xf32>
    %c0_51 = arith.constant 0 : index
    %c32 = arith.constant 32 : index
    %c0_52 = arith.constant 0 : index
    %207 = vector.load %arg8[%c0_51, %c32, %c0_52] : memref<1x64x16xf32, #tpu.memory_space<vmem>>, vector<1x16x16xf32>
    %208 = vector.shape_cast %207 : vector<1x16x16xf32> to vector<16x16xf32>
    %209 = vector.shape_cast %206 : vector<16x16xf32> to vector<1x16x16xf32>
    tpu.vector_store %arg8[%c0_51, %c32, %c0_52], %209 {strides = array<i32>} : memref<1x64x16xf32, #tpu.memory_space<vmem>>, vector<1x16x16xf32>,
    %210 = vector.extract_strided_slice %9 {offsets = [48, 0], sizes = [16, 9], strides = [1, 1]} : vector<176x9xbf16> to vector<16x9xbf16>
    %211 = vector.extract_strided_slice %11 {offsets = [48, 0], sizes = [16, 9], strides = [1, 1]} : vector<176x9xbf16> to vector<16x9xbf16>
    %cst_53 = arith.constant dense<0.000000e+00> : vector<32x9xf32>
    %212 = tpu.matmul %5, %210, %cst_53 {dimension_numbers = #tpu.dot_dimension_numbers<[1], [0], [0], [1], [0, 0, 1, 1], [], []>} : vector<32x16xbf16>, vector<16x9xbf16>, vector<32x9xf32> -> vector<32x9xf32>
    %cst_54 = arith.constant dense<0.000000e+00> : vector<32x9xf32>
    %213 = tpu.matmul %5, %211, %cst_54 {dimension_numbers = #tpu.dot_dimension_numbers<[1], [0], [0], [1], [0, 0, 1, 1], [], []>} : vector<32x16xbf16>, vector<16x9xbf16>, vector<32x9xf32> -> vector<32x9xf32>
    %214 = vector.extract_strided_slice %212 {offsets = [0, 0], sizes = [16, 9], strides = [1, 1]} : vector<32x9xf32> to vector<16x9xf32>
    %215 = vector.extract_strided_slice %213 {offsets = [16, 0], sizes = [16, 9], strides = [1, 1]} : vector<32x9xf32> to vector<16x9xf32>
    %216 = arith.addf %214, %215 : vector<16x9xf32>
    %217 = vector.extract_strided_slice %213 {offsets = [0, 0], sizes = [16, 9], strides = [1, 1]} : vector<32x9xf32> to vector<16x9xf32>
    %218 = vector.extract_strided_slice %212 {offsets = [16, 0], sizes = [16, 9], strides = [1, 1]} : vector<32x9xf32> to vector<16x9xf32>
    %219 = arith.subf %217, %218 : vector<16x9xf32>
    %220 = vector.extract_strided_slice %9 {offsets = [112, 0], sizes = [16, 9], strides = [1, 1]} : vector<176x9xbf16> to vector<16x9xbf16>
    %221 = vector.extract_strided_slice %11 {offsets = [112, 0], sizes = [16, 9], strides = [1, 1]} : vector<176x9xbf16> to vector<16x9xbf16>
    %cst_55 = arith.constant dense<0.000000e+00> : vector<32x9xf32>
    %222 = tpu.matmul %5, %220, %cst_55 {dimension_numbers = #tpu.dot_dimension_numbers<[1], [0], [0], [1], [0, 0, 1, 1], [], []>} : vector<32x16xbf16>, vector<16x9xbf16>, vector<32x9xf32> -> vector<32x9xf32>
    %cst_56 = arith.constant dense<0.000000e+00> : vector<32x9xf32>
    %223 = tpu.matmul %5, %221, %cst_56 {dimension_numbers = #tpu.dot_dimension_numbers<[1], [0], [0], [1], [0, 0, 1, 1], [], []>} : vector<32x16xbf16>, vector<16x9xbf16>, vector<32x9xf32> -> vector<32x9xf32>
    %224 = vector.extract_strided_slice %222 {offsets = [0, 0], sizes = [16, 9], strides = [1, 1]} : vector<32x9xf32> to vector<16x9xf32>
    %225 = vector.extract_strided_slice %223 {offsets = [16, 0], sizes = [16, 9], strides = [1, 1]} : vector<32x9xf32> to vector<16x9xf32>
    %226 = arith.addf %224, %225 : vector<16x9xf32>
    %227 = vector.extract_strided_slice %223 {offsets = [0, 0], sizes = [16, 9], strides = [1, 1]} : vector<32x9xf32> to vector<16x9xf32>
    %228 = vector.extract_strided_slice %222 {offsets = [16, 0], sizes = [16, 9], strides = [1, 1]} : vector<32x9xf32> to vector<16x9xf32>
    %229 = arith.subf %227, %228 : vector<16x9xf32>
    %230 = arith.mulf %226, %226 : vector<16x9xf32>
    %231 = arith.mulf %229, %229 : vector<16x9xf32>
    %232 = arith.addf %230, %231 : vector<16x9xf32>
    %233 = arith.addf %232, %56 : vector<16x9xf32>
    %234 = tpu.reciprocal %233 {approx = true} : vector<16x9xf32> -> vector<16x9xf32>
    %235 = arith.mulf %226, %216 : vector<16x9xf32>
    %236 = arith.mulf %229, %219 : vector<16x9xf32>
    %237 = arith.addf %235, %236 : vector<16x9xf32>
    %238 = arith.mulf %237, %234 : vector<16x9xf32>
    %239 = arith.truncf %238 : vector<16x9xf32> to vector<16x9xbf16>
    %240 = arith.mulf %226, %219 : vector<16x9xf32>
    %241 = arith.mulf %229, %216 : vector<16x9xf32>
    %242 = arith.subf %240, %241 : vector<16x9xf32>
    %243 = arith.mulf %242, %234 : vector<16x9xf32>
    %244 = arith.truncf %243 : vector<16x9xf32> to vector<16x9xbf16>
    %cst_57 = arith.constant dense<0.000000e+00> : vector<32x9xf32>
    %245 = tpu.matmul %5, %239, %cst_57 {dimension_numbers = #tpu.dot_dimension_numbers<[1], [0], [0], [1], [0, 0, 1, 1], [], []>} : vector<32x16xbf16>, vector<16x9xbf16>, vector<32x9xf32> -> vector<32x9xf32>
    %cst_58 = arith.constant dense<0.000000e+00> : vector<32x9xf32>
    %246 = tpu.matmul %5, %244, %cst_58 {dimension_numbers = #tpu.dot_dimension_numbers<[1], [0], [0], [1], [0, 0, 1, 1], [], []>} : vector<32x16xbf16>, vector<16x9xbf16>, vector<32x9xf32> -> vector<32x9xf32>
    %247 = vector.extract_strided_slice %245 {offsets = [0, 0], sizes = [16, 9], strides = [1, 1]} : vector<32x9xf32> to vector<16x9xf32>
    %248 = vector.extract_strided_slice %246 {offsets = [16, 0], sizes = [16, 9], strides = [1, 1]} : vector<32x9xf32> to vector<16x9xf32>
    %249 = arith.subf %247, %248 : vector<16x9xf32>
    %250 = arith.truncf %249 : vector<16x9xf32> to vector<16x9xbf16>
    %251 = vector.extract_strided_slice %246 {offsets = [0, 0], sizes = [16, 9], strides = [1, 1]} : vector<32x9xf32> to vector<16x9xf32>
    %252 = vector.extract_strided_slice %245 {offsets = [16, 0], sizes = [16, 9], strides = [1, 1]} : vector<32x9xf32> to vector<16x9xf32>
    %253 = arith.addf %251, %252 : vector<16x9xf32>
    %254 = arith.truncf %253 : vector<16x9xf32> to vector<16x9xbf16>
    %cst_59 = arith.constant dense<0.000000e+00> : vector<16x16xf32>
    %255 = tpu.matmul %250, %6, %cst_59 {dimension_numbers = #tpu.dot_dimension_numbers<[1], [0], [0], [1], [0, 0, 1, 1], [], []>} : vector<16x9xbf16>, vector<9x16xbf16>, vector<16x16xf32> -> vector<16x16xf32>
    %cst_60 = arith.constant dense<0.000000e+00> : vector<16x16xf32>
    %256 = tpu.matmul %254, %7, %cst_60 {dimension_numbers = #tpu.dot_dimension_numbers<[1], [0], [0], [1], [0, 0, 1, 1], [], []>} : vector<16x9xbf16>, vector<9x16xbf16>, vector<16x16xf32> -> vector<16x16xf32>
    %257 = arith.addf %255, %256 : vector<16x16xf32>
    %c0_61 = arith.constant 0 : index
    %c48 = arith.constant 48 : index
    %c0_62 = arith.constant 0 : index
    %258 = vector.load %arg8[%c0_61, %c48, %c0_62] : memref<1x64x16xf32, #tpu.memory_space<vmem>>, vector<1x16x16xf32>
    %259 = vector.shape_cast %258 : vector<1x16x16xf32> to vector<16x16xf32>
    %260 = vector.shape_cast %257 : vector<16x16xf32> to vector<1x16x16xf32>
    tpu.vector_store %arg8[%c0_61, %c48, %c0_62], %260 {strides = array<i32>} : memref<1x64x16xf32, #tpu.memory_space<vmem>>, vector<1x16x16xf32>,
    return
  }
  func.func @transform_0(%arg0: i32) -> (i32, i32, i32) {
    %c0_i32 = arith.constant 0 : i32
    %c0_i32_0 = arith.constant 0 : i32
    %c0_i32_1 = arith.constant 0 : i32
    return %arg0, %c0_i32, %c0_i32_0 : i32, i32, i32
  }
  func.func @transform_1(%arg0: i32) -> (i32, i32) {
    %c0_i32 = arith.constant 0 : i32
    %c0_i32_0 = arith.constant 0 : i32
    %c0_i32_1 = arith.constant 0 : i32
    return %c0_i32, %c0_i32_0 : i32, i32
  }
  func.func @transform_2(%arg0: i32) -> (i32, i32) {
    %c0_i32 = arith.constant 0 : i32
    %c0_i32_0 = arith.constant 0 : i32
    %c0_i32_1 = arith.constant 0 : i32
    return %c0_i32, %c0_i32_0 : i32, i32
  }
  func.func @transform_3(%arg0: i32) -> (i32, i32) {
    %c0_i32 = arith.constant 0 : i32
    %c0_i32_0 = arith.constant 0 : i32
    %c0_i32_1 = arith.constant 0 : i32
    return %c0_i32, %c0_i32_0 : i32, i32
  }
  func.func @transform_4(%arg0: i32) -> (i32, i32) {
    %c0_i32 = arith.constant 0 : i32
    %c0_i32_0 = arith.constant 0 : i32
    %c0_i32_1 = arith.constant 0 : i32
    return %c0_i32, %c0_i32_0 : i32, i32
  }
  func.func @transform_5(%arg0: i32) -> (i32, i32) {
    %c0_i32 = arith.constant 0 : i32
    %c0_i32_0 = arith.constant 0 : i32
    %c0_i32_1 = arith.constant 0 : i32
    return %c0_i32, %c0_i32_0 : i32, i32
  }
  func.func @transform_6(%arg0: i32) -> (i32, i32) {
    %c0_i32 = arith.constant 0 : i32
    %c0_i32_0 = arith.constant 0 : i32
    %c0_i32_1 = arith.constant 0 : i32
    return %c0_i32, %c0_i32_0 : i32, i32
  }
  func.func @transform_7(%arg0: i32) -> (i32, i32, i32) {
    %c0_i32 = arith.constant 0 : i32
    %c0_i32_0 = arith.constant 0 : i32
    %c0_i32_1 = arith.constant 0 : i32
    return %arg0, %c0_i32, %c0_i32_0 : i32, i32, i32
  }
}

</mosaic_0001>

<llo_original>
// kernel: tpu_custom_call.1
$region0: #{tpu_custom_call.1}
  #allocation0 [shape = 'u32[]', space=smem, size = 0x4, offset = 0x4, fixed_abs, tag = 'smem constant byte address 0x4 - core index']
  #allocation1 [shape = 'u32[144,128]{1,0:T(1,128)}', space=vmem, size = 0x12000, scoped, tag = 'internal scratch']
  #allocation2 [shape = 'f32[1,1]{1,0:T(1,128)S(6)}', space=smem, size = 0x200, scoped, tag = 'scoped memory for tpu_custom_call.1']
  %s0 = inlined_call_operand.vmem [shape: bf16[2,176,16], index: 0, kind: input, shape index: {}]
  %s1 = inlined_call_operand.<no memory space> [shape: f32[1,1], index: 1, kind: input, shape index: {}]
  %s2 = inlined_call_operand.vmem [shape: bf16[16,9], index: 2, kind: input, shape index: {}]
  %s3 = inlined_call_operand.vmem [shape: bf16[16,9], index: 3, kind: input, shape index: {}]
  %s4 = inlined_call_operand.vmem [shape: bf16[32,16], index: 4, kind: input, shape index: {}]
  %s5 = inlined_call_operand.vmem [shape: bf16[9,16], index: 5, kind: input, shape index: {}]
  %s6 = inlined_call_operand.vmem [shape: bf16[9,16], index: 6, kind: input, shape index: {}]
  %s7 = inlined_call_operand.vmem [shape: f32[2,64,16], index: 7, kind: output, shape index: {}]
  %s8 = sld [smem:[#allocation0]]
  $region61: #{tpu_custom_call.1} parent=0
    _
  %s10 = ssub.s32 1, %s8
  %s11 = scalar_select 0, %s10, %s8
  %12 = sst [smem:[#allocation2]] %s1
  loop: start=0, step=1, limit=4
  $region2: #{tpu_custom_call.1} parent=0 // loop_pre_header
    _
  $region3: #{tpu_custom_call.1} parent=0 // loop_header
    %s14 = sphi 0, %s18
    %p15 = scmp.ge.s32.totalorder %s14, 4
    %s24 = sphi 0, %s26
    %s27 = sphi 0, %s24
    %s28 = sphi 0, %s27
    %s44 = sphi 0, %s28
    %s48 = sphi 0, %s48
    %s50 = sphi 0, %s48
    %s51 = sphi 0, %s50
    %s65 = sphi 0, %s51
    %s69 = sphi 0, %s69
    %s71 = sphi 0, %s69
    %s72 = sphi 0, %s71
    %s86 = sphi 0, %s72
    %s90 = sphi 0, %s90
    %s92 = sphi 0, %s90
    %s93 = sphi 0, %s92
    %s107 = sphi 0, %s93
    %s111 = sphi 0, %s111
    %s113 = sphi 0, %s111
    %s114 = sphi 0, %s113
    %s128 = sphi 0, %s114
    %s132 = sphi 0, %s132
    %s134 = sphi 0, %s132
    %s135 = sphi 0, %s134
    %s149 = sphi 0, %s135
    %s153 = sphi 0, %s153
    %s155 = sphi 0, %s153
    %s156 = sphi 0, %s155
    %s170 = sphi 0, %s156
    %s176 = sphi 0, %s178
    %s179 = sphi 0, %s176
    %s180 = sphi 0, %s179
    %s196 = sphi 0, %s180
  $region4: #{tpu_custom_call.1} parent=0 // loop_header_branch
    %17 = sbr.rel (%p15) target = $region8
  $region5: #{tpu_custom_call.1} parent=0 // loop_body
    %s19 = ssub.s32 %s14, 1
    %s20 = ssub.s32 %s14, 2
    %s21 = sadd.s32 %s14, 1
    %s22 = ssub.s32 %s14, %s21
    %p23 = scmp.eq.s32.totalorder %s22, 0
    %s25 = sadd.s32 %s24, 1
    %s26 = scalar_select %p23, %s24, %s25
    %p29 = pneg %p23
    %p30 = scmp.eq.s32.totalorder %s14, 1
    %p31 = por %p29, %p30
    %p32 = scmp.ne.s32.totalorder %s24, %s27
    %p33 = scmp.eq.s32.totalorder %s14, 0
    %p34 = por %p32, %p33
    %p35 = scmp.ne.s32.totalorder %s24, %s27
    %p36 = scmp.eq.s32.totalorder %s19, 1
    %p37 = por %p35, %p36
    %p38 = scmp.ne.s32.totalorder %s27, %s28
    %p39 = scmp.eq.s32.totalorder %s19, 0
    %p40 = por %p38, %p39
    %p41 = scmp.ne.s32.totalorder %s27, %s28
    %p42 = scmp.eq.s32.totalorder %s20, 1
    %p43 = por %p41, %p42
    %p45 = scmp.ne.s32.totalorder %s28, %s44
    %p46 = scmp.eq.s32.totalorder %s20, 0
    %p47 = por %p45, %p46
    %s49 = sadd.s32 %s48, 1
    %p52 = scmp.eq.s32.totalorder %s14, 1
    %p53 = scmp.ne.s32.totalorder %s48, %s50
    %p54 = scmp.eq.s32.totalorder %s14, 0
    %p55 = por %p53, %p54
    %p56 = scmp.ne.s32.totalorder %s48, %s50
    %p57 = scmp.eq.s32.totalorder %s19, 1
    %p58 = por %p56, %p57
    %p59 = scmp.ne.s32.totalorder %s50, %s51
    %p60 = scmp.eq.s32.totalorder %s19, 0
    %p61 = por %p59, %p60
    %p62 = scmp.ne.s32.totalorder %s50, %s51
    %p63 = scmp.eq.s32.totalorder %s20, 1
    %p64 = por %p62, %p63
    %p66 = scmp.ne.s32.totalorder %s51, %s65
    %p67 = scmp.eq.s32.totalorder %s20, 0
    %p68 = por %p66, %p67
    %s70 = sadd.s32 %s69, 1
    %p73 = scmp.eq.s32.totalorder %s14, 1
    %p74 = scmp.ne.s32.totalorder %s69, %s71
    %p75 = scmp.eq.s32.totalorder %s14, 0
    %p76 = por %p74, %p75
    %p77 = scmp.ne.s32.totalorder %s69, %s71
    %p78 = scmp.eq.s32.totalorder %s19, 1
    %p79 = por %p77, %p78
    %p80 = scmp.ne.s32.totalorder %s71, %s72
    %p81 = scmp.eq.s32.totalorder %s19, 0
    %p82 = por %p80, %p81
    %p83 = scmp.ne.s32.totalorder %s71, %s72
    %p84 = scmp.eq.s32.totalorder %s20, 1
    %p85 = por %p83, %p84
    %p87 = scmp.ne.s32.totalorder %s72, %s86
    %p88 = scmp.eq.s32.totalorder %s20, 0
    %p89 = por %p87, %p88
    %s91 = sadd.s32 %s90, 1
    %p94 = scmp.eq.s32.totalorder %s14, 1
    %p95 = scmp.ne.s32.totalorder %s90, %s92
    %p96 = scmp.eq.s32.totalorder %s14, 0
    %p97 = por %p95, %p96
    %p98 = scmp.ne.s32.totalorder %s90, %s92
    %p99 = scmp.eq.s32.totalorder %s19, 1
    %p100 = por %p98, %p99
    %p101 = scmp.ne.s32.totalorder %s92, %s93
    %p102 = scmp.eq.s32.totalorder %s19, 0
    %p103 = por %p101, %p102
    %p104 = scmp.ne.s32.totalorder %s92, %s93
    %p105 = scmp.eq.s32.totalorder %s20, 1
    %p106 = por %p104, %p105
    %p108 = scmp.ne.s32.totalorder %s93, %s107
    %p109 = scmp.eq.s32.totalorder %s20, 0
    %p110 = por %p108, %p109
    %s112 = sadd.s32 %s111, 1
    %p115 = scmp.eq.s32.totalorder %s14, 1
    %p116 = scmp.ne.s32.totalorder %s111, %s113
    %p117 = scmp.eq.s32.totalorder %s14, 0
    %p118 = por %p116, %p117
    %p119 = scmp.ne.s32.totalorder %s111, %s113
    %p120 = scmp.eq.s32.totalorder %s19, 1
    %p121 = por %p119, %p120
    %p122 = scmp.ne.s32.totalorder %s113, %s114
    %p123 = scmp.eq.s32.totalorder %s19, 0
    %p124 = por %p122, %p123
    %p125 = scmp.ne.s32.totalorder %s113, %s114
    %p126 = scmp.eq.s32.totalorder %s20, 1
    %p127 = por %p125, %p126
    %p129 = scmp.ne.s32.totalorder %s114, %s128
    %p130 = scmp.eq.s32.totalorder %s20, 0
    %p131 = por %p129, %p130
    %s133 = sadd.s32 %s132, 1
    %p136 = scmp.eq.s32.totalorder %s14, 1
    %p137 = scmp.ne.s32.totalorder %s132, %s134
    %p138 = scmp.eq.s32.totalorder %s14, 0
    %p139 = por %p137, %p138
    %p140 = scmp.ne.s32.totalorder %s132, %s134
    %p141 = scmp.eq.s32.totalorder %s19, 1
    %p142 = por %p140, %p141
    %p143 = scmp.ne.s32.totalorder %s134, %s135
    %p144 = scmp.eq.s32.totalorder %s19, 0
    %p145 = por %p143, %p144
    %p146 = scmp.ne.s32.totalorder %s134, %s135
    %p147 = scmp.eq.s32.totalorder %s20, 1
    %p148 = por %p146, %p147
    %p150 = scmp.ne.s32.totalorder %s135, %s149
    %p151 = scmp.eq.s32.totalorder %s20, 0
    %p152 = por %p150, %p151
    %s154 = sadd.s32 %s153, 1
    %p157 = scmp.eq.s32.totalorder %s14, 1
    %p158 = scmp.ne.s32.totalorder %s153, %s155
    %p159 = scmp.eq.s32.totalorder %s14, 0
    %p160 = por %p158, %p159
    %p161 = scmp.ne.s32.totalorder %s153, %s155
    %p162 = scmp.eq.s32.totalorder %s19, 1
    %p163 = por %p161, %p162
    %p164 = scmp.ne.s32.totalorder %s155, %s156
    %p165 = scmp.eq.s32.totalorder %s19, 0
    %p166 = por %p164, %p165
    %p167 = scmp.ne.s32.totalorder %s155, %s156
    %p168 = scmp.eq.s32.totalorder %s20, 1
    %p169 = por %p167, %p168
    %p171 = scmp.ne.s32.totalorder %s156, %s170
    %p172 = scmp.eq.s32.totalorder %s20, 0
    %p173 = por %p171, %p172
    %s174 = ssub.s32 %s14, %s21
    %p175 = scmp.eq.s32.totalorder %s174, 0
    %s177 = sadd.s32 %s176, 1
    %s178 = scalar_select %p175, %s176, %s177
    %p181 = pneg %p175
    %p182 = scmp.eq.s32.totalorder %s14, 1
    %p183 = por %p181, %p182
    %p184 = scmp.ne.s32.totalorder %s176, %s179
    %p185 = scmp.eq.s32.totalorder %s14, 0
    %p186 = por %p184, %p185
    %p187 = scmp.ne.s32.totalorder %s176, %s179
    %p188 = scmp.eq.s32.totalorder %s19, 1
    %p189 = por %p187, %p188
    %p190 = scmp.ne.s32.totalorder %s179, %s180
    %p191 = scmp.eq.s32.totalorder %s19, 0
    %p192 = por %p190, %p191
    %p193 = scmp.ne.s32.totalorder %s179, %s180
    %p194 = scmp.eq.s32.totalorder %s20, 1
    %p195 = por %p193, %p194
    %p197 = scmp.ne.s32.totalorder %s180, %s196
    %p198 = scmp.eq.s32.totalorder %s20, 0
    %p199 = por %p197, %p198
    %p200 = scmp.le.s32.totalorder 1, %s14
    %p201 = scmp.lt.s32.totalorder %s14, 3
    %p202 = pnand %p200, %p201
    %p203 = pneg %p202
    // Predicated region
    $region9: #{tpu_custom_call.1} parent=5 // pred_check
      _
    $region10: #{tpu_custom_call.1} parent=5 // pred_check_branch
      %205 = sbr.rel (%p202) target = $region12
    $region11: #{tpu_custom_call.1} parent=5 // pred_region
      %s206 = ssub.s32 %s14, 1
      // Predicated region
      $region13: #{tpu_custom_call.1} parent=11 // pred_check
        %p207 = pneg %p61
      $region14: #{tpu_custom_call.1} parent=11 // pred_check_branch
        %209 = sbr.rel (%p207) target = $region16
      $region15: #{tpu_custom_call.1} parent=11 // pred_region
        _
      $region16: #{tpu_custom_call.1} parent=11 // pred_fallthru
        _
      // Predicated region
      $region17: #{tpu_custom_call.1} parent=11 // pred_check
        %p210 = pneg %p82
      $region18: #{tpu_custom_call.1} parent=11 // pred_check_branch
        %212 = sbr.rel (%p210) target = $region20
      $region19: #{tpu_custom_call.1} parent=11 // pred_region
        _
      $region20: #{tpu_custom_call.1} parent=11 // pred_fallthru
        _
      // Predicated region
      $region21: #{tpu_custom_call.1} parent=11 // pred_check
        %p213 = pneg %p103
      $region22: #{tpu_custom_call.1} parent=11 // pred_check_branch
        %215 = sbr.rel (%p213) target = $region24
      $region23: #{tpu_custom_call.1} parent=11 // pred_region
        _
      $region24: #{tpu_custom_call.1} parent=11 // pred_fallthru
        _
      // Predicated region
      $region25: #{tpu_custom_call.1} parent=11 // pred_check
        %p216 = pneg %p124
      $region26: #{tpu_custom_call.1} parent=11 // pred_check_branch
        %218 = sbr.rel (%p216) target = $region28
      $region27: #{tpu_custom_call.1} parent=11 // pred_region
        _
      $region28: #{tpu_custom_call.1} parent=11 // pred_fallthru
        _
      // Predicated region
      $region29: #{tpu_custom_call.1} parent=11 // pred_check
        %p219 = pneg %p145
      $region30: #{tpu_custom_call.1} parent=11 // pred_check_branch
        %221 = sbr.rel (%p219) target = $region32
      $region31: #{tpu_custom_call.1} parent=11 // pred_region
        _
      $region32: #{tpu_custom_call.1} parent=11 // pred_fallthru
        _
      // Predicated region
      $region33: #{tpu_custom_call.1} parent=11 // pred_check
        %p222 = pneg %p166
      $region34: #{tpu_custom_call.1} parent=11 // pred_check_branch
        %224 = sbr.rel (%p222) target = $region36
      $region35: #{tpu_custom_call.1} parent=11 // pred_region
        _
      $region36: #{tpu_custom_call.1} parent=11 // pred_fallthru
        _
    $region12: #{tpu_custom_call.1} parent=5 // pred_fallthru
      _
    %p225 = scmp.lt.s32.totalorder %s14, 2
    // Predicated region
    $region37: #{tpu_custom_call.1} parent=5 // pred_check
      %p226 = pneg %p225
    $region38: #{tpu_custom_call.1} parent=5 // pred_check_branch
      %228 = sbr.rel (%p226) target = $region40
    $region39: #{tpu_custom_call.1} parent=5 // pred_region
      // Predicated region
      $region41: #{tpu_custom_call.1} parent=39 // pred_check
        %p229 = pneg %p34
      $region42: #{tpu_custom_call.1} parent=39 // pred_check_branch
        %231 = sbr.rel (%p229) target = $region44
      $region43: #{tpu_custom_call.1} parent=39 // pred_region
        %p232 = scmp.lt.s32.totalorder %s14, 1
        %s233 = scalar_select %p232, %s14, 1
        %s234 = smul.addr %s233, 22
        %s235 = smul.addr %s234, 4
        %s236 = scalar_lea.vmem %s0, %s235
      $region44: #{tpu_custom_call.1} parent=39 // pred_fallthru
        _
    $region40: #{tpu_custom_call.1} parent=5 // pred_fallthru
      _
    %p237 = scmp.le.s32.totalorder 1, %s14
    %p238 = scmp.lt.s32.totalorder %s14, 3
    %p239 = pnand %p237, %p238
    %p240 = pneg %p239
    // Predicated region
    $region45: #{tpu_custom_call.1} parent=5 // pred_check
      _
    $region46: #{tpu_custom_call.1} parent=5 // pred_check_branch
      %242 = sbr.rel (%p239) target = $region48
    $region47: #{tpu_custom_call.1} parent=5 // pred_region
      %s243 = ssub.s32 %s14, 1
      %p244 = scmp.lt.s32.totalorder %s19, 1
      %s245 = scalar_select %p244, %s19, 1
      %s246 = smul.addr %s245, 22
      %s247 = smul.addr %s246, 4
      %s248 = scalar_lea.vmem %s0, %s247
      %p249 = pneg %p40
      %p250 = pneg %p37
      %p251 = pneg %p61
      %p252 = pneg %p58
      %p253 = pneg %p82
      %p254 = pneg %p79
      %p255 = pneg %p103
      %p256 = pneg %p100
      %p257 = pneg %p124
      %p258 = pneg %p121
      %p259 = pneg %p145
      %p260 = pneg %p142
      %p261 = pneg %p166
      %p262 = pneg %p163
      %p263 = pneg %p192
      %p264 = pneg %p189
      %p265 = scmp.lt.s32.totalorder %s19, 1
      %s266 = scalar_select %p265, %s19, 1
      %s267 = smul.addr %s266, 8
      %s268 = smul.addr %s267, 8
      %s269 = scalar_lea.vmem %s7, %s268
      %p270 = scmp.lt.s32.totalorder %s19, 1
      %s271 = scalar_select %p270, %s19, 1
      %s272 = smul.addr %s271, 22
      %s273 = smul.addr %s272, 4
      %s274 = scalar_lea.vmem %s0, %s273
      %p275 = scmp.lt.s32.totalorder %s19, 1
      %s276 = scalar_select %p275, %s19, 1
      %s277 = smul.addr %s276, 8
      %s278 = smul.addr %s277, 8
      %s279 = scalar_lea.vmem %s7, %s278
      %s281 = sld [smem:[#allocation2]]
      %v282 = vld [vmem:[%s274] sm:$0xf]
      %v283 = vld [vmem:[%s274 + $0x4] sm:$0xf]
      %v284 = vld [vmem:[%s274 + $0x8] sm:$0xf]
      %v285 = vld [vmem:[%s274 + $0xc] sm:$0xf]
      %v286 = vld [vmem:[%s274 + $0x10] sm:$0xf]
      %v287 = vld [vmem:[%s274 + $0x14] sm:$0xf]
      %v288 = vld [vmem:[%s274 + $0x18] sm:$0xf]
      %v289 = vld [vmem:[%s274 + $0x1c] sm:$0xf]
      %v290 = vld [vmem:[%s274 + $0x20] sm:$0xf]
      %v291 = vld [vmem:[%s274 + $0x24] sm:$0xf]
      %v292 = vld [vmem:[%s274 + $0x28] sm:$0xf]
      %v293 = vld [vmem:[%s274 + $0x2c] sm:$0xf]
      %v294 = vld [vmem:[%s274 + $0x30] sm:$0xf]
      %v295 = vld [vmem:[%s274 + $0x34] sm:$0xf]
      %v296 = vld [vmem:[%s274 + $0x38] sm:$0xf]
      %v297 = vld [vmem:[%s274 + $0x3c] sm:$0xf]
      %v298 = vld [vmem:[%s274 + $0x40] sm:$0xf]
      %v299 = vld [vmem:[%s274 + $0x44] sm:$0xf]
      %v300 = vld [vmem:[%s274 + $0x48] sm:$0xf]
      %v301 = vld [vmem:[%s274 + $0x4c] sm:$0xf]
      %v302 = vld [vmem:[%s274 + $0x50] sm:$0xf]
      %v303 = vld [vmem:[%s274 + $0x54] sm:$0xf]
      %v304 = vld [vmem:[%s2] sm:$0xf]
      %v305 = vld [vmem:[%s2 + $0x4] sm:$0xf]
      %v306 = vld [vmem:[%s3] sm:$0xf]
      %v307 = vld [vmem:[%s3 + $0x4] sm:$0xf]
      %v308 = vld [vmem:[%s4] sm:$0xf]
      %v309 = vld [vmem:[%s4 + $0x4] sm:$0xf]
      %v310 = vld [vmem:[%s4 + $0x8] sm:$0xf]
      %v311 = vld [vmem:[%s4 + $0xc] sm:$0xf]
      %v312 = vld [vmem:[%s5] sm:$0xf]
      %v313 = vld [vmem:[%s5 + $0x4] sm:$0x1]
      %v314 = vld [vmem:[%s6] sm:$0xf]
      %v315 = vld [vmem:[%s6 + $0x4] sm:$0x1]
      %v338 = vunpack.c.l.b16 %v282
      %v339 = vunpack.c.l.b16 %v283
      %v340 = vunpack.c.l.b16 %v284
      %v341 = vunpack.c.l.b16 %v285
      %v342 = vunpack.c.l.b16 %v286
      %v343 = vunpack.c.l.b16 %v287
      %v344 = vunpack.c.l.b16 %v288
      %v345 = vunpack.c.l.b16 %v289
      %v346 = vunpack.c.l.b16 %v290
      %v347 = vunpack.c.l.b16 %v291
      %v348 = vunpack.c.l.b16 %v292
      %v349 = vunpack.c.l.b16 %v293
      %v350 = vunpack.c.l.b16 %v294
      %v351 = vunpack.c.l.b16 %v295
      %v352 = vunpack.c.l.b16 %v296
      %v353 = vunpack.c.l.b16 %v297
      %v354 = vunpack.c.l.b16 %v298
      %v355 = vunpack.c.l.b16 %v299
      %v356 = vunpack.c.l.b16 %v300
      %v357 = vunpack.c.l.b16 %v301
      %v358 = vunpack.c.l.b16 %v302
      %v359 = vunpack.c.l.b16 %v303
      %v360 = vpack.c.b16 %v339, %v338
      %v361 = vpack.c.b16 %v341, %v340
      %v362 = vpack.c.b16 %v343, %v342
      %v363 = vpack.c.b16 %v345, %v344
      %v364 = vpack.c.b16 %v347, %v346
      %v365 = vpack.c.b16 %v349, %v348
      %v366 = vpack.c.b16 %v351, %v350
      %v367 = vpack.c.b16 %v353, %v352
      %v368 = vpack.c.b16 %v355, %v354
      %v369 = vpack.c.b16 %v357, %v356
      %v370 = vpack.c.b16 %v359, %v358
      %v373 = vunpack.c.l.b16 %v304
      %v374 = vunpack.c.l.b16 %v305
      %v375 = vpack.c.b16 %v374, %v373
      %vm377 = vcmask 130048
      %v379 = vsel %vm377, %v360, 0
      %v382 = vsel %vm377, %v361, 0
      %v385 = vsel %vm377, %v362, 0
      %v388 = vsel %vm377, %v363, 0
      %v391 = vsel %vm377, %v364, 0
      %v394 = vsel %vm377, %v365, 0
      %v397 = vsel %vm377, %v366, 0
      %v400 = vsel %vm377, %v367, 0
      %v403 = vsel %vm377, %v368, 0
      %v406 = vsel %vm377, %v369, 0
      %v409 = vsel %vm377, %v370, 0
      %411 = vmatprep.subr.bf16.mxu0 0
      %412 = vmatpush1.bf16.msra.mxu0 0
      %413 = vmatprep.subr.bf16.mxu0 0
      %414 = vmatpush1.bf16.msra.mxu0 0
      %415 = vmatprep.subr.bf16.mxu0 0
      %416 = vmatpush1.bf16.msra.mxu0 0
      %417 = vmatprep.subr.bf16.mxu0 0
      %418 = vmatpush1.bf16.msra.mxu0 0
      %419 = vmatprep.subr.bf16.mxu0 0
      %420 = vmatpush1.bf16.msra.mxu0 0
      %421 = vmatprep.subr.bf16.mxu0 0
      %422 = vmatpush1.bf16.msra.mxu0 0
      %423 = vmatprep.subr.bf16.mxu0 0
      %424 = vmatpush1.bf16.msra.mxu0 0
      %425 = vmatprep.subr.bf16.mxu0 0
      %426 = vmatpush1.bf16.msra.mxu0 %v375
      %427 = vmatprep.subr.bf16.mxu0 0
      %428 = vmatpush2.bf16.msra.mxu0 0
      %429 = vmatprep.subr.bf16.mxu0 0
      %430 = vmatpush2.bf16.msra.mxu0 0
      %431 = vmatprep.subr.bf16.mxu0 0
      %432 = vmatpush2.bf16.msra.mxu0 0
      %433 = vmatprep.subr.bf16.mxu0 0
      %434 = vmatpush2.bf16.msra.mxu0 0
      %435 = vmatprep.subr.bf16.mxu0 0
      %436 = vmatpush2.bf16.msra.mxu0 0
      %437 = vmatprep.subr.bf16.mxu0 0
      %438 = vmatpush2.bf16.msra.mxu0 0
      %439 = vmatprep.subr.bf16.mxu0 0
      %440 = vmatpush2.bf16.msra.mxu0 0
      %441 = vmatprep.subr.bf16.mxu0 0
      %442 = vmatpush2.bf16.msra.mxu0 0
      %443 = vmatprep.mubr.bf16.mxu0 0
      %444 = vmatmul.mubr.bf16.gmra.mxu0 %v379
      %v445 = vpop.f32.mrf.mxu0
      %v446 = vadd.f32 0.0, %v445
      %v447 = vpop.f32.mrf.mxu0
      %v448 = vpop.f32.mrf.mxu0
      %v449 = vadd.f32 0.0, %v448
      %v450 = vpop.f32.mrf.mxu0
      %451 = vmatprep.mubr.bf16.mxu0 0
      %452 = vmatmul.mubr.bf16.gmra.mxu0 %v382
      %v453 = vpop.f32.mrf.mxu0
      %v454 = vadd.f32 0.0, %v453
      %v455 = vpop.f32.mrf.mxu0
      %v456 = vpop.f32.mrf.mxu0
      %v457 = vadd.f32 0.0, %v456
      %v458 = vpop.f32.mrf.mxu0
      %459 = vmatprep.mubr.bf16.mxu0 0
      %460 = vmatmul.mubr.bf16.gmra.mxu0 %v385
      %v461 = vpop.f32.mrf.mxu0
      %v462 = vadd.f32 0.0, %v461
      %v463 = vpop.f32.mrf.mxu0
      %v464 = vpop.f32.mrf.mxu0
      %v465 = vadd.f32 0.0, %v464
      %v466 = vpop.f32.mrf.mxu0
      %467 = vmatprep.mubr.bf16.mxu0 0
      %468 = vmatmul.mubr.bf16.gmra.mxu0 %v388
      %v469 = vpop.f32.mrf.mxu0
      %v470 = vadd.f32 0.0, %v469
      %v471 = vpop.f32.mrf.mxu0
      %v472 = vpop.f32.mrf.mxu0
      %v473 = vadd.f32 0.0, %v472
      %v474 = vpop.f32.mrf.mxu0
      %475 = vmatprep.mubr.bf16.mxu0 0
      %476 = vmatmul.mubr.bf16.gmra.mxu0 %v391
      %v477 = vpop.f32.mrf.mxu0
      %v478 = vadd.f32 0.0, %v477
      %v479 = vpop.f32.mrf.mxu0
      %v480 = vpop.f32.mrf.mxu0
      %v481 = vadd.f32 0.0, %v480
      %v482 = vpop.f32.mrf.mxu0
      %483 = vmatprep.mubr.bf16.mxu0 0
      %484 = vmatmul.mubr.bf16.gmra.mxu0 %v394
      %v485 = vpop.f32.mrf.mxu0
      %v486 = vadd.f32 0.0, %v485
      %v487 = vpop.f32.mrf.mxu0
      %v488 = vpop.f32.mrf.mxu0
      %v489 = vadd.f32 0.0, %v488
      %v490 = vpop.f32.mrf.mxu0
      %491 = vmatprep.mubr.bf16.mxu0 0
      %492 = vmatmul.mubr.bf16.gmra.mxu0 %v397
      %v493 = vpop.f32.mrf.mxu0
      %v494 = vadd.f32 0.0, %v493
      %v495 = vpop.f32.mrf.mxu0
      %v496 = vpop.f32.mrf.mxu0
      %v497 = vadd.f32 0.0, %v496
      %v498 = vpop.f32.mrf.mxu0
      %499 = vmatprep.mubr.bf16.mxu0 0
      %500 = vmatmul.mubr.bf16.gmra.mxu0 %v400
      %v501 = vpop.f32.mrf.mxu0
      %v502 = vadd.f32 0.0, %v501
      %v503 = vpop.f32.mrf.mxu0
      %v504 = vpop.f32.mrf.mxu0
      %v505 = vadd.f32 0.0, %v504
      %v506 = vpop.f32.mrf.mxu0
      %507 = vmatprep.mubr.bf16.mxu0 0
      %508 = vmatmul.mubr.bf16.gmra.mxu0 %v403
      %v509 = vpop.f32.mrf.mxu0
      %v510 = vadd.f32 0.0, %v509
      %v511 = vpop.f32.mrf.mxu0
      %v512 = vpop.f32.mrf.mxu0
      %v513 = vadd.f32 0.0, %v512
      %v514 = vpop.f32.mrf.mxu0
      %515 = vmatprep.mubr.bf16.mxu0 0
      %516 = vmatmul.mubr.bf16.gmra.mxu0 %v406
      %v517 = vpop.f32.mrf.mxu0
      %v518 = vadd.f32 0.0, %v517
      %v519 = vpop.f32.mrf.mxu0
      %v520 = vpop.f32.mrf.mxu0
      %v521 = vadd.f32 0.0, %v520
      %v522 = vpop.f32.mrf.mxu0
      %523 = vmatprep.mubr.bf16.mxu0 0
      %524 = vmatmul.mubr.bf16.gmra.mxu0 %v409
      %v525 = vpop.f32.mrf.mxu0
      %v526 = vadd.f32 0.0, %v525
      %v527 = vpop.f32.mrf.mxu0
      %v528 = vpop.f32.mrf.mxu0
      %v529 = vadd.f32 0.0, %v528
      %v530 = vpop.f32.mrf.mxu0
      %531 = vdwg.mxu0
      %v532 = vpack.c.bf16 %v449, %v446
      %v533 = vpack.c.bf16 %v457, %v454
      %v534 = vpack.c.bf16 %v465, %v462
      %v535 = vpack.c.bf16 %v473, %v470
      %v536 = vpack.c.bf16 %v481, %v478
      %v537 = vpack.c.bf16 %v489, %v486
      %v538 = vpack.c.bf16 %v497, %v494
      %v539 = vpack.c.bf16 %v505, %v502
      %v540 = vpack.c.bf16 %v513, %v510
      %v541 = vpack.c.bf16 %v521, %v518
      %v542 = vpack.c.bf16 %v529, %v526
      %v545 = vunpack.c.l.b16 %v306
      %v546 = vunpack.c.l.b16 %v307
      %v547 = vpack.c.b16 %v546, %v545
      %549 = vmatprep.subr.bf16.mxu0 0
      %550 = vmatpush1.bf16.msra.mxu0 0
      %551 = vmatprep.subr.bf16.mxu0 0
      %552 = vmatpush1.bf16.msra.mxu0 0
      %553 = vmatprep.subr.bf16.mxu0 0
      %554 = vmatpush1.bf16.msra.mxu0 0
      %555 = vmatprep.subr.bf16.mxu0 0
      %556 = vmatpush1.bf16.msra.mxu0 0
      %557 = vmatprep.subr.bf16.mxu0 0
      %558 = vmatpush1.bf16.msra.mxu0 0
      %559 = vmatprep.subr.bf16.mxu0 0
      %560 = vmatpush1.bf16.msra.mxu0 0
      %561 = vmatprep.subr.bf16.mxu0 0
      %562 = vmatpush1.bf16.msra.mxu0 0
      %563 = vmatprep.subr.bf16.mxu0 0
      %564 = vmatpush1.bf16.msra.mxu0 %v547
      %565 = vmatprep.subr.bf16.mxu0 0
      %566 = vmatpush2.bf16.msra.mxu0 0
      %567 = vmatprep.subr.bf16.mxu0 0
      %568 = vmatpush2.bf16.msra.mxu0 0
      %569 = vmatprep.subr.bf16.mxu0 0
      %570 = vmatpush2.bf16.msra.mxu0 0
      %571 = vmatprep.subr.bf16.mxu0 0
      %572 = vmatpush2.bf16.msra.mxu0 0
      %573 = vmatprep.subr.bf16.mxu0 0
      %574 = vmatpush2.bf16.msra.mxu0 0
      %575 = vmatprep.subr.bf16.mxu0 0
      %576 = vmatpush2.bf16.msra.mxu0 0
      %577 = vmatprep.subr.bf16.mxu0 0
      %578 = vmatpush2.bf16.msra.mxu0 0
      %579 = vmatprep.subr.bf16.mxu0 0
      %580 = vmatpush2.bf16.msra.mxu0 0
      %581 = vmatprep.mubr.bf16.mxu0 0
      %582 = vmatmul.mubr.bf16.gmra.mxu0 %v379
      %v583 = vpop.f32.mrf.mxu0
      %v584 = vadd.f32 0.0, %v583
      %v585 = vpop.f32.mrf.mxu0
      %v586 = vpop.f32.mrf.mxu0
      %v587 = vadd.f32 0.0, %v586
      %v588 = vpop.f32.mrf.mxu0
      %589 = vmatprep.mubr.bf16.mxu0 0
      %590 = vmatmul.mubr.bf16.gmra.mxu0 %v382
      %v591 = vpop.f32.mrf.mxu0
      %v592 = vadd.f32 0.0, %v591
      %v593 = vpop.f32.mrf.mxu0
      %v594 = vpop.f32.mrf.mxu0
      %v595 = vadd.f32 0.0, %v594
      %v596 = vpop.f32.mrf.mxu0
      %597 = vmatprep.mubr.bf16.mxu0 0
      %598 = vmatmul.mubr.bf16.gmra.mxu0 %v385
      %v599 = vpop.f32.mrf.mxu0
      %v600 = vadd.f32 0.0, %v599
      %v601 = vpop.f32.mrf.mxu0
      %v602 = vpop.f32.mrf.mxu0
      %v603 = vadd.f32 0.0, %v602
      %v604 = vpop.f32.mrf.mxu0
      %605 = vmatprep.mubr.bf16.mxu0 0
      %606 = vmatmul.mubr.bf16.gmra.mxu0 %v388
      %v607 = vpop.f32.mrf.mxu0
      %v608 = vadd.f32 0.0, %v607
      %v609 = vpop.f32.mrf.mxu0
      %v610 = vpop.f32.mrf.mxu0
      %v611 = vadd.f32 0.0, %v610
      %v612 = vpop.f32.mrf.mxu0
      %613 = vmatprep.mubr.bf16.mxu0 0
      %614 = vmatmul.mubr.bf16.gmra.mxu0 %v391
      %v615 = vpop.f32.mrf.mxu0
      %v616 = vadd.f32 0.0, %v615
      %v617 = vpop.f32.mrf.mxu0
      %v618 = vpop.f32.mrf.mxu0
      %v619 = vadd.f32 0.0, %v618
      %v620 = vpop.f32.mrf.mxu0
      %621 = vmatprep.mubr.bf16.mxu0 0
      %622 = vmatmul.mubr.bf16.gmra.mxu0 %v394
      %v623 = vpop.f32.mrf.mxu0
      %v624 = vadd.f32 0.0, %v623
      %v625 = vpop.f32.mrf.mxu0
      %v626 = vpop.f32.mrf.mxu0
      %v627 = vadd.f32 0.0, %v626
      %v628 = vpop.f32.mrf.mxu0
      %629 = vmatprep.mubr.bf16.mxu0 0
      %630 = vmatmul.mubr.bf16.gmra.mxu0 %v397
      %v631 = vpop.f32.mrf.mxu0
      %v632 = vadd.f32 0.0, %v631
      %v633 = vpop.f32.mrf.mxu0
      %v634 = vpop.f32.mrf.mxu0
      %v635 = vadd.f32 0.0, %v634
      %v636 = vpop.f32.mrf.mxu0
      %637 = vmatprep.mubr.bf16.mxu0 0
      %638 = vmatmul.mubr.bf16.gmra.mxu0 %v400
      %v639 = vpop.f32.mrf.mxu0
      %v640 = vadd.f32 0.0, %v639
      %v641 = vpop.f32.mrf.mxu0
      %v642 = vpop.f32.mrf.mxu0
      %v643 = vadd.f32 0.0, %v642
      %v644 = vpop.f32.mrf.mxu0
      %645 = vmatprep.mubr.bf16.mxu0 0
      %646 = vmatmul.mubr.bf16.gmra.mxu0 %v403
      %v647 = vpop.f32.mrf.mxu0
      %v648 = vadd.f32 0.0, %v647
      %v649 = vpop.f32.mrf.mxu0
      %v650 = vpop.f32.mrf.mxu0
      %v651 = vadd.f32 0.0, %v650
      %v652 = vpop.f32.mrf.mxu0
      %653 = vmatprep.mubr.bf16.mxu0 0
      %654 = vmatmul.mubr.bf16.gmra.mxu0 %v406
      %v655 = vpop.f32.mrf.mxu0
      %v656 = vadd.f32 0.0, %v655
      %v657 = vpop.f32.mrf.mxu0
      %v658 = vpop.f32.mrf.mxu0
      %v659 = vadd.f32 0.0, %v658
      %v660 = vpop.f32.mrf.mxu0
      %661 = vmatprep.mubr.bf16.mxu0 0
      %662 = vmatmul.mubr.bf16.gmra.mxu0 %v409
      %v663 = vpop.f32.mrf.mxu0
      %v664 = vadd.f32 0.0, %v663
      %v665 = vpop.f32.mrf.mxu0
      %v666 = vpop.f32.mrf.mxu0
      %v667 = vadd.f32 0.0, %v666
      %v668 = vpop.f32.mrf.mxu0
      %669 = vdwg.mxu0
      %v670 = vpack.c.bf16 %v587, %v584
      %v671 = vpack.c.bf16 %v595, %v592
      %v672 = vpack.c.bf16 %v603, %v600
      %v673 = vpack.c.bf16 %v611, %v608
      %v674 = vpack.c.bf16 %v619, %v616
      %v675 = vpack.c.bf16 %v627, %v624
      %v676 = vpack.c.bf16 %v635, %v632
      %v677 = vpack.c.bf16 %v643, %v640
      %v678 = vpack.c.bf16 %v651, %v648
      %v679 = vpack.c.bf16 %v659, %v656
      %v680 = vpack.c.bf16 %v667, %v664
      %v685 = vunpack.c.l.b16 %v308
      %v686 = vunpack.c.l.b16 %v309
      %v687 = vunpack.c.l.b16 %v310
      %v688 = vunpack.c.l.b16 %v311
      %v689 = vpack.c.b16 %v686, %v685
      %v690 = vpack.c.b16 %v688, %v687
      %v692 = vsel %vm377, %v689, 0
      %v695 = vsel %vm377, %v690, 0
      %697 = vmatprep.subr.bf16.mxu0 0
      %698 = vmatpush1.bf16.msra.mxu0 0
      %699 = vmatprep.subr.bf16.mxu0 0
      %700 = vmatpush1.bf16.msra.mxu0 0
      %701 = vmatprep.subr.bf16.mxu0 0
      %702 = vmatpush1.bf16.msra.mxu0 0
      %703 = vmatprep.subr.bf16.mxu0 0
      %704 = vmatpush1.bf16.msra.mxu0 0
      %705 = vmatprep.subr.bf16.mxu0 0
      %706 = vmatpush1.bf16.msra.mxu0 0
      %707 = vmatprep.subr.bf16.mxu0 0
      %708 = vmatpush1.bf16.msra.mxu0 0
      %709 = vmatprep.subr.bf16.mxu0 0
      %710 = vmatpush1.bf16.msra.mxu0 0
      %711 = vmatprep.subr.bf16.mxu0 0
      %712 = vmatpush1.bf16.msra.mxu0 %v540
      %713 = vmatprep.subr.bf16.mxu0 0
      %714 = vmatpush2.bf16.msra.mxu0 0
      %715 = vmatprep.subr.bf16.mxu0 0
      %716 = vmatpush2.bf16.msra.mxu0 0
      %717 = vmatprep.subr.bf16.mxu0 0
      %718 = vmatpush2.bf16.msra.mxu0 0
      %719 = vmatprep.subr.bf16.mxu0 0
      %720 = vmatpush2.bf16.msra.mxu0 0
      %721 = vmatprep.subr.bf16.mxu0 0
      %722 = vmatpush2.bf16.msra.mxu0 0
      %723 = vmatprep.subr.bf16.mxu0 0
      %724 = vmatpush2.bf16.msra.mxu0 0
      %725 = vmatprep.subr.bf16.mxu0 0
      %726 = vmatpush2.bf16.msra.mxu0 0
      %727 = vmatprep.subr.bf16.mxu0 0
      %728 = vmatpush2.bf16.msra.mxu0 0
      %729 = vmatprep.mubr.bf16.mxu0 0
      %730 = vmatmul.mubr.bf16.gmra.mxu0 %v692
      %v731 = vpop.f32.mrf.mxu0
      %v732 = vadd.f32 0.0, %v731
      %v733 = vpop.f32.mrf.mxu0
      %v734 = vpop.f32.mrf.mxu0
      %v735 = vadd.f32 0.0, %v734
      %v736 = vpop.f32.mrf.mxu0
      %737 = vmatprep.mubr.bf16.mxu0 0
      %738 = vmatmul.mubr.bf16.gmra.mxu0 %v695
      %v739 = vpop.f32.mrf.mxu0
      %v740 = vadd.f32 0.0, %v739
      %v741 = vpop.f32.mrf.mxu0
      %v742 = vpop.f32.mrf.mxu0
      %v743 = vadd.f32 0.0, %v742
      %v744 = vpop.f32.mrf.mxu0
      %745 = vdwg.mxu0
      %746 = vmatprep.subr.bf16.mxu0 0
      %747 = vmatpush1.bf16.msra.mxu0 0
      %748 = vmatprep.subr.bf16.mxu0 0
      %749 = vmatpush1.bf16.msra.mxu0 0
      %750 = vmatprep.subr.bf16.mxu0 0
      %751 = vmatpush1.bf16.msra.mxu0 0
      %752 = vmatprep.subr.bf16.mxu0 0
      %753 = vmatpush1.bf16.msra.mxu0 0
      %754 = vmatprep.subr.bf16.mxu0 0
      %755 = vmatpush1.bf16.msra.mxu0 0
      %756 = vmatprep.subr.bf16.mxu0 0
      %757 = vmatpush1.bf16.msra.mxu0 0
      %758 = vmatprep.subr.bf16.mxu0 0
      %759 = vmatpush1.bf16.msra.mxu0 0
      %760 = vmatprep.subr.bf16.mxu0 0
      %761 = vmatpush1.bf16.msra.mxu0 %v678
      %762 = vmatprep.subr.bf16.mxu0 0
      %763 = vmatpush2.bf16.msra.mxu0 0
      %764 = vmatprep.subr.bf16.mxu0 0
      %765 = vmatpush2.bf16.msra.mxu0 0
      %766 = vmatprep.subr.bf16.mxu0 0
      %767 = vmatpush2.bf16.msra.mxu0 0
      %768 = vmatprep.subr.bf16.mxu0 0
      %769 = vmatpush2.bf16.msra.mxu0 0
      %770 = vmatprep.subr.bf16.mxu0 0
      %771 = vmatpush2.bf16.msra.mxu0 0
      %772 = vmatprep.subr.bf16.mxu0 0
      %773 = vmatpush2.bf16.msra.mxu0 0
      %774 = vmatprep.subr.bf16.mxu0 0
      %775 = vmatpush2.bf16.msra.mxu0 0
      %776 = vmatprep.subr.bf16.mxu0 0
      %777 = vmatpush2.bf16.msra.mxu0 0
      %778 = vmatprep.mubr.bf16.mxu0 0
      %779 = vmatmul.mubr.bf16.gmra.mxu0 %v692
      %v780 = vpop.f32.mrf.mxu0
      %v781 = vadd.f32 0.0, %v780
      %v782 = vpop.f32.mrf.mxu0
      %v783 = vpop.f32.mrf.mxu0
      %v784 = vadd.f32 0.0, %v783
      %v785 = vpop.f32.mrf.mxu0
      %786 = vmatprep.mubr.bf16.mxu0 0
      %787 = vmatmul.mubr.bf16.gmra.mxu0 %v695
      %v788 = vpop.f32.mrf.mxu0
      %v789 = vadd.f32 0.0, %v788
      %v790 = vpop.f32.mrf.mxu0
      %v791 = vpop.f32.mrf.mxu0
      %v792 = vadd.f32 0.0, %v791
      %v793 = vpop.f32.mrf.mxu0
      %794 = vdwg.mxu0
      %v795 = vadd.f32 %v732, %v789
      %v796 = vadd.f32 %v735, %v792
      %v797 = vsub.f32 %v781, %v740
      %v798 = vsub.f32 %v784, %v743
      %v799 = vmul.f32 %v795, %v795
      %v800 = vmul.f32 %v796, %v796
      %v801 = vadd.f32 %v799, 0.0
      %v802 = vadd.f32 %v800, 0.0
      %v803 = vmul.f32 %v797, %v797
      %v804 = vmul.f32 %v798, %v798
      %v805 = vadd.f32 %v801, %v803
      %v806 = vadd.f32 %v802, %v804
      %807 = vmatprep.subr.bf16.mxu0 0
      %808 = vmatpush1.bf16.msra.mxu0 0
      %809 = vmatprep.subr.bf16.mxu0 0
      %810 = vmatpush1.bf16.msra.mxu0 0
      %811 = vmatprep.subr.bf16.mxu0 0
      %812 = vmatpush1.bf16.msra.mxu0 0
      %813 = vmatprep.subr.bf16.mxu0 0
      %814 = vmatpush1.bf16.msra.mxu0 0
      %815 = vmatprep.subr.bf16.mxu0 0
      %816 = vmatpush1.bf16.msra.mxu0 0
      %817 = vmatprep.subr.bf16.mxu0 0
      %818 = vmatpush1.bf16.msra.mxu0 0
      %819 = vmatprep.subr.bf16.mxu0 0
      %820 = vmatpush1.bf16.msra.mxu0 0
      %821 = vmatprep.subr.bf16.mxu0 0
      %822 = vmatpush1.bf16.msra.mxu0 %v541
      %823 = vmatprep.subr.bf16.mxu0 0
      %824 = vmatpush2.bf16.msra.mxu0 0
      %825 = vmatprep.subr.bf16.mxu0 0
      %826 = vmatpush2.bf16.msra.mxu0 0
      %827 = vmatprep.subr.bf16.mxu0 0
      %828 = vmatpush2.bf16.msra.mxu0 0
      %829 = vmatprep.subr.bf16.mxu0 0
      %830 = vmatpush2.bf16.msra.mxu0 0
      %831 = vmatprep.subr.bf16.mxu0 0
      %832 = vmatpush2.bf16.msra.mxu0 0
      %833 = vmatprep.subr.bf16.mxu0 0
      %834 = vmatpush2.bf16.msra.mxu0 0
      %835 = vmatprep.subr.bf16.mxu0 0
      %836 = vmatpush2.bf16.msra.mxu0 0
      %837 = vmatprep.subr.bf16.mxu0 0
      %838 = vmatpush2.bf16.msra.mxu0 0
      %839 = vmatprep.mubr.bf16.mxu0 0
      %840 = vmatmul.mubr.bf16.gmra.mxu0 %v692
      %v841 = vpop.f32.mrf.mxu0
      %v842 = vadd.f32 0.0, %v841
      %v843 = vpop.f32.mrf.mxu0
      %v844 = vpop.f32.mrf.mxu0
      %v845 = vadd.f32 0.0, %v844
      %v846 = vpop.f32.mrf.mxu0
      %847 = vmatprep.mubr.bf16.mxu0 0
      %848 = vmatmul.mubr.bf16.gmra.mxu0 %v695
      %v849 = vpop.f32.mrf.mxu0
      %v850 = vadd.f32 0.0, %v849
      %v851 = vpop.f32.mrf.mxu0
      %v852 = vpop.f32.mrf.mxu0
      %v853 = vadd.f32 0.0, %v852
      %v854 = vpop.f32.mrf.mxu0
      %855 = vdwg.mxu0
      %856 = vmatprep.subr.bf16.mxu0 0
      %857 = vmatpush1.bf16.msra.mxu0 0
      %858 = vmatprep.subr.bf16.mxu0 0
      %859 = vmatpush1.bf16.msra.mxu0 0
      %860 = vmatprep.subr.bf16.mxu0 0
      %861 = vmatpush1.bf16.msra.mxu0 0
      %862 = vmatprep.subr.bf16.mxu0 0
      %863 = vmatpush1.bf16.msra.mxu0 0
      %864 = vmatprep.subr.bf16.mxu0 0
      %865 = vmatpush1.bf16.msra.mxu0 0
      %866 = vmatprep.subr.bf16.mxu0 0
      %867 = vmatpush1.bf16.msra.mxu0 0
      %868 = vmatprep.subr.bf16.mxu0 0
      %869 = vmatpush1.bf16.msra.mxu0 0
      %870 = vmatprep.subr.bf16.mxu0 0
      %871 = vmatpush1.bf16.msra.mxu0 %v679
      %872 = vmatprep.subr.bf16.mxu0 0
      %873 = vmatpush2.bf16.msra.mxu0 0
      %874 = vmatprep.subr.bf16.mxu0 0
      %875 = vmatpush2.bf16.msra.mxu0 0
      %876 = vmatprep.subr.bf16.mxu0 0
      %877 = vmatpush2.bf16.msra.mxu0 0
      %878 = vmatprep.subr.bf16.mxu0 0
      %879 = vmatpush2.bf16.msra.mxu0 0
      %880 = vmatprep.subr.bf16.mxu0 0
      %881 = vmatpush2.bf16.msra.mxu0 0
      %882 = vmatprep.subr.bf16.mxu0 0
      %883 = vmatpush2.bf16.msra.mxu0 0
      %884 = vmatprep.subr.bf16.mxu0 0
      %885 = vmatpush2.bf16.msra.mxu0 0
      %886 = vmatprep.subr.bf16.mxu0 0
      %887 = vmatpush2.bf16.msra.mxu0 0
      %888 = vmatprep.mubr.bf16.mxu0 0
      %889 = vmatmul.mubr.bf16.gmra.mxu0 %v692
      %v890 = vpop.f32.mrf.mxu0
      %v891 = vadd.f32 0.0, %v890
      %v892 = vpop.f32.mrf.mxu0
      %v893 = vpop.f32.mrf.mxu0
      %v894 = vadd.f32 0.0, %v893
      %v895 = vpop.f32.mrf.mxu0
      %896 = vmatprep.mubr.bf16.mxu0 0
      %897 = vmatmul.mubr.bf16.gmra.mxu0 %v695
      %v898 = vpop.f32.mrf.mxu0
      %v899 = vadd.f32 0.0, %v898
      %v900 = vpop.f32.mrf.mxu0
      %v901 = vpop.f32.mrf.mxu0
      %v902 = vadd.f32 0.0, %v901
      %v903 = vpop.f32.mrf.mxu0
      %904 = vdwg.mxu0
      %v905 = vadd.f32 %v842, %v899
      %v906 = vadd.f32 %v845, %v902
      %v907 = vsub.f32 %v891, %v850
      %v908 = vsub.f32 %v894, %v853
      %v909 = vmul.f32 %v905, %v905
      %v910 = vmul.f32 %v906, %v906
      %v911 = vadd.f32 %v805, %v909
      %v912 = vadd.f32 %v806, %v910
      %v913 = vmul.f32 %v907, %v907
      %v914 = vmul.f32 %v908, %v908
      %v915 = vadd.f32 %v911, %v913
      %v916 = vadd.f32 %v912, %v914
      %917 = vmatprep.subr.bf16.mxu0 0
      %918 = vmatpush1.bf16.msra.mxu0 0
      %919 = vmatprep.subr.bf16.mxu0 0
      %920 = vmatpush1.bf16.msra.mxu0 0
      %921 = vmatprep.subr.bf16.mxu0 0
      %922 = vmatpush1.bf16.msra.mxu0 0
      %923 = vmatprep.subr.bf16.mxu0 0
      %924 = vmatpush1.bf16.msra.mxu0 0
      %925 = vmatprep.subr.bf16.mxu0 0
      %926 = vmatpush1.bf16.msra.mxu0 0
      %927 = vmatprep.subr.bf16.mxu0 0
      %928 = vmatpush1.bf16.msra.mxu0 0
      %929 = vmatprep.subr.bf16.mxu0 0
      %930 = vmatpush1.bf16.msra.mxu0 0
      %931 = vmatprep.subr.bf16.mxu0 0
      %932 = vmatpush1.bf16.msra.mxu0 %v542
      %933 = vmatprep.subr.bf16.mxu0 0
      %934 = vmatpush2.bf16.msra.mxu0 0
      %935 = vmatprep.subr.bf16.mxu0 0
      %936 = vmatpush2.bf16.msra.mxu0 0
      %937 = vmatprep.subr.bf16.mxu0 0
      %938 = vmatpush2.bf16.msra.mxu0 0
      %939 = vmatprep.subr.bf16.mxu0 0
      %940 = vmatpush2.bf16.msra.mxu0 0
      %941 = vmatprep.subr.bf16.mxu0 0
      %942 = vmatpush2.bf16.msra.mxu0 0
      %943 = vmatprep.subr.bf16.mxu0 0
      %944 = vmatpush2.bf16.msra.mxu0 0
      %945 = vmatprep.subr.bf16.mxu0 0
      %946 = vmatpush2.bf16.msra.mxu0 0
      %947 = vmatprep.subr.bf16.mxu0 0
      %948 = vmatpush2.bf16.msra.mxu0 0
      %949 = vmatprep.mubr.bf16.mxu0 0
      %950 = vmatmul.mubr.bf16.gmra.mxu0 %v692
      %v951 = vpop.f32.mrf.mxu0
      %v952 = vadd.f32 0.0, %v951
      %v953 = vpop.f32.mrf.mxu0
      %v954 = vpop.f32.mrf.mxu0
      %v955 = vadd.f32 0.0, %v954
      %v956 = vpop.f32.mrf.mxu0
      %957 = vmatprep.mubr.bf16.mxu0 0
      %958 = vmatmul.mubr.bf16.gmra.mxu0 %v695
      %v959 = vpop.f32.mrf.mxu0
      %v960 = vadd.f32 0.0, %v959
      %v961 = vpop.f32.mrf.mxu0
      %v962 = vpop.f32.mrf.mxu0
      %v963 = vadd.f32 0.0, %v962
      %v964 = vpop.f32.mrf.mxu0
      %965 = vdwg.mxu0
      %966 = vmatprep.subr.bf16.mxu0 0
      %967 = vmatpush1.bf16.msra.mxu0 0
      %968 = vmatprep.subr.bf16.mxu0 0
      %969 = vmatpush1.bf16.msra.mxu0 0
      %970 = vmatprep.subr.bf16.mxu0 0
      %971 = vmatpush1.bf16.msra.mxu0 0
      %972 = vmatprep.subr.bf16.mxu0 0
      %973 = vmatpush1.bf16.msra.mxu0 0
      %974 = vmatprep.subr.bf16.mxu0 0
      %975 = vmatpush1.bf16.msra.mxu0 0
      %976 = vmatprep.subr.bf16.mxu0 0
      %977 = vmatpush1.bf16.msra.mxu0 0
      %978 = vmatprep.subr.bf16.mxu0 0
      %979 = vmatpush1.bf16.msra.mxu0 0
      %980 = vmatprep.subr.bf16.mxu0 0
      %981 = vmatpush1.bf16.msra.mxu0 %v680
      %982 = vmatprep.subr.bf16.mxu0 0
      %983 = vmatpush2.bf16.msra.mxu0 0
      %984 = vmatprep.subr.bf16.mxu0 0
      %985 = vmatpush2.bf16.msra.mxu0 0
      %986 = vmatprep.subr.bf16.mxu0 0
      %987 = vmatpush2.bf16.msra.mxu0 0
      %988 = vmatprep.subr.bf16.mxu0 0
      %989 = vmatpush2.bf16.msra.mxu0 0
      %990 = vmatprep.subr.bf16.mxu0 0
      %991 = vmatpush2.bf16.msra.mxu0 0
      %992 = vmatprep.subr.bf16.mxu0 0
      %993 = vmatpush2.bf16.msra.mxu0 0
      %994 = vmatprep.subr.bf16.mxu0 0
      %995 = vmatpush2.bf16.msra.mxu0 0
      %996 = vmatprep.subr.bf16.mxu0 0
      %997 = vmatpush2.bf16.msra.mxu0 0
      %998 = vmatprep.mubr.bf16.mxu0 0
      %999 = vmatmul.mubr.bf16.gmra.mxu0 %v692
      %v1000 = vpop.f32.mrf.mxu0
      %v1001 = vadd.f32 0.0, %v1000
      %v1002 = vpop.f32.mrf.mxu0
      %v1003 = vpop.f32.mrf.mxu0
      %v1004 = vadd.f32 0.0, %v1003
      %v1005 = vpop.f32.mrf.mxu0
      %1006 = vmatprep.mubr.bf16.mxu0 0
      %1007 = vmatmul.mubr.bf16.gmra.mxu0 %v695
      %v1008 = vpop.f32.mrf.mxu0
      %v1009 = vadd.f32 0.0, %v1008
      %v1010 = vpop.f32.mrf.mxu0
      %v1011 = vpop.f32.mrf.mxu0
      %v1012 = vadd.f32 0.0, %v1011
      %v1013 = vpop.f32.mrf.mxu0
      %1014 = vdwg.mxu0
      %v1015 = vadd.f32 %v952, %v1009
      %v1016 = vadd.f32 %v955, %v1012
      %v1017 = vsub.f32 %v1001, %v960
      %v1018 = vsub.f32 %v1004, %v963
      %v1019 = vmul.f32 %v1015, %v1015
      %v1020 = vmul.f32 %v1016, %v1016
      %v1021 = vadd.f32 %v915, %v1019
      %v1022 = vadd.f32 %v916, %v1020
      %v1023 = vmul.f32 %v1017, %v1017
      %v1024 = vmul.f32 %v1018, %v1018
      %v1025 = vadd.f32 %v1021, %v1023
      %v1026 = vadd.f32 %v1022, %v1024
      %v1027 = vstv %s281
      %v1028 = vmul.f32 %v1027, %v1025
      %v1029 = vmul.f32 %v1027, %v1026
      %1030 = vmatprep.subr.bf16.mxu0 0
      %1031 = vmatpush1.bf16.msra.mxu0 0
      %1032 = vmatprep.subr.bf16.mxu0 0
      %1033 = vmatpush1.bf16.msra.mxu0 0
      %1034 = vmatprep.subr.bf16.mxu0 0
      %1035 = vmatpush1.bf16.msra.mxu0 0
      %1036 = vmatprep.subr.bf16.mxu0 0
      %1037 = vmatpush1.bf16.msra.mxu0 0
      %1038 = vmatprep.subr.bf16.mxu0 0
      %1039 = vmatpush1.bf16.msra.mxu0 0
      %1040 = vmatprep.subr.bf16.mxu0 0
      %1041 = vmatpush1.bf16.msra.mxu0 0
      %1042 = vmatprep.subr.bf16.mxu0 0
      %1043 = vmatpush1.bf16.msra.mxu0 0
      %1044 = vmatprep.subr.bf16.mxu0 0
      %1045 = vmatpush1.bf16.msra.mxu0 %v532
      %1046 = vmatprep.subr.bf16.mxu0 0
      %1047 = vmatpush2.bf16.msra.mxu0 0
      %1048 = vmatprep.subr.bf16.mxu0 0
      %1049 = vmatpush2.bf16.msra.mxu0 0
      %1050 = vmatprep.subr.bf16.mxu0 0
      %1051 = vmatpush2.bf16.msra.mxu0 0
      %1052 = vmatprep.subr.bf16.mxu0 0
      %1053 = vmatpush2.bf16.msra.mxu0 0
      %1054 = vmatprep.subr.bf16.mxu0 0
      %1055 = vmatpush2.bf16.msra.mxu0 0
      %1056 = vmatprep.subr.bf16.mxu0 0
      %1057 = vmatpush2.bf16.msra.mxu0 0
      %1058 = vmatprep.subr.bf16.mxu0 0
      %1059 = vmatpush2.bf16.msra.mxu0 0
      %1060 = vmatprep.subr.bf16.mxu0 0
      %1061 = vmatpush2.bf16.msra.mxu0 0
      %1062 = vmatprep.mubr.bf16.mxu0 0
      %1063 = vmatmul.mubr.bf16.gmra.mxu0 %v692
      %v1064 = vpop.f32.mrf.mxu0
      %v1065 = vadd.f32 0.0, %v1064
      %v1066 = vpop.f32.mrf.mxu0
      %v1067 = vpop.f32.mrf.mxu0
      %v1068 = vadd.f32 0.0, %v1067
      %v1069 = vpop.f32.mrf.mxu0
      %1070 = vmatprep.mubr.bf16.mxu0 0
      %1071 = vmatmul.mubr.bf16.gmra.mxu0 %v695
      %v1072 = vpop.f32.mrf.mxu0
      %v1073 = vadd.f32 0.0, %v1072
      %v1074 = vpop.f32.mrf.mxu0
      %v1075 = vpop.f32.mrf.mxu0
      %v1076 = vadd.f32 0.0, %v1075
      %v1077 = vpop.f32.mrf.mxu0
      %1078 = vdwg.mxu0
      %1079 = vmatprep.subr.bf16.mxu0 0
      %1080 = vmatpush1.bf16.msra.mxu0 0
      %1081 = vmatprep.subr.bf16.mxu0 0
      %1082 = vmatpush1.bf16.msra.mxu0 0
      %1083 = vmatprep.subr.bf16.mxu0 0
      %1084 = vmatpush1.bf16.msra.mxu0 0
      %1085 = vmatprep.subr.bf16.mxu0 0
      %1086 = vmatpush1.bf16.msra.mxu0 0
      %1087 = vmatprep.subr.bf16.mxu0 0
      %1088 = vmatpush1.bf16.msra.mxu0 0
      %1089 = vmatprep.subr.bf16.mxu0 0
      %1090 = vmatpush1.bf16.msra.mxu0 0
      %1091 = vmatprep.subr.bf16.mxu0 0
      %1092 = vmatpush1.bf16.msra.mxu0 0
      %1093 = vmatprep.subr.bf16.mxu0 0
      %1094 = vmatpush1.bf16.msra.mxu0 %v670
      %1095 = vmatprep.subr.bf16.mxu0 0
      %1096 = vmatpush2.bf16.msra.mxu0 0
      %1097 = vmatprep.subr.bf16.mxu0 0
      %1098 = vmatpush2.bf16.msra.mxu0 0
      %1099 = vmatprep.subr.bf16.mxu0 0
      %1100 = vmatpush2.bf16.msra.mxu0 0
      %1101 = vmatprep.subr.bf16.mxu0 0
      %1102 = vmatpush2.bf16.msra.mxu0 0
      %1103 = vmatprep.subr.bf16.mxu0 0
      %1104 = vmatpush2.bf16.msra.mxu0 0
      %1105 = vmatprep.subr.bf16.mxu0 0
      %1106 = vmatpush2.bf16.msra.mxu0 0
      %1107 = vmatprep.subr.bf16.mxu0 0
      %1108 = vmatpush2.bf16.msra.mxu0 0
      %1109 = vmatprep.subr.bf16.mxu0 0
      %1110 = vmatpush2.bf16.msra.mxu0 0
      %1111 = vmatprep.mubr.bf16.mxu0 0
      %1112 = vmatmul.mubr.bf16.gmra.mxu0 %v692
      %v1113 = vpop.f32.mrf.mxu0
      %v1114 = vadd.f32 0.0, %v1113
      %v1115 = vpop.f32.mrf.mxu0
      %v1116 = vpop.f32.mrf.mxu0
      %v1117 = vadd.f32 0.0, %v1116
      %v1118 = vpop.f32.mrf.mxu0
      %1119 = vmatprep.mubr.bf16.mxu0 0
      %1120 = vmatmul.mubr.bf16.gmra.mxu0 %v695
      %v1121 = vpop.f32.mrf.mxu0
      %v1122 = vadd.f32 0.0, %v1121
      %v1123 = vpop.f32.mrf.mxu0
      %v1124 = vpop.f32.mrf.mxu0
      %v1125 = vadd.f32 0.0, %v1124
      %v1126 = vpop.f32.mrf.mxu0
      %1127 = vdwg.mxu0
      %v1128 = vadd.f32 %v1065, %v1122
      %v1129 = vadd.f32 %v1068, %v1125
      %v1130 = vsub.f32 %v1114, %v1073
      %v1131 = vsub.f32 %v1117, %v1076
      %1132 = vmatprep.subr.bf16.mxu0 0
      %1133 = vmatpush1.bf16.msra.mxu0 0
      %1134 = vmatprep.subr.bf16.mxu0 0
      %1135 = vmatpush1.bf16.msra.mxu0 0
      %1136 = vmatprep.subr.bf16.mxu0 0
      %1137 = vmatpush1.bf16.msra.mxu0 0
      %1138 = vmatprep.subr.bf16.mxu0 0
      %1139 = vmatpush1.bf16.msra.mxu0 0
      %1140 = vmatprep.subr.bf16.mxu0 0
      %1141 = vmatpush1.bf16.msra.mxu0 0
      %1142 = vmatprep.subr.bf16.mxu0 0
      %1143 = vmatpush1.bf16.msra.mxu0 0
      %1144 = vmatprep.subr.bf16.mxu0 0
      %1145 = vmatpush1.bf16.msra.mxu0 0
      %1146 = vmatprep.subr.bf16.mxu0 0
      %1147 = vmatpush1.bf16.msra.mxu0 %v536
      %1148 = vmatprep.subr.bf16.mxu0 0
      %1149 = vmatpush2.bf16.msra.mxu0 0
      %1150 = vmatprep.subr.bf16.mxu0 0
      %1151 = vmatpush2.bf16.msra.mxu0 0
      %1152 = vmatprep.subr.bf16.mxu0 0
      %1153 = vmatpush2.bf16.msra.mxu0 0
      %1154 = vmatprep.subr.bf16.mxu0 0
      %1155 = vmatpush2.bf16.msra.mxu0 0
      %1156 = vmatprep.subr.bf16.mxu0 0
      %1157 = vmatpush2.bf16.msra.mxu0 0
      %1158 = vmatprep.subr.bf16.mxu0 0
      %1159 = vmatpush2.bf16.msra.mxu0 0
      %1160 = vmatprep.subr.bf16.mxu0 0
      %1161 = vmatpush2.bf16.msra.mxu0 0
      %1162 = vmatprep.subr.bf16.mxu0 0
      %1163 = vmatpush2.bf16.msra.mxu0 0
      %1164 = vmatprep.mubr.bf16.mxu0 0
      %1165 = vmatmul.mubr.bf16.gmra.mxu0 %v692
      %v1166 = vpop.f32.mrf.mxu0
      %v1167 = vadd.f32 0.0, %v1166
      %v1168 = vpop.f32.mrf.mxu0
      %v1169 = vpop.f32.mrf.mxu0
      %v1170 = vadd.f32 0.0, %v1169
      %v1171 = vpop.f32.mrf.mxu0
      %1172 = vmatprep.mubr.bf16.mxu0 0
      %1173 = vmatmul.mubr.bf16.gmra.mxu0 %v695
      %v1174 = vpop.f32.mrf.mxu0
      %v1175 = vadd.f32 0.0, %v1174
      %v1176 = vpop.f32.mrf.mxu0
      %v1177 = vpop.f32.mrf.mxu0
      %v1178 = vadd.f32 0.0, %v1177
      %v1179 = vpop.f32.mrf.mxu0
      %1180 = vdwg.mxu0
      %1181 = vmatprep.subr.bf16.mxu0 0
      %1182 = vmatpush1.bf16.msra.mxu0 0
      %1183 = vmatprep.subr.bf16.mxu0 0
      %1184 = vmatpush1.bf16.msra.mxu0 0
      %1185 = vmatprep.subr.bf16.mxu0 0
      %1186 = vmatpush1.bf16.msra.mxu0 0
      %1187 = vmatprep.subr.bf16.mxu0 0
      %1188 = vmatpush1.bf16.msra.mxu0 0
      %1189 = vmatprep.subr.bf16.mxu0 0
      %1190 = vmatpush1.bf16.msra.mxu0 0
      %1191 = vmatprep.subr.bf16.mxu0 0
      %1192 = vmatpush1.bf16.msra.mxu0 0
      %1193 = vmatprep.subr.bf16.mxu0 0
      %1194 = vmatpush1.bf16.msra.mxu0 0
      %1195 = vmatprep.subr.bf16.mxu0 0
      %1196 = vmatpush1.bf16.msra.mxu0 %v674
      %1197 = vmatprep.subr.bf16.mxu0 0
      %1198 = vmatpush2.bf16.msra.mxu0 0
      %1199 = vmatprep.subr.bf16.mxu0 0
      %1200 = vmatpush2.bf16.msra.mxu0 0
      %1201 = vmatprep.subr.bf16.mxu0 0
      %1202 = vmatpush2.bf16.msra.mxu0 0
      %1203 = vmatprep.subr.bf16.mxu0 0
      %1204 = vmatpush2.bf16.msra.mxu0 0
      %1205 = vmatprep.subr.bf16.mxu0 0
      %1206 = vmatpush2.bf16.msra.mxu0 0
      %1207 = vmatprep.subr.bf16.mxu0 0
      %1208 = vmatpush2.bf16.msra.mxu0 0
      %1209 = vmatprep.subr.bf16.mxu0 0
      %1210 = vmatpush2.bf16.msra.mxu0 0
      %1211 = vmatprep.subr.bf16.mxu0 0
      %1212 = vmatpush2.bf16.msra.mxu0 0
      %1213 = vmatprep.mubr.bf16.mxu0 0
      %1214 = vmatmul.mubr.bf16.gmra.mxu0 %v692
      %v1215 = vpop.f32.mrf.mxu0
      %v1216 = vadd.f32 0.0, %v1215
      %v1217 = vpop.f32.mrf.mxu0
      %v1218 = vpop.f32.mrf.mxu0
      %v1219 = vadd.f32 0.0, %v1218
      %v1220 = vpop.f32.mrf.mxu0
      %1221 = vmatprep.mubr.bf16.mxu0 0
      %1222 = vmatmul.mubr.bf16.gmra.mxu0 %v695
      %v1223 = vpop.f32.mrf.mxu0
      %v1224 = vadd.f32 0.0, %v1223
      %v1225 = vpop.f32.mrf.mxu0
      %v1226 = vpop.f32.mrf.mxu0
      %v1227 = vadd.f32 0.0, %v1226
      %v1228 = vpop.f32.mrf.mxu0
      %1229 = vdwg.mxu0
      %v1230 = vadd.f32 %v1167, %v1224
      %v1231 = vadd.f32 %v1170, %v1227
      %v1232 = vsub.f32 %v1216, %v1175
      %v1233 = vsub.f32 %v1219, %v1178
      %v1234 = vmul.f32 %v1230, %v1230
      %v1235 = vmul.f32 %v1231, %v1231
      %v1236 = vmul.f32 %v1232, %v1232
      %v1237 = vmul.f32 %v1233, %v1233
      %v1238 = vadd.f32 %v1234, %v1236
      %v1239 = vadd.f32 %v1235, %v1237
      %v1240 = vadd.f32 %v1238, %v1028
      %v1241 = vadd.f32 %v1239, %v1029
      %v1242 = vrcp.pop %v1240
      %v1243 = vrcp.pop %v1241
      %v1244 = vmul.f32 %v1230, %v1128
      %v1245 = vmul.f32 %v1231, %v1129
      %v1246 = vmul.f32 %v1232, %v1130
      %v1247 = vmul.f32 %v1233, %v1131
      %v1248 = vadd.f32 %v1244, %v1246
      %v1249 = vadd.f32 %v1245, %v1247
      %v1250 = vmul.f32 %v1248, %v1242
      %v1251 = vmul.f32 %v1249, %v1243
      %v1252 = vpack.c.bf16 %v1251, %v1250
      %v1253 = vmul.f32 %v1230, %v1130
      %v1254 = vmul.f32 %v1231, %v1131
      %v1255 = vmul.f32 %v1232, %v1128
      %v1256 = vmul.f32 %v1233, %v1129
      %v1257 = vsub.f32 %v1253, %v1255
      %v1258 = vsub.f32 %v1254, %v1256
      %v1259 = vmul.f32 %v1257, %v1242
      %v1260 = vmul.f32 %v1258, %v1243
      %v1261 = vpack.c.bf16 %v1260, %v1259
      %1262 = vmatprep.subr.bf16.mxu0 0
      %1263 = vmatpush1.bf16.msra.mxu0 0
      %1264 = vmatprep.subr.bf16.mxu0 0
      %1265 = vmatpush1.bf16.msra.mxu0 0
      %1266 = vmatprep.subr.bf16.mxu0 0
      %1267 = vmatpush1.bf16.msra.mxu0 0
      %1268 = vmatprep.subr.bf16.mxu0 0
      %1269 = vmatpush1.bf16.msra.mxu0 0
      %1270 = vmatprep.subr.bf16.mxu0 0
      %1271 = vmatpush1.bf16.msra.mxu0 0
      %1272 = vmatprep.subr.bf16.mxu0 0
      %1273 = vmatpush1.bf16.msra.mxu0 0
      %1274 = vmatprep.subr.bf16.mxu0 0
      %1275 = vmatpush1.bf16.msra.mxu0 0
      %1276 = vmatprep.subr.bf16.mxu0 0
      %1277 = vmatpush1.bf16.msra.mxu0 %v1252
      %1278 = vmatprep.subr.bf16.mxu0 0
      %1279 = vmatpush2.bf16.msra.mxu0 0
      %1280 = vmatprep.subr.bf16.mxu0 0
      %1281 = vmatpush2.bf16.msra.mxu0 0
      %1282 = vmatprep.subr.bf16.mxu0 0
      %1283 = vmatpush2.bf16.msra.mxu0 0
      %1284 = vmatprep.subr.bf16.mxu0 0
      %1285 = vmatpush2.bf16.msra.mxu0 0
      %1286 = vmatprep.subr.bf16.mxu0 0
      %1287 = vmatpush2.bf16.msra.mxu0 0
      %1288 = vmatprep.subr.bf16.mxu0 0
      %1289 = vmatpush2.bf16.msra.mxu0 0
      %1290 = vmatprep.subr.bf16.mxu0 0
      %1291 = vmatpush2.bf16.msra.mxu0 0
      %1292 = vmatprep.subr.bf16.mxu0 0
      %1293 = vmatpush2.bf16.msra.mxu0 0
      %1294 = vmatprep.mubr.bf16.mxu0 0
      %1295 = vmatmul.mubr.bf16.gmra.mxu0 %v692
      %v1296 = vpop.f32.mrf.mxu0
      %v1297 = vadd.f32 0.0, %v1296
      %v1298 = vpop.f32.mrf.mxu0
      %v1299 = vpop.f32.mrf.mxu0
      %v1300 = vadd.f32 0.0, %v1299
      %v1301 = vpop.f32.mrf.mxu0
      %1302 = vmatprep.mubr.bf16.mxu0 0
      %1303 = vmatmul.mubr.bf16.gmra.mxu0 %v695
      %v1304 = vpop.f32.mrf.mxu0
      %v1305 = vadd.f32 0.0, %v1304
      %v1306 = vpop.f32.mrf.mxu0
      %v1307 = vpop.f32.mrf.mxu0
      %v1308 = vadd.f32 0.0, %v1307
      %v1309 = vpop.f32.mrf.mxu0
      %1310 = vdwg.mxu0
      %1311 = vmatprep.subr.bf16.mxu0 0
      %1312 = vmatpush1.bf16.msra.mxu0 0
      %1313 = vmatprep.subr.bf16.mxu0 0
      %1314 = vmatpush1.bf16.msra.mxu0 0
      %1315 = vmatprep.subr.bf16.mxu0 0
      %1316 = vmatpush1.bf16.msra.mxu0 0
      %1317 = vmatprep.subr.bf16.mxu0 0
      %1318 = vmatpush1.bf16.msra.mxu0 0
      %1319 = vmatprep.subr.bf16.mxu0 0
      %1320 = vmatpush1.bf16.msra.mxu0 0
      %1321 = vmatprep.subr.bf16.mxu0 0
      %1322 = vmatpush1.bf16.msra.mxu0 0
      %1323 = vmatprep.subr.bf16.mxu0 0
      %1324 = vmatpush1.bf16.msra.mxu0 0
      %1325 = vmatprep.subr.bf16.mxu0 0
      %1326 = vmatpush1.bf16.msra.mxu0 %v1261
      %1327 = vmatprep.subr.bf16.mxu0 0
      %1328 = vmatpush2.bf16.msra.mxu0 0
      %1329 = vmatprep.subr.bf16.mxu0 0
      %1330 = vmatpush2.bf16.msra.mxu0 0
      %1331 = vmatprep.subr.bf16.mxu0 0
      %1332 = vmatpush2.bf16.msra.mxu0 0
      %1333 = vmatprep.subr.bf16.mxu0 0
      %1334 = vmatpush2.bf16.msra.mxu0 0
      %1335 = vmatprep.subr.bf16.mxu0 0
      %1336 = vmatpush2.bf16.msra.mxu0 0
      %1337 = vmatprep.subr.bf16.mxu0 0
      %1338 = vmatpush2.bf16.msra.mxu0 0
      %1339 = vmatprep.subr.bf16.mxu0 0
      %1340 = vmatpush2.bf16.msra.mxu0 0
      %1341 = vmatprep.subr.bf16.mxu0 0
      %1342 = vmatpush2.bf16.msra.mxu0 0
      %1343 = vmatprep.mubr.bf16.mxu0 0
      %1344 = vmatmul.mubr.bf16.gmra.mxu0 %v692
      %v1345 = vpop.f32.mrf.mxu0
      %v1346 = vadd.f32 0.0, %v1345
      %v1347 = vpop.f32.mrf.mxu0
      %v1348 = vpop.f32.mrf.mxu0
      %v1349 = vadd.f32 0.0, %v1348
      %v1350 = vpop.f32.mrf.mxu0
      %1351 = vmatprep.mubr.bf16.mxu0 0
      %1352 = vmatmul.mubr.bf16.gmra.mxu0 %v695
      %v1353 = vpop.f32.mrf.mxu0
      %v1354 = vadd.f32 0.0, %v1353
      %v1355 = vpop.f32.mrf.mxu0
      %v1356 = vpop.f32.mrf.mxu0
      %v1357 = vadd.f32 0.0, %v1356
      %v1358 = vpop.f32.mrf.mxu0
      %1359 = vdwg.mxu0
      %v1360 = vsub.f32 %v1297, %v1354
      %v1361 = vsub.f32 %v1300, %v1357
      %v1362 = vpack.c.bf16 %v1361, %v1360
      %v1363 = vadd.f32 %v1346, %v1305
      %v1364 = vadd.f32 %v1349, %v1308
      %v1365 = vpack.c.bf16 %v1364, %v1363
      %v1368 = vunpack.c.l.b16 %v314
      %v1369 = vunpack.c.l.b16 %v315
      %v1370 = vpack.c.b16 %v1369, %v1368
      %vm1371 = vcmask 72704
      %v1373 = vsel %vm1371, %v1365, 0
      %vm1375 = vcmask 1043456
      %vm1376 = vcmask 1044480
      %v1377 = vsel %vm1375, 4294967295, 65535
      %v1378 = vsel %vm1376, %v1377, 0
      %v1380 = vand.u32 %v1370, %v1378
      %1382 = vmatprep.subr.bf16.mxu0 0
      %1383 = vmatpush1.bf16.msra.mxu0 0
      %1384 = vmatprep.subr.bf16.mxu0 0
      %1385 = vmatpush1.bf16.msra.mxu0 0
      %1386 = vmatprep.subr.bf16.mxu0 0
      %1387 = vmatpush1.bf16.msra.mxu0 0
      %1388 = vmatprep.subr.bf16.mxu0 0
      %1389 = vmatpush1.bf16.msra.mxu0 0
      %1390 = vmatprep.subr.bf16.mxu0 0
      %1391 = vmatpush1.bf16.msra.mxu0 0
      %1392 = vmatprep.subr.bf16.mxu0 0
      %1393 = vmatpush1.bf16.msra.mxu0 0
      %1394 = vmatprep.subr.bf16.mxu0 0
      %1395 = vmatpush1.bf16.msra.mxu0 0
      %1396 = vmatprep.subr.bf16.mxu0 0
      %1397 = vmatpush1.bf16.msra.mxu0 %v1380
      %1398 = vmatprep.subr.bf16.mxu0 0
      %1399 = vmatpush2.bf16.msra.mxu0 0
      %1400 = vmatprep.subr.bf16.mxu0 0
      %1401 = vmatpush2.bf16.msra.mxu0 0
      %1402 = vmatprep.subr.bf16.mxu0 0
      %1403 = vmatpush2.bf16.msra.mxu0 0
      %1404 = vmatprep.subr.bf16.mxu0 0
      %1405 = vmatpush2.bf16.msra.mxu0 0
      %1406 = vmatprep.subr.bf16.mxu0 0
      %1407 = vmatpush2.bf16.msra.mxu0 0
      %1408 = vmatprep.subr.bf16.mxu0 0
      %1409 = vmatpush2.bf16.msra.mxu0 0
      %1410 = vmatprep.subr.bf16.mxu0 0
      %1411 = vmatpush2.bf16.msra.mxu0 0
      %1412 = vmatprep.subr.bf16.mxu0 0
      %1413 = vmatpush2.bf16.msra.mxu0 0
      %1414 = vmatprep.mubr.bf16.mxu0 0
      %1415 = vmatmul.mubr.bf16.gmra.mxu0 %v1373
      %v1416 = vpop.f32.mrf.mxu0
      %v1417 = vadd.f32 0.0, %v1416
      %v1418 = vpop.f32.mrf.mxu0
      %v1419 = vpop.f32.mrf.mxu0
      %v1420 = vadd.f32 0.0, %v1419
      %v1421 = vpop.f32.mrf.mxu0
      %1422 = vdwg.mxu0
      %v1425 = vunpack.c.l.b16 %v312
      %v1426 = vunpack.c.l.b16 %v313
      %v1427 = vpack.c.b16 %v1426, %v1425
      %v1429 = vsel %vm1371, %v1362, 0
      %v1432 = vand.u32 %v1427, %v1378
      %1434 = vmatprep.subr.bf16.mxu0 0
      %1435 = vmatpush1.bf16.msra.mxu0 0
      %1436 = vmatprep.subr.bf16.mxu0 0
      %1437 = vmatpush1.bf16.msra.mxu0 0
      %1438 = vmatprep.subr.bf16.mxu0 0
      %1439 = vmatpush1.bf16.msra.mxu0 0
      %1440 = vmatprep.subr.bf16.mxu0 0
      %1441 = vmatpush1.bf16.msra.mxu0 0
      %1442 = vmatprep.subr.bf16.mxu0 0
      %1443 = vmatpush1.bf16.msra.mxu0 0
      %1444 = vmatprep.subr.bf16.mxu0 0
      %1445 = vmatpush1.bf16.msra.mxu0 0
      %1446 = vmatprep.subr.bf16.mxu0 0
      %1447 = vmatpush1.bf16.msra.mxu0 0
      %1448 = vmatprep.subr.bf16.mxu0 0
      %1449 = vmatpush1.bf16.msra.mxu0 %v1432
      %1450 = vmatprep.subr.bf16.mxu0 0
      %1451 = vmatpush2.bf16.msra.mxu0 0
      %1452 = vmatprep.subr.bf16.mxu0 0
      %1453 = vmatpush2.bf16.msra.mxu0 0
      %1454 = vmatprep.subr.bf16.mxu0 0
      %1455 = vmatpush2.bf16.msra.mxu0 0
      %1456 = vmatprep.subr.bf16.mxu0 0
      %1457 = vmatpush2.bf16.msra.mxu0 0
      %1458 = vmatprep.subr.bf16.mxu0 0
      %1459 = vmatpush2.bf16.msra.mxu0 0
      %1460 = vmatprep.subr.bf16.mxu0 0
      %1461 = vmatpush2.bf16.msra.mxu0 0
      %1462 = vmatprep.subr.bf16.mxu0 0
      %1463 = vmatpush2.bf16.msra.mxu0 0
      %1464 = vmatprep.subr.bf16.mxu0 0
      %1465 = vmatpush2.bf16.msra.mxu0 0
      %1466 = vmatprep.mubr.bf16.mxu0 0
      %1467 = vmatmul.mubr.bf16.gmra.mxu0 %v1429
      %v1468 = vpop.f32.mrf.mxu0
      %v1469 = vadd.f32 %v1417, %v1468
      %v1470 = vpop.f32.mrf.mxu0
      %v1471 = vpop.f32.mrf.mxu0
      %v1472 = vadd.f32 %v1420, %v1471
      %v1473 = vpop.f32.mrf.mxu0
      %1474 = vdwg.mxu0
      %1475 = vst.msk [vmem:[%s279] sm:$0xff] %vm377, %v1469
      %1476 = vst.msk [vmem:[%s279 + $0x8] sm:$0xff] %vm377, %v1472
      %1477 = vmatprep.subr.bf16.mxu0 0
      %1478 = vmatpush1.bf16.msra.mxu0 0
      %1479 = vmatprep.subr.bf16.mxu0 0
      %1480 = vmatpush1.bf16.msra.mxu0 0
      %1481 = vmatprep.subr.bf16.mxu0 0
      %1482 = vmatpush1.bf16.msra.mxu0 0
      %1483 = vmatprep.subr.bf16.mxu0 0
      %1484 = vmatpush1.bf16.msra.mxu0 0
      %1485 = vmatprep.subr.bf16.mxu0 0
      %1486 = vmatpush1.bf16.msra.mxu0 0
      %1487 = vmatprep.subr.bf16.mxu0 0
      %1488 = vmatpush1.bf16.msra.mxu0 0
      %1489 = vmatprep.subr.bf16.mxu0 0
      %1490 = vmatpush1.bf16.msra.mxu0 0
      %1491 = vmatprep.subr.bf16.mxu0 0
      %1492 = vmatpush1.bf16.msra.mxu0 %v533
      %1493 = vmatprep.subr.bf16.mxu0 0
      %1494 = vmatpush2.bf16.msra.mxu0 0
      %1495 = vmatprep.subr.bf16.mxu0 0
      %1496 = vmatpush2.bf16.msra.mxu0 0
      %1497 = vmatprep.subr.bf16.mxu0 0
      %1498 = vmatpush2.bf16.msra.mxu0 0
      %1499 = vmatprep.subr.bf16.mxu0 0
      %1500 = vmatpush2.bf16.msra.mxu0 0
      %1501 = vmatprep.subr.bf16.mxu0 0
      %1502 = vmatpush2.bf16.msra.mxu0 0
      %1503 = vmatprep.subr.bf16.mxu0 0
      %1504 = vmatpush2.bf16.msra.mxu0 0
      %1505 = vmatprep.subr.bf16.mxu0 0
      %1506 = vmatpush2.bf16.msra.mxu0 0
      %1507 = vmatprep.subr.bf16.mxu0 0
      %1508 = vmatpush2.bf16.msra.mxu0 0
      %1509 = vmatprep.mubr.bf16.mxu0 0
      %1510 = vmatmul.mubr.bf16.gmra.mxu0 %v692
      %v1511 = vpop.f32.mrf.mxu0
      %v1512 = vadd.f32 0.0, %v1511
      %v1513 = vpop.f32.mrf.mxu0
      %v1514 = vpop.f32.mrf.mxu0
      %v1515 = vadd.f32 0.0, %v1514
      %v1516 = vpop.f32.mrf.mxu0
      %1517 = vmatprep.mubr.bf16.mxu0 0
      %1518 = vmatmul.mubr.bf16.gmra.mxu0 %v695
      %v1519 = vpop.f32.mrf.mxu0
      %v1520 = vadd.f32 0.0, %v1519
      %v1521 = vpop.f32.mrf.mxu0
      %v1522 = vpop.f32.mrf.mxu0
      %v1523 = vadd.f32 0.0, %v1522
      %v1524 = vpop.f32.mrf.mxu0
      %1525 = vdwg.mxu0
      %1526 = vmatprep.subr.bf16.mxu0 0
      %1527 = vmatpush1.bf16.msra.mxu0 0
      %1528 = vmatprep.subr.bf16.mxu0 0
      %1529 = vmatpush1.bf16.msra.mxu0 0
      %1530 = vmatprep.subr.bf16.mxu0 0
      %1531 = vmatpush1.bf16.msra.mxu0 0
      %1532 = vmatprep.subr.bf16.mxu0 0
      %1533 = vmatpush1.bf16.msra.mxu0 0
      %1534 = vmatprep.subr.bf16.mxu0 0
      %1535 = vmatpush1.bf16.msra.mxu0 0
      %1536 = vmatprep.subr.bf16.mxu0 0
      %1537 = vmatpush1.bf16.msra.mxu0 0
      %1538 = vmatprep.subr.bf16.mxu0 0
      %1539 = vmatpush1.bf16.msra.mxu0 0
      %1540 = vmatprep.subr.bf16.mxu0 0
      %1541 = vmatpush1.bf16.msra.mxu0 %v671
      %1542 = vmatprep.subr.bf16.mxu0 0
      %1543 = vmatpush2.bf16.msra.mxu0 0
      %1544 = vmatprep.subr.bf16.mxu0 0
      %1545 = vmatpush2.bf16.msra.mxu0 0
      %1546 = vmatprep.subr.bf16.mxu0 0
      %1547 = vmatpush2.bf16.msra.mxu0 0
      %1548 = vmatprep.subr.bf16.mxu0 0
      %1549 = vmatpush2.bf16.msra.mxu0 0
      %1550 = vmatprep.subr.bf16.mxu0 0
      %1551 = vmatpush2.bf16.msra.mxu0 0
      %1552 = vmatprep.subr.bf16.mxu0 0
      %1553 = vmatpush2.bf16.msra.mxu0 0
      %1554 = vmatprep.subr.bf16.mxu0 0
      %1555 = vmatpush2.bf16.msra.mxu0 0
      %1556 = vmatprep.subr.bf16.mxu0 0
      %1557 = vmatpush2.bf16.msra.mxu0 0
      %1558 = vmatprep.mubr.bf16.mxu0 0
      %1559 = vmatmul.mubr.bf16.gmra.mxu0 %v692
      %v1560 = vpop.f32.mrf.mxu0
      %v1561 = vadd.f32 0.0, %v1560
      %v1562 = vpop.f32.mrf.mxu0
      %v1563 = vpop.f32.mrf.mxu0
      %v1564 = vadd.f32 0.0, %v1563
      %v1565 = vpop.f32.mrf.mxu0
      %1566 = vmatprep.mubr.bf16.mxu0 0
      %1567 = vmatmul.mubr.bf16.gmra.mxu0 %v695
      %v1568 = vpop.f32.mrf.mxu0
      %v1569 = vadd.f32 0.0, %v1568
      %v1570 = vpop.f32.mrf.mxu0
      %v1571 = vpop.f32.mrf.mxu0
      %v1572 = vadd.f32 0.0, %v1571
      %v1573 = vpop.f32.mrf.mxu0
      %1574 = vdwg.mxu0
      %v1575 = vadd.f32 %v1512, %v1569
      %v1576 = vadd.f32 %v1515, %v1572
      %v1577 = vsub.f32 %v1561, %v1520
      %v1578 = vsub.f32 %v1564, %v1523
      %1579 = vmatprep.subr.bf16.mxu0 0
      %1580 = vmatpush1.bf16.msra.mxu0 0
      %1581 = vmatprep.subr.bf16.mxu0 0
      %1582 = vmatpush1.bf16.msra.mxu0 0
      %1583 = vmatprep.subr.bf16.mxu0 0
      %1584 = vmatpush1.bf16.msra.mxu0 0
      %1585 = vmatprep.subr.bf16.mxu0 0
      %1586 = vmatpush1.bf16.msra.mxu0 0
      %1587 = vmatprep.subr.bf16.mxu0 0
      %1588 = vmatpush1.bf16.msra.mxu0 0
      %1589 = vmatprep.subr.bf16.mxu0 0
      %1590 = vmatpush1.bf16.msra.mxu0 0
      %1591 = vmatprep.subr.bf16.mxu0 0
      %1592 = vmatpush1.bf16.msra.mxu0 0
      %1593 = vmatprep.subr.bf16.mxu0 0
      %1594 = vmatpush1.bf16.msra.mxu0 %v537
      %1595 = vmatprep.subr.bf16.mxu0 0
      %1596 = vmatpush2.bf16.msra.mxu0 0
      %1597 = vmatprep.subr.bf16.mxu0 0
      %1598 = vmatpush2.bf16.msra.mxu0 0
      %1599 = vmatprep.subr.bf16.mxu0 0
      %1600 = vmatpush2.bf16.msra.mxu0 0
      %1601 = vmatprep.subr.bf16.mxu0 0
      %1602 = vmatpush2.bf16.msra.mxu0 0
      %1603 = vmatprep.subr.bf16.mxu0 0
      %1604 = vmatpush2.bf16.msra.mxu0 0
      %1605 = vmatprep.subr.bf16.mxu0 0
      %1606 = vmatpush2.bf16.msra.mxu0 0
      %1607 = vmatprep.subr.bf16.mxu0 0
      %1608 = vmatpush2.bf16.msra.mxu0 0
      %1609 = vmatprep.subr.bf16.mxu0 0
      %1610 = vmatpush2.bf16.msra.mxu0 0
      %1611 = vmatprep.mubr.bf16.mxu0 0
      %1612 = vmatmul.mubr.bf16.gmra.mxu0 %v692
      %v1613 = vpop.f32.mrf.mxu0
      %v1614 = vadd.f32 0.0, %v1613
      %v1615 = vpop.f32.mrf.mxu0
      %v1616 = vpop.f32.mrf.mxu0
      %v1617 = vadd.f32 0.0, %v1616
      %v1618 = vpop.f32.mrf.mxu0
      %1619 = vmatprep.mubr.bf16.mxu0 0
      %1620 = vmatmul.mubr.bf16.gmra.mxu0 %v695
      %v1621 = vpop.f32.mrf.mxu0
      %v1622 = vadd.f32 0.0, %v1621
      %v1623 = vpop.f32.mrf.mxu0
      %v1624 = vpop.f32.mrf.mxu0
      %v1625 = vadd.f32 0.0, %v1624
      %v1626 = vpop.f32.mrf.mxu0
      %1627 = vdwg.mxu0
      %1628 = vmatprep.subr.bf16.mxu0 0
      %1629 = vmatpush1.bf16.msra.mxu0 0
      %1630 = vmatprep.subr.bf16.mxu0 0
      %1631 = vmatpush1.bf16.msra.mxu0 0
      %1632 = vmatprep.subr.bf16.mxu0 0
      %1633 = vmatpush1.bf16.msra.mxu0 0
      %1634 = vmatprep.subr.bf16.mxu0 0
      %1635 = vmatpush1.bf16.msra.mxu0 0
      %1636 = vmatprep.subr.bf16.mxu0 0
      %1637 = vmatpush1.bf16.msra.mxu0 0
      %1638 = vmatprep.subr.bf16.mxu0 0
      %1639 = vmatpush1.bf16.msra.mxu0 0
      %1640 = vmatprep.subr.bf16.mxu0 0
      %1641 = vmatpush1.bf16.msra.mxu0 0
      %1642 = vmatprep.subr.bf16.mxu0 0
      %1643 = vmatpush1.bf16.msra.mxu0 %v675
      %1644 = vmatprep.subr.bf16.mxu0 0
      %1645 = vmatpush2.bf16.msra.mxu0 0
      %1646 = vmatprep.subr.bf16.mxu0 0
      %1647 = vmatpush2.bf16.msra.mxu0 0
      %1648 = vmatprep.subr.bf16.mxu0 0
      %1649 = vmatpush2.bf16.msra.mxu0 0
      %1650 = vmatprep.subr.bf16.mxu0 0
      %1651 = vmatpush2.bf16.msra.mxu0 0
      %1652 = vmatprep.subr.bf16.mxu0 0
      %1653 = vmatpush2.bf16.msra.mxu0 0
      %1654 = vmatprep.subr.bf16.mxu0 0
      %1655 = vmatpush2.bf16.msra.mxu0 0
      %1656 = vmatprep.subr.bf16.mxu0 0
      %1657 = vmatpush2.bf16.msra.mxu0 0
      %1658 = vmatprep.subr.bf16.mxu0 0
      %1659 = vmatpush2.bf16.msra.mxu0 0
      %1660 = vmatprep.mubr.bf16.mxu0 0
      %1661 = vmatmul.mubr.bf16.gmra.mxu0 %v692
      %v1662 = vpop.f32.mrf.mxu0
      %v1663 = vadd.f32 0.0, %v1662
      %v1664 = vpop.f32.mrf.mxu0
      %v1665 = vpop.f32.mrf.mxu0
      %v1666 = vadd.f32 0.0, %v1665
      %v1667 = vpop.f32.mrf.mxu0
      %1668 = vmatprep.mubr.bf16.mxu0 0
      %1669 = vmatmul.mubr.bf16.gmra.mxu0 %v695
      %v1670 = vpop.f32.mrf.mxu0
      %v1671 = vadd.f32 0.0, %v1670
      %v1672 = vpop.f32.mrf.mxu0
      %v1673 = vpop.f32.mrf.mxu0
      %v1674 = vadd.f32 0.0, %v1673
      %v1675 = vpop.f32.mrf.mxu0
      %1676 = vdwg.mxu0
      %v1677 = vadd.f32 %v1614, %v1671
      %v1678 = vadd.f32 %v1617, %v1674
      %v1679 = vsub.f32 %v1663, %v1622
      %v1680 = vsub.f32 %v1666, %v1625
      %v1681 = vmul.f32 %v1677, %v1677
      %v1682 = vmul.f32 %v1678, %v1678
      %v1683 = vmul.f32 %v1679, %v1679
      %v1684 = vmul.f32 %v1680, %v1680
      %v1685 = vadd.f32 %v1681, %v1683
      %v1686 = vadd.f32 %v1682, %v1684
      %v1687 = vadd.f32 %v1685, %v1028
      %v1688 = vadd.f32 %v1686, %v1029
      %v1689 = vrcp.pop %v1687
      %v1690 = vrcp.pop %v1688
      %v1691 = vmul.f32 %v1677, %v1575
      %v1692 = vmul.f32 %v1678, %v1576
      %v1693 = vmul.f32 %v1679, %v1577
      %v1694 = vmul.f32 %v1680, %v1578
      %v1695 = vadd.f32 %v1691, %v1693
      %v1696 = vadd.f32 %v1692, %v1694
      %v1697 = vmul.f32 %v1695, %v1689
      %v1698 = vmul.f32 %v1696, %v1690
      %v1699 = vpack.c.bf16 %v1698, %v1697
      %v1700 = vmul.f32 %v1677, %v1577
      %v1701 = vmul.f32 %v1678, %v1578
      %v1702 = vmul.f32 %v1679, %v1575
      %v1703 = vmul.f32 %v1680, %v1576
      %v1704 = vsub.f32 %v1700, %v1702
      %v1705 = vsub.f32 %v1701, %v1703
      %v1706 = vmul.f32 %v1704, %v1689
      %v1707 = vmul.f32 %v1705, %v1690
      %v1708 = vpack.c.bf16 %v1707, %v1706
      %1709 = vmatprep.subr.bf16.mxu0 0
      %1710 = vmatpush1.bf16.msra.mxu0 0
      %1711 = vmatprep.subr.bf16.mxu0 0
      %1712 = vmatpush1.bf16.msra.mxu0 0
      %1713 = vmatprep.subr.bf16.mxu0 0
      %1714 = vmatpush1.bf16.msra.mxu0 0
      %1715 = vmatprep.subr.bf16.mxu0 0
      %1716 = vmatpush1.bf16.msra.mxu0 0
      %1717 = vmatprep.subr.bf16.mxu0 0
      %1718 = vmatpush1.bf16.msra.mxu0 0
      %1719 = vmatprep.subr.bf16.mxu0 0
      %1720 = vmatpush1.bf16.msra.mxu0 0
      %1721 = vmatprep.subr.bf16.mxu0 0
      %1722 = vmatpush1.bf16.msra.mxu0 0
      %1723 = vmatprep.subr.bf16.mxu0 0
      %1724 = vmatpush1.bf16.msra.mxu0 %v1699
      %1725 = vmatprep.subr.bf16.mxu0 0
      %1726 = vmatpush2.bf16.msra.mxu0 0
      %1727 = vmatprep.subr.bf16.mxu0 0
      %1728 = vmatpush2.bf16.msra.mxu0 0
      %1729 = vmatprep.subr.bf16.mxu0 0
      %1730 = vmatpush2.bf16.msra.mxu0 0
      %1731 = vmatprep.subr.bf16.mxu0 0
      %1732 = vmatpush2.bf16.msra.mxu0 0
      %1733 = vmatprep.subr.bf16.mxu0 0
      %1734 = vmatpush2.bf16.msra.mxu0 0
      %1735 = vmatprep.subr.bf16.mxu0 0
      %1736 = vmatpush2.bf16.msra.mxu0 0
      %1737 = vmatprep.subr.bf16.mxu0 0
      %1738 = vmatpush2.bf16.msra.mxu0 0
      %1739 = vmatprep.subr.bf16.mxu0 0
      %1740 = vmatpush2.bf16.msra.mxu0 0
      %1741 = vmatprep.mubr.bf16.mxu0 0
      %1742 = vmatmul.mubr.bf16.gmra.mxu0 %v692
      %v1743 = vpop.f32.mrf.mxu0
      %v1744 = vadd.f32 0.0, %v1743
      %v1745 = vpop.f32.mrf.mxu0
      %v1746 = vpop.f32.mrf.mxu0
      %v1747 = vadd.f32 0.0, %v1746
      %v1748 = vpop.f32.mrf.mxu0
      %1749 = vmatprep.mubr.bf16.mxu0 0
      %1750 = vmatmul.mubr.bf16.gmra.mxu0 %v695
      %v1751 = vpop.f32.mrf.mxu0
      %v1752 = vadd.f32 0.0, %v1751
      %v1753 = vpop.f32.mrf.mxu0
      %v1754 = vpop.f32.mrf.mxu0
      %v1755 = vadd.f32 0.0, %v1754
      %v1756 = vpop.f32.mrf.mxu0
      %1757 = vdwg.mxu0
      %1758 = vmatprep.subr.bf16.mxu0 0
      %1759 = vmatpush1.bf16.msra.mxu0 0
      %1760 = vmatprep.subr.bf16.mxu0 0
      %1761 = vmatpush1.bf16.msra.mxu0 0
      %1762 = vmatprep.subr.bf16.mxu0 0
      %1763 = vmatpush1.bf16.msra.mxu0 0
      %1764 = vmatprep.subr.bf16.mxu0 0
      %1765 = vmatpush1.bf16.msra.mxu0 0
      %1766 = vmatprep.subr.bf16.mxu0 0
      %1767 = vmatpush1.bf16.msra.mxu0 0
      %1768 = vmatprep.subr.bf16.mxu0 0
      %1769 = vmatpush1.bf16.msra.mxu0 0
      %1770 = vmatprep.subr.bf16.mxu0 0
      %1771 = vmatpush1.bf16.msra.mxu0 0
      %1772 = vmatprep.subr.bf16.mxu0 0
      %1773 = vmatpush1.bf16.msra.mxu0 %v1708
      %1774 = vmatprep.subr.bf16.mxu0 0
      %1775 = vmatpush2.bf16.msra.mxu0 0
      %1776 = vmatprep.subr.bf16.mxu0 0
      %1777 = vmatpush2.bf16.msra.mxu0 0
      %1778 = vmatprep.subr.bf16.mxu0 0
      %1779 = vmatpush2.bf16.msra.mxu0 0
      %1780 = vmatprep.subr.bf16.mxu0 0
      %1781 = vmatpush2.bf16.msra.mxu0 0
      %1782 = vmatprep.subr.bf16.mxu0 0
      %1783 = vmatpush2.bf16.msra.mxu0 0
      %1784 = vmatprep.subr.bf16.mxu0 0
      %1785 = vmatpush2.bf16.msra.mxu0 0
      %1786 = vmatprep.subr.bf16.mxu0 0
      %1787 = vmatpush2.bf16.msra.mxu0 0
      %1788 = vmatprep.subr.bf16.mxu0 0
      %1789 = vmatpush2.bf16.msra.mxu0 0
      %1790 = vmatprep.mubr.bf16.mxu0 0
      %1791 = vmatmul.mubr.bf16.gmra.mxu0 %v692
      %v1792 = vpop.f32.mrf.mxu0
      %v1793 = vadd.f32 0.0, %v1792
      %v1794 = vpop.f32.mrf.mxu0
      %v1795 = vpop.f32.mrf.mxu0
      %v1796 = vadd.f32 0.0, %v1795
      %v1797 = vpop.f32.mrf.mxu0
      %1798 = vmatprep.mubr.bf16.mxu0 0
      %1799 = vmatmul.mubr.bf16.gmra.mxu0 %v695
      %v1800 = vpop.f32.mrf.mxu0
      %v1801 = vadd.f32 0.0, %v1800
      %v1802 = vpop.f32.mrf.mxu0
      %v1803 = vpop.f32.mrf.mxu0
      %v1804 = vadd.f32 0.0, %v1803
      %v1805 = vpop.f32.mrf.mxu0
      %1806 = vdwg.mxu0
      %v1807 = vsub.f32 %v1744, %v1801
      %v1808 = vsub.f32 %v1747, %v1804
      %v1809 = vpack.c.bf16 %v1808, %v1807
      %v1810 = vadd.f32 %v1793, %v1752
      %v1811 = vadd.f32 %v1796, %v1755
      %v1812 = vpack.c.bf16 %v1811, %v1810
      %v1814 = vsel %vm1371, %v1812, 0
      %1816 = vmatprep.subr.bf16.mxu0 0
      %1817 = vmatpush1.bf16.msra.mxu0 0
      %1818 = vmatprep.subr.bf16.mxu0 0
      %1819 = vmatpush1.bf16.msra.mxu0 0
      %1820 = vmatprep.subr.bf16.mxu0 0
      %1821 = vmatpush1.bf16.msra.mxu0 0
      %1822 = vmatprep.subr.bf16.mxu0 0
      %1823 = vmatpush1.bf16.msra.mxu0 0
      %1824 = vmatprep.subr.bf16.mxu0 0
      %1825 = vmatpush1.bf16.msra.mxu0 0
      %1826 = vmatprep.subr.bf16.mxu0 0
      %1827 = vmatpush1.bf16.msra.mxu0 0
      %1828 = vmatprep.subr.bf16.mxu0 0
      %1829 = vmatpush1.bf16.msra.mxu0 0
      %1830 = vmatprep.subr.bf16.mxu0 0
      %1831 = vmatpush1.bf16.msra.mxu0 %v1380
      %1832 = vmatprep.subr.bf16.mxu0 0
      %1833 = vmatpush2.bf16.msra.mxu0 0
      %1834 = vmatprep.subr.bf16.mxu0 0
      %1835 = vmatpush2.bf16.msra.mxu0 0
      %1836 = vmatprep.subr.bf16.mxu0 0
      %1837 = vmatpush2.bf16.msra.mxu0 0
      %1838 = vmatprep.subr.bf16.mxu0 0
      %1839 = vmatpush2.bf16.msra.mxu0 0
      %1840 = vmatprep.subr.bf16.mxu0 0
      %1841 = vmatpush2.bf16.msra.mxu0 0
      %1842 = vmatprep.subr.bf16.mxu0 0
      %1843 = vmatpush2.bf16.msra.mxu0 0
      %1844 = vmatprep.subr.bf16.mxu0 0
      %1845 = vmatpush2.bf16.msra.mxu0 0
      %1846 = vmatprep.subr.bf16.mxu0 0
      %1847 = vmatpush2.bf16.msra.mxu0 0
      %1848 = vmatprep.mubr.bf16.mxu0 0
      %1849 = vmatmul.mubr.bf16.gmra.mxu0 %v1814
      %v1850 = vpop.f32.mrf.mxu0
      %v1851 = vadd.f32 0.0, %v1850
      %v1852 = vpop.f32.mrf.mxu0
      %v1853 = vpop.f32.mrf.mxu0
      %v1854 = vadd.f32 0.0, %v1853
      %v1855 = vpop.f32.mrf.mxu0
      %1856 = vdwg.mxu0
      %v1858 = vsel %vm1371, %v1809, 0
      %1860 = vmatprep.subr.bf16.mxu0 0
      %1861 = vmatpush1.bf16.msra.mxu0 0
      %1862 = vmatprep.subr.bf16.mxu0 0
      %1863 = vmatpush1.bf16.msra.mxu0 0
      %1864 = vmatprep.subr.bf16.mxu0 0
      %1865 = vmatpush1.bf16.msra.mxu0 0
      %1866 = vmatprep.subr.bf16.mxu0 0
      %1867 = vmatpush1.bf16.msra.mxu0 0
      %1868 = vmatprep.subr.bf16.mxu0 0
      %1869 = vmatpush1.bf16.msra.mxu0 0
      %1870 = vmatprep.subr.bf16.mxu0 0
      %1871 = vmatpush1.bf16.msra.mxu0 0
      %1872 = vmatprep.subr.bf16.mxu0 0
      %1873 = vmatpush1.bf16.msra.mxu0 0
      %1874 = vmatprep.subr.bf16.mxu0 0
      %1875 = vmatpush1.bf16.msra.mxu0 %v1432
      %1876 = vmatprep.subr.bf16.mxu0 0
      %1877 = vmatpush2.bf16.msra.mxu0 0
      %1878 = vmatprep.subr.bf16.mxu0 0
      %1879 = vmatpush2.bf16.msra.mxu0 0
      %1880 = vmatprep.subr.bf16.mxu0 0
      %1881 = vmatpush2.bf16.msra.mxu0 0
      %1882 = vmatprep.subr.bf16.mxu0 0
      %1883 = vmatpush2.bf16.msra.mxu0 0
      %1884 = vmatprep.subr.bf16.mxu0 0
      %1885 = vmatpush2.bf16.msra.mxu0 0
      %1886 = vmatprep.subr.bf16.mxu0 0
      %1887 = vmatpush2.bf16.msra.mxu0 0
      %1888 = vmatprep.subr.bf16.mxu0 0
      %1889 = vmatpush2.bf16.msra.mxu0 0
      %1890 = vmatprep.subr.bf16.mxu0 0
      %1891 = vmatpush2.bf16.msra.mxu0 0
      %1892 = vmatprep.mubr.bf16.mxu0 0
      %1893 = vmatmul.mubr.bf16.gmra.mxu0 %v1858
      %v1894 = vpop.f32.mrf.mxu0
      %v1895 = vadd.f32 %v1851, %v1894
      %v1896 = vpop.f32.mrf.mxu0
      %v1897 = vpop.f32.mrf.mxu0
      %v1898 = vadd.f32 %v1854, %v1897
      %v1899 = vpop.f32.mrf.mxu0
      %1900 = vdwg.mxu0
      %1901 = vst.msk [vmem:[%s279 + $0x10] sm:$0xff] %vm377, %v1895
      %1902 = vst.msk [vmem:[%s279 + $0x18] sm:$0xff] %vm377, %v1898
      %1903 = vmatprep.subr.bf16.mxu0 0
      %1904 = vmatpush1.bf16.msra.mxu0 0
      %1905 = vmatprep.subr.bf16.mxu0 0
      %1906 = vmatpush1.bf16.msra.mxu0 0
      %1907 = vmatprep.subr.bf16.mxu0 0
      %1908 = vmatpush1.bf16.msra.mxu0 0
      %1909 = vmatprep.subr.bf16.mxu0 0
      %1910 = vmatpush1.bf16.msra.mxu0 0
      %1911 = vmatprep.subr.bf16.mxu0 0
      %1912 = vmatpush1.bf16.msra.mxu0 0
      %1913 = vmatprep.subr.bf16.mxu0 0
      %1914 = vmatpush1.bf16.msra.mxu0 0
      %1915 = vmatprep.subr.bf16.mxu0 0
      %1916 = vmatpush1.bf16.msra.mxu0 0
      %1917 = vmatprep.subr.bf16.mxu0 0
      %1918 = vmatpush1.bf16.msra.mxu0 %v534
      %1919 = vmatprep.subr.bf16.mxu0 0
      %1920 = vmatpush2.bf16.msra.mxu0 0
      %1921 = vmatprep.subr.bf16.mxu0 0
      %1922 = vmatpush2.bf16.msra.mxu0 0
      %1923 = vmatprep.subr.bf16.mxu0 0
      %1924 = vmatpush2.bf16.msra.mxu0 0
      %1925 = vmatprep.subr.bf16.mxu0 0
      %1926 = vmatpush2.bf16.msra.mxu0 0
      %1927 = vmatprep.subr.bf16.mxu0 0
      %1928 = vmatpush2.bf16.msra.mxu0 0
      %1929 = vmatprep.subr.bf16.mxu0 0
      %1930 = vmatpush2.bf16.msra.mxu0 0
      %1931 = vmatprep.subr.bf16.mxu0 0
      %1932 = vmatpush2.bf16.msra.mxu0 0
      %1933 = vmatprep.subr.bf16.mxu0 0
      %1934 = vmatpush2.bf16.msra.mxu0 0
      %1935 = vmatprep.mubr.bf16.mxu0 0
      %1936 = vmatmul.mubr.bf16.gmra.mxu0 %v692
      %v1937 = vpop.f32.mrf.mxu0
      %v1938 = vadd.f32 0.0, %v1937
      %v1939 = vpop.f32.mrf.mxu0
      %v1940 = vpop.f32.mrf.mxu0
      %v1941 = vadd.f32 0.0, %v1940
      %v1942 = vpop.f32.mrf.mxu0
      %1943 = vmatprep.mubr.bf16.mxu0 0
      %1944 = vmatmul.mubr.bf16.gmra.mxu0 %v695
      %v1945 = vpop.f32.mrf.mxu0
      %v1946 = vadd.f32 0.0, %v1945
      %v1947 = vpop.f32.mrf.mxu0
      %v1948 = vpop.f32.mrf.mxu0
      %v1949 = vadd.f32 0.0, %v1948
      %v1950 = vpop.f32.mrf.mxu0
      %1951 = vdwg.mxu0
      %1952 = vmatprep.subr.bf16.mxu0 0
      %1953 = vmatpush1.bf16.msra.mxu0 0
      %1954 = vmatprep.subr.bf16.mxu0 0
      %1955 = vmatpush1.bf16.msra.mxu0 0
      %1956 = vmatprep.subr.bf16.mxu0 0
      %1957 = vmatpush1.bf16.msra.mxu0 0
      %1958 = vmatprep.subr.bf16.mxu0 0
      %1959 = vmatpush1.bf16.msra.mxu0 0
      %1960 = vmatprep.subr.bf16.mxu0 0
      %1961 = vmatpush1.bf16.msra.mxu0 0
      %1962 = vmatprep.subr.bf16.mxu0 0
      %1963 = vmatpush1.bf16.msra.mxu0 0
      %1964 = vmatprep.subr.bf16.mxu0 0
      %1965 = vmatpush1.bf16.msra.mxu0 0
      %1966 = vmatprep.subr.bf16.mxu0 0
      %1967 = vmatpush1.bf16.msra.mxu0 %v672
      %1968 = vmatprep.subr.bf16.mxu0 0
      %1969 = vmatpush2.bf16.msra.mxu0 0
      %1970 = vmatprep.subr.bf16.mxu0 0
      %1971 = vmatpush2.bf16.msra.mxu0 0
      %1972 = vmatprep.subr.bf16.mxu0 0
      %1973 = vmatpush2.bf16.msra.mxu0 0
      %1974 = vmatprep.subr.bf16.mxu0 0
      %1975 = vmatpush2.bf16.msra.mxu0 0
      %1976 = vmatprep.subr.bf16.mxu0 0
      %1977 = vmatpush2.bf16.msra.mxu0 0
      %1978 = vmatprep.subr.bf16.mxu0 0
      %1979 = vmatpush2.bf16.msra.mxu0 0
      %1980 = vmatprep.subr.bf16.mxu0 0
      %1981 = vmatpush2.bf16.msra.mxu0 0
      %1982 = vmatprep.subr.bf16.mxu0 0
      %1983 = vmatpush2.bf16.msra.mxu0 0
      %1984 = vmatprep.mubr.bf16.mxu0 0
      %1985 = vmatmul.mubr.bf16.gmra.mxu0 %v692
      %v1986 = vpop.f32.mrf.mxu0
      %v1987 = vadd.f32 0.0, %v1986
      %v1988 = vpop.f32.mrf.mxu0
      %v1989 = vpop.f32.mrf.mxu0
      %v1990 = vadd.f32 0.0, %v1989
      %v1991 = vpop.f32.mrf.mxu0
      %1992 = vmatprep.mubr.bf16.mxu0 0
      %1993 = vmatmul.mubr.bf16.gmra.mxu0 %v695
      %v1994 = vpop.f32.mrf.mxu0
      %v1995 = vadd.f32 0.0, %v1994
      %v1996 = vpop.f32.mrf.mxu0
      %v1997 = vpop.f32.mrf.mxu0
      %v1998 = vadd.f32 0.0, %v1997
      %v1999 = vpop.f32.mrf.mxu0
      %2000 = vdwg.mxu0
      %v2001 = vadd.f32 %v1938, %v1995
      %v2002 = vadd.f32 %v1941, %v1998
      %v2003 = vsub.f32 %v1987, %v1946
      %v2004 = vsub.f32 %v1990, %v1949
      %2005 = vmatprep.subr.bf16.mxu0 0
      %2006 = vmatpush1.bf16.msra.mxu0 0
      %2007 = vmatprep.subr.bf16.mxu0 0
      %2008 = vmatpush1.bf16.msra.mxu0 0
      %2009 = vmatprep.subr.bf16.mxu0 0
      %2010 = vmatpush1.bf16.msra.mxu0 0
      %2011 = vmatprep.subr.bf16.mxu0 0
      %2012 = vmatpush1.bf16.msra.mxu0 0
      %2013 = vmatprep.subr.bf16.mxu0 0
      %2014 = vmatpush1.bf16.msra.mxu0 0
      %2015 = vmatprep.subr.bf16.mxu0 0
      %2016 = vmatpush1.bf16.msra.mxu0 0
      %2017 = vmatprep.subr.bf16.mxu0 0
      %2018 = vmatpush1.bf16.msra.mxu0 0
      %2019 = vmatprep.subr.bf16.mxu0 0
      %2020 = vmatpush1.bf16.msra.mxu0 %v538
      %2021 = vmatprep.subr.bf16.mxu0 0
      %2022 = vmatpush2.bf16.msra.mxu0 0
      %2023 = vmatprep.subr.bf16.mxu0 0
      %2024 = vmatpush2.bf16.msra.mxu0 0
      %2025 = vmatprep.subr.bf16.mxu0 0
      %2026 = vmatpush2.bf16.msra.mxu0 0
      %2027 = vmatprep.subr.bf16.mxu0 0
      %2028 = vmatpush2.bf16.msra.mxu0 0
      %2029 = vmatprep.subr.bf16.mxu0 0
      %2030 = vmatpush2.bf16.msra.mxu0 0
      %2031 = vmatprep.subr.bf16.mxu0 0
      %2032 = vmatpush2.bf16.msra.mxu0 0
      %2033 = vmatprep.subr.bf16.mxu0 0
      %2034 = vmatpush2.bf16.msra.mxu0 0
      %2035 = vmatprep.subr.bf16.mxu0 0
      %2036 = vmatpush2.bf16.msra.mxu0 0
      %2037 = vmatprep.mubr.bf16.mxu0 0
      %2038 = vmatmul.mubr.bf16.gmra.mxu0 %v692
      %v2039 = vpop.f32.mrf.mxu0
      %v2040 = vadd.f32 0.0, %v2039
      %v2041 = vpop.f32.mrf.mxu0
      %v2042 = vpop.f32.mrf.mxu0
      %v2043 = vadd.f32 0.0, %v2042
      %v2044 = vpop.f32.mrf.mxu0
      %2045 = vmatprep.mubr.bf16.mxu0 0
      %2046 = vmatmul.mubr.bf16.gmra.mxu0 %v695
      %v2047 = vpop.f32.mrf.mxu0
      %v2048 = vadd.f32 0.0, %v2047
      %v2049 = vpop.f32.mrf.mxu0
      %v2050 = vpop.f32.mrf.mxu0
      %v2051 = vadd.f32 0.0, %v2050
      %v2052 = vpop.f32.mrf.mxu0
      %2053 = vdwg.mxu0
      %2054 = vmatprep.subr.bf16.mxu0 0
      %2055 = vmatpush1.bf16.msra.mxu0 0
      %2056 = vmatprep.subr.bf16.mxu0 0
      %2057 = vmatpush1.bf16.msra.mxu0 0
      %2058 = vmatprep.subr.bf16.mxu0 0
      %2059 = vmatpush1.bf16.msra.mxu0 0
      %2060 = vmatprep.subr.bf16.mxu0 0
      %2061 = vmatpush1.bf16.msra.mxu0 0
      %2062 = vmatprep.subr.bf16.mxu0 0
      %2063 = vmatpush1.bf16.msra.mxu0 0
      %2064 = vmatprep.subr.bf16.mxu0 0
      %2065 = vmatpush1.bf16.msra.mxu0 0
      %2066 = vmatprep.subr.bf16.mxu0 0
      %2067 = vmatpush1.bf16.msra.mxu0 0
      %2068 = vmatprep.subr.bf16.mxu0 0
      %2069 = vmatpush1.bf16.msra.mxu0 %v676
      %2070 = vmatprep.subr.bf16.mxu0 0
      %2071 = vmatpush2.bf16.msra.mxu0 0
      %2072 = vmatprep.subr.bf16.mxu0 0
      %2073 = vmatpush2.bf16.msra.mxu0 0
      %2074 = vmatprep.subr.bf16.mxu0 0
      %2075 = vmatpush2.bf16.msra.mxu0 0
      %2076 = vmatprep.subr.bf16.mxu0 0
      %2077 = vmatpush2.bf16.msra.mxu0 0
      %2078 = vmatprep.subr.bf16.mxu0 0
      %2079 = vmatpush2.bf16.msra.mxu0 0
      %2080 = vmatprep.subr.bf16.mxu0 0
      %2081 = vmatpush2.bf16.msra.mxu0 0
      %2082 = vmatprep.subr.bf16.mxu0 0
      %2083 = vmatpush2.bf16.msra.mxu0 0
      %2084 = vmatprep.subr.bf16.mxu0 0
      %2085 = vmatpush2.bf16.msra.mxu0 0
      %2086 = vmatprep.mubr.bf16.mxu0 0
      %2087 = vmatmul.mubr.bf16.gmra.mxu0 %v692
      %v2088 = vpop.f32.mrf.mxu0
      %v2089 = vadd.f32 0.0, %v2088
      %v2090 = vpop.f32.mrf.mxu0
      %v2091 = vpop.f32.mrf.mxu0
      %v2092 = vadd.f32 0.0, %v2091
      %v2093 = vpop.f32.mrf.mxu0
      %2094 = vmatprep.mubr.bf16.mxu0 0
      %2095 = vmatmul.mubr.bf16.gmra.mxu0 %v695
      %v2096 = vpop.f32.mrf.mxu0
      %v2097 = vadd.f32 0.0, %v2096
      %v2098 = vpop.f32.mrf.mxu0
      %v2099 = vpop.f32.mrf.mxu0
      %v2100 = vadd.f32 0.0, %v2099
      %v2101 = vpop.f32.mrf.mxu0
      %2102 = vdwg.mxu0
      %v2103 = vadd.f32 %v2040, %v2097
      %v2104 = vadd.f32 %v2043, %v2100
      %v2105 = vsub.f32 %v2089, %v2048
      %v2106 = vsub.f32 %v2092, %v2051
      %v2107 = vmul.f32 %v2103, %v2103
      %v2108 = vmul.f32 %v2104, %v2104
      %v2109 = vmul.f32 %v2105, %v2105
      %v2110 = vmul.f32 %v2106, %v2106
      %v2111 = vadd.f32 %v2107, %v2109
      %v2112 = vadd.f32 %v2108, %v2110
      %v2113 = vadd.f32 %v2111, %v1028
      %v2114 = vadd.f32 %v2112, %v1029
      %v2115 = vrcp.pop %v2113
      %v2116 = vrcp.pop %v2114
      %v2117 = vmul.f32 %v2103, %v2001
      %v2118 = vmul.f32 %v2104, %v2002
      %v2119 = vmul.f32 %v2105, %v2003
      %v2120 = vmul.f32 %v2106, %v2004
      %v2121 = vadd.f32 %v2117, %v2119
      %v2122 = vadd.f32 %v2118, %v2120
      %v2123 = vmul.f32 %v2121, %v2115
      %v2124 = vmul.f32 %v2122, %v2116
      %v2125 = vpack.c.bf16 %v2124, %v2123
      %v2126 = vmul.f32 %v2103, %v2003
      %v2127 = vmul.f32 %v2104, %v2004
      %v2128 = vmul.f32 %v2105, %v2001
      %v2129 = vmul.f32 %v2106, %v2002
      %v2130 = vsub.f32 %v2126, %v2128
      %v2131 = vsub.f32 %v2127, %v2129
      %v2132 = vmul.f32 %v2130, %v2115
      %v2133 = vmul.f32 %v2131, %v2116
      %v2134 = vpack.c.bf16 %v2133, %v2132
      %2135 = vmatprep.subr.bf16.mxu0 0
      %2136 = vmatpush1.bf16.msra.mxu0 0
      %2137 = vmatprep.subr.bf16.mxu0 0
      %2138 = vmatpush1.bf16.msra.mxu0 0
      %2139 = vmatprep.subr.bf16.mxu0 0
      %2140 = vmatpush1.bf16.msra.mxu0 0
      %2141 = vmatprep.subr.bf16.mxu0 0
      %2142 = vmatpush1.bf16.msra.mxu0 0
      %2143 = vmatprep.subr.bf16.mxu0 0
      %2144 = vmatpush1.bf16.msra.mxu0 0
      %2145 = vmatprep.subr.bf16.mxu0 0
      %2146 = vmatpush1.bf16.msra.mxu0 0
      %2147 = vmatprep.subr.bf16.mxu0 0
      %2148 = vmatpush1.bf16.msra.mxu0 0
      %2149 = vmatprep.subr.bf16.mxu0 0
      %2150 = vmatpush1.bf16.msra.mxu0 %v2125
      %2151 = vmatprep.subr.bf16.mxu0 0
      %2152 = vmatpush2.bf16.msra.mxu0 0
      %2153 = vmatprep.subr.bf16.mxu0 0
      %2154 = vmatpush2.bf16.msra.mxu0 0
      %2155 = vmatprep.subr.bf16.mxu0 0
      %2156 = vmatpush2.bf16.msra.mxu0 0
      %2157 = vmatprep.subr.bf16.mxu0 0
      %2158 = vmatpush2.bf16.msra.mxu0 0
      %2159 = vmatprep.subr.bf16.mxu0 0
      %2160 = vmatpush2.bf16.msra.mxu0 0
      %2161 = vmatprep.subr.bf16.mxu0 0
      %2162 = vmatpush2.bf16.msra.mxu0 0
      %2163 = vmatprep.subr.bf16.mxu0 0
      %2164 = vmatpush2.bf16.msra.mxu0 0
      %2165 = vmatprep.subr.bf16.mxu0 0
      %2166 = vmatpush2.bf16.msra.mxu0 0
      %2167 = vmatprep.mubr.bf16.mxu0 0
      %2168 = vmatmul.mubr.bf16.gmra.mxu0 %v692
      %v2169 = vpop.f32.mrf.mxu0
      %v2170 = vadd.f32 0.0, %v2169
      %v2171 = vpop.f32.mrf.mxu0
      %v2172 = vpop.f32.mrf.mxu0
      %v2173 = vadd.f32 0.0, %v2172
      %v2174 = vpop.f32.mrf.mxu0
      %2175 = vmatprep.mubr.bf16.mxu0 0
      %2176 = vmatmul.mubr.bf16.gmra.mxu0 %v695
      %v2177 = vpop.f32.mrf.mxu0
      %v2178 = vadd.f32 0.0, %v2177
      %v2179 = vpop.f32.mrf.mxu0
      %v2180 = vpop.f32.mrf.mxu0
      %v2181 = vadd.f32 0.0, %v2180
      %v2182 = vpop.f32.mrf.mxu0
      %2183 = vdwg.mxu0
      %2184 = vmatprep.subr.bf16.mxu0 0
      %2185 = vmatpush1.bf16.msra.mxu0 0
      %2186 = vmatprep.subr.bf16.mxu0 0
      %2187 = vmatpush1.bf16.msra.mxu0 0
      %2188 = vmatprep.subr.bf16.mxu0 0
      %2189 = vmatpush1.bf16.msra.mxu0 0
      %2190 = vmatprep.subr.bf16.mxu0 0
      %2191 = vmatpush1.bf16.msra.mxu0 0
      %2192 = vmatprep.subr.bf16.mxu0 0
      %2193 = vmatpush1.bf16.msra.mxu0 0
      %2194 = vmatprep.subr.bf16.mxu0 0
      %2195 = vmatpush1.bf16.msra.mxu0 0
      %2196 = vmatprep.subr.bf16.mxu0 0
      %2197 = vmatpush1.bf16.msra.mxu0 0
      %2198 = vmatprep.subr.bf16.mxu0 0
      %2199 = vmatpush1.bf16.msra.mxu0 %v2134
      %2200 = vmatprep.subr.bf16.mxu0 0
      %2201 = vmatpush2.bf16.msra.mxu0 0
      %2202 = vmatprep.subr.bf16.mxu0 0
      %2203 = vmatpush2.bf16.msra.mxu0 0
      %2204 = vmatprep.subr.bf16.mxu0 0
      %2205 = vmatpush2.bf16.msra.mxu0 0
      %2206 = vmatprep.subr.bf16.mxu0 0
      %2207 = vmatpush2.bf16.msra.mxu0 0
      %2208 = vmatprep.subr.bf16.mxu0 0
      %2209 = vmatpush2.bf16.msra.mxu0 0
      %2210 = vmatprep.subr.bf16.mxu0 0
      %2211 = vmatpush2.bf16.msra.mxu0 0
      %2212 = vmatprep.subr.bf16.mxu0 0
      %2213 = vmatpush2.bf16.msra.mxu0 0
      %2214 = vmatprep.subr.bf16.mxu0 0
      %2215 = vmatpush2.bf16.msra.mxu0 0
      %2216 = vmatprep.mubr.bf16.mxu0 0
      %2217 = vmatmul.mubr.bf16.gmra.mxu0 %v692
      %v2218 = vpop.f32.mrf.mxu0
      %v2219 = vadd.f32 0.0, %v2218
      %v2220 = vpop.f32.mrf.mxu0
      %v2221 = vpop.f32.mrf.mxu0
      %v2222 = vadd.f32 0.0, %v2221
      %v2223 = vpop.f32.mrf.mxu0
      %2224 = vmatprep.mubr.bf16.mxu0 0
      %2225 = vmatmul.mubr.bf16.gmra.mxu0 %v695
      %v2226 = vpop.f32.mrf.mxu0
      %v2227 = vadd.f32 0.0, %v2226
      %v2228 = vpop.f32.mrf.mxu0
      %v2229 = vpop.f32.mrf.mxu0
      %v2230 = vadd.f32 0.0, %v2229
      %v2231 = vpop.f32.mrf.mxu0
      %2232 = vdwg.mxu0
      %v2233 = vsub.f32 %v2170, %v2227
      %v2234 = vsub.f32 %v2173, %v2230
      %v2235 = vpack.c.bf16 %v2234, %v2233
      %v2236 = vadd.f32 %v2219, %v2178
      %v2237 = vadd.f32 %v2222, %v2181
      %v2238 = vpack.c.bf16 %v2237, %v2236
      %v2240 = vsel %vm1371, %v2238, 0
      %2242 = vmatprep.subr.bf16.mxu0 0
      %2243 = vmatpush1.bf16.msra.mxu0 0
      %2244 = vmatprep.subr.bf16.mxu0 0
      %2245 = vmatpush1.bf16.msra.mxu0 0
      %2246 = vmatprep.subr.bf16.mxu0 0
      %2247 = vmatpush1.bf16.msra.mxu0 0
      %2248 = vmatprep.subr.bf16.mxu0 0
      %2249 = vmatpush1.bf16.msra.mxu0 0
      %2250 = vmatprep.subr.bf16.mxu0 0
      %2251 = vmatpush1.bf16.msra.mxu0 0
      %2252 = vmatprep.subr.bf16.mxu0 0
      %2253 = vmatpush1.bf16.msra.mxu0 0
      %2254 = vmatprep.subr.bf16.mxu0 0
      %2255 = vmatpush1.bf16.msra.mxu0 0
      %2256 = vmatprep.subr.bf16.mxu0 0
      %2257 = vmatpush1.bf16.msra.mxu0 %v1380
      %2258 = vmatprep.subr.bf16.mxu0 0
      %2259 = vmatpush2.bf16.msra.mxu0 0
      %2260 = vmatprep.subr.bf16.mxu0 0
      %2261 = vmatpush2.bf16.msra.mxu0 0
      %2262 = vmatprep.subr.bf16.mxu0 0
      %2263 = vmatpush2.bf16.msra.mxu0 0
      %2264 = vmatprep.subr.bf16.mxu0 0
      %2265 = vmatpush2.bf16.msra.mxu0 0
      %2266 = vmatprep.subr.bf16.mxu0 0
      %2267 = vmatpush2.bf16.msra.mxu0 0
      %2268 = vmatprep.subr.bf16.mxu0 0
      %2269 = vmatpush2.bf16.msra.mxu0 0
      %2270 = vmatprep.subr.bf16.mxu0 0
      %2271 = vmatpush2.bf16.msra.mxu0 0
      %2272 = vmatprep.subr.bf16.mxu0 0
      %2273 = vmatpush2.bf16.msra.mxu0 0
      %2274 = vmatprep.mubr.bf16.mxu0 0
      %2275 = vmatmul.mubr.bf16.gmra.mxu0 %v2240
      %v2276 = vpop.f32.mrf.mxu0
      %v2277 = vadd.f32 0.0, %v2276
      %v2278 = vpop.f32.mrf.mxu0
      %v2279 = vpop.f32.mrf.mxu0
      %v2280 = vadd.f32 0.0, %v2279
      %v2281 = vpop.f32.mrf.mxu0
      %2282 = vdwg.mxu0
      %v2284 = vsel %vm1371, %v2235, 0
      %2286 = vmatprep.subr.bf16.mxu0 0
      %2287 = vmatpush1.bf16.msra.mxu0 0
      %2288 = vmatprep.subr.bf16.mxu0 0
      %2289 = vmatpush1.bf16.msra.mxu0 0
      %2290 = vmatprep.subr.bf16.mxu0 0
      %2291 = vmatpush1.bf16.msra.mxu0 0
      %2292 = vmatprep.subr.bf16.mxu0 0
      %2293 = vmatpush1.bf16.msra.mxu0 0
      %2294 = vmatprep.subr.bf16.mxu0 0
      %2295 = vmatpush1.bf16.msra.mxu0 0
      %2296 = vmatprep.subr.bf16.mxu0 0
      %2297 = vmatpush1.bf16.msra.mxu0 0
      %2298 = vmatprep.subr.bf16.mxu0 0
      %2299 = vmatpush1.bf16.msra.mxu0 0
      %2300 = vmatprep.subr.bf16.mxu0 0
      %2301 = vmatpush1.bf16.msra.mxu0 %v1432
      %2302 = vmatprep.subr.bf16.mxu0 0
      %2303 = vmatpush2.bf16.msra.mxu0 0
      %2304 = vmatprep.subr.bf16.mxu0 0
      %2305 = vmatpush2.bf16.msra.mxu0 0
      %2306 = vmatprep.subr.bf16.mxu0 0
      %2307 = vmatpush2.bf16.msra.mxu0 0
      %2308 = vmatprep.subr.bf16.mxu0 0
      %2309 = vmatpush2.bf16.msra.mxu0 0
      %2310 = vmatprep.subr.bf16.mxu0 0
      %2311 = vmatpush2.bf16.msra.mxu0 0
      %2312 = vmatprep.subr.bf16.mxu0 0
      %2313 = vmatpush2.bf16.msra.mxu0 0
      %2314 = vmatprep.subr.bf16.mxu0 0
      %2315 = vmatpush2.bf16.msra.mxu0 0
      %2316 = vmatprep.subr.bf16.mxu0 0
      %2317 = vmatpush2.bf16.msra.mxu0 0
      %2318 = vmatprep.mubr.bf16.mxu0 0
      %2319 = vmatmul.mubr.bf16.gmra.mxu0 %v2284
      %v2320 = vpop.f32.mrf.mxu0
      %v2321 = vadd.f32 %v2277, %v2320
      %v2322 = vpop.f32.mrf.mxu0
      %v2323 = vpop.f32.mrf.mxu0
      %v2324 = vadd.f32 %v2280, %v2323
      %v2325 = vpop.f32.mrf.mxu0
      %2326 = vdwg.mxu0
      %2327 = vst.msk [vmem:[%s279 + $0x20] sm:$0xff] %vm377, %v2321
      %2328 = vst.msk [vmem:[%s279 + $0x28] sm:$0xff] %vm377, %v2324
      %2329 = vmatprep.subr.bf16.mxu0 0
      %2330 = vmatpush1.bf16.msra.mxu0 0
      %2331 = vmatprep.subr.bf16.mxu0 0
      %2332 = vmatpush1.bf16.msra.mxu0 0
      %2333 = vmatprep.subr.bf16.mxu0 0
      %2334 = vmatpush1.bf16.msra.mxu0 0
      %2335 = vmatprep.subr.bf16.mxu0 0
      %2336 = vmatpush1.bf16.msra.mxu0 0
      %2337 = vmatprep.subr.bf16.mxu0 0
      %2338 = vmatpush1.bf16.msra.mxu0 0
      %2339 = vmatprep.subr.bf16.mxu0 0
      %2340 = vmatpush1.bf16.msra.mxu0 0
      %2341 = vmatprep.subr.bf16.mxu0 0
      %2342 = vmatpush1.bf16.msra.mxu0 0
      %2343 = vmatprep.subr.bf16.mxu0 0
      %2344 = vmatpush1.bf16.msra.mxu0 %v535
      %2345 = vmatprep.subr.bf16.mxu0 0
      %2346 = vmatpush2.bf16.msra.mxu0 0
      %2347 = vmatprep.subr.bf16.mxu0 0
      %2348 = vmatpush2.bf16.msra.mxu0 0
      %2349 = vmatprep.subr.bf16.mxu0 0
      %2350 = vmatpush2.bf16.msra.mxu0 0
      %2351 = vmatprep.subr.bf16.mxu0 0
      %2352 = vmatpush2.bf16.msra.mxu0 0
      %2353 = vmatprep.subr.bf16.mxu0 0
      %2354 = vmatpush2.bf16.msra.mxu0 0
      %2355 = vmatprep.subr.bf16.mxu0 0
      %2356 = vmatpush2.bf16.msra.mxu0 0
      %2357 = vmatprep.subr.bf16.mxu0 0
      %2358 = vmatpush2.bf16.msra.mxu0 0
      %2359 = vmatprep.subr.bf16.mxu0 0
      %2360 = vmatpush2.bf16.msra.mxu0 0
      %2361 = vmatprep.mubr.bf16.mxu0 0
      %2362 = vmatmul.mubr.bf16.gmra.mxu0 %v692
      %v2363 = vpop.f32.mrf.mxu0
      %v2364 = vadd.f32 0.0, %v2363
      %v2365 = vpop.f32.mrf.mxu0
      %v2366 = vpop.f32.mrf.mxu0
      %v2367 = vadd.f32 0.0, %v2366
      %v2368 = vpop.f32.mrf.mxu0
      %2369 = vmatprep.mubr.bf16.mxu0 0
      %2370 = vmatmul.mubr.bf16.gmra.mxu0 %v695
      %v2371 = vpop.f32.mrf.mxu0
      %v2372 = vadd.f32 0.0, %v2371
      %v2373 = vpop.f32.mrf.mxu0
      %v2374 = vpop.f32.mrf.mxu0
      %v2375 = vadd.f32 0.0, %v2374
      %v2376 = vpop.f32.mrf.mxu0
      %2377 = vdwg.mxu0
      %2378 = vmatprep.subr.bf16.mxu0 0
      %2379 = vmatpush1.bf16.msra.mxu0 0
      %2380 = vmatprep.subr.bf16.mxu0 0
      %2381 = vmatpush1.bf16.msra.mxu0 0
      %2382 = vmatprep.subr.bf16.mxu0 0
      %2383 = vmatpush1.bf16.msra.mxu0 0
      %2384 = vmatprep.subr.bf16.mxu0 0
      %2385 = vmatpush1.bf16.msra.mxu0 0
      %2386 = vmatprep.subr.bf16.mxu0 0
      %2387 = vmatpush1.bf16.msra.mxu0 0
      %2388 = vmatprep.subr.bf16.mxu0 0
      %2389 = vmatpush1.bf16.msra.mxu0 0
      %2390 = vmatprep.subr.bf16.mxu0 0
      %2391 = vmatpush1.bf16.msra.mxu0 0
      %2392 = vmatprep.subr.bf16.mxu0 0
      %2393 = vmatpush1.bf16.msra.mxu0 %v673
      %2394 = vmatprep.subr.bf16.mxu0 0
      %2395 = vmatpush2.bf16.msra.mxu0 0
      %2396 = vmatprep.subr.bf16.mxu0 0
      %2397 = vmatpush2.bf16.msra.mxu0 0
      %2398 = vmatprep.subr.bf16.mxu0 0
      %2399 = vmatpush2.bf16.msra.mxu0 0
      %2400 = vmatprep.subr.bf16.mxu0 0
      %2401 = vmatpush2.bf16.msra.mxu0 0
      %2402 = vmatprep.subr.bf16.mxu0 0
      %2403 = vmatpush2.bf16.msra.mxu0 0
      %2404 = vmatprep.subr.bf16.mxu0 0
      %2405 = vmatpush2.bf16.msra.mxu0 0
      %2406 = vmatprep.subr.bf16.mxu0 0
      %2407 = vmatpush2.bf16.msra.mxu0 0
      %2408 = vmatprep.subr.bf16.mxu0 0
      %2409 = vmatpush2.bf16.msra.mxu0 0
      %2410 = vmatprep.mubr.bf16.mxu0 0
      %2411 = vmatmul.mubr.bf16.gmra.mxu0 %v692
      %v2412 = vpop.f32.mrf.mxu0
      %v2413 = vadd.f32 0.0, %v2412
      %v2414 = vpop.f32.mrf.mxu0
      %v2415 = vpop.f32.mrf.mxu0
      %v2416 = vadd.f32 0.0, %v2415
      %v2417 = vpop.f32.mrf.mxu0
      %2418 = vmatprep.mubr.bf16.mxu0 0
      %2419 = vmatmul.mubr.bf16.gmra.mxu0 %v695
      %v2420 = vpop.f32.mrf.mxu0
      %v2421 = vadd.f32 0.0, %v2420
      %v2422 = vpop.f32.mrf.mxu0
      %v2423 = vpop.f32.mrf.mxu0
      %v2424 = vadd.f32 0.0, %v2423
      %v2425 = vpop.f32.mrf.mxu0
      %2426 = vdwg.mxu0
      %v2427 = vadd.f32 %v2364, %v2421
      %v2428 = vadd.f32 %v2367, %v2424
      %v2429 = vsub.f32 %v2413, %v2372
      %v2430 = vsub.f32 %v2416, %v2375
      %2431 = vmatprep.subr.bf16.mxu0 0
      %2432 = vmatpush1.bf16.msra.mxu0 0
      %2433 = vmatprep.subr.bf16.mxu0 0
      %2434 = vmatpush1.bf16.msra.mxu0 0
      %2435 = vmatprep.subr.bf16.mxu0 0
      %2436 = vmatpush1.bf16.msra.mxu0 0
      %2437 = vmatprep.subr.bf16.mxu0 0
      %2438 = vmatpush1.bf16.msra.mxu0 0
      %2439 = vmatprep.subr.bf16.mxu0 0
      %2440 = vmatpush1.bf16.msra.mxu0 0
      %2441 = vmatprep.subr.bf16.mxu0 0
      %2442 = vmatpush1.bf16.msra.mxu0 0
      %2443 = vmatprep.subr.bf16.mxu0 0
      %2444 = vmatpush1.bf16.msra.mxu0 0
      %2445 = vmatprep.subr.bf16.mxu0 0
      %2446 = vmatpush1.bf16.msra.mxu0 %v539
      %2447 = vmatprep.subr.bf16.mxu0 0
      %2448 = vmatpush2.bf16.msra.mxu0 0
      %2449 = vmatprep.subr.bf16.mxu0 0
      %2450 = vmatpush2.bf16.msra.mxu0 0
      %2451 = vmatprep.subr.bf16.mxu0 0
      %2452 = vmatpush2.bf16.msra.mxu0 0
      %2453 = vmatprep.subr.bf16.mxu0 0
      %2454 = vmatpush2.bf16.msra.mxu0 0
      %2455 = vmatprep.subr.bf16.mxu0 0
      %2456 = vmatpush2.bf16.msra.mxu0 0
      %2457 = vmatprep.subr.bf16.mxu0 0
      %2458 = vmatpush2.bf16.msra.mxu0 0
      %2459 = vmatprep.subr.bf16.mxu0 0
      %2460 = vmatpush2.bf16.msra.mxu0 0
      %2461 = vmatprep.subr.bf16.mxu0 0
      %2462 = vmatpush2.bf16.msra.mxu0 0
      %2463 = vmatprep.mubr.bf16.mxu0 0
      %2464 = vmatmul.mubr.bf16.gmra.mxu0 %v692
      %v2465 = vpop.f32.mrf.mxu0
      %v2466 = vadd.f32 0.0, %v2465
      %v2467 = vpop.f32.mrf.mxu0
      %v2468 = vpop.f32.mrf.mxu0
      %v2469 = vadd.f32 0.0, %v2468
      %v2470 = vpop.f32.mrf.mxu0
      %2471 = vmatprep.mubr.bf16.mxu0 0
      %2472 = vmatmul.mubr.bf16.gmra.mxu0 %v695
      %v2473 = vpop.f32.mrf.mxu0
      %v2474 = vadd.f32 0.0, %v2473
      %v2475 = vpop.f32.mrf.mxu0
      %v2476 = vpop.f32.mrf.mxu0
      %v2477 = vadd.f32 0.0, %v2476
      %v2478 = vpop.f32.mrf.mxu0
      %2479 = vdwg.mxu0
      %2480 = vmatprep.subr.bf16.mxu0 0
      %2481 = vmatpush1.bf16.msra.mxu0 0
      %2482 = vmatprep.subr.bf16.mxu0 0
      %2483 = vmatpush1.bf16.msra.mxu0 0
      %2484 = vmatprep.subr.bf16.mxu0 0
      %2485 = vmatpush1.bf16.msra.mxu0 0
      %2486 = vmatprep.subr.bf16.mxu0 0
      %2487 = vmatpush1.bf16.msra.mxu0 0
      %2488 = vmatprep.subr.bf16.mxu0 0
      %2489 = vmatpush1.bf16.msra.mxu0 0
      %2490 = vmatprep.subr.bf16.mxu0 0
      %2491 = vmatpush1.bf16.msra.mxu0 0
      %2492 = vmatprep.subr.bf16.mxu0 0
      %2493 = vmatpush1.bf16.msra.mxu0 0
      %2494 = vmatprep.subr.bf16.mxu0 0
      %2495 = vmatpush1.bf16.msra.mxu0 %v677
      %2496 = vmatprep.subr.bf16.mxu0 0
      %2497 = vmatpush2.bf16.msra.mxu0 0
      %2498 = vmatprep.subr.bf16.mxu0 0
      %2499 = vmatpush2.bf16.msra.mxu0 0
      %2500 = vmatprep.subr.bf16.mxu0 0
      %2501 = vmatpush2.bf16.msra.mxu0 0
      %2502 = vmatprep.subr.bf16.mxu0 0
      %2503 = vmatpush2.bf16.msra.mxu0 0
      %2504 = vmatprep.subr.bf16.mxu0 0
      %2505 = vmatpush2.bf16.msra.mxu0 0
      %2506 = vmatprep.subr.bf16.mxu0 0
      %2507 = vmatpush2.bf16.msra.mxu0 0
      %2508 = vmatprep.subr.bf16.mxu0 0
      %2509 = vmatpush2.bf16.msra.mxu0 0
      %2510 = vmatprep.subr.bf16.mxu0 0
      %2511 = vmatpush2.bf16.msra.mxu0 0
      %2512 = vmatprep.mubr.bf16.mxu0 0
      %2513 = vmatmul.mubr.bf16.gmra.mxu0 %v692
      %v2514 = vpop.f32.mrf.mxu0
      %v2515 = vadd.f32 0.0, %v2514
      %v2516 = vpop.f32.mrf.mxu0
      %v2517 = vpop.f32.mrf.mxu0
      %v2518 = vadd.f32 0.0, %v2517
      %v2519 = vpop.f32.mrf.mxu0
      %2520 = vmatprep.mubr.bf16.mxu0 0
      %2521 = vmatmul.mubr.bf16.gmra.mxu0 %v695
      %v2522 = vpop.f32.mrf.mxu0
      %v2523 = vadd.f32 0.0, %v2522
      %v2524 = vpop.f32.mrf.mxu0
      %v2525 = vpop.f32.mrf.mxu0
      %v2526 = vadd.f32 0.0, %v2525
      %v2527 = vpop.f32.mrf.mxu0
      %2528 = vdwg.mxu0
      %v2529 = vadd.f32 %v2466, %v2523
      %v2530 = vadd.f32 %v2469, %v2526
      %v2531 = vsub.f32 %v2515, %v2474
      %v2532 = vsub.f32 %v2518, %v2477
      %v2533 = vmul.f32 %v2529, %v2529
      %v2534 = vmul.f32 %v2530, %v2530
      %v2535 = vmul.f32 %v2531, %v2531
      %v2536 = vmul.f32 %v2532, %v2532
      %v2537 = vadd.f32 %v2533, %v2535
      %v2538 = vadd.f32 %v2534, %v2536
      %v2539 = vadd.f32 %v2537, %v1028
      %v2540 = vadd.f32 %v2538, %v1029
      %v2541 = vrcp.pop %v2539
      %v2542 = vrcp.pop %v2540
      %v2543 = vmul.f32 %v2529, %v2427
      %v2544 = vmul.f32 %v2530, %v2428
      %v2545 = vmul.f32 %v2531, %v2429
      %v2546 = vmul.f32 %v2532, %v2430
      %v2547 = vadd.f32 %v2543, %v2545
      %v2548 = vadd.f32 %v2544, %v2546
      %v2549 = vmul.f32 %v2547, %v2541
      %v2550 = vmul.f32 %v2548, %v2542
      %v2551 = vpack.c.bf16 %v2550, %v2549
      %v2552 = vmul.f32 %v2529, %v2429
      %v2553 = vmul.f32 %v2530, %v2430
      %v2554 = vmul.f32 %v2531, %v2427
      %v2555 = vmul.f32 %v2532, %v2428
      %v2556 = vsub.f32 %v2552, %v2554
      %v2557 = vsub.f32 %v2553, %v2555
      %v2558 = vmul.f32 %v2556, %v2541
      %v2559 = vmul.f32 %v2557, %v2542
      %v2560 = vpack.c.bf16 %v2559, %v2558
      %2561 = vmatprep.subr.bf16.mxu0 0
      %2562 = vmatpush1.bf16.msra.mxu0 0
      %2563 = vmatprep.subr.bf16.mxu0 0
      %2564 = vmatpush1.bf16.msra.mxu0 0
      %2565 = vmatprep.subr.bf16.mxu0 0
      %2566 = vmatpush1.bf16.msra.mxu0 0
      %2567 = vmatprep.subr.bf16.mxu0 0
      %2568 = vmatpush1.bf16.msra.mxu0 0
      %2569 = vmatprep.subr.bf16.mxu0 0
      %2570 = vmatpush1.bf16.msra.mxu0 0
      %2571 = vmatprep.subr.bf16.mxu0 0
      %2572 = vmatpush1.bf16.msra.mxu0 0
      %2573 = vmatprep.subr.bf16.mxu0 0
      %2574 = vmatpush1.bf16.msra.mxu0 0
      %2575 = vmatprep.subr.bf16.mxu0 0
      %2576 = vmatpush1.bf16.msra.mxu0 %v2551
      %2577 = vmatprep.subr.bf16.mxu0 0
      %2578 = vmatpush2.bf16.msra.mxu0 0
      %2579 = vmatprep.subr.bf16.mxu0 0
      %2580 = vmatpush2.bf16.msra.mxu0 0
      %2581 = vmatprep.subr.bf16.mxu0 0
      %2582 = vmatpush2.bf16.msra.mxu0 0
      %2583 = vmatprep.subr.bf16.mxu0 0
      %2584 = vmatpush2.bf16.msra.mxu0 0
      %2585 = vmatprep.subr.bf16.mxu0 0
      %2586 = vmatpush2.bf16.msra.mxu0 0
      %2587 = vmatprep.subr.bf16.mxu0 0
      %2588 = vmatpush2.bf16.msra.mxu0 0
      %2589 = vmatprep.subr.bf16.mxu0 0
      %2590 = vmatpush2.bf16.msra.mxu0 0
      %2591 = vmatprep.subr.bf16.mxu0 0
      %2592 = vmatpush2.bf16.msra.mxu0 0
      %2593 = vmatprep.mubr.bf16.mxu0 0
      %2594 = vmatmul.mubr.bf16.gmra.mxu0 %v692
      %v2595 = vpop.f32.mrf.mxu0
      %v2596 = vadd.f32 0.0, %v2595
      %v2597 = vpop.f32.mrf.mxu0
      %v2598 = vpop.f32.mrf.mxu0
      %v2599 = vadd.f32 0.0, %v2598
      %v2600 = vpop.f32.mrf.mxu0
      %2601 = vmatprep.mubr.bf16.mxu0 0
      %2602 = vmatmul.mubr.bf16.gmra.mxu0 %v695
      %v2603 = vpop.f32.mrf.mxu0
      %v2604 = vadd.f32 0.0, %v2603
      %v2605 = vpop.f32.mrf.mxu0
      %v2606 = vpop.f32.mrf.mxu0
      %v2607 = vadd.f32 0.0, %v2606
      %v2608 = vpop.f32.mrf.mxu0
      %2609 = vdwg.mxu0
      %2610 = vmatprep.subr.bf16.mxu0 0
      %2611 = vmatpush1.bf16.msra.mxu0 0
      %2612 = vmatprep.subr.bf16.mxu0 0
      %2613 = vmatpush1.bf16.msra.mxu0 0
      %2614 = vmatprep.subr.bf16.mxu0 0
      %2615 = vmatpush1.bf16.msra.mxu0 0
      %2616 = vmatprep.subr.bf16.mxu0 0
      %2617 = vmatpush1.bf16.msra.mxu0 0
      %2618 = vmatprep.subr.bf16.mxu0 0
      %2619 = vmatpush1.bf16.msra.mxu0 0
      %2620 = vmatprep.subr.bf16.mxu0 0
      %2621 = vmatpush1.bf16.msra.mxu0 0
      %2622 = vmatprep.subr.bf16.mxu0 0
      %2623 = vmatpush1.bf16.msra.mxu0 0
      %2624 = vmatprep.subr.bf16.mxu0 0
      %2625 = vmatpush1.bf16.msra.mxu0 %v2560
      %2626 = vmatprep.subr.bf16.mxu0 0
      %2627 = vmatpush2.bf16.msra.mxu0 0
      %2628 = vmatprep.subr.bf16.mxu0 0
      %2629 = vmatpush2.bf16.msra.mxu0 0
      %2630 = vmatprep.subr.bf16.mxu0 0
      %2631 = vmatpush2.bf16.msra.mxu0 0
      %2632 = vmatprep.subr.bf16.mxu0 0
      %2633 = vmatpush2.bf16.msra.mxu0 0
      %2634 = vmatprep.subr.bf16.mxu0 0
      %2635 = vmatpush2.bf16.msra.mxu0 0
      %2636 = vmatprep.subr.bf16.mxu0 0
      %2637 = vmatpush2.bf16.msra.mxu0 0
      %2638 = vmatprep.subr.bf16.mxu0 0
      %2639 = vmatpush2.bf16.msra.mxu0 0
      %2640 = vmatprep.subr.bf16.mxu0 0
      %2641 = vmatpush2.bf16.msra.mxu0 0
      %2642 = vmatprep.mubr.bf16.mxu0 0
      %2643 = vmatmul.mubr.bf16.gmra.mxu0 %v692
      %v2644 = vpop.f32.mrf.mxu0
      %v2645 = vadd.f32 0.0, %v2644
      %v2646 = vpop.f32.mrf.mxu0
      %v2647 = vpop.f32.mrf.mxu0
      %v2648 = vadd.f32 0.0, %v2647
      %v2649 = vpop.f32.mrf.mxu0
      %2650 = vmatprep.mubr.bf16.mxu0 0
      %2651 = vmatmul.mubr.bf16.gmra.mxu0 %v695
      %v2652 = vpop.f32.mrf.mxu0
      %v2653 = vadd.f32 0.0, %v2652
      %v2654 = vpop.f32.mrf.mxu0
      %v2655 = vpop.f32.mrf.mxu0
      %v2656 = vadd.f32 0.0, %v2655
      %v2657 = vpop.f32.mrf.mxu0
      %2658 = vdwg.mxu0
      %v2659 = vsub.f32 %v2596, %v2653
      %v2660 = vsub.f32 %v2599, %v2656
      %v2661 = vpack.c.bf16 %v2660, %v2659
      %v2662 = vadd.f32 %v2645, %v2604
      %v2663 = vadd.f32 %v2648, %v2607
      %v2664 = vpack.c.bf16 %v2663, %v2662
      %v2666 = vsel %vm1371, %v2664, 0
      %2668 = vmatprep.subr.bf16.mxu0 0
      %2669 = vmatpush1.bf16.msra.mxu0 0
      %2670 = vmatprep.subr.bf16.mxu0 0
      %2671 = vmatpush1.bf16.msra.mxu0 0
      %2672 = vmatprep.subr.bf16.mxu0 0
      %2673 = vmatpush1.bf16.msra.mxu0 0
      %2674 = vmatprep.subr.bf16.mxu0 0
      %2675 = vmatpush1.bf16.msra.mxu0 0
      %2676 = vmatprep.subr.bf16.mxu0 0
      %2677 = vmatpush1.bf16.msra.mxu0 0
      %2678 = vmatprep.subr.bf16.mxu0 0
      %2679 = vmatpush1.bf16.msra.mxu0 0
      %2680 = vmatprep.subr.bf16.mxu0 0
      %2681 = vmatpush1.bf16.msra.mxu0 0
      %2682 = vmatprep.subr.bf16.mxu0 0
      %2683 = vmatpush1.bf16.msra.mxu0 %v1380
      %2684 = vmatprep.subr.bf16.mxu0 0
      %2685 = vmatpush2.bf16.msra.mxu0 0
      %2686 = vmatprep.subr.bf16.mxu0 0
      %2687 = vmatpush2.bf16.msra.mxu0 0
      %2688 = vmatprep.subr.bf16.mxu0 0
      %2689 = vmatpush2.bf16.msra.mxu0 0
      %2690 = vmatprep.subr.bf16.mxu0 0
      %2691 = vmatpush2.bf16.msra.mxu0 0
      %2692 = vmatprep.subr.bf16.mxu0 0
      %2693 = vmatpush2.bf16.msra.mxu0 0
      %2694 = vmatprep.subr.bf16.mxu0 0
      %2695 = vmatpush2.bf16.msra.mxu0 0
      %2696 = vmatprep.subr.bf16.mxu0 0
      %2697 = vmatpush2.bf16.msra.mxu0 0
      %2698 = vmatprep.subr.bf16.mxu0 0
      %2699 = vmatpush2.bf16.msra.mxu0 0
      %2700 = vmatprep.mubr.bf16.mxu0 0
      %2701 = vmatmul.mubr.bf16.gmra.mxu0 %v2666
      %v2702 = vpop.f32.mrf.mxu0
      %v2703 = vadd.f32 0.0, %v2702
      %v2704 = vpop.f32.mrf.mxu0
      %v2705 = vpop.f32.mrf.mxu0
      %v2706 = vadd.f32 0.0, %v2705
      %v2707 = vpop.f32.mrf.mxu0
      %2708 = vdwg.mxu0
      %v2710 = vsel %vm1371, %v2661, 0
      %2712 = vmatprep.subr.bf16.mxu0 0
      %2713 = vmatpush1.bf16.msra.mxu0 0
      %2714 = vmatprep.subr.bf16.mxu0 0
      %2715 = vmatpush1.bf16.msra.mxu0 0
      %2716 = vmatprep.subr.bf16.mxu0 0
      %2717 = vmatpush1.bf16.msra.mxu0 0
      %2718 = vmatprep.subr.bf16.mxu0 0
      %2719 = vmatpush1.bf16.msra.mxu0 0
      %2720 = vmatprep.subr.bf16.mxu0 0
      %2721 = vmatpush1.bf16.msra.mxu0 0
      %2722 = vmatprep.subr.bf16.mxu0 0
      %2723 = vmatpush1.bf16.msra.mxu0 0
      %2724 = vmatprep.subr.bf16.mxu0 0
      %2725 = vmatpush1.bf16.msra.mxu0 0
      %2726 = vmatprep.subr.bf16.mxu0 0
      %2727 = vmatpush1.bf16.msra.mxu0 %v1432
      %2728 = vmatprep.subr.bf16.mxu0 0
      %2729 = vmatpush2.bf16.msra.mxu0 0
      %2730 = vmatprep.subr.bf16.mxu0 0
      %2731 = vmatpush2.bf16.msra.mxu0 0
      %2732 = vmatprep.subr.bf16.mxu0 0
      %2733 = vmatpush2.bf16.msra.mxu0 0
      %2734 = vmatprep.subr.bf16.mxu0 0
      %2735 = vmatpush2.bf16.msra.mxu0 0
      %2736 = vmatprep.subr.bf16.mxu0 0
      %2737 = vmatpush2.bf16.msra.mxu0 0
      %2738 = vmatprep.subr.bf16.mxu0 0
      %2739 = vmatpush2.bf16.msra.mxu0 0
      %2740 = vmatprep.subr.bf16.mxu0 0
      %2741 = vmatpush2.bf16.msra.mxu0 0
      %2742 = vmatprep.subr.bf16.mxu0 0
      %2743 = vmatpush2.bf16.msra.mxu0 0
      %2744 = vmatprep.mubr.bf16.mxu0 0
      %2745 = vmatmul.mubr.bf16.gmra.mxu0 %v2710
      %v2746 = vpop.f32.mrf.mxu0
      %v2747 = vadd.f32 %v2703, %v2746
      %v2748 = vpop.f32.mrf.mxu0
      %v2749 = vpop.f32.mrf.mxu0
      %v2750 = vadd.f32 %v2706, %v2749
      %v2751 = vpop.f32.mrf.mxu0
      %2752 = vdwg.mxu0
      %2753 = vst.msk [vmem:[%s279 + $0x30] sm:$0xff] %vm377, %v2747
      %2754 = vst.msk [vmem:[%s279 + $0x38] sm:$0xff] %vm377, %v2750
      %p2755 = scmp.lt.s32.totalorder %s19, 1
      %s2756 = scalar_select %p2755, %s19, 1
      %s2757 = smul.addr %s2756, 8
      %s2758 = smul.addr %s2757, 8
      %s2759 = scalar_lea.vmem %s7, %s2758
      // Predicated region
      $region49: #{tpu_custom_call.1} parent=47 // pred_check
        %p2760 = pneg %p189
      $region50: #{tpu_custom_call.1} parent=47 // pred_check_branch
        %2762 = sbr.rel (%p2760) target = $region52
      $region51: #{tpu_custom_call.1} parent=47 // pred_region
        _
      $region52: #{tpu_custom_call.1} parent=47 // pred_fallthru
        _
    $region48: #{tpu_custom_call.1} parent=5 // pred_fallthru
      _
    %p2763 = scmp.le.s32.totalorder 2, %s14
    // Predicated region
    $region53: #{tpu_custom_call.1} parent=5 // pred_check
      %p2764 = pneg %p2763
    $region54: #{tpu_custom_call.1} parent=5 // pred_check_branch
      %2766 = sbr.rel (%p2764) target = $region56
    $region55: #{tpu_custom_call.1} parent=5 // pred_region
      %s2767 = ssub.s32 %s14, 2
      // Predicated region
      $region57: #{tpu_custom_call.1} parent=55 // pred_check
        %p2768 = pneg %p195
      $region58: #{tpu_custom_call.1} parent=55 // pred_check_branch
        %2770 = sbr.rel (%p2768) target = $region60
      $region59: #{tpu_custom_call.1} parent=55 // pred_region
        %p2771 = scmp.lt.s32.totalorder %s20, 1
        %s2772 = scalar_select %p2771, %s20, 1
        %s2773 = smul.addr %s2772, 8
        %s2774 = smul.addr %s2773, 8
        %s2775 = scalar_lea.vmem %s7, %s2774
      $region60: #{tpu_custom_call.1} parent=55 // pred_fallthru
        _
    $region56: #{tpu_custom_call.1} parent=5 // pred_fallthru
      _
  $region6: #{tpu_custom_call.1} parent=0 // loop_footer
    %s18 = sadd.s32 1, %s14
  $region7: #{tpu_custom_call.1} parent=0 // loop_footer_branch
    %13 = sbr.rel target = $region3
  $region8: #{tpu_custom_call.1} parent=0 // loop_exit
    _

// kernel: tpu_custom_call.1
$region0: #{tpu_custom_call.1}
  #allocation0 [shape = 'u32[]', space=smem, size = 0x4, offset = 0x4, fixed_abs, tag = 'smem constant byte address 0x4 - core index']
  #allocation1 [shape = 'u32[144,128]{1,0:T(1,128)}', space=vmem, size = 0x12000, scoped, tag = 'internal scratch']
  #allocation2 [shape = 'f32[1,1]{1,0:T(1,128)S(6)}', space=smem, size = 0x200, scoped, tag = 'scoped memory for tpu_custom_call.1']
  %s0 = inlined_call_operand.vmem [shape: bf16[2,176,16], index: 0, kind: input, shape index: {}]
  %s1 = inlined_call_operand.<no memory space> [shape: f32[1,1], index: 1, kind: input, shape index: {}]
  %s2 = inlined_call_operand.vmem [shape: bf16[16,9], index: 2, kind: input, shape index: {}]
  %s3 = inlined_call_operand.vmem [shape: bf16[16,9], index: 3, kind: input, shape index: {}]
  %s4 = inlined_call_operand.vmem [shape: bf16[32,16], index: 4, kind: input, shape index: {}]
  %s5 = inlined_call_operand.vmem [shape: bf16[9,16], index: 5, kind: input, shape index: {}]
  %s6 = inlined_call_operand.vmem [shape: bf16[9,16], index: 6, kind: input, shape index: {}]
  %s7 = inlined_call_operand.vmem [shape: f32[2,64,16], index: 7, kind: output, shape index: {}]
  %s8 = sld [smem:[#allocation0]]
  $region61: #{tpu_custom_call.1} parent=0
    _
  %s10 = ssub.s32 1, %s8
  %s11 = scalar_select 0, %s10, %s8
  %12 = sst [smem:[#allocation2]] %s1
  loop: start=0, step=1, limit=4
  $region2: #{tpu_custom_call.1} parent=0 // loop_pre_header
    _
  $region3: #{tpu_custom_call.1} parent=0 // loop_header
    %s14 = sphi 0, %s18
    %p15 = scmp.ge.s32.totalorder %s14, 4
    %s24 = sphi 0, %s26
    %s27 = sphi 0, %s24
    %s28 = sphi 0, %s27
    %s44 = sphi 0, %s28
    %s48 = sphi 0, %s48
    %s50 = sphi 0, %s48
    %s51 = sphi 0, %s50
    %s65 = sphi 0, %s51
    %s69 = sphi 0, %s69
    %s71 = sphi 0, %s69
    %s72 = sphi 0, %s71
    %s86 = sphi 0, %s72
    %s90 = sphi 0, %s90
    %s92 = sphi 0, %s90
    %s93 = sphi 0, %s92
    %s107 = sphi 0, %s93
    %s111 = sphi 0, %s111
    %s113 = sphi 0, %s111
    %s114 = sphi 0, %s113
    %s128 = sphi 0, %s114
    %s132 = sphi 0, %s132
    %s134 = sphi 0, %s132
    %s135 = sphi 0, %s134
    %s149 = sphi 0, %s135
    %s153 = sphi 0, %s153
    %s155 = sphi 0, %s153
    %s156 = sphi 0, %s155
    %s170 = sphi 0, %s156
    %s176 = sphi 0, %s178
    %s179 = sphi 0, %s176
    %s180 = sphi 0, %s179
    %s196 = sphi 0, %s180
  $region4: #{tpu_custom_call.1} parent=0 // loop_header_branch
    %17 = sbr.rel (%p15) target = $region8
  $region5: #{tpu_custom_call.1} parent=0 // loop_body
    %s19 = ssub.s32 %s14, 1
    %s20 = ssub.s32 %s14, 2
    %s21 = sadd.s32 %s14, 1
    %s22 = ssub.s32 %s14, %s21
    %p23 = scmp.eq.s32.totalorder %s22, 0
    %s25 = sadd.s32 %s24, 1
    %s26 = scalar_select %p23, %s24, %s25
    %p29 = pneg %p23
    %p30 = scmp.eq.s32.totalorder %s14, 1
    %p31 = por %p29, %p30
    %p32 = scmp.ne.s32.totalorder %s24, %s27
    %p33 = scmp.eq.s32.totalorder %s14, 0
    %p34 = por %p32, %p33
    %p35 = scmp.ne.s32.totalorder %s24, %s27
    %p36 = scmp.eq.s32.totalorder %s19, 1
    %p37 = por %p35, %p36
    %p38 = scmp.ne.s32.totalorder %s27, %s28
    %p39 = scmp.eq.s32.totalorder %s19, 0
    %p40 = por %p38, %p39
    %p41 = scmp.ne.s32.totalorder %s27, %s28
    %p42 = scmp.eq.s32.totalorder %s20, 1
    %p43 = por %p41, %p42
    %p45 = scmp.ne.s32.totalorder %s28, %s44
    %p46 = scmp.eq.s32.totalorder %s20, 0
    %p47 = por %p45, %p46
    %s49 = sadd.s32 %s48, 1
    %p52 = scmp.eq.s32.totalorder %s14, 1
    %p53 = scmp.ne.s32.totalorder %s48, %s50
    %p54 = scmp.eq.s32.totalorder %s14, 0
    %p55 = por %p53, %p54
    %p56 = scmp.ne.s32.totalorder %s48, %s50
    %p57 = scmp.eq.s32.totalorder %s19, 1
    %p58 = por %p56, %p57
    %p59 = scmp.ne.s32.totalorder %s50, %s51
    %p60 = scmp.eq.s32.totalorder %s19, 0
    %p61 = por %p59, %p60
    %p62 = scmp.ne.s32.totalorder %s50, %s51
    %p63 = scmp.eq.s32.totalorder %s20, 1
    %p64 = por %p62, %p63
    %p66 = scmp.ne.s32.totalorder %s51, %s65
    %p67 = scmp.eq.s32.totalorder %s20, 0
    %p68 = por %p66, %p67
    %s70 = sadd.s32 %s69, 1
    %p73 = scmp.eq.s32.totalorder %s14, 1
    %p74 = scmp.ne.s32.totalorder %s69, %s71
    %p75 = scmp.eq.s32.totalorder %s14, 0
    %p76 = por %p74, %p75
    %p77 = scmp.ne.s32.totalorder %s69, %s71
    %p78 = scmp.eq.s32.totalorder %s19, 1
    %p79 = por %p77, %p78
    %p80 = scmp.ne.s32.totalorder %s71, %s72
    %p81 = scmp.eq.s32.totalorder %s19, 0
    %p82 = por %p80, %p81
    %p83 = scmp.ne.s32.totalorder %s71, %s72
    %p84 = scmp.eq.s32.totalorder %s20, 1
    %p85 = por %p83, %p84
    %p87 = scmp.ne.s32.totalorder %s72, %s86
    %p88 = scmp.eq.s32.totalorder %s20, 0
    %p89 = por %p87, %p88
    %s91 = sadd.s32 %s90, 1
    %p94 = scmp.eq.s32.totalorder %s14, 1
    %p95 = scmp.ne.s32.totalorder %s90, %s92
    %p96 = scmp.eq.s32.totalorder %s14, 0
    %p97 = por %p95, %p96
    %p98 = scmp.ne.s32.totalorder %s90, %s92
    %p99 = scmp.eq.s32.totalorder %s19, 1
    %p100 = por %p98, %p99
    %p101 = scmp.ne.s32.totalorder %s92, %s93
    %p102 = scmp.eq.s32.totalorder %s19, 0
    %p103 = por %p101, %p102
    %p104 = scmp.ne.s32.totalorder %s92, %s93
    %p105 = scmp.eq.s32.totalorder %s20, 1
    %p106 = por %p104, %p105
    %p108 = scmp.ne.s32.totalorder %s93, %s107
    %p109 = scmp.eq.s32.totalorder %s20, 0
    %p110 = por %p108, %p109
    %s112 = sadd.s32 %s111, 1
    %p115 = scmp.eq.s32.totalorder %s14, 1
    %p116 = scmp.ne.s32.totalorder %s111, %s113
    %p117 = scmp.eq.s32.totalorder %s14, 0
    %p118 = por %p116, %p117
    %p119 = scmp.ne.s32.totalorder %s111, %s113
    %p120 = scmp.eq.s32.totalorder %s19, 1
    %p121 = por %p119, %p120
    %p122 = scmp.ne.s32.totalorder %s113, %s114
    %p123 = scmp.eq.s32.totalorder %s19, 0
    %p124 = por %p122, %p123
    %p125 = scmp.ne.s32.totalorder %s113, %s114
    %p126 = scmp.eq.s32.totalorder %s20, 1
    %p127 = por %p125, %p126
    %p129 = scmp.ne.s32.totalorder %s114, %s128
    %p130 = scmp.eq.s32.totalorder %s20, 0
    %p131 = por %p129, %p130
    %s133 = sadd.s32 %s132, 1
    %p136 = scmp.eq.s32.totalorder %s14, 1
    %p137 = scmp.ne.s32.totalorder %s132, %s134
    %p138 = scmp.eq.s32.totalorder %s14, 0
    %p139 = por %p137, %p138
    %p140 = scmp.ne.s32.totalorder %s132, %s134
    %p141 = scmp.eq.s32.totalorder %s19, 1
    %p142 = por %p140, %p141
    %p143 = scmp.ne.s32.totalorder %s134, %s135
    %p144 = scmp.eq.s32.totalorder %s19, 0
    %p145 = por %p143, %p144
    %p146 = scmp.ne.s32.totalorder %s134, %s135
    %p147 = scmp.eq.s32.totalorder %s20, 1
    %p148 = por %p146, %p147
    %p150 = scmp.ne.s32.totalorder %s135, %s149
    %p151 = scmp.eq.s32.totalorder %s20, 0
    %p152 = por %p150, %p151
    %s154 = sadd.s32 %s153, 1
    %p157 = scmp.eq.s32.totalorder %s14, 1
    %p158 = scmp.ne.s32.totalorder %s153, %s155
    %p159 = scmp.eq.s32.totalorder %s14, 0
    %p160 = por %p158, %p159
    %p161 = scmp.ne.s32.totalorder %s153, %s155
    %p162 = scmp.eq.s32.totalorder %s19, 1
    %p163 = por %p161, %p162
    %p164 = scmp.ne.s32.totalorder %s155, %s156
    %p165 = scmp.eq.s32.totalorder %s19, 0
    %p166 = por %p164, %p165
    %p167 = scmp.ne.s32.totalorder %s155, %s156
    %p168 = scmp.eq.s32.totalorder %s20, 1
    %p169 = por %p167, %p168
    %p171 = scmp.ne.s32.totalorder %s156, %s170
    %p172 = scmp.eq.s32.totalorder %s20, 0
    %p173 = por %p171, %p172
    %s174 = ssub.s32 %s14, %s21
    %p175 = scmp.eq.s32.totalorder %s174, 0
    %s177 = sadd.s32 %s176, 1
    %s178 = scalar_select %p175, %s176, %s177
    %p181 = pneg %p175
    %p182 = scmp.eq.s32.totalorder %s14, 1
    %p183 = por %p181, %p182
    %p184 = scmp.ne.s32.totalorder %s176, %s179
    %p185 = scmp.eq.s32.totalorder %s14, 0
    %p186 = por %p184, %p185
    %p187 = scmp.ne.s32.totalorder %s176, %s179
    %p188 = scmp.eq.s32.totalorder %s19, 1
    %p189 = por %p187, %p188
    %p190 = scmp.ne.s32.totalorder %s179, %s180
    %p191 = scmp.eq.s32.totalorder %s19, 0
    %p192 = por %p190, %p191
    %p193 = scmp.ne.s32.totalorder %s179, %s180
    %p194 = scmp.eq.s32.totalorder %s20, 1
    %p195 = por %p193, %p194
    %p197 = scmp.ne.s32.totalorder %s180, %s196
    %p198 = scmp.eq.s32.totalorder %s20, 0
    %p199 = por %p197, %p198
    %p200 = scmp.le.s32.totalorder 1, %s14
    %p201 = scmp.lt.s32.totalorder %s14, 3
    %p202 = pnand %p200, %p201
    %p203 = pneg %p202
    // Predicated region
    $region9: #{tpu_custom_call.1} parent=5 // pred_check
      _
    $region10: #{tpu_custom_call.1} parent=5 // pred_check_branch
      %205 = sbr.rel (%p202) target = $region12
    $region11: #{tpu_custom_call.1} parent=5 // pred_region
      %s206 = ssub.s32 %s14, 1
      // Predicated region
      $region13: #{tpu_custom_call.1} parent=11 // pred_check
        %p207 = pneg %p61
      $region14: #{tpu_custom_call.1} parent=11 // pred_check_branch
        %209 = sbr.rel (%p207) target = $region16
      $region15: #{tpu_custom_call.1} parent=11 // pred_region
        _
      $region16: #{tpu_custom_call.1} parent=11 // pred_fallthru
        _
      // Predicated region
      $region17: #{tpu_custom_call.1} parent=11 // pred_check
        %p210 = pneg %p82
      $region18: #{tpu_custom_call.1} parent=11 // pred_check_branch
        %212 = sbr.rel (%p210) target = $region20
      $region19: #{tpu_custom_call.1} parent=11 // pred_region
        _
      $region20: #{tpu_custom_call.1} parent=11 // pred_fallthru
        _
      // Predicated region
      $region21: #{tpu_custom_call.1} parent=11 // pred_check
        %p213 = pneg %p103
      $region22: #{tpu_custom_call.1} parent=11 // pred_check_branch
        %215 = sbr.rel (%p213) target = $region24
      $region23: #{tpu_custom_call.1} parent=11 // pred_region
        _
      $region24: #{tpu_custom_call.1} parent=11 // pred_fallthru
        _
      // Predicated region
      $region25: #{tpu_custom_call.1} parent=11 // pred_check
        %p216 = pneg %p124
      $region26: #{tpu_custom_call.1} parent=11 // pred_check_branch
        %218 = sbr.rel (%p216) target = $region28
      $region27: #{tpu_custom_call.1} parent=11 // pred_region
        _
      $region28: #{tpu_custom_call.1} parent=11 // pred_fallthru
        _
      // Predicated region
      $region29: #{tpu_custom_call.1} parent=11 // pred_check
        %p219 = pneg %p145
      $region30: #{tpu_custom_call.1} parent=11 // pred_check_branch
        %221 = sbr.rel (%p219) target = $region32
      $region31: #{tpu_custom_call.1} parent=11 // pred_region
        _
      $region32: #{tpu_custom_call.1} parent=11 // pred_fallthru
        _
      // Predicated region
      $region33: #{tpu_custom_call.1} parent=11 // pred_check
        %p222 = pneg %p166
      $region34: #{tpu_custom_call.1} parent=11 // pred_check_branch
        %224 = sbr.rel (%p222) target = $region36
      $region35: #{tpu_custom_call.1} parent=11 // pred_region
        _
      $region36: #{tpu_custom_call.1} parent=11 // pred_fallthru
        _
    $region12: #{tpu_custom_call.1} parent=5 // pred_fallthru
      _
    %p225 = scmp.lt.s32.totalorder %s14, 2
    // Predicated region
    $region37: #{tpu_custom_call.1} parent=5 // pred_check
      %p226 = pneg %p225
    $region38: #{tpu_custom_call.1} parent=5 // pred_check_branch
      %228 = sbr.rel (%p226) target = $region40
    $region39: #{tpu_custom_call.1} parent=5 // pred_region
      // Predicated region
      $region41: #{tpu_custom_call.1} parent=39 // pred_check
        %p229 = pneg %p34
      $region42: #{tpu_custom_call.1} parent=39 // pred_check_branch
        %231 = sbr.rel (%p229) target = $region44
      $region43: #{tpu_custom_call.1} parent=39 // pred_region
        %p232 = scmp.lt.s32.totalorder %s14, 1
        %s233 = scalar_select %p232, %s14, 1
        %s234 = smul.addr %s233, 22
        %s235 = smul.addr %s234, 4
        %s236 = scalar_lea.vmem %s0, %s235
      $region44: #{tpu_custom_call.1} parent=39 // pred_fallthru
        _
    $region40: #{tpu_custom_call.1} parent=5 // pred_fallthru
      _
    %p237 = scmp.le.s32.totalorder 1, %s14
    %p238 = scmp.lt.s32.totalorder %s14, 3
    %p239 = pnand %p237, %p238
    %p240 = pneg %p239
    // Predicated region
    $region45: #{tpu_custom_call.1} parent=5 // pred_check
      _
    $region46: #{tpu_custom_call.1} parent=5 // pred_check_branch
      %242 = sbr.rel (%p239) target = $region48
    $region47: #{tpu_custom_call.1} parent=5 // pred_region
      %s243 = ssub.s32 %s14, 1
      %p244 = scmp.lt.s32.totalorder %s19, 1
      %s245 = scalar_select %p244, %s19, 1
      %s246 = smul.addr %s245, 22
      %s247 = smul.addr %s246, 4
      %s248 = scalar_lea.vmem %s0, %s247
      %p249 = pneg %p40
      %p250 = pneg %p37
      %p251 = pneg %p61
      %p252 = pneg %p58
      %p253 = pneg %p82
      %p254 = pneg %p79
      %p255 = pneg %p103
      %p256 = pneg %p100
      %p257 = pneg %p124
      %p258 = pneg %p121
      %p259 = pneg %p145
      %p260 = pneg %p142
      %p261 = pneg %p166
      %p262 = pneg %p163
      %p263 = pneg %p192
      %p264 = pneg %p189
      %p265 = scmp.lt.s32.totalorder %s19, 1
      %s266 = scalar_select %p265, %s19, 1
      %s267 = smul.addr %s266, 8
      %s268 = smul.addr %s267, 8
      %s269 = scalar_lea.vmem %s7, %s268
      %p270 = scmp.lt.s32.totalorder %s19, 1
      %s271 = scalar_select %p270, %s19, 1
      %s272 = smul.addr %s271, 22
      %s273 = smul.addr %s272, 4
      %s274 = scalar_lea.vmem %s0, %s273
      %p275 = scmp.lt.s32.totalorder %s19, 1
      %s276 = scalar_select %p275, %s19, 1
      %s277 = smul.addr %s276, 8
      %s278 = smul.addr %s277, 8
      %s279 = scalar_lea.vmem %s7, %s278
      %s281 = sld [smem:[#allocation2]]
      %v282 = vld [vmem:[%s274] sm:$0xf]
      %v283 = vld [vmem:[%s274 + $0x4] sm:$0xf]
      %v284 = vld [vmem:[%s274 + $0x8] sm:$0xf]
      %v285 = vld [vmem:[%s274 + $0xc] sm:$0xf]
      %v286 = vld [vmem:[%s274 + $0x10] sm:$0xf]
      %v287 = vld [vmem:[%s274 + $0x14] sm:$0xf]
      %v288 = vld [vmem:[%s274 + $0x18] sm:$0xf]
      %v289 = vld [vmem:[%s274 + $0x1c] sm:$0xf]
      %v290 = vld [vmem:[%s274 + $0x20] sm:$0xf]
      %v291 = vld [vmem:[%s274 + $0x24] sm:$0xf]
      %v292 = vld [vmem:[%s274 + $0x28] sm:$0xf]
      %v293 = vld [vmem:[%s274 + $0x2c] sm:$0xf]
      %v294 = vld [vmem:[%s274 + $0x30] sm:$0xf]
      %v295 = vld [vmem:[%s274 + $0x34] sm:$0xf]
      %v296 = vld [vmem:[%s274 + $0x38] sm:$0xf]
      %v297 = vld [vmem:[%s274 + $0x3c] sm:$0xf]
      %v298 = vld [vmem:[%s274 + $0x40] sm:$0xf]
      %v299 = vld [vmem:[%s274 + $0x44] sm:$0xf]
      %v300 = vld [vmem:[%s274 + $0x48] sm:$0xf]
      %v301 = vld [vmem:[%s274 + $0x4c] sm:$0xf]
      %v302 = vld [vmem:[%s274 + $0x50] sm:$0xf]
      %v303 = vld [vmem:[%s274 + $0x54] sm:$0xf]
      %v304 = vld [vmem:[%s2] sm:$0xf]
      %v305 = vld [vmem:[%s2 + $0x4] sm:$0xf]
      %v306 = vld [vmem:[%s3] sm:$0xf]
      %v307 = vld [vmem:[%s3 + $0x4] sm:$0xf]
      %v308 = vld [vmem:[%s4] sm:$0xf]
      %v309 = vld [vmem:[%s4 + $0x4] sm:$0xf]
      %v310 = vld [vmem:[%s4 + $0x8] sm:$0xf]
      %v311 = vld [vmem:[%s4 + $0xc] sm:$0xf]
      %v312 = vld [vmem:[%s5] sm:$0xf]
      %v313 = vld [vmem:[%s5 + $0x4] sm:$0x1]
      %v314 = vld [vmem:[%s6] sm:$0xf]
      %v315 = vld [vmem:[%s6 + $0x4] sm:$0x1]
      %v338 = vunpack.c.l.b16 %v282
      %v339 = vunpack.c.l.b16 %v283
      %v340 = vunpack.c.l.b16 %v284
      %v341 = vunpack.c.l.b16 %v285
      %v342 = vunpack.c.l.b16 %v286
      %v343 = vunpack.c.l.b16 %v287
      %v344 = vunpack.c.l.b16 %v288
      %v345 = vunpack.c.l.b16 %v289
      %v346 = vunpack.c.l.b16 %v290
      %v347 = vunpack.c.l.b16 %v291
      %v348 = vunpack.c.l.b16 %v292
      %v349 = vunpack.c.l.b16 %v293
      %v350 = vunpack.c.l.b16 %v294
      %v351 = vunpack.c.l.b16 %v295
      %v352 = vunpack.c.l.b16 %v296
      %v353 = vunpack.c.l.b16 %v297
      %v354 = vunpack.c.l.b16 %v298
      %v355 = vunpack.c.l.b16 %v299
      %v356 = vunpack.c.l.b16 %v300
      %v357 = vunpack.c.l.b16 %v301
      %v358 = vunpack.c.l.b16 %v302
      %v359 = vunpack.c.l.b16 %v303
      %v360 = vpack.c.b16 %v339, %v338
      %v361 = vpack.c.b16 %v341, %v340
      %v362 = vpack.c.b16 %v343, %v342
      %v363 = vpack.c.b16 %v345, %v344
      %v364 = vpack.c.b16 %v347, %v346
      %v365 = vpack.c.b16 %v349, %v348
      %v366 = vpack.c.b16 %v351, %v350
      %v367 = vpack.c.b16 %v353, %v352
      %v368 = vpack.c.b16 %v355, %v354
      %v369 = vpack.c.b16 %v357, %v356
      %v370 = vpack.c.b16 %v359, %v358
      %v373 = vunpack.c.l.b16 %v304
      %v374 = vunpack.c.l.b16 %v305
      %v375 = vpack.c.b16 %v374, %v373
      %vm377 = vcmask 130048
      %v379 = vsel %vm377, %v360, 0
      %v382 = vsel %vm377, %v361, 0
      %v385 = vsel %vm377, %v362, 0
      %v388 = vsel %vm377, %v363, 0
      %v391 = vsel %vm377, %v364, 0
      %v394 = vsel %vm377, %v365, 0
      %v397 = vsel %vm377, %v366, 0
      %v400 = vsel %vm377, %v367, 0
      %v403 = vsel %vm377, %v368, 0
      %v406 = vsel %vm377, %v369, 0
      %v409 = vsel %vm377, %v370, 0
      %411 = vmatprep.subr.bf16.mxu0 0
      %412 = vmatpush1.bf16.msra.mxu0 0
      %413 = vmatprep.subr.bf16.mxu0 0
      %414 = vmatpush1.bf16.msra.mxu0 0
      %415 = vmatprep.subr.bf16.mxu0 0
      %416 = vmatpush1.bf16.msra.mxu0 0
      %417 = vmatprep.subr.bf16.mxu0 0
      %418 = vmatpush1.bf16.msra.mxu0 0
      %419 = vmatprep.subr.bf16.mxu0 0
      %420 = vmatpush1.bf16.msra.mxu0 0
      %421 = vmatprep.subr.bf16.mxu0 0
      %422 = vmatpush1.bf16.msra.mxu0 0
      %423 = vmatprep.subr.bf16.mxu0 0
      %424 = vmatpush1.bf16.msra.mxu0 0
      %425 = vmatprep.subr.bf16.mxu0 0
      %426 = vmatpush1.bf16.msra.mxu0 %v375
      %427 = vmatprep.subr.bf16.mxu0 0
      %428 = vmatpush2.bf16.msra.mxu0 0
      %429 = vmatprep.subr.bf16.mxu0 0
      %430 = vmatpush2.bf16.msra.mxu0 0
      %431 = vmatprep.subr.bf16.mxu0 0
      %432 = vmatpush2.bf16.msra.mxu0 0
      %433 = vmatprep.subr.bf16.mxu0 0
      %434 = vmatpush2.bf16.msra.mxu0 0
      %435 = vmatprep.subr.bf16.mxu0 0
      %436 = vmatpush2.bf16.msra.mxu0 0
      %437 = vmatprep.subr.bf16.mxu0 0
      %438 = vmatpush2.bf16.msra.mxu0 0
      %439 = vmatprep.subr.bf16.mxu0 0
      %440 = vmatpush2.bf16.msra.mxu0 0
      %441 = vmatprep.subr.bf16.mxu0 0
      %442 = vmatpush2.bf16.msra.mxu0 0
      %443 = vmatprep.mubr.bf16.mxu0 0
      %444 = vmatmul.mubr.bf16.gmra.mxu0 %v379
      %v445 = vpop.f32.mrf.mxu0
      %v446 = vadd.f32 0.0, %v445
      %v447 = vpop.f32.mrf.mxu0
      %v448 = vpop.f32.mrf.mxu0
      %v449 = vadd.f32 0.0, %v448
      %v450 = vpop.f32.mrf.mxu0
      %451 = vmatprep.mubr.bf16.mxu0 0
      %452 = vmatmul.mubr.bf16.gmra.mxu0 %v382
      %v453 = vpop.f32.mrf.mxu0
      %v454 = vadd.f32 0.0, %v453
      %v455 = vpop.f32.mrf.mxu0
      %v456 = vpop.f32.mrf.mxu0
      %v457 = vadd.f32 0.0, %v456
      %v458 = vpop.f32.mrf.mxu0
      %459 = vmatprep.mubr.bf16.mxu0 0
      %460 = vmatmul.mubr.bf16.gmra.mxu0 %v385
      %v461 = vpop.f32.mrf.mxu0
      %v462 = vadd.f32 0.0, %v461
      %v463 = vpop.f32.mrf.mxu0
      %v464 = vpop.f32.mrf.mxu0
      %v465 = vadd.f32 0.0, %v464
      %v466 = vpop.f32.mrf.mxu0
      %467 = vmatprep.mubr.bf16.mxu0 0
      %468 = vmatmul.mubr.bf16.gmra.mxu0 %v388
      %v469 = vpop.f32.mrf.mxu0
      %v470 = vadd.f32 0.0, %v469
      %v471 = vpop.f32.mrf.mxu0
      %v472 = vpop.f32.mrf.mxu0
      %v473 = vadd.f32 0.0, %v472
      %v474 = vpop.f32.mrf.mxu0
      %475 = vmatprep.mubr.bf16.mxu0 0
      %476 = vmatmul.mubr.bf16.gmra.mxu0 %v391
      %v477 = vpop.f32.mrf.mxu0
      %v478 = vadd.f32 0.0, %v477
      %v479 = vpop.f32.mrf.mxu0
      %v480 = vpop.f32.mrf.mxu0
      %v481 = vadd.f32 0.0, %v480
      %v482 = vpop.f32.mrf.mxu0
      %483 = vmatprep.mubr.bf16.mxu0 0
      %484 = vmatmul.mubr.bf16.gmra.mxu0 %v394
      %v485 = vpop.f32.mrf.mxu0
      %v486 = vadd.f32 0.0, %v485
      %v487 = vpop.f32.mrf.mxu0
      %v488 = vpop.f32.mrf.mxu0
      %v489 = vadd.f32 0.0, %v488
      %v490 = vpop.f32.mrf.mxu0
      %491 = vmatprep.mubr.bf16.mxu0 0
      %492 = vmatmul.mubr.bf16.gmra.mxu0 %v397
      %v493 = vpop.f32.mrf.mxu0
      %v494 = vadd.f32 0.0, %v493
      %v495 = vpop.f32.mrf.mxu0
      %v496 = vpop.f32.mrf.mxu0
      %v497 = vadd.f32 0.0, %v496
      %v498 = vpop.f32.mrf.mxu0
      %499 = vmatprep.mubr.bf16.mxu0 0
      %500 = vmatmul.mubr.bf16.gmra.mxu0 %v400
      %v501 = vpop.f32.mrf.mxu0
      %v502 = vadd.f32 0.0, %v501
      %v503 = vpop.f32.mrf.mxu0
      %v504 = vpop.f32.mrf.mxu0
      %v505 = vadd.f32 0.0, %v504
      %v506 = vpop.f32.mrf.mxu0
      %507 = vmatprep.mubr.bf16.mxu0 0
      %508 = vmatmul.mubr.bf16.gmra.mxu0 %v403
      %v509 = vpop.f32.mrf.mxu0
      %v510 = vadd.f32 0.0, %v509
      %v511 = vpop.f32.mrf.mxu0
      %v512 = vpop.f32.mrf.mxu0
      %v513 = vadd.f32 0.0, %v512
      %v514 = vpop.f32.mrf.mxu0
      %515 = vmatprep.mubr.bf16.mxu0 0
      %516 = vmatmul.mubr.bf16.gmra.mxu0 %v406
      %v517 = vpop.f32.mrf.mxu0
      %v518 = vadd.f32 0.0, %v517
      %v519 = vpop.f32.mrf.mxu0
      %v520 = vpop.f32.mrf.mxu0
      %v521 = vadd.f32 0.0, %v520
      %v522 = vpop.f32.mrf.mxu0
      %523 = vmatprep.mubr.bf16.mxu0 0
      %524 = vmatmul.mubr.bf16.gmra.mxu0 %v409
      %v525 = vpop.f32.mrf.mxu0
      %v526 = vadd.f32 0.0, %v525
      %v527 = vpop.f32.mrf.mxu0
      %v528 = vpop.f32.mrf.mxu0
      %v529 = vadd.f32 0.0, %v528
      %v530 = vpop.f32.mrf.mxu0
      %531 = vdwg.mxu0
      %v532 = vpack.c.bf16 %v449, %v446
      %v533 = vpack.c.bf16 %v457, %v454
      %v534 = vpack.c.bf16 %v465, %v462
      %v535 = vpack.c.bf16 %v473, %v470
      %v536 = vpack.c.bf16 %v481, %v478
      %v537 = vpack.c.bf16 %v489, %v486
      %v538 = vpack.c.bf16 %v497, %v494
      %v539 = vpack.c.bf16 %v505, %v502
      %v540 = vpack.c.bf16 %v513, %v510
      %v541 = vpack.c.bf16 %v521, %v518
      %v542 = vpack.c.bf16 %v529, %v526
      %v545 = vunpack.c.l.b16 %v306
      %v546 = vunpack.c.l.b16 %v307
      %v547 = vpack.c.b16 %v546, %v545
      %549 = vmatprep.subr.bf16.mxu0 0
      %550 = vmatpush1.bf16.msra.mxu0 0
      %551 = vmatprep.subr.bf16.mxu0 0
      %552 = vmatpush1.bf16.msra.mxu0 0
      %553 = vmatprep.subr.bf16.mxu0 0
      %554 = vmatpush1.bf16.msra.mxu0 0
      %555 = vmatprep.subr.bf16.mxu0 0
      %556 = vmatpush1.bf16.msra.mxu0 0
      %557 = vmatprep.subr.bf16.mxu0 0
      %558 = vmatpush1.bf16.msra.mxu0 0
      %559 = vmatprep.subr.bf16.mxu0 0
      %560 = vmatpush1.bf16.msra.mxu0 0
      %561 = vmatprep.subr.bf16.mxu0 0
      %562 = vmatpush1.bf16.msra.mxu0 0
      %563 = vmatprep.subr.bf16.mxu0 0
      %564 = vmatpush1.bf16.msra.mxu0 %v547
      %565 = vmatprep.subr.bf16.mxu0 0
      %566 = vmatpush2.bf16.msra.mxu0 0
      %567 = vmatprep.subr.bf16.mxu0 0
      %568 = vmatpush2.bf16.msra.mxu0 0
      %569 = vmatprep.subr.bf16.mxu0 0
      %570 = vmatpush2.bf16.msra.mxu0 0
      %571 = vmatprep.subr.bf16.mxu0 0
      %572 = vmatpush2.bf16.msra.mxu0 0
      %573 = vmatprep.subr.bf16.mxu0 0
      %574 = vmatpush2.bf16.msra.mxu0 0
      %575 = vmatprep.subr.bf16.mxu0 0
      %576 = vmatpush2.bf16.msra.mxu0 0
      %577 = vmatprep.subr.bf16.mxu0 0
      %578 = vmatpush2.bf16.msra.mxu0 0
      %579 = vmatprep.subr.bf16.mxu0 0
      %580 = vmatpush2.bf16.msra.mxu0 0
      %581 = vmatprep.mubr.bf16.mxu0 0
      %582 = vmatmul.mubr.bf16.gmra.mxu0 %v379
      %v583 = vpop.f32.mrf.mxu0
      %v584 = vadd.f32 0.0, %v583
      %v585 = vpop.f32.mrf.mxu0
      %v586 = vpop.f32.mrf.mxu0
      %v587 = vadd.f32 0.0, %v586
      %v588 = vpop.f32.mrf.mxu0
      %589 = vmatprep.mubr.bf16.mxu0 0
      %590 = vmatmul.mubr.bf16.gmra.mxu0 %v382
      %v591 = vpop.f32.mrf.mxu0
      %v592 = vadd.f32 0.0, %v591
      %v593 = vpop.f32.mrf.mxu0
      %v594 = vpop.f32.mrf.mxu0
      %v595 = vadd.f32 0.0, %v594
      %v596 = vpop.f32.mrf.mxu0
      %597 = vmatprep.mubr.bf16.mxu0 0
      %598 = vmatmul.mubr.bf16.gmra.mxu0 %v385
      %v599 = vpop.f32.mrf.mxu0
      %v600 = vadd.f32 0.0, %v599
      %v601 = vpop.f32.mrf.mxu0
      %v602 = vpop.f32.mrf.mxu0
      %v603 = vadd.f32 0.0, %v602
      %v604 = vpop.f32.mrf.mxu0
      %605 = vmatprep.mubr.bf16.mxu0 0
      %606 = vmatmul.mubr.bf16.gmra.mxu0 %v388
      %v607 = vpop.f32.mrf.mxu0
      %v608 = vadd.f32 0.0, %v607
      %v609 = vpop.f32.mrf.mxu0
      %v610 = vpop.f32.mrf.mxu0
      %v611 = vadd.f32 0.0, %v610
      %v612 = vpop.f32.mrf.mxu0
      %613 = vmatprep.mubr.bf16.mxu0 0
      %614 = vmatmul.mubr.bf16.gmra.mxu0 %v391
      %v615 = vpop.f32.mrf.mxu0
      %v616 = vadd.f32 0.0, %v615
      %v617 = vpop.f32.mrf.mxu0
      %v618 = vpop.f32.mrf.mxu0
      %v619 = vadd.f32 0.0, %v618
      %v620 = vpop.f32.mrf.mxu0
      %621 = vmatprep.mubr.bf16.mxu0 0
      %622 = vmatmul.mubr.bf16.gmra.mxu0 %v394
      %v623 = vpop.f32.mrf.mxu0
      %v624 = vadd.f32 0.0, %v623
      %v625 = vpop.f32.mrf.mxu0
      %v626 = vpop.f32.mrf.mxu0
      %v627 = vadd.f32 0.0, %v626
      %v628 = vpop.f32.mrf.mxu0
      %629 = vmatprep.mubr.bf16.mxu0 0
      %630 = vmatmul.mubr.bf16.gmra.mxu0 %v397
      %v631 = vpop.f32.mrf.mxu0
      %v632 = vadd.f32 0.0, %v631
      %v633 = vpop.f32.mrf.mxu0
      %v634 = vpop.f32.mrf.mxu0
      %v635 = vadd.f32 0.0, %v634
      %v636 = vpop.f32.mrf.mxu0
      %637 = vmatprep.mubr.bf16.mxu0 0
      %638 = vmatmul.mubr.bf16.gmra.mxu0 %v400
      %v639 = vpop.f32.mrf.mxu0
      %v640 = vadd.f32 0.0, %v639
      %v641 = vpop.f32.mrf.mxu0
      %v642 = vpop.f32.mrf.mxu0
      %v643 = vadd.f32 0.0, %v642
      %v644 = vpop.f32.mrf.mxu0
      %645 = vmatprep.mubr.bf16.mxu0 0
      %646 = vmatmul.mubr.bf16.gmra.mxu0 %v403
      %v647 = vpop.f32.mrf.mxu0
      %v648 = vadd.f32 0.0, %v647
      %v649 = vpop.f32.mrf.mxu0
      %v650 = vpop.f32.mrf.mxu0
      %v651 = vadd.f32 0.0, %v650
      %v652 = vpop.f32.mrf.mxu0
      %653 = vmatprep.mubr.bf16.mxu0 0
      %654 = vmatmul.mubr.bf16.gmra.mxu0 %v406
      %v655 = vpop.f32.mrf.mxu0
      %v656 = vadd.f32 0.0, %v655
      %v657 = vpop.f32.mrf.mxu0
      %v658 = vpop.f32.mrf.mxu0
      %v659 = vadd.f32 0.0, %v658
      %v660 = vpop.f32.mrf.mxu0
      %661 = vmatprep.mubr.bf16.mxu0 0
      %662 = vmatmul.mubr.bf16.gmra.mxu0 %v409
      %v663 = vpop.f32.mrf.mxu0
      %v664 = vadd.f32 0.0, %v663
      %v665 = vpop.f32.mrf.mxu0
      %v666 = vpop.f32.mrf.mxu0
      %v667 = vadd.f32 0.0, %v666
      %v668 = vpop.f32.mrf.mxu0
      %669 = vdwg.mxu0
      %v670 = vpack.c.bf16 %v587, %v584
      %v671 = vpack.c.bf16 %v595, %v592
      %v672 = vpack.c.bf16 %v603, %v600
      %v673 = vpack.c.bf16 %v611, %v608
      %v674 = vpack.c.bf16 %v619, %v616
      %v675 = vpack.c.bf16 %v627, %v624
      %v676 = vpack.c.bf16 %v635, %v632
      %v677 = vpack.c.bf16 %v643, %v640
      %v678 = vpack.c.bf16 %v651, %v648
      %v679 = vpack.c.bf16 %v659, %v656
      %v680 = vpack.c.bf16 %v667, %v664
      %v685 = vunpack.c.l.b16 %v308
      %v686 = vunpack.c.l.b16 %v309
      %v687 = vunpack.c.l.b16 %v310
      %v688 = vunpack.c.l.b16 %v311
      %v689 = vpack.c.b16 %v686, %v685
      %v690 = vpack.c.b16 %v688, %v687
      %v692 = vsel %vm377, %v689, 0
      %v695 = vsel %vm377, %v690, 0
      %697 = vmatprep.subr.bf16.mxu0 0
      %698 = vmatpush1.bf16.msra.mxu0 0
      %699 = vmatprep.subr.bf16.mxu0 0
      %700 = vmatpush1.bf16.msra.mxu0 0
      %701 = vmatprep.subr.bf16.mxu0 0
      %702 = vmatpush1.bf16.msra.mxu0 0
      %703 = vmatprep.subr.bf16.mxu0 0
      %704 = vmatpush1.bf16.msra.mxu0 0
      %705 = vmatprep.subr.bf16.mxu0 0
      %706 = vmatpush1.bf16.msra.mxu0 0
      %707 = vmatprep.subr.bf16.mxu0 0
      %708 = vmatpush1.bf16.msra.mxu0 0
      %709 = vmatprep.subr.bf16.mxu0 0
      %710 = vmatpush1.bf16.msra.mxu0 0
      %711 = vmatprep.subr.bf16.mxu0 0
      %712 = vmatpush1.bf16.msra.mxu0 %v540
      %713 = vmatprep.subr.bf16.mxu0 0
      %714 = vmatpush2.bf16.msra.mxu0 0
      %715 = vmatprep.subr.bf16.mxu0 0
      %716 = vmatpush2.bf16.msra.mxu0 0
      %717 = vmatprep.subr.bf16.mxu0 0
      %718 = vmatpush2.bf16.msra.mxu0 0
      %719 = vmatprep.subr.bf16.mxu0 0
      %720 = vmatpush2.bf16.msra.mxu0 0
      %721 = vmatprep.subr.bf16.mxu0 0
      %722 = vmatpush2.bf16.msra.mxu0 0
      %723 = vmatprep.subr.bf16.mxu0 0
      %724 = vmatpush2.bf16.msra.mxu0 0
      %725 = vmatprep.subr.bf16.mxu0 0
      %726 = vmatpush2.bf16.msra.mxu0 0
      %727 = vmatprep.subr.bf16.mxu0 0
      %728 = vmatpush2.bf16.msra.mxu0 0
      %729 = vmatprep.mubr.bf16.mxu0 0
      %730 = vmatmul.mubr.bf16.gmra.mxu0 %v692
      %v731 = vpop.f32.mrf.mxu0
      %v732 = vadd.f32 0.0, %v731
      %v733 = vpop.f32.mrf.mxu0
      %v734 = vpop.f32.mrf.mxu0
      %v735 = vadd.f32 0.0, %v734
      %v736 = vpop.f32.mrf.mxu0
      %737 = vmatprep.mubr.bf16.mxu0 0
      %738 = vmatmul.mubr.bf16.gmra.mxu0 %v695
      %v739 = vpop.f32.mrf.mxu0
      %v740 = vadd.f32 0.0, %v739
      %v741 = vpop.f32.mrf.mxu0
      %v742 = vpop.f32.mrf.mxu0
      %v743 = vadd.f32 0.0, %v742
      %v744 = vpop.f32.mrf.mxu0
      %745 = vdwg.mxu0
      %746 = vmatprep.subr.bf16.mxu0 0
      %747 = vmatpush1.bf16.msra.mxu0 0
      %748 = vmatprep.subr.bf16.mxu0 0
      %749 = vmatpush1.bf16.msra.mxu0 0
      %750 = vmatprep.subr.bf16.mxu0 0
      %751 = vmatpush1.bf16.msra.mxu0 0
      %752 = vmatprep.subr.bf16.mxu0 0
      %753 = vmatpush1.bf16.msra.mxu0 0
      %754 = vmatprep.subr.bf16.mxu0 0
      %755 = vmatpush1.bf16.msra.mxu0 0
      %756 = vmatprep.subr.bf16.mxu0 0
      %757 = vmatpush1.bf16.msra.mxu0 0
      %758 = vmatprep.subr.bf16.mxu0 0
      %759 = vmatpush1.bf16.msra.mxu0 0
      %760 = vmatprep.subr.bf16.mxu0 0
      %761 = vmatpush1.bf16.msra.mxu0 %v678
      %762 = vmatprep.subr.bf16.mxu0 0
      %763 = vmatpush2.bf16.msra.mxu0 0
      %764 = vmatprep.subr.bf16.mxu0 0
      %765 = vmatpush2.bf16.msra.mxu0 0
      %766 = vmatprep.subr.bf16.mxu0 0
      %767 = vmatpush2.bf16.msra.mxu0 0
      %768 = vmatprep.subr.bf16.mxu0 0
      %769 = vmatpush2.bf16.msra.mxu0 0
      %770 = vmatprep.subr.bf16.mxu0 0
      %771 = vmatpush2.bf16.msra.mxu0 0
      %772 = vmatprep.subr.bf16.mxu0 0
      %773 = vmatpush2.bf16.msra.mxu0 0
      %774 = vmatprep.subr.bf16.mxu0 0
      %775 = vmatpush2.bf16.msra.mxu0 0
      %776 = vmatprep.subr.bf16.mxu0 0
      %777 = vmatpush2.bf16.msra.mxu0 0
      %778 = vmatprep.mubr.bf16.mxu0 0
      %779 = vmatmul.mubr.bf16.gmra.mxu0 %v692
      %v780 = vpop.f32.mrf.mxu0
      %v781 = vadd.f32 0.0, %v780
      %v782 = vpop.f32.mrf.mxu0
      %v783 = vpop.f32.mrf.mxu0
      %v784 = vadd.f32 0.0, %v783
      %v785 = vpop.f32.mrf.mxu0
      %786 = vmatprep.mubr.bf16.mxu0 0
      %787 = vmatmul.mubr.bf16.gmra.mxu0 %v695
      %v788 = vpop.f32.mrf.mxu0
      %v789 = vadd.f32 0.0, %v788
      %v790 = vpop.f32.mrf.mxu0
      %v791 = vpop.f32.mrf.mxu0
      %v792 = vadd.f32 0.0, %v791
      %v793 = vpop.f32.mrf.mxu0
      %794 = vdwg.mxu0
      %v795 = vadd.f32 %v732, %v789
      %v796 = vadd.f32 %v735, %v792
      %v797 = vsub.f32 %v781, %v740
      %v798 = vsub.f32 %v784, %v743
      %v799 = vmul.f32 %v795, %v795
      %v800 = vmul.f32 %v796, %v796
      %v801 = vadd.f32 %v799, 0.0
      %v802 = vadd.f32 %v800, 0.0
      %v803 = vmul.f32 %v797, %v797
      %v804 = vmul.f32 %v798, %v798
      %v805 = vadd.f32 %v801, %v803
      %v806 = vadd.f32 %v802, %v804
      %807 = vmatprep.subr.bf16.mxu0 0
      %808 = vmatpush1.bf16.msra.mxu0 0
      %809 = vmatprep.subr.bf16.mxu0 0
      %810 = vmatpush1.bf16.msra.mxu0 0
      %811 = vmatprep.subr.bf16.mxu0 0
      %812 = vmatpush1.bf16.msra.mxu0 0
      %813 = vmatprep.subr.bf16.mxu0 0
      %814 = vmatpush1.bf16.msra.mxu0 0
      %815 = vmatprep.subr.bf16.mxu0 0
      %816 = vmatpush1.bf16.msra.mxu0 0
      %817 = vmatprep.subr.bf16.mxu0 0
      %818 = vmatpush1.bf16.msra.mxu0 0
      %819 = vmatprep.subr.bf16.mxu0 0
      %820 = vmatpush1.bf16.msra.mxu0 0
      %821 = vmatprep.subr.bf16.mxu0 0
      %822 = vmatpush1.bf16.msra.mxu0 %v541
      %823 = vmatprep.subr.bf16.mxu0 0
      %824 = vmatpush2.bf16.msra.mxu0 0
      %825 = vmatprep.subr.bf16.mxu0 0
      %826 = vmatpush2.bf16.msra.mxu0 0
      %827 = vmatprep.subr.bf16.mxu0 0
      %828 = vmatpush2.bf16.msra.mxu0 0
      %829 = vmatprep.subr.bf16.mxu0 0
      %830 = vmatpush2.bf16.msra.mxu0 0
      %831 = vmatprep.subr.bf16.mxu0 0
      %832 = vmatpush2.bf16.msra.mxu0 0
      %833 = vmatprep.subr.bf16.mxu0 0
      %834 = vmatpush2.bf16.msra.mxu0 0
      %835 = vmatprep.subr.bf16.mxu0 0
      %836 = vmatpush2.bf16.msra.mxu0 0
      %837 = vmatprep.subr.bf16.mxu0 0
      %838 = vmatpush2.bf16.msra.mxu0 0
      %839 = vmatprep.mubr.bf16.mxu0 0
      %840 = vmatmul.mubr.bf16.gmra.mxu0 %v692
      %v841 = vpop.f32.mrf.mxu0
      %v842 = vadd.f32 0.0, %v841
      %v843 = vpop.f32.mrf.mxu0
      %v844 = vpop.f32.mrf.mxu0
      %v845 = vadd.f32 0.0, %v844
      %v846 = vpop.f32.mrf.mxu0
      %847 = vmatprep.mubr.bf16.mxu0 0
      %848 = vmatmul.mubr.bf16.gmra.mxu0 %v695
      %v849 = vpop.f32.mrf.mxu0
      %v850 = vadd.f32 0.0, %v849
      %v851 = vpop.f32.mrf.mxu0
      %v852 = vpop.f32.mrf.mxu0
      %v853 = vadd.f32 0.0, %v852
      %v854 = vpop.f32.mrf.mxu0
      %855 = vdwg.mxu0
      %856 = vmatprep.subr.bf16.mxu0 0
      %857 = vmatpush1.bf16.msra.mxu0 0
      %858 = vmatprep.subr.bf16.mxu0 0
      %859 = vmatpush1.bf16.msra.mxu0 0
      %860 = vmatprep.subr.bf16.mxu0 0
      %861 = vmatpush1.bf16.msra.mxu0 0
      %862 = vmatprep.subr.bf16.mxu0 0
      %863 = vmatpush1.bf16.msra.mxu0 0
      %864 = vmatprep.subr.bf16.mxu0 0
      %865 = vmatpush1.bf16.msra.mxu0 0
      %866 = vmatprep.subr.bf16.mxu0 0
      %867 = vmatpush1.bf16.msra.mxu0 0
      %868 = vmatprep.subr.bf16.mxu0 0
      %869 = vmatpush1.bf16.msra.mxu0 0
      %870 = vmatprep.subr.bf16.mxu0 0
      %871 = vmatpush1.bf16.msra.mxu0 %v679
      %872 = vmatprep.subr.bf16.mxu0 0
      %873 = vmatpush2.bf16.msra.mxu0 0
      %874 = vmatprep.subr.bf16.mxu0 0
      %875 = vmatpush2.bf16.msra.mxu0 0
      %876 = vmatprep.subr.bf16.mxu0 0
      %877 = vmatpush2.bf16.msra.mxu0 0
      %878 = vmatprep.subr.bf16.mxu0 0
      %879 = vmatpush2.bf16.msra.mxu0 0
      %880 = vmatprep.subr.bf16.mxu0 0
      %881 = vmatpush2.bf16.msra.mxu0 0
      %882 = vmatprep.subr.bf16.mxu0 0
      %883 = vmatpush2.bf16.msra.mxu0 0
      %884 = vmatprep.subr.bf16.mxu0 0
      %885 = vmatpush2.bf16.msra.mxu0 0
      %886 = vmatprep.subr.bf16.mxu0 0
      %887 = vmatpush2.bf16.msra.mxu0 0
      %888 = vmatprep.mubr.bf16.mxu0 0
      %889 = vmatmul.mubr.bf16.gmra.mxu0 %v692
      %v890 = vpop.f32.mrf.mxu0
      %v891 = vadd.f32 0.0, %v890
      %v892 = vpop.f32.mrf.mxu0
      %v893 = vpop.f32.mrf.mxu0
      %v894 = vadd.f32 0.0, %v893
      %v895 = vpop.f32.mrf.mxu0
      %896 = vmatprep.mubr.bf16.mxu0 0
      %897 = vmatmul.mubr.bf16.gmra.mxu0 %v695
      %v898 = vpop.f32.mrf.mxu0
      %v899 = vadd.f32 0.0, %v898
      %v900 = vpop.f32.mrf.mxu0
      %v901 = vpop.f32.mrf.mxu0
      %v902 = vadd.f32 0.0, %v901
      %v903 = vpop.f32.mrf.mxu0
      %904 = vdwg.mxu0
      %v905 = vadd.f32 %v842, %v899
      %v906 = vadd.f32 %v845, %v902
      %v907 = vsub.f32 %v891, %v850
      %v908 = vsub.f32 %v894, %v853
      %v909 = vmul.f32 %v905, %v905
      %v910 = vmul.f32 %v906, %v906
      %v911 = vadd.f32 %v805, %v909
      %v912 = vadd.f32 %v806, %v910
      %v913 = vmul.f32 %v907, %v907
      %v914 = vmul.f32 %v908, %v908
      %v915 = vadd.f32 %v911, %v913
      %v916 = vadd.f32 %v912, %v914
      %917 = vmatprep.subr.bf16.mxu0 0
      %918 = vmatpush1.bf16.msra.mxu0 0
      %919 = vmatprep.subr.bf16.mxu0 0
      %920 = vmatpush1.bf16.msra.mxu0 0
      %921 = vmatprep.subr.bf16.mxu0 0
      %922 = vmatpush1.bf16.msra.mxu0 0
      %923 = vmatprep.subr.bf16.mxu0 0
      %924 = vmatpush1.bf16.msra.mxu0 0
      %925 = vmatprep.subr.bf16.mxu0 0
      %926 = vmatpush1.bf16.msra.mxu0 0
      %927 = vmatprep.subr.bf16.mxu0 0
      %928 = vmatpush1.bf16.msra.mxu0 0
      %929 = vmatprep.subr.bf16.mxu0 0
      %930 = vmatpush1.bf16.msra.mxu0 0
      %931 = vmatprep.subr.bf16.mxu0 0
      %932 = vmatpush1.bf16.msra.mxu0 %v542
      %933 = vmatprep.subr.bf16.mxu0 0
      %934 = vmatpush2.bf16.msra.mxu0 0
      %935 = vmatprep.subr.bf16.mxu0 0
      %936 = vmatpush2.bf16.msra.mxu0 0
      %937 = vmatprep.subr.bf16.mxu0 0
      %938 = vmatpush2.bf16.msra.mxu0 0
      %939 = vmatprep.subr.bf16.mxu0 0
      %940 = vmatpush2.bf16.msra.mxu0 0
      %941 = vmatprep.subr.bf16.mxu0 0
      %942 = vmatpush2.bf16.msra.mxu0 0
      %943 = vmatprep.subr.bf16.mxu0 0
      %944 = vmatpush2.bf16.msra.mxu0 0
      %945 = vmatprep.subr.bf16.mxu0 0
      %946 = vmatpush2.bf16.msra.mxu0 0
      %947 = vmatprep.subr.bf16.mxu0 0
      %948 = vmatpush2.bf16.msra.mxu0 0
      %949 = vmatprep.mubr.bf16.mxu0 0
      %950 = vmatmul.mubr.bf16.gmra.mxu0 %v692
      %v951 = vpop.f32.mrf.mxu0
      %v952 = vadd.f32 0.0, %v951
      %v953 = vpop.f32.mrf.mxu0
      %v954 = vpop.f32.mrf.mxu0
      %v955 = vadd.f32 0.0, %v954
      %v956 = vpop.f32.mrf.mxu0
      %957 = vmatprep.mubr.bf16.mxu0 0
      %958 = vmatmul.mubr.bf16.gmra.mxu0 %v695
      %v959 = vpop.f32.mrf.mxu0
      %v960 = vadd.f32 0.0, %v959
      %v961 = vpop.f32.mrf.mxu0
      %v962 = vpop.f32.mrf.mxu0
      %v963 = vadd.f32 0.0, %v962
      %v964 = vpop.f32.mrf.mxu0
      %965 = vdwg.mxu0
      %966 = vmatprep.subr.bf16.mxu0 0
      %967 = vmatpush1.bf16.msra.mxu0 0
      %968 = vmatprep.subr.bf16.mxu0 0
      %969 = vmatpush1.bf16.msra.mxu0 0
      %970 = vmatprep.subr.bf16.mxu0 0
      %971 = vmatpush1.bf16.msra.mxu0 0
      %972 = vmatprep.subr.bf16.mxu0 0
      %973 = vmatpush1.bf16.msra.mxu0 0
      %974 = vmatprep.subr.bf16.mxu0 0
      %975 = vmatpush1.bf16.msra.mxu0 0
      %976 = vmatprep.subr.bf16.mxu0 0
      %977 = vmatpush1.bf16.msra.mxu0 0
      %978 = vmatprep.subr.bf16.mxu0 0
      %979 = vmatpush1.bf16.msra.mxu0 0
      %980 = vmatprep.subr.bf16.mxu0 0
      %981 = vmatpush1.bf16.msra.mxu0 %v680
      %982 = vmatprep.subr.bf16.mxu0 0
      %983 = vmatpush2.bf16.msra.mxu0 0
      %984 = vmatprep.subr.bf16.mxu0 0
      %985 = vmatpush2.bf16.msra.mxu0 0
      %986 = vmatprep.subr.bf16.mxu0 0
      %987 = vmatpush2.bf16.msra.mxu0 0
      %988 = vmatprep.subr.bf16.mxu0 0
      %989 = vmatpush2.bf16.msra.mxu0 0
      %990 = vmatprep.subr.bf16.mxu0 0
      %991 = vmatpush2.bf16.msra.mxu0 0
      %992 = vmatprep.subr.bf16.mxu0 0
      %993 = vmatpush2.bf16.msra.mxu0 0
      %994 = vmatprep.subr.bf16.mxu0 0
      %995 = vmatpush2.bf16.msra.mxu0 0
      %996 = vmatprep.subr.bf16.mxu0 0
      %997 = vmatpush2.bf16.msra.mxu0 0
      %998 = vmatprep.mubr.bf16.mxu0 0
      %999 = vmatmul.mubr.bf16.gmra.mxu0 %v692
      %v1000 = vpop.f32.mrf.mxu0
      %v1001 = vadd.f32 0.0, %v1000
      %v1002 = vpop.f32.mrf.mxu0
      %v1003 = vpop.f32.mrf.mxu0
      %v1004 = vadd.f32 0.0, %v1003
      %v1005 = vpop.f32.mrf.mxu0
      %1006 = vmatprep.mubr.bf16.mxu0 0
      %1007 = vmatmul.mubr.bf16.gmra.mxu0 %v695
      %v1008 = vpop.f32.mrf.mxu0
      %v1009 = vadd.f32 0.0, %v1008
      %v1010 = vpop.f32.mrf.mxu0
      %v1011 = vpop.f32.mrf.mxu0
      %v1012 = vadd.f32 0.0, %v1011
      %v1013 = vpop.f32.mrf.mxu0
      %1014 = vdwg.mxu0
      %v1015 = vadd.f32 %v952, %v1009
      %v1016 = vadd.f32 %v955, %v1012
      %v1017 = vsub.f32 %v1001, %v960
      %v1018 = vsub.f32 %v1004, %v963
      %v1019 = vmul.f32 %v1015, %v1015
      %v1020 = vmul.f32 %v1016, %v1016
      %v1021 = vadd.f32 %v915, %v1019
      %v1022 = vadd.f32 %v916, %v1020
      %v1023 = vmul.f32 %v1017, %v1017
      %v1024 = vmul.f32 %v1018, %v1018
      %v1025 = vadd.f32 %v1021, %v1023
      %v1026 = vadd.f32 %v1022, %v1024
      %v1027 = vstv %s281
      %v1028 = vmul.f32 %v1027, %v1025
      %v1029 = vmul.f32 %v1027, %v1026
      %1030 = vmatprep.subr.bf16.mxu0 0
      %1031 = vmatpush1.bf16.msra.mxu0 0
      %1032 = vmatprep.subr.bf16.mxu0 0
      %1033 = vmatpush1.bf16.msra.mxu0 0
      %1034 = vmatprep.subr.bf16.mxu0 0
      %1035 = vmatpush1.bf16.msra.mxu0 0
      %1036 = vmatprep.subr.bf16.mxu0 0
      %1037 = vmatpush1.bf16.msra.mxu0 0
      %1038 = vmatprep.subr.bf16.mxu0 0
      %1039 = vmatpush1.bf16.msra.mxu0 0
      %1040 = vmatprep.subr.bf16.mxu0 0
      %1041 = vmatpush1.bf16.msra.mxu0 0
      %1042 = vmatprep.subr.bf16.mxu0 0
      %1043 = vmatpush1.bf16.msra.mxu0 0
      %1044 = vmatprep.subr.bf16.mxu0 0
      %1045 = vmatpush1.bf16.msra.mxu0 %v532
      %1046 = vmatprep.subr.bf16.mxu0 0
      %1047 = vmatpush2.bf16.msra.mxu0 0
      %1048 = vmatprep.subr.bf16.mxu0 0
      %1049 = vmatpush2.bf16.msra.mxu0 0
      %1050 = vmatprep.subr.bf16.mxu0 0
      %1051 = vmatpush2.bf16.msra.mxu0 0
      %1052 = vmatprep.subr.bf16.mxu0 0
      %1053 = vmatpush2.bf16.msra.mxu0 0
      %1054 = vmatprep.subr.bf16.mxu0 0
      %1055 = vmatpush2.bf16.msra.mxu0 0
      %1056 = vmatprep.subr.bf16.mxu0 0
      %1057 = vmatpush2.bf16.msra.mxu0 0
      %1058 = vmatprep.subr.bf16.mxu0 0
      %1059 = vmatpush2.bf16.msra.mxu0 0
      %1060 = vmatprep.subr.bf16.mxu0 0
      %1061 = vmatpush2.bf16.msra.mxu0 0
      %1062 = vmatprep.mubr.bf16.mxu0 0
      %1063 = vmatmul.mubr.bf16.gmra.mxu0 %v692
      %v1064 = vpop.f32.mrf.mxu0
      %v1065 = vadd.f32 0.0, %v1064
      %v1066 = vpop.f32.mrf.mxu0
      %v1067 = vpop.f32.mrf.mxu0
      %v1068 = vadd.f32 0.0, %v1067
      %v1069 = vpop.f32.mrf.mxu0
      %1070 = vmatprep.mubr.bf16.mxu0 0
      %1071 = vmatmul.mubr.bf16.gmra.mxu0 %v695
      %v1072 = vpop.f32.mrf.mxu0
      %v1073 = vadd.f32 0.0, %v1072
      %v1074 = vpop.f32.mrf.mxu0
      %v1075 = vpop.f32.mrf.mxu0
      %v1076 = vadd.f32 0.0, %v1075
      %v1077 = vpop.f32.mrf.mxu0
      %1078 = vdwg.mxu0
      %1079 = vmatprep.subr.bf16.mxu0 0
      %1080 = vmatpush1.bf16.msra.mxu0 0
      %1081 = vmatprep.subr.bf16.mxu0 0
      %1082 = vmatpush1.bf16.msra.mxu0 0
      %1083 = vmatprep.subr.bf16.mxu0 0
      %1084 = vmatpush1.bf16.msra.mxu0 0
      %1085 = vmatprep.subr.bf16.mxu0 0
      %1086 = vmatpush1.bf16.msra.mxu0 0
      %1087 = vmatprep.subr.bf16.mxu0 0
      %1088 = vmatpush1.bf16.msra.mxu0 0
      %1089 = vmatprep.subr.bf16.mxu0 0
      %1090 = vmatpush1.bf16.msra.mxu0 0
      %1091 = vmatprep.subr.bf16.mxu0 0
      %1092 = vmatpush1.bf16.msra.mxu0 0
      %1093 = vmatprep.subr.bf16.mxu0 0
      %1094 = vmatpush1.bf16.msra.mxu0 %v670
      %1095 = vmatprep.subr.bf16.mxu0 0
      %1096 = vmatpush2.bf16.msra.mxu0 0
      %1097 = vmatprep.subr.bf16.mxu0 0
      %1098 = vmatpush2.bf16.msra.mxu0 0
      %1099 = vmatprep.subr.bf16.mxu0 0
      %1100 = vmatpush2.bf16.msra.mxu0 0
      %1101 = vmatprep.subr.bf16.mxu0 0
      %1102 = vmatpush2.bf16.msra.mxu0 0
      %1103 = vmatprep.subr.bf16.mxu0 0
      %1104 = vmatpush2.bf16.msra.mxu0 0
      %1105 = vmatprep.subr.bf16.mxu0 0
      %1106 = vmatpush2.bf16.msra.mxu0 0
      %1107 = vmatprep.subr.bf16.mxu0 0
      %1108 = vmatpush2.bf16.msra.mxu0 0
      %1109 = vmatprep.subr.bf16.mxu0 0
      %1110 = vmatpush2.bf16.msra.mxu0 0
      %1111 = vmatprep.mubr.bf16.mxu0 0
      %1112 = vmatmul.mubr.bf16.gmra.mxu0 %v692
      %v1113 = vpop.f32.mrf.mxu0
      %v1114 = vadd.f32 0.0, %v1113
      %v1115 = vpop.f32.mrf.mxu0
      %v1116 = vpop.f32.mrf.mxu0
      %v1117 = vadd.f32 0.0, %v1116
      %v1118 = vpop.f32.mrf.mxu0
      %1119 = vmatprep.mubr.bf16.mxu0 0
      %1120 = vmatmul.mubr.bf16.gmra.mxu0 %v695
      %v1121 = vpop.f32.mrf.mxu0
      %v1122 = vadd.f32 0.0, %v1121
      %v1123 = vpop.f32.mrf.mxu0
      %v1124 = vpop.f32.mrf.mxu0
      %v1125 = vadd.f32 0.0, %v1124
      %v1126 = vpop.f32.mrf.mxu0
      %1127 = vdwg.mxu0
      %v1128 = vadd.f32 %v1065, %v1122
      %v1129 = vadd.f32 %v1068, %v1125
      %v1130 = vsub.f32 %v1114, %v1073
      %v1131 = vsub.f32 %v1117, %v1076
      %1132 = vmatprep.subr.bf16.mxu0 0
      %1133 = vmatpush1.bf16.msra.mxu0 0
      %1134 = vmatprep.subr.bf16.mxu0 0
      %1135 = vmatpush1.bf16.msra.mxu0 0
      %1136 = vmatprep.subr.bf16.mxu0 0
      %1137 = vmatpush1.bf16.msra.mxu0 0
      %1138 = vmatprep.subr.bf16.mxu0 0
      %1139 = vmatpush1.bf16.msra.mxu0 0
      %1140 = vmatprep.subr.bf16.mxu0 0
      %1141 = vmatpush1.bf16.msra.mxu0 0
      %1142 = vmatprep.subr.bf16.mxu0 0
      %1143 = vmatpush1.bf16.msra.mxu0 0
      %1144 = vmatprep.subr.bf16.mxu0 0
      %1145 = vmatpush1.bf16.msra.mxu0 0
      %1146 = vmatprep.subr.bf16.mxu0 0
      %1147 = vmatpush1.bf16.msra.mxu0 %v536
      %1148 = vmatprep.subr.bf16.mxu0 0
      %1149 = vmatpush2.bf16.msra.mxu0 0
      %1150 = vmatprep.subr.bf16.mxu0 0
      %1151 = vmatpush2.bf16.msra.mxu0 0
      %1152 = vmatprep.subr.bf16.mxu0 0
      %1153 = vmatpush2.bf16.msra.mxu0 0
      %1154 = vmatprep.subr.bf16.mxu0 0
      %1155 = vmatpush2.bf16.msra.mxu0 0
      %1156 = vmatprep.subr.bf16.mxu0 0
      %1157 = vmatpush2.bf16.msra.mxu0 0
      %1158 = vmatprep.subr.bf16.mxu0 0
      %1159 = vmatpush2.bf16.msra.mxu0 0
      %1160 = vmatprep.subr.bf16.mxu0 0
      %1161 = vmatpush2.bf16.msra.mxu0 0
      %1162 = vmatprep.subr.bf16.mxu0 0
      %1163 = vmatpush2.bf16.msra.mxu0 0
      %1164 = vmatprep.mubr.bf16.mxu0 0
      %1165 = vmatmul.mubr.bf16.gmra.mxu0 %v692
      %v1166 = vpop.f32.mrf.mxu0
      %v1167 = vadd.f32 0.0, %v1166
      %v1168 = vpop.f32.mrf.mxu0
      %v1169 = vpop.f32.mrf.mxu0
      %v1170 = vadd.f32 0.0, %v1169
      %v1171 = vpop.f32.mrf.mxu0
      %1172 = vmatprep.mubr.bf16.mxu0 0
      %1173 = vmatmul.mubr.bf16.gmra.mxu0 %v695
      %v1174 = vpop.f32.mrf.mxu0
      %v1175 = vadd.f32 0.0, %v1174
      %v1176 = vpop.f32.mrf.mxu0
      %v1177 = vpop.f32.mrf.mxu0
      %v1178 = vadd.f32 0.0, %v1177
      %v1179 = vpop.f32.mrf.mxu0
      %1180 = vdwg.mxu0
      %1181 = vmatprep.subr.bf16.mxu0 0
      %1182 = vmatpush1.bf16.msra.mxu0 0
      %1183 = vmatprep.subr.bf16.mxu0 0
      %1184 = vmatpush1.bf16.msra.mxu0 0
      %1185 = vmatprep.subr.bf16.mxu0 0
      %1186 = vmatpush1.bf16.msra.mxu0 0
      %1187 = vmatprep.subr.bf16.mxu0 0
      %1188 = vmatpush1.bf16.msra.mxu0 0
      %1189 = vmatprep.subr.bf16.mxu0 0
      %1190 = vmatpush1.bf16.msra.mxu0 0
      %1191 = vmatprep.subr.bf16.mxu0 0
      %1192 = vmatpush1.bf16.msra.mxu0 0
      %1193 = vmatprep.subr.bf16.mxu0 0
      %1194 = vmatpush1.bf16.msra.mxu0 0
      %1195 = vmatprep.subr.bf16.mxu0 0
      %1196 = vmatpush1.bf16.msra.mxu0 %v674
      %1197 = vmatprep.subr.bf16.mxu0 0
      %1198 = vmatpush2.bf16.msra.mxu0 0
      %1199 = vmatprep.subr.bf16.mxu0 0
      %1200 = vmatpush2.bf16.msra.mxu0 0
      %1201 = vmatprep.subr.bf16.mxu0 0
      %1202 = vmatpush2.bf16.msra.mxu0 0
      %1203 = vmatprep.subr.bf16.mxu0 0
      %1204 = vmatpush2.bf16.msra.mxu0 0
      %1205 = vmatprep.subr.bf16.mxu0 0
      %1206 = vmatpush2.bf16.msra.mxu0 0
      %1207 = vmatprep.subr.bf16.mxu0 0
      %1208 = vmatpush2.bf16.msra.mxu0 0
      %1209 = vmatprep.subr.bf16.mxu0 0
      %1210 = vmatpush2.bf16.msra.mxu0 0
      %1211 = vmatprep.subr.bf16.mxu0 0
      %1212 = vmatpush2.bf16.msra.mxu0 0
      %1213 = vmatprep.mubr.bf16.mxu0 0
      %1214 = vmatmul.mubr.bf16.gmra.mxu0 %v692
      %v1215 = vpop.f32.mrf.mxu0
      %v1216 = vadd.f32 0.0, %v1215
      %v1217 = vpop.f32.mrf.mxu0
      %v1218 = vpop.f32.mrf.mxu0
      %v1219 = vadd.f32 0.0, %v1218
      %v1220 = vpop.f32.mrf.mxu0
      %1221 = vmatprep.mubr.bf16.mxu0 0
      %1222 = vmatmul.mubr.bf16.gmra.mxu0 %v695
      %v1223 = vpop.f32.mrf.mxu0
      %v1224 = vadd.f32 0.0, %v1223
      %v1225 = vpop.f32.mrf.mxu0
      %v1226 = vpop.f32.mrf.mxu0
      %v1227 = vadd.f32 0.0, %v1226
      %v1228 = vpop.f32.mrf.mxu0
      %1229 = vdwg.mxu0
      %v1230 = vadd.f32 %v1167, %v1224
      %v1231 = vadd.f32 %v1170, %v1227
      %v1232 = vsub.f32 %v1216, %v1175
      %v1233 = vsub.f32 %v1219, %v1178
      %v1234 = vmul.f32 %v1230, %v1230
      %v1235 = vmul.f32 %v1231, %v1231
      %v1236 = vmul.f32 %v1232, %v1232
      %v1237 = vmul.f32 %v1233, %v1233
      %v1238 = vadd.f32 %v1234, %v1236
      %v1239 = vadd.f32 %v1235, %v1237
      %v1240 = vadd.f32 %v1238, %v1028
      %v1241 = vadd.f32 %v1239, %v1029
      %v1242 = vrcp.pop %v1240
      %v1243 = vrcp.pop %v1241
      %v1244 = vmul.f32 %v1230, %v1128
      %v1245 = vmul.f32 %v1231, %v1129
      %v1246 = vmul.f32 %v1232, %v1130
      %v1247 = vmul.f32 %v1233, %v1131
      %v1248 = vadd.f32 %v1244, %v1246
      %v1249 = vadd.f32 %v1245, %v1247
      %v1250 = vmul.f32 %v1248, %v1242
      %v1251 = vmul.f32 %v1249, %v1243
      %v1252 = vpack.c.bf16 %v1251, %v1250
      %v1253 = vmul.f32 %v1230, %v1130
      %v1254 = vmul.f32 %v1231, %v1131
      %v1255 = vmul.f32 %v1232, %v1128
      %v1256 = vmul.f32 %v1233, %v1129
      %v1257 = vsub.f32 %v1253, %v1255
      %v1258 = vsub.f32 %v1254, %v1256
      %v1259 = vmul.f32 %v1257, %v1242
      %v1260 = vmul.f32 %v1258, %v1243
      %v1261 = vpack.c.bf16 %v1260, %v1259
      %1262 = vmatprep.subr.bf16.mxu0 0
      %1263 = vmatpush1.bf16.msra.mxu0 0
      %1264 = vmatprep.subr.bf16.mxu0 0
      %1265 = vmatpush1.bf16.msra.mxu0 0
      %1266 = vmatprep.subr.bf16.mxu0 0
      %1267 = vmatpush1.bf16.msra.mxu0 0
      %1268 = vmatprep.subr.bf16.mxu0 0
      %1269 = vmatpush1.bf16.msra.mxu0 0
      %1270 = vmatprep.subr.bf16.mxu0 0
      %1271 = vmatpush1.bf16.msra.mxu0 0
      %1272 = vmatprep.subr.bf16.mxu0 0
      %1273 = vmatpush1.bf16.msra.mxu0 0
      %1274 = vmatprep.subr.bf16.mxu0 0
      %1275 = vmatpush1.bf16.msra.mxu0 0
      %1276 = vmatprep.subr.bf16.mxu0 0
      %1277 = vmatpush1.bf16.msra.mxu0 %v1252
      %1278 = vmatprep.subr.bf16.mxu0 0
      %1279 = vmatpush2.bf16.msra.mxu0 0
      %1280 = vmatprep.subr.bf16.mxu0 0
      %1281 = vmatpush2.bf16.msra.mxu0 0
      %1282 = vmatprep.subr.bf16.mxu0 0
      %1283 = vmatpush2.bf16.msra.mxu0 0
      %1284 = vmatprep.subr.bf16.mxu0 0
      %1285 = vmatpush2.bf16.msra.mxu0 0
      %1286 = vmatprep.subr.bf16.mxu0 0
      %1287 = vmatpush2.bf16.msra.mxu0 0
      %1288 = vmatprep.subr.bf16.mxu0 0
      %1289 = vmatpush2.bf16.msra.mxu0 0
      %1290 = vmatprep.subr.bf16.mxu0 0
      %1291 = vmatpush2.bf16.msra.mxu0 0
      %1292 = vmatprep.subr.bf16.mxu0 0
      %1293 = vmatpush2.bf16.msra.mxu0 0
      %1294 = vmatprep.mubr.bf16.mxu0 0
      %1295 = vmatmul.mubr.bf16.gmra.mxu0 %v692
      %v1296 = vpop.f32.mrf.mxu0
      %v1297 = vadd.f32 0.0, %v1296
      %v1298 = vpop.f32.mrf.mxu0
      %v1299 = vpop.f32.mrf.mxu0
      %v1300 = vadd.f32 0.0, %v1299
      %v1301 = vpop.f32.mrf.mxu0
      %1302 = vmatprep.mubr.bf16.mxu0 0
      %1303 = vmatmul.mubr.bf16.gmra.mxu0 %v695
      %v1304 = vpop.f32.mrf.mxu0
      %v1305 = vadd.f32 0.0, %v1304
      %v1306 = vpop.f32.mrf.mxu0
      %v1307 = vpop.f32.mrf.mxu0
      %v1308 = vadd.f32 0.0, %v1307
      %v1309 = vpop.f32.mrf.mxu0
      %1310 = vdwg.mxu0
      %1311 = vmatprep.subr.bf16.mxu0 0
      %1312 = vmatpush1.bf16.msra.mxu0 0
      %1313 = vmatprep.subr.bf16.mxu0 0
      %1314 = vmatpush1.bf16.msra.mxu0 0
      %1315 = vmatprep.subr.bf16.mxu0 0
      %1316 = vmatpush1.bf16.msra.mxu0 0
      %1317 = vmatprep.subr.bf16.mxu0 0
      %1318 = vmatpush1.bf16.msra.mxu0 0
      %1319 = vmatprep.subr.bf16.mxu0 0
      %1320 = vmatpush1.bf16.msra.mxu0 0
      %1321 = vmatprep.subr.bf16.mxu0 0
      %1322 = vmatpush1.bf16.msra.mxu0 0
      %1323 = vmatprep.subr.bf16.mxu0 0
      %1324 = vmatpush1.bf16.msra.mxu0 0
      %1325 = vmatprep.subr.bf16.mxu0 0
      %1326 = vmatpush1.bf16.msra.mxu0 %v1261
      %1327 = vmatprep.subr.bf16.mxu0 0
      %1328 = vmatpush2.bf16.msra.mxu0 0
      %1329 = vmatprep.subr.bf16.mxu0 0
      %1330 = vmatpush2.bf16.msra.mxu0 0
      %1331 = vmatprep.subr.bf16.mxu0 0
      %1332 = vmatpush2.bf16.msra.mxu0 0
      %1333 = vmatprep.subr.bf16.mxu0 0
      %1334 = vmatpush2.bf16.msra.mxu0 0
      %1335 = vmatprep.subr.bf16.mxu0 0
      %1336 = vmatpush2.bf16.msra.mxu0 0
      %1337 = vmatprep.subr.bf16.mxu0 0
      %1338 = vmatpush2.bf16.msra.mxu0 0
      %1339 = vmatprep.subr.bf16.mxu0 0
      %1340 = vmatpush2.bf16.msra.mxu0 0
      %1341 = vmatprep.subr.bf16.mxu0 0
      %1342 = vmatpush2.bf16.msra.mxu0 0
      %1343 = vmatprep.mubr.bf16.mxu0 0
      %1344 = vmatmul.mubr.bf16.gmra.mxu0 %v692
      %v1345 = vpop.f32.mrf.mxu0
      %v1346 = vadd.f32 0.0, %v1345
      %v1347 = vpop.f32.mrf.mxu0
      %v1348 = vpop.f32.mrf.mxu0
      %v1349 = vadd.f32 0.0, %v1348
      %v1350 = vpop.f32.mrf.mxu0
      %1351 = vmatprep.mubr.bf16.mxu0 0
      %1352 = vmatmul.mubr.bf16.gmra.mxu0 %v695
      %v1353 = vpop.f32.mrf.mxu0
      %v1354 = vadd.f32 0.0, %v1353
      %v1355 = vpop.f32.mrf.mxu0
      %v1356 = vpop.f32.mrf.mxu0
      %v1357 = vadd.f32 0.0, %v1356
      %v1358 = vpop.f32.mrf.mxu0
      %1359 = vdwg.mxu0
      %v1360 = vsub.f32 %v1297, %v1354
      %v1361 = vsub.f32 %v1300, %v1357
      %v1362 = vpack.c.bf16 %v1361, %v1360
      %v1363 = vadd.f32 %v1346, %v1305
      %v1364 = vadd.f32 %v1349, %v1308
      %v1365 = vpack.c.bf16 %v1364, %v1363
      %v1368 = vunpack.c.l.b16 %v314
      %v1369 = vunpack.c.l.b16 %v315
      %v1370 = vpack.c.b16 %v1369, %v1368
      %vm1371 = vcmask 72704
      %v1373 = vsel %vm1371, %v1365, 0
      %vm1375 = vcmask 1043456
      %vm1376 = vcmask 1044480
      %v1377 = vsel %vm1375, 4294967295, 65535
      %v1378 = vsel %vm1376, %v1377, 0
      %v1380 = vand.u32 %v1370, %v1378
      %1382 = vmatprep.subr.bf16.mxu0 0
      %1383 = vmatpush1.bf16.msra.mxu0 0
      %1384 = vmatprep.subr.bf16.mxu0 0
      %1385 = vmatpush1.bf16.msra.mxu0 0
      %1386 = vmatprep.subr.bf16.mxu0 0
      %1387 = vmatpush1.bf16.msra.mxu0 0
      %1388 = vmatprep.subr.bf16.mxu0 0
      %1389 = vmatpush1.bf16.msra.mxu0 0
      %1390 = vmatprep.subr.bf16.mxu0 0
      %1391 = vmatpush1.bf16.msra.mxu0 0
      %1392 = vmatprep.subr.bf16.mxu0 0
      %1393 = vmatpush1.bf16.msra.mxu0 0
      %1394 = vmatprep.subr.bf16.mxu0 0
      %1395 = vmatpush1.bf16.msra.mxu0 0
      %1396 = vmatprep.subr.bf16.mxu0 0
      %1397 = vmatpush1.bf16.msra.mxu0 %v1380
      %1398 = vmatprep.subr.bf16.mxu0 0
      %1399 = vmatpush2.bf16.msra.mxu0 0
      %1400 = vmatprep.subr.bf16.mxu0 0
      %1401 = vmatpush2.bf16.msra.mxu0 0
      %1402 = vmatprep.subr.bf16.mxu0 0
      %1403 = vmatpush2.bf16.msra.mxu0 0
      %1404 = vmatprep.subr.bf16.mxu0 0
      %1405 = vmatpush2.bf16.msra.mxu0 0
      %1406 = vmatprep.subr.bf16.mxu0 0
      %1407 = vmatpush2.bf16.msra.mxu0 0
      %1408 = vmatprep.subr.bf16.mxu0 0
      %1409 = vmatpush2.bf16.msra.mxu0 0
      %1410 = vmatprep.subr.bf16.mxu0 0
      %1411 = vmatpush2.bf16.msra.mxu0 0
      %1412 = vmatprep.subr.bf16.mxu0 0
      %1413 = vmatpush2.bf16.msra.mxu0 0
      %1414 = vmatprep.mubr.bf16.mxu0 0
      %1415 = vmatmul.mubr.bf16.gmra.mxu0 %v1373
      %v1416 = vpop.f32.mrf.mxu0
      %v1417 = vadd.f32 0.0, %v1416
      %v1418 = vpop.f32.mrf.mxu0
      %v1419 = vpop.f32.mrf.mxu0
      %v1420 = vadd.f32 0.0, %v1419
      %v1421 = vpop.f32.mrf.mxu0
      %1422 = vdwg.mxu0
      %v1425 = vunpack.c.l.b16 %v312
      %v1426 = vunpack.c.l.b16 %v313
      %v1427 = vpack.c.b16 %v1426, %v1425
      %v1429 = vsel %vm1371, %v1362, 0
      %v1432 = vand.u32 %v1427, %v1378
      %1434 = vmatprep.subr.bf16.mxu0 0
      %1435 = vmatpush1.bf16.msra.mxu0 0
      %1436 = vmatprep.subr.bf16.mxu0 0
      %1437 = vmatpush1.bf16.msra.mxu0 0
      %1438 = vmatprep.subr.bf16.mxu0 0
      %1439 = vmatpush1.bf16.msra.mxu0 0
      %1440 = vmatprep.subr.bf16.mxu0 0
      %1441 = vmatpush1.bf16.msra.mxu0 0
      %1442 = vmatprep.subr.bf16.mxu0 0
      %1443 = vmatpush1.bf16.msra.mxu0 0
      %1444 = vmatprep.subr.bf16.mxu0 0
      %1445 = vmatpush1.bf16.msra.mxu0 0
      %1446 = vmatprep.subr.bf16.mxu0 0
      %1447 = vmatpush1.bf16.msra.mxu0 0
      %1448 = vmatprep.subr.bf16.mxu0 0
      %1449 = vmatpush1.bf16.msra.mxu0 %v1432
      %1450 = vmatprep.subr.bf16.mxu0 0
      %1451 = vmatpush2.bf16.msra.mxu0 0
      %1452 = vmatprep.subr.bf16.mxu0 0
      %1453 = vmatpush2.bf16.msra.mxu0 0
      %1454 = vmatprep.subr.bf16.mxu0 0
      %1455 = vmatpush2.bf16.msra.mxu0 0
      %1456 = vmatprep.subr.bf16.mxu0 0
      %1457 = vmatpush2.bf16.msra.mxu0 0
      %1458 = vmatprep.subr.bf16.mxu0 0
      %1459 = vmatpush2.bf16.msra.mxu0 0
      %1460 = vmatprep.subr.bf16.mxu0 0
      %1461 = vmatpush2.bf16.msra.mxu0 0
      %1462 = vmatprep.subr.bf16.mxu0 0
      %1463 = vmatpush2.bf16.msra.mxu0 0
      %1464 = vmatprep.subr.bf16.mxu0 0
      %1465 = vmatpush2.bf16.msra.mxu0 0
      %1466 = vmatprep.mubr.bf16.mxu0 0
      %1467 = vmatmul.mubr.bf16.gmra.mxu0 %v1429
      %v1468 = vpop.f32.mrf.mxu0
      %v1469 = vadd.f32 %v1417, %v1468
      %v1470 = vpop.f32.mrf.mxu0
      %v1471 = vpop.f32.mrf.mxu0
      %v1472 = vadd.f32 %v1420, %v1471
      %v1473 = vpop.f32.mrf.mxu0
      %1474 = vdwg.mxu0
      %1475 = vst.msk [vmem:[%s279] sm:$0xff] %vm377, %v1469
      %1476 = vst.msk [vmem:[%s279 + $0x8] sm:$0xff] %vm377, %v1472
      %1477 = vmatprep.subr.bf16.mxu0 0
      %1478 = vmatpush1.bf16.msra.mxu0 0
      %1479 = vmatprep.subr.bf16.mxu0 0
      %1480 = vmatpush1.bf16.msra.mxu0 0
      %1481 = vmatprep.subr.bf16.mxu0 0
      %1482 = vmatpush1.bf16.msra.mxu0 0
      %1483 = vmatprep.subr.bf16.mxu0 0
      %1484 = vmatpush1.bf16.msra.mxu0 0
      %1485 = vmatprep.subr.bf16.mxu0 0
      %1486 = vmatpush1.bf16.msra.mxu0 0
      %1487 = vmatprep.subr.bf16.mxu0 0
      %1488 = vmatpush1.bf16.msra.mxu0 0
      %1489 = vmatprep.subr.bf16.mxu0 0
      %1490 = vmatpush1.bf16.msra.mxu0 0
      %1491 = vmatprep.subr.bf16.mxu0 0
      %1492 = vmatpush1.bf16.msra.mxu0 %v533
      %1493 = vmatprep.subr.bf16.mxu0 0
      %1494 = vmatpush2.bf16.msra.mxu0 0
      %1495 = vmatprep.subr.bf16.mxu0 0
      %1496 = vmatpush2.bf16.msra.mxu0 0
      %1497 = vmatprep.subr.bf16.mxu0 0
      %1498 = vmatpush2.bf16.msra.mxu0 0
      %1499 = vmatprep.subr.bf16.mxu0 0
      %1500 = vmatpush2.bf16.msra.mxu0 0
      %1501 = vmatprep.subr.bf16.mxu0 0
      %1502 = vmatpush2.bf16.msra.mxu0 0
      %1503 = vmatprep.subr.bf16.mxu0 0
      %1504 = vmatpush2.bf16.msra.mxu0 0
      %1505 = vmatprep.subr.bf16.mxu0 0
      %1506 = vmatpush2.bf16.msra.mxu0 0
      %1507 = vmatprep.subr.bf16.mxu0 0
      %1508 = vmatpush2.bf16.msra.mxu0 0
      %1509 = vmatprep.mubr.bf16.mxu0 0
      %1510 = vmatmul.mubr.bf16.gmra.mxu0 %v692
      %v1511 = vpop.f32.mrf.mxu0
      %v1512 = vadd.f32 0.0, %v1511
      %v1513 = vpop.f32.mrf.mxu0
      %v1514 = vpop.f32.mrf.mxu0
      %v1515 = vadd.f32 0.0, %v1514
      %v1516 = vpop.f32.mrf.mxu0
      %1517 = vmatprep.mubr.bf16.mxu0 0
      %1518 = vmatmul.mubr.bf16.gmra.mxu0 %v695
      %v1519 = vpop.f32.mrf.mxu0
      %v1520 = vadd.f32 0.0, %v1519
      %v1521 = vpop.f32.mrf.mxu0
      %v1522 = vpop.f32.mrf.mxu0
      %v1523 = vadd.f32 0.0, %v1522
      %v1524 = vpop.f32.mrf.mxu0
      %1525 = vdwg.mxu0
      %1526 = vmatprep.subr.bf16.mxu0 0
      %1527 = vmatpush1.bf16.msra.mxu0 0
      %1528 = vmatprep.subr.bf16.mxu0 0
      %1529 = vmatpush1.bf16.msra.mxu0 0
      %1530 = vmatprep.subr.bf16.mxu0 0
      %1531 = vmatpush1.bf16.msra.mxu0 0
      %1532 = vmatprep.subr.bf16.mxu0 0
      %1533 = vmatpush1.bf16.msra.mxu0 0
      %1534 = vmatprep.subr.bf16.mxu0 0
      %1535 = vmatpush1.bf16.msra.mxu0 0
      %1536 = vmatprep.subr.bf16.mxu0 0
      %1537 = vmatpush1.bf16.msra.mxu0 0
      %1538 = vmatprep.subr.bf16.mxu0 0
      %1539 = vmatpush1.bf16.msra.mxu0 0
      %1540 = vmatprep.subr.bf16.mxu0 0
      %1541 = vmatpush1.bf16.msra.mxu0 %v671
      %1542 = vmatprep.subr.bf16.mxu0 0
      %1543 = vmatpush2.bf16.msra.mxu0 0
      %1544 = vmatprep.subr.bf16.mxu0 0
      %1545 = vmatpush2.bf16.msra.mxu0 0
      %1546 = vmatprep.subr.bf16.mxu0 0
      %1547 = vmatpush2.bf16.msra.mxu0 0
      %1548 = vmatprep.subr.bf16.mxu0 0
      %1549 = vmatpush2.bf16.msra.mxu0 0
      %1550 = vmatprep.subr.bf16.mxu0 0
      %1551 = vmatpush2.bf16.msra.mxu0 0
      %1552 = vmatprep.subr.bf16.mxu0 0
      %1553 = vmatpush2.bf16.msra.mxu0 0
      %1554 = vmatprep.subr.bf16.mxu0 0
      %1555 = vmatpush2.bf16.msra.mxu0 0
      %1556 = vmatprep.subr.bf16.mxu0 0
      %1557 = vmatpush2.bf16.msra.mxu0 0
      %1558 = vmatprep.mubr.bf16.mxu0 0
      %1559 = vmatmul.mubr.bf16.gmra.mxu0 %v692
      %v1560 = vpop.f32.mrf.mxu0
      %v1561 = vadd.f32 0.0, %v1560
      %v1562 = vpop.f32.mrf.mxu0
      %v1563 = vpop.f32.mrf.mxu0
      %v1564 = vadd.f32 0.0, %v1563
      %v1565 = vpop.f32.mrf.mxu0
      %1566 = vmatprep.mubr.bf16.mxu0 0
      %1567 = vmatmul.mubr.bf16.gmra.mxu0 %v695
      %v1568 = vpop.f32.mrf.mxu0
      %v1569 = vadd.f32 0.0, %v1568
      %v1570 = vpop.f32.mrf.mxu0
      %v1571 = vpop.f32.mrf.mxu0
      %v1572 = vadd.f32 0.0, %v1571
      %v1573 = vpop.f32.mrf.mxu0
      %1574 = vdwg.mxu0
      %v1575 = vadd.f32 %v1512, %v1569
      %v1576 = vadd.f32 %v1515, %v1572
      %v1577 = vsub.f32 %v1561, %v1520
      %v1578 = vsub.f32 %v1564, %v1523
      %1579 = vmatprep.subr.bf16.mxu0 0
      %1580 = vmatpush1.bf16.msra.mxu0 0
      %1581 = vmatprep.subr.bf16.mxu0 0
      %1582 = vmatpush1.bf16.msra.mxu0 0
      %1583 = vmatprep.subr.bf16.mxu0 0
      %1584 = vmatpush1.bf16.msra.mxu0 0
      %1585 = vmatprep.subr.bf16.mxu0 0
      %1586 = vmatpush1.bf16.msra.mxu0 0
      %1587 = vmatprep.subr.bf16.mxu0 0
      %1588 = vmatpush1.bf16.msra.mxu0 0
      %1589 = vmatprep.subr.bf16.mxu0 0
      %1590 = vmatpush1.bf16.msra.mxu0 0
      %1591 = vmatprep.subr.bf16.mxu0 0
      %1592 = vmatpush1.bf16.msra.mxu0 0
      %1593 = vmatprep.subr.bf16.mxu0 0
      %1594 = vmatpush1.bf16.msra.mxu0 %v537
      %1595 = vmatprep.subr.bf16.mxu0 0
      %1596 = vmatpush2.bf16.msra.mxu0 0
      %1597 = vmatprep.subr.bf16.mxu0 0
      %1598 = vmatpush2.bf16.msra.mxu0 0
      %1599 = vmatprep.subr.bf16.mxu0 0
      %1600 = vmatpush2.bf16.msra.mxu0 0
      %1601 = vmatprep.subr.bf16.mxu0 0
      %1602 = vmatpush2.bf16.msra.mxu0 0
      %1603 = vmatprep.subr.bf16.mxu0 0
      %1604 = vmatpush2.bf16.msra.mxu0 0
      %1605 = vmatprep.subr.bf16.mxu0 0
      %1606 = vmatpush2.bf16.msra.mxu0 0
      %1607 = vmatprep.subr.bf16.mxu0 0
      %1608 = vmatpush2.bf16.msra.mxu0 0
      %1609 = vmatprep.subr.bf16.mxu0 0
      %1610 = vmatpush2.bf16.msra.mxu0 0
      %1611 = vmatprep.mubr.bf16.mxu0 0
      %1612 = vmatmul.mubr.bf16.gmra.mxu0 %v692
      %v1613 = vpop.f32.mrf.mxu0
      %v1614 = vadd.f32 0.0, %v1613
      %v1615 = vpop.f32.mrf.mxu0
      %v1616 = vpop.f32.mrf.mxu0
      %v1617 = vadd.f32 0.0, %v1616
      %v1618 = vpop.f32.mrf.mxu0
      %1619 = vmatprep.mubr.bf16.mxu0 0
      %1620 = vmatmul.mubr.bf16.gmra.mxu0 %v695
      %v1621 = vpop.f32.mrf.mxu0
      %v1622 = vadd.f32 0.0, %v1621
      %v1623 = vpop.f32.mrf.mxu0
      %v1624 = vpop.f32.mrf.mxu0
      %v1625 = vadd.f32 0.0, %v1624
      %v1626 = vpop.f32.mrf.mxu0
      %1627 = vdwg.mxu0
      %1628 = vmatprep.subr.bf16.mxu0 0
      %1629 = vmatpush1.bf16.msra.mxu0 0
      %1630 = vmatprep.subr.bf16.mxu0 0
      %1631 = vmatpush1.bf16.msra.mxu0 0
      %1632 = vmatprep.subr.bf16.mxu0 0
      %1633 = vmatpush1.bf16.msra.mxu0 0
      %1634 = vmatprep.subr.bf16.mxu0 0
      %1635 = vmatpush1.bf16.msra.mxu0 0
      %1636 = vmatprep.subr.bf16.mxu0 0
      %1637 = vmatpush1.bf16.msra.mxu0 0
      %1638 = vmatprep.subr.bf16.mxu0 0
      %1639 = vmatpush1.bf16.msra.mxu0 0
      %1640 = vmatprep.subr.bf16.mxu0 0
      %1641 = vmatpush1.bf16.msra.mxu0 0
      %1642 = vmatprep.subr.bf16.mxu0 0
      %1643 = vmatpush1.bf16.msra.mxu0 %v675
      %1644 = vmatprep.subr.bf16.mxu0 0
      %1645 = vmatpush2.bf16.msra.mxu0 0
      %1646 = vmatprep.subr.bf16.mxu0 0
      %1647 = vmatpush2.bf16.msra.mxu0 0
      %1648 = vmatprep.subr.bf16.mxu0 0
      %1649 = vmatpush2.bf16.msra.mxu0 0
      %1650 = vmatprep.subr.bf16.mxu0 0
      %1651 = vmatpush2.bf16.msra.mxu0 0
      %1652 = vmatprep.subr.bf16.mxu0 0
      %1653 = vmatpush2.bf16.msra.mxu0 0
      %1654 = vmatprep.subr.bf16.mxu0 0
      %1655 = vmatpush2.bf16.msra.mxu0 0
      %1656 = vmatprep.subr.bf16.mxu0 0
      %1657 = vmatpush2.bf16.msra.mxu0 0
      %1658 = vmatprep.subr.bf16.mxu0 0
      %1659 = vmatpush2.bf16.msra.mxu0 0
      %1660 = vmatprep.mubr.bf16.mxu0 0
      %1661 = vmatmul.mubr.bf16.gmra.mxu0 %v692
      %v1662 = vpop.f32.mrf.mxu0
      %v1663 = vadd.f32 0.0, %v1662
      %v1664 = vpop.f32.mrf.mxu0
      %v1665 = vpop.f32.mrf.mxu0
      %v1666 = vadd.f32 0.0, %v1665
      %v1667 = vpop.f32.mrf.mxu0
      %1668 = vmatprep.mubr.bf16.mxu0 0
      %1669 = vmatmul.mubr.bf16.gmra.mxu0 %v695
      %v1670 = vpop.f32.mrf.mxu0
      %v1671 = vadd.f32 0.0, %v1670
      %v1672 = vpop.f32.mrf.mxu0
      %v1673 = vpop.f32.mrf.mxu0
      %v1674 = vadd.f32 0.0, %v1673
      %v1675 = vpop.f32.mrf.mxu0
      %1676 = vdwg.mxu0
      %v1677 = vadd.f32 %v1614, %v1671
      %v1678 = vadd.f32 %v1617, %v1674
      %v1679 = vsub.f32 %v1663, %v1622
      %v1680 = vsub.f32 %v1666, %v1625
      %v1681 = vmul.f32 %v1677, %v1677
      %v1682 = vmul.f32 %v1678, %v1678
      %v1683 = vmul.f32 %v1679, %v1679
      %v1684 = vmul.f32 %v1680, %v1680
      %v1685 = vadd.f32 %v1681, %v1683
      %v1686 = vadd.f32 %v1682, %v1684
      %v1687 = vadd.f32 %v1685, %v1028
      %v1688 = vadd.f32 %v1686, %v1029
      %v1689 = vrcp.pop %v1687
      %v1690 = vrcp.pop %v1688
      %v1691 = vmul.f32 %v1677, %v1575
      %v1692 = vmul.f32 %v1678, %v1576
      %v1693 = vmul.f32 %v1679, %v1577
      %v1694 = vmul.f32 %v1680, %v1578
      %v1695 = vadd.f32 %v1691, %v1693
      %v1696 = vadd.f32 %v1692, %v1694
      %v1697 = vmul.f32 %v1695, %v1689
      %v1698 = vmul.f32 %v1696, %v1690
      %v1699 = vpack.c.bf16 %v1698, %v1697
      %v1700 = vmul.f32 %v1677, %v1577
      %v1701 = vmul.f32 %v1678, %v1578
      %v1702 = vmul.f32 %v1679, %v1575
      %v1703 = vmul.f32 %v1680, %v1576
      %v1704 = vsub.f32 %v1700, %v1702
      %v1705 = vsub.f32 %v1701, %v1703
      %v1706 = vmul.f32 %v1704, %v1689
      %v1707 = vmul.f32 %v1705, %v1690
      %v1708 = vpack.c.bf16 %v1707, %v1706
      %1709 = vmatprep.subr.bf16.mxu0 0
      %1710 = vmatpush1.bf16.msra.mxu0 0
      %1711 = vmatprep.subr.bf16.mxu0 0
      %1712 = vmatpush1.bf16.msra.mxu0 0
      %1713 = vmatprep.subr.bf16.mxu0 0
      %1714 = vmatpush1.bf16.msra.mxu0 0
      %1715 = vmatprep.subr.bf16.mxu0 0
      %1716 = vmatpush1.bf16.msra.mxu0 0
      %1717 = vmatprep.subr.bf16.mxu0 0
      %1718 = vmatpush1.bf16.msra.mxu0 0
      %1719 = vmatprep.subr.bf16.mxu0 0
      %1720 = vmatpush1.bf16.msra.mxu0 0
      %1721 = vmatprep.subr.bf16.mxu0 0
      %1722 = vmatpush1.bf16.msra.mxu0 0
      %1723 = vmatprep.subr.bf16.mxu0 0
      %1724 = vmatpush1.bf16.msra.mxu0 %v1699
      %1725 = vmatprep.subr.bf16.mxu0 0
      %1726 = vmatpush2.bf16.msra.mxu0 0
      %1727 = vmatprep.subr.bf16.mxu0 0
      %1728 = vmatpush2.bf16.msra.mxu0 0
      %1729 = vmatprep.subr.bf16.mxu0 0
      %1730 = vmatpush2.bf16.msra.mxu0 0
      %1731 = vmatprep.subr.bf16.mxu0 0
      %1732 = vmatpush2.bf16.msra.mxu0 0
      %1733 = vmatprep.subr.bf16.mxu0 0
      %1734 = vmatpush2.bf16.msra.mxu0 0
      %1735 = vmatprep.subr.bf16.mxu0 0
      %1736 = vmatpush2.bf16.msra.mxu0 0
      %1737 = vmatprep.subr.bf16.mxu0 0
      %1738 = vmatpush2.bf16.msra.mxu0 0
      %1739 = vmatprep.subr.bf16.mxu0 0
      %1740 = vmatpush2.bf16.msra.mxu0 0
      %1741 = vmatprep.mubr.bf16.mxu0 0
      %1742 = vmatmul.mubr.bf16.gmra.mxu0 %v692
      %v1743 = vpop.f32.mrf.mxu0
      %v1744 = vadd.f32 0.0, %v1743
      %v1745 = vpop.f32.mrf.mxu0
      %v1746 = vpop.f32.mrf.mxu0
      %v1747 = vadd.f32 0.0, %v1746
      %v1748 = vpop.f32.mrf.mxu0
      %1749 = vmatprep.mubr.bf16.mxu0 0
      %1750 = vmatmul.mubr.bf16.gmra.mxu0 %v695
      %v1751 = vpop.f32.mrf.mxu0
      %v1752 = vadd.f32 0.0, %v1751
      %v1753 = vpop.f32.mrf.mxu0
      %v1754 = vpop.f32.mrf.mxu0
      %v1755 = vadd.f32 0.0, %v1754
      %v1756 = vpop.f32.mrf.mxu0
      %1757 = vdwg.mxu0
      %1758 = vmatprep.subr.bf16.mxu0 0
      %1759 = vmatpush1.bf16.msra.mxu0 0
      %1760 = vmatprep.subr.bf16.mxu0 0
      %1761 = vmatpush1.bf16.msra.mxu0 0
      %1762 = vmatprep.subr.bf16.mxu0 0
      %1763 = vmatpush1.bf16.msra.mxu0 0
      %1764 = vmatprep.subr.bf16.mxu0 0
      %1765 = vmatpush1.bf16.msra.mxu0 0
      %1766 = vmatprep.subr.bf16.mxu0 0
      %1767 = vmatpush1.bf16.msra.mxu0 0
      %1768 = vmatprep.subr.bf16.mxu0 0
      %1769 = vmatpush1.bf16.msra.mxu0 0
      %1770 = vmatprep.subr.bf16.mxu0 0
      %1771 = vmatpush1.bf16.msra.mxu0 0
      %1772 = vmatprep.subr.bf16.mxu0 0
      %1773 = vmatpush1.bf16.msra.mxu0 %v1708
      %1774 = vmatprep.subr.bf16.mxu0 0
      %1775 = vmatpush2.bf16.msra.mxu0 0
      %1776 = vmatprep.subr.bf16.mxu0 0
      %1777 = vmatpush2.bf16.msra.mxu0 0
      %1778 = vmatprep.subr.bf16.mxu0 0
      %1779 = vmatpush2.bf16.msra.mxu0 0
      %1780 = vmatprep.subr.bf16.mxu0 0
      %1781 = vmatpush2.bf16.msra.mxu0 0
      %1782 = vmatprep.subr.bf16.mxu0 0
      %1783 = vmatpush2.bf16.msra.mxu0 0
      %1784 = vmatprep.subr.bf16.mxu0 0
      %1785 = vmatpush2.bf16.msra.mxu0 0
      %1786 = vmatprep.subr.bf16.mxu0 0
      %1787 = vmatpush2.bf16.msra.mxu0 0
      %1788 = vmatprep.subr.bf16.mxu0 0
      %1789 = vmatpush2.bf16.msra.mxu0 0
      %1790 = vmatprep.mubr.bf16.mxu0 0
      %1791 = vmatmul.mubr.bf16.gmra.mxu0 %v692
      %v1792 = vpop.f32.mrf.mxu0
      %v1793 = vadd.f32 0.0, %v1792
      %v1794 = vpop.f32.mrf.mxu0
      %v1795 = vpop.f32.mrf.mxu0
      %v1796 = vadd.f32 0.0, %v1795
      %v1797 = vpop.f32.mrf.mxu0
      %1798 = vmatprep.mubr.bf16.mxu0 0
      %1799 = vmatmul.mubr.bf16.gmra.mxu0 %v695
      %v1800 = vpop.f32.mrf.mxu0
      %v1801 = vadd.f32 0.0, %v1800
      %v1802 = vpop.f32.mrf.mxu0
      %v1803 = vpop.f32.mrf.mxu0
      %v1804 = vadd.f32 0.0, %v1803
      %v1805 = vpop.f32.mrf.mxu0
      %1806 = vdwg.mxu0
      %v1807 = vsub.f32 %v1744, %v1801
      %v1808 = vsub.f32 %v1747, %v1804
      %v1809 = vpack.c.bf16 %v1808, %v1807
      %v1810 = vadd.f32 %v1793, %v1752
      %v1811 = vadd.f32 %v1796, %v1755
      %v1812 = vpack.c.bf16 %v1811, %v1810
      %v1814 = vsel %vm1371, %v1812, 0
      %1816 = vmatprep.subr.bf16.mxu0 0
      %1817 = vmatpush1.bf16.msra.mxu0 0
      %1818 = vmatprep.subr.bf16.mxu0 0
      %1819 = vmatpush1.bf16.msra.mxu0 0
      %1820 = vmatprep.subr.bf16.mxu0 0
      %1821 = vmatpush1.bf16.msra.mxu0 0
      %1822 = vmatprep.subr.bf16.mxu0 0
      %1823 = vmatpush1.bf16.msra.mxu0 0
      %1824 = vmatprep.subr.bf16.mxu0 0
      %1825 = vmatpush1.bf16.msra.mxu0 0
      %1826 = vmatprep.subr.bf16.mxu0 0
      %1827 = vmatpush1.bf16.msra.mxu0 0
      %1828 = vmatprep.subr.bf16.mxu0 0
      %1829 = vmatpush1.bf16.msra.mxu0 0
      %1830 = vmatprep.subr.bf16.mxu0 0
      %1831 = vmatpush1.bf16.msra.mxu0 %v1380
      %1832 = vmatprep.subr.bf16.mxu0 0
      %1833 = vmatpush2.bf16.msra.mxu0 0
      %1834 = vmatprep.subr.bf16.mxu0 0
      %1835 = vmatpush2.bf16.msra.mxu0 0
      %1836 = vmatprep.subr.bf16.mxu0 0
      %1837 = vmatpush2.bf16.msra.mxu0 0
      %1838 = vmatprep.subr.bf16.mxu0 0
      %1839 = vmatpush2.bf16.msra.mxu0 0
      %1840 = vmatprep.subr.bf16.mxu0 0
      %1841 = vmatpush2.bf16.msra.mxu0 0
      %1842 = vmatprep.subr.bf16.mxu0 0
      %1843 = vmatpush2.bf16.msra.mxu0 0
      %1844 = vmatprep.subr.bf16.mxu0 0
      %1845 = vmatpush2.bf16.msra.mxu0 0
      %1846 = vmatprep.subr.bf16.mxu0 0
      %1847 = vmatpush2.bf16.msra.mxu0 0
      %1848 = vmatprep.mubr.bf16.mxu0 0
      %1849 = vmatmul.mubr.bf16.gmra.mxu0 %v1814
      %v1850 = vpop.f32.mrf.mxu0
      %v1851 = vadd.f32 0.0, %v1850
      %v1852 = vpop.f32.mrf.mxu0
      %v1853 = vpop.f32.mrf.mxu0
      %v1854 = vadd.f32 0.0, %v1853
      %v1855 = vpop.f32.mrf.mxu0
      %1856 = vdwg.mxu0
      %v1858 = vsel %vm1371, %v1809, 0
      %1860 = vmatprep.subr.bf16.mxu0 0
      %1861 = vmatpush1.bf16.msra.mxu0 0
      %1862 = vmatprep.subr.bf16.mxu0 0
      %1863 = vmatpush1.bf16.msra.mxu0 0
      %1864 = vmatprep.subr.bf16.mxu0 0
      %1865 = vmatpush1.bf16.msra.mxu0 0
      %1866 = vmatprep.subr.bf16.mxu0 0
      %1867 = vmatpush1.bf16.msra.mxu0 0
      %1868 = vmatprep.subr.bf16.mxu0 0
      %1869 = vmatpush1.bf16.msra.mxu0 0
      %1870 = vmatprep.subr.bf16.mxu0 0
      %1871 = vmatpush1.bf16.msra.mxu0 0
      %1872 = vmatprep.subr.bf16.mxu0 0
      %1873 = vmatpush1.bf16.msra.mxu0 0
      %1874 = vmatprep.subr.bf16.mxu0 0
      %1875 = vmatpush1.bf16.msra.mxu0 %v1432
      %1876 = vmatprep.subr.bf16.mxu0 0
      %1877 = vmatpush2.bf16.msra.mxu0 0
      %1878 = vmatprep.subr.bf16.mxu0 0
      %1879 = vmatpush2.bf16.msra.mxu0 0
      %1880 = vmatprep.subr.bf16.mxu0 0
      %1881 = vmatpush2.bf16.msra.mxu0 0
      %1882 = vmatprep.subr.bf16.mxu0 0
      %1883 = vmatpush2.bf16.msra.mxu0 0
      %1884 = vmatprep.subr.bf16.mxu0 0
      %1885 = vmatpush2.bf16.msra.mxu0 0
      %1886 = vmatprep.subr.bf16.mxu0 0
      %1887 = vmatpush2.bf16.msra.mxu0 0
      %1888 = vmatprep.subr.bf16.mxu0 0
      %1889 = vmatpush2.bf16.msra.mxu0 0
      %1890 = vmatprep.subr.bf16.mxu0 0
      %1891 = vmatpush2.bf16.msra.mxu0 0
      %1892 = vmatprep.mubr.bf16.mxu0 0
      %1893 = vmatmul.mubr.bf16.gmra.mxu0 %v1858
      %v1894 = vpop.f32.mrf.mxu0
      %v1895 = vadd.f32 %v1851, %v1894
      %v1896 = vpop.f32.mrf.mxu0
      %v1897 = vpop.f32.mrf.mxu0
      %v1898 = vadd.f32 %v1854, %v1897
      %v1899 = vpop.f32.mrf.mxu0
      %1900 = vdwg.mxu0
      %1901 = vst.msk [vmem:[%s279 + $0x10] sm:$0xff] %vm377, %v1895
      %1902 = vst.msk [vmem:[%s279 + $0x18] sm:$0xff] %vm377, %v1898
      %1903 = vmatprep.subr.bf16.mxu0 0
      %1904 = vmatpush1.bf16.msra.mxu0 0
      %1905 = vmatprep.subr.bf16.mxu0 0
      %1906 = vmatpush1.bf16.msra.mxu0 0
      %1907 = vmatprep.subr.bf16.mxu0 0
      %1908 = vmatpush1.bf16.msra.mxu0 0
      %1909 = vmatprep.subr.bf16.mxu0 0
      %1910 = vmatpush1.bf16.msra.mxu0 0
      %1911 = vmatprep.subr.bf16.mxu0 0
      %1912 = vmatpush1.bf16.msra.mxu0 0
      %1913 = vmatprep.subr.bf16.mxu0 0
      %1914 = vmatpush1.bf16.msra.mxu0 0
      %1915 = vmatprep.subr.bf16.mxu0 0
      %1916 = vmatpush1.bf16.msra.mxu0 0
      %1917 = vmatprep.subr.bf16.mxu0 0
      %1918 = vmatpush1.bf16.msra.mxu0 %v534
      %1919 = vmatprep.subr.bf16.mxu0 0
      %1920 = vmatpush2.bf16.msra.mxu0 0
      %1921 = vmatprep.subr.bf16.mxu0 0
      %1922 = vmatpush2.bf16.msra.mxu0 0
      %1923 = vmatprep.subr.bf16.mxu0 0
      %1924 = vmatpush2.bf16.msra.mxu0 0
      %1925 = vmatprep.subr.bf16.mxu0 0
      %1926 = vmatpush2.bf16.msra.mxu0 0
      %1927 = vmatprep.subr.bf16.mxu0 0
      %1928 = vmatpush2.bf16.msra.mxu0 0
      %1929 = vmatprep.subr.bf16.mxu0 0
      %1930 = vmatpush2.bf16.msra.mxu0 0
      %1931 = vmatprep.subr.bf16.mxu0 0
      %1932 = vmatpush2.bf16.msra.mxu0 0
      %1933 = vmatprep.subr.bf16.mxu0 0
      %1934 = vmatpush2.bf16.msra.mxu0 0
      %1935 = vmatprep.mubr.bf16.mxu0 0
      %1936 = vmatmul.mubr.bf16.gmra.mxu0 %v692
      %v1937 = vpop.f32.mrf.mxu0
      %v1938 = vadd.f32 0.0, %v1937
      %v1939 = vpop.f32.mrf.mxu0
      %v1940 = vpop.f32.mrf.mxu0
      %v1941 = vadd.f32 0.0, %v1940
      %v1942 = vpop.f32.mrf.mxu0
      %1943 = vmatprep.mubr.bf16.mxu0 0
      %1944 = vmatmul.mubr.bf16.gmra.mxu0 %v695
      %v1945 = vpop.f32.mrf.mxu0
      %v1946 = vadd.f32 0.0, %v1945
      %v1947 = vpop.f32.mrf.mxu0
      %v1948 = vpop.f32.mrf.mxu0
      %v1949 = vadd.f32 0.0, %v1948
      %v1950 = vpop.f32.mrf.mxu0
      %1951 = vdwg.mxu0
      %1952 = vmatprep.subr.bf16.mxu0 0
      %1953 = vmatpush1.bf16.msra.mxu0 0
      %1954 = vmatprep.subr.bf16.mxu0 0
      %1955 = vmatpush1.bf16.msra.mxu0 0
      %1956 = vmatprep.subr.bf16.mxu0 0
      %1957 = vmatpush1.bf16.msra.mxu0 0
      %1958 = vmatprep.subr.bf16.mxu0 0
      %1959 = vmatpush1.bf16.msra.mxu0 0
      %1960 = vmatprep.subr.bf16.mxu0 0
      %1961 = vmatpush1.bf16.msra.mxu0 0
      %1962 = vmatprep.subr.bf16.mxu0 0
      %1963 = vmatpush1.bf16.msra.mxu0 0
      %1964 = vmatprep.subr.bf16.mxu0 0
      %1965 = vmatpush1.bf16.msra.mxu0 0
      %1966 = vmatprep.subr.bf16.mxu0 0
      %1967 = vmatpush1.bf16.msra.mxu0 %v672
      %1968 = vmatprep.subr.bf16.mxu0 0
      %1969 = vmatpush2.bf16.msra.mxu0 0
      %1970 = vmatprep.subr.bf16.mxu0 0
      %1971 = vmatpush2.bf16.msra.mxu0 0
      %1972 = vmatprep.subr.bf16.mxu0 0
      %1973 = vmatpush2.bf16.msra.mxu0 0
      %1974 = vmatprep.subr.bf16.mxu0 0
      %1975 = vmatpush2.bf16.msra.mxu0 0
      %1976 = vmatprep.subr.bf16.mxu0 0
      %1977 = vmatpush2.bf16.msra.mxu0 0
      %1978 = vmatprep.subr.bf16.mxu0 0
      %1979 = vmatpush2.bf16.msra.mxu0 0
      %1980 = vmatprep.subr.bf16.mxu0 0
      %1981 = vmatpush2.bf16.msra.mxu0 0
      %1982 = vmatprep.subr.bf16.mxu0 0
      %1983 = vmatpush2.bf16.msra.mxu0 0
      %1984 = vmatprep.mubr.bf16.mxu0 0
      %1985 = vmatmul.mubr.bf16.gmra.mxu0 %v692
      %v1986 = vpop.f32.mrf.mxu0
      %v1987 = vadd.f32 0.0, %v1986
      %v1988 = vpop.f32.mrf.mxu0
      %v1989 = vpop.f32.mrf.mxu0
      %v1990 = vadd.f32 0.0, %v1989
      %v1991 = vpop.f32.mrf.mxu0
      %1992 = vmatprep.mubr.bf16.mxu0 0
      %1993 = vmatmul.mubr.bf16.gmra.mxu0 %v695
      %v1994 = vpop.f32.mrf.mxu0
      %v1995 = vadd.f32 0.0, %v1994
      %v1996 = vpop.f32.mrf.mxu0
      %v1997 = vpop.f32.mrf.mxu0
      %v1998 = vadd.f32 0.0, %v1997
      %v1999 = vpop.f32.mrf.mxu0
      %2000 = vdwg.mxu0
      %v2001 = vadd.f32 %v1938, %v1995
      %v2002 = vadd.f32 %v1941, %v1998
      %v2003 = vsub.f32 %v1987, %v1946
      %v2004 = vsub.f32 %v1990, %v1949
      %2005 = vmatprep.subr.bf16.mxu0 0
      %2006 = vmatpush1.bf16.msra.mxu0 0
      %2007 = vmatprep.subr.bf16.mxu0 0
      %2008 = vmatpush1.bf16.msra.mxu0 0
      %2009 = vmatprep.subr.bf16.mxu0 0
      %2010 = vmatpush1.bf16.msra.mxu0 0
      %2011 = vmatprep.subr.bf16.mxu0 0
      %2012 = vmatpush1.bf16.msra.mxu0 0
      %2013 = vmatprep.subr.bf16.mxu0 0
      %2014 = vmatpush1.bf16.msra.mxu0 0
      %2015 = vmatprep.subr.bf16.mxu0 0
      %2016 = vmatpush1.bf16.msra.mxu0 0
      %2017 = vmatprep.subr.bf16.mxu0 0
      %2018 = vmatpush1.bf16.msra.mxu0 0
      %2019 = vmatprep.subr.bf16.mxu0 0
      %2020 = vmatpush1.bf16.msra.mxu0 %v538
      %2021 = vmatprep.subr.bf16.mxu0 0
      %2022 = vmatpush2.bf16.msra.mxu0 0
      %2023 = vmatprep.subr.bf16.mxu0 0
      %2024 = vmatpush2.bf16.msra.mxu0 0
      %2025 = vmatprep.subr.bf16.mxu0 0
      %2026 = vmatpush2.bf16.msra.mxu0 0
      %2027 = vmatprep.subr.bf16.mxu0 0
      %2028 = vmatpush2.bf16.msra.mxu0 0
      %2029 = vmatprep.subr.bf16.mxu0 0
      %2030 = vmatpush2.bf16.msra.mxu0 0
      %2031 = vmatprep.subr.bf16.mxu0 0
      %2032 = vmatpush2.bf16.msra.mxu0 0
      %2033 = vmatprep.subr.bf16.mxu0 0
      %2034 = vmatpush2.bf16.msra.mxu0 0
      %2035 = vmatprep.subr.bf16.mxu0 0
      %2036 = vmatpush2.bf16.msra.mxu0 0
      %2037 = vmatprep.mubr.bf16.mxu0 0
      %2038 = vmatmul.mubr.bf16.gmra.mxu0 %v692
      %v2039 = vpop.f32.mrf.mxu0
      %v2040 = vadd.f32 0.0, %v2039
      %v2041 = vpop.f32.mrf.mxu0
      %v2042 = vpop.f32.mrf.mxu0
      %v2043 = vadd.f32 0.0, %v2042
      %v2044 = vpop.f32.mrf.mxu0
      %2045 = vmatprep.mubr.bf16.mxu0 0
      %2046 = vmatmul.mubr.bf16.gmra.mxu0 %v695
      %v2047 = vpop.f32.mrf.mxu0
      %v2048 = vadd.f32 0.0, %v2047
      %v2049 = vpop.f32.mrf.mxu0
      %v2050 = vpop.f32.mrf.mxu0
      %v2051 = vadd.f32 0.0, %v2050
      %v2052 = vpop.f32.mrf.mxu0
      %2053 = vdwg.mxu0
      %2054 = vmatprep.subr.bf16.mxu0 0
      %2055 = vmatpush1.bf16.msra.mxu0 0
      %2056 = vmatprep.subr.bf16.mxu0 0
      %2057 = vmatpush1.bf16.msra.mxu0 0
      %2058 = vmatprep.subr.bf16.mxu0 0
      %2059 = vmatpush1.bf16.msra.mxu0 0
      %2060 = vmatprep.subr.bf16.mxu0 0
      %2061 = vmatpush1.bf16.msra.mxu0 0
      %2062 = vmatprep.subr.bf16.mxu0 0
      %2063 = vmatpush1.bf16.msra.mxu0 0
      %2064 = vmatprep.subr.bf16.mxu0 0
      %2065 = vmatpush1.bf16.msra.mxu0 0
      %2066 = vmatprep.subr.bf16.mxu0 0
      %2067 = vmatpush1.bf16.msra.mxu0 0
      %2068 = vmatprep.subr.bf16.mxu0 0
      %2069 = vmatpush1.bf16.msra.mxu0 %v676
      %2070 = vmatprep.subr.bf16.mxu0 0
      %2071 = vmatpush2.bf16.msra.mxu0 0
      %2072 = vmatprep.subr.bf16.mxu0 0
      %2073 = vmatpush2.bf16.msra.mxu0 0
      %2074 = vmatprep.subr.bf16.mxu0 0
      %2075 = vmatpush2.bf16.msra.mxu0 0
      %2076 = vmatprep.subr.bf16.mxu0 0
      %2077 = vmatpush2.bf16.msra.mxu0 0
      %2078 = vmatprep.subr.bf16.mxu0 0
      %2079 = vmatpush2.bf16.msra.mxu0 0
      %2080 = vmatprep.subr.bf16.mxu0 0
      %2081 = vmatpush2.bf16.msra.mxu0 0
      %2082 = vmatprep.subr.bf16.mxu0 0
      %2083 = vmatpush2.bf16.msra.mxu0 0
      %2084 = vmatprep.subr.bf16.mxu0 0
      %2085 = vmatpush2.bf16.msra.mxu0 0
      %2086 = vmatprep.mubr.bf16.mxu0 0
      %2087 = vmatmul.mubr.bf16.gmra.mxu0 %v692
      %v2088 = vpop.f32.mrf.mxu0
      %v2089 = vadd.f32 0.0, %v2088
      %v2090 = vpop.f32.mrf.mxu0
      %v2091 = vpop.f32.mrf.mxu0
      %v2092 = vadd.f32 0.0, %v2091
      %v2093 = vpop.f32.mrf.mxu0
      %2094 = vmatprep.mubr.bf16.mxu0 0
      %2095 = vmatmul.mubr.bf16.gmra.mxu0 %v695
      %v2096 = vpop.f32.mrf.mxu0
      %v2097 = vadd.f32 0.0, %v2096
      %v2098 = vpop.f32.mrf.mxu0
      %v2099 = vpop.f32.mrf.mxu0
      %v2100 = vadd.f32 0.0, %v2099
      %v2101 = vpop.f32.mrf.mxu0
      %2102 = vdwg.mxu0
      %v2103 = vadd.f32 %v2040, %v2097
      %v2104 = vadd.f32 %v2043, %v2100
      %v2105 = vsub.f32 %v2089, %v2048
      %v2106 = vsub.f32 %v2092, %v2051
      %v2107 = vmul.f32 %v2103, %v2103
      %v2108 = vmul.f32 %v2104, %v2104
      %v2109 = vmul.f32 %v2105, %v2105
      %v2110 = vmul.f32 %v2106, %v2106
      %v2111 = vadd.f32 %v2107, %v2109
      %v2112 = vadd.f32 %v2108, %v2110
      %v2113 = vadd.f32 %v2111, %v1028
      %v2114 = vadd.f32 %v2112, %v1029
      %v2115 = vrcp.pop %v2113
      %v2116 = vrcp.pop %v2114
      %v2117 = vmul.f32 %v2103, %v2001
      %v2118 = vmul.f32 %v2104, %v2002
      %v2119 = vmul.f32 %v2105, %v2003
      %v2120 = vmul.f32 %v2106, %v2004
      %v2121 = vadd.f32 %v2117, %v2119
      %v2122 = vadd.f32 %v2118, %v2120
      %v2123 = vmul.f32 %v2121, %v2115
      %v2124 = vmul.f32 %v2122, %v2116
      %v2125 = vpack.c.bf16 %v2124, %v2123
      %v2126 = vmul.f32 %v2103, %v2003
      %v2127 = vmul.f32 %v2104, %v2004
      %v2128 = vmul.f32 %v2105, %v2001
      %v2129 = vmul.f32 %v2106, %v2002
      %v2130 = vsub.f32 %v2126, %v2128
      %v2131 = vsub.f32 %v2127, %v2129
      %v2132 = vmul.f32 %v2130, %v2115
      %v2133 = vmul.f32 %v2131, %v2116
      %v2134 = vpack.c.bf16 %v2133, %v2132
      %2135 = vmatprep.subr.bf16.mxu0 0
      %2136 = vmatpush1.bf16.msra.mxu0 0
      %2137 = vmatprep.subr.bf16.mxu0 0
      %2138 = vmatpush1.bf16.msra.mxu0 0
      %2139 = vmatprep.subr.bf16.mxu0 0
      %2140 = vmatpush1.bf16.msra.mxu0 0
      %2141 = vmatprep.subr.bf16.mxu0 0
      %2142 = vmatpush1.bf16.msra.mxu0 0
      %2143 = vmatprep.subr.bf16.mxu0 0
      %2144 = vmatpush1.bf16.msra.mxu0 0
      %2145 = vmatprep.subr.bf16.mxu0 0
      %2146 = vmatpush1.bf16.msra.mxu0 0
      %2147 = vmatprep.subr.bf16.mxu0 0
      %2148 = vmatpush1.bf16.msra.mxu0 0
      %2149 = vmatprep.subr.bf16.mxu0 0
      %2150 = vmatpush1.bf16.msra.mxu0 %v2125
      %2151 = vmatprep.subr.bf16.mxu0 0
      %2152 = vmatpush2.bf16.msra.mxu0 0
      %2153 = vmatprep.subr.bf16.mxu0 0
      %2154 = vmatpush2.bf16.msra.mxu0 0
      %2155 = vmatprep.subr.bf16.mxu0 0
      %2156 = vmatpush2.bf16.msra.mxu0 0
      %2157 = vmatprep.subr.bf16.mxu0 0
      %2158 = vmatpush2.bf16.msra.mxu0 0
      %2159 = vmatprep.subr.bf16.mxu0 0
      %2160 = vmatpush2.bf16.msra.mxu0 0
      %2161 = vmatprep.subr.bf16.mxu0 0
      %2162 = vmatpush2.bf16.msra.mxu0 0
      %2163 = vmatprep.subr.bf16.mxu0 0
      %2164 = vmatpush2.bf16.msra.mxu0 0
      %2165 = vmatprep.subr.bf16.mxu0 0
      %2166 = vmatpush2.bf16.msra.mxu0 0
      %2167 = vmatprep.mubr.bf16.mxu0 0
      %2168 = vmatmul.mubr.bf16.gmra.mxu0 %v692
      %v2169 = vpop.f32.mrf.mxu0
      %v2170 = vadd.f32 0.0, %v2169
      %v2171 = vpop.f32.mrf.mxu0
      %v2172 = vpop.f32.mrf.mxu0
      %v2173 = vadd.f32 0.0, %v2172
      %v2174 = vpop.f32.mrf.mxu0
      %2175 = vmatprep.mubr.bf16.mxu0 0
      %2176 = vmatmul.mubr.bf16.gmra.mxu0 %v695
      %v2177 = vpop.f32.mrf.mxu0
      %v2178 = vadd.f32 0.0, %v2177
      %v2179 = vpop.f32.mrf.mxu0
      %v2180 = vpop.f32.mrf.mxu0
      %v2181 = vadd.f32 0.0, %v2180
      %v2182 = vpop.f32.mrf.mxu0
      %2183 = vdwg.mxu0
      %2184 = vmatprep.subr.bf16.mxu0 0
      %2185 = vmatpush1.bf16.msra.mxu0 0
      %2186 = vmatprep.subr.bf16.mxu0 0
      %2187 = vmatpush1.bf16.msra.mxu0 0
      %2188 = vmatprep.subr.bf16.mxu0 0
      %2189 = vmatpush1.bf16.msra.mxu0 0
      %2190 = vmatprep.subr.bf16.mxu0 0
      %2191 = vmatpush1.bf16.msra.mxu0 0
      %2192 = vmatprep.subr.bf16.mxu0 0
      %2193 = vmatpush1.bf16.msra.mxu0 0
      %2194 = vmatprep.subr.bf16.mxu0 0
      %2195 = vmatpush1.bf16.msra.mxu0 0
      %2196 = vmatprep.subr.bf16.mxu0 0
      %2197 = vmatpush1.bf16.msra.mxu0 0
      %2198 = vmatprep.subr.bf16.mxu0 0
      %2199 = vmatpush1.bf16.msra.mxu0 %v2134
      %2200 = vmatprep.subr.bf16.mxu0 0
      %2201 = vmatpush2.bf16.msra.mxu0 0
      %2202 = vmatprep.subr.bf16.mxu0 0
      %2203 = vmatpush2.bf16.msra.mxu0 0
      %2204 = vmatprep.subr.bf16.mxu0 0
      %2205 = vmatpush2.bf16.msra.mxu0 0
      %2206 = vmatprep.subr.bf16.mxu0 0
      %2207 = vmatpush2.bf16.msra.mxu0 0
      %2208 = vmatprep.subr.bf16.mxu0 0
      %2209 = vmatpush2.bf16.msra.mxu0 0
      %2210 = vmatprep.subr.bf16.mxu0 0
      %2211 = vmatpush2.bf16.msra.mxu0 0
      %2212 = vmatprep.subr.bf16.mxu0 0
      %2213 = vmatpush2.bf16.msra.mxu0 0
      %2214 = vmatprep.subr.bf16.mxu0 0
      %2215 = vmatpush2.bf16.msra.mxu0 0
      %2216 = vmatprep.mubr.bf16.mxu0 0
      %2217 = vmatmul.mubr.bf16.gmra.mxu0 %v692
      %v2218 = vpop.f32.mrf.mxu0
      %v2219 = vadd.f32 0.0, %v2218
      %v2220 = vpop.f32.mrf.mxu0
      %v2221 = vpop.f32.mrf.mxu0
      %v2222 = vadd.f32 0.0, %v2221
      %v2223 = vpop.f32.mrf.mxu0
      %2224 = vmatprep.mubr.bf16.mxu0 0
      %2225 = vmatmul.mubr.bf16.gmra.mxu0 %v695
      %v2226 = vpop.f32.mrf.mxu0
      %v2227 = vadd.f32 0.0, %v2226
      %v2228 = vpop.f32.mrf.mxu0
      %v2229 = vpop.f32.mrf.mxu0
      %v2230 = vadd.f32 0.0, %v2229
      %v2231 = vpop.f32.mrf.mxu0
      %2232 = vdwg.mxu0
      %v2233 = vsub.f32 %v2170, %v2227
      %v2234 = vsub.f32 %v2173, %v2230
      %v2235 = vpack.c.bf16 %v2234, %v2233
      %v2236 = vadd.f32 %v2219, %v2178
      %v2237 = vadd.f32 %v2222, %v2181
      %v2238 = vpack.c.bf16 %v2237, %v2236
      %v2240 = vsel %vm1371, %v2238, 0
      %2242 = vmatprep.subr.bf16.mxu0 0
      %2243 = vmatpush1.bf16.msra.mxu0 0
      %2244 = vmatprep.subr.bf16.mxu0 0
      %2245 = vmatpush1.bf16.msra.mxu0 0
      %2246 = vmatprep.subr.bf16.mxu0 0
      %2247 = vmatpush1.bf16.msra.mxu0 0
      %2248 = vmatprep.subr.bf16.mxu0 0
      %2249 = vmatpush1.bf16.msra.mxu0 0
      %2250 = vmatprep.subr.bf16.mxu0 0
      %2251 = vmatpush1.bf16.msra.mxu0 0
      %2252 = vmatprep.subr.bf16.mxu0 0
      %2253 = vmatpush1.bf16.msra.mxu0 0
      %2254 = vmatprep.subr.bf16.mxu0 0
      %2255 = vmatpush1.bf16.msra.mxu0 0
      %2256 = vmatprep.subr.bf16.mxu0 0
      %2257 = vmatpush1.bf16.msra.mxu0 %v1380
      %2258 = vmatprep.subr.bf16.mxu0 0
      %2259 = vmatpush2.bf16.msra.mxu0 0
      %2260 = vmatprep.subr.bf16.mxu0 0
      %2261 = vmatpush2.bf16.msra.mxu0 0
      %2262 = vmatprep.subr.bf16.mxu0 0
      %2263 = vmatpush2.bf16.msra.mxu0 0
      %2264 = vmatprep.subr.bf16.mxu0 0
      %2265 = vmatpush2.bf16.msra.mxu0 0
      %2266 = vmatprep.subr.bf16.mxu0 0
      %2267 = vmatpush2.bf16.msra.mxu0 0
      %2268 = vmatprep.subr.bf16.mxu0 0
      %2269 = vmatpush2.bf16.msra.mxu0 0
      %2270 = vmatprep.subr.bf16.mxu0 0
      %2271 = vmatpush2.bf16.msra.mxu0 0
      %2272 = vmatprep.subr.bf16.mxu0 0
      %2273 = vmatpush2.bf16.msra.mxu0 0
      %2274 = vmatprep.mubr.bf16.mxu0 0
      %2275 = vmatmul.mubr.bf16.gmra.mxu0 %v2240
      %v2276 = vpop.f32.mrf.mxu0
      %v2277 = vadd.f32 0.0, %v2276
      %v2278 = vpop.f32.mrf.mxu0
      %v2279 = vpop.f32.mrf.mxu0
      %v2280 = vadd.f32 0.0, %v2279
      %v2281 = vpop.f32.mrf.mxu0
      %2282 = vdwg.mxu0
      %v2284 = vsel %vm1371, %v2235, 0
      %2286 = vmatprep.subr.bf16.mxu0 0
      %2287 = vmatpush1.bf16.msra.mxu0 0
      %2288 = vmatprep.subr.bf16.mxu0 0
      %2289 = vmatpush1.bf16.msra.mxu0 0
      %2290 = vmatprep.subr.bf16.mxu0 0
      %2291 = vmatpush1.bf16.msra.mxu0 0
      %2292 = vmatprep.subr.bf16.mxu0 0
      %2293 = vmatpush1.bf16.msra.mxu0 0
      %2294 = vmatprep.subr.bf16.mxu0 0
      %2295 = vmatpush1.bf16.msra.mxu0 0
      %2296 = vmatprep.subr.bf16.mxu0 0
      %2297 = vmatpush1.bf16.msra.mxu0 0
      %2298 = vmatprep.subr.bf16.mxu0 0
      %2299 = vmatpush1.bf16.msra.mxu0 0
      %2300 = vmatprep.subr.bf16.mxu0 0
      %2301 = vmatpush1.bf16.msra.mxu0 %v1432
      %2302 = vmatprep.subr.bf16.mxu0 0
      %2303 = vmatpush2.bf16.msra.mxu0 0
      %2304 = vmatprep.subr.bf16.mxu0 0
      %2305 = vmatpush2.bf16.msra.mxu0 0
      %2306 = vmatprep.subr.bf16.mxu0 0
      %2307 = vmatpush2.bf16.msra.mxu0 0
      %2308 = vmatprep.subr.bf16.mxu0 0
      %2309 = vmatpush2.bf16.msra.mxu0 0
      %2310 = vmatprep.subr.bf16.mxu0 0
      %2311 = vmatpush2.bf16.msra.mxu0 0
      %2312 = vmatprep.subr.bf16.mxu0 0
      %2313 = vmatpush2.bf16.msra.mxu0 0
      %2314 = vmatprep.subr.bf16.mxu0 0
      %2315 = vmatpush2.bf16.msra.mxu0 0
      %2316 = vmatprep.subr.bf16.mxu0 0
      %2317 = vmatpush2.bf16.msra.mxu0 0
      %2318 = vmatprep.mubr.bf16.mxu0 0
      %2319 = vmatmul.mubr.bf16.gmra.mxu0 %v2284
      %v2320 = vpop.f32.mrf.mxu0
      %v2321 = vadd.f32 %v2277, %v2320
      %v2322 = vpop.f32.mrf.mxu0
      %v2323 = vpop.f32.mrf.mxu0
      %v2324 = vadd.f32 %v2280, %v2323
      %v2325 = vpop.f32.mrf.mxu0
      %2326 = vdwg.mxu0
      %2327 = vst.msk [vmem:[%s279 + $0x20] sm:$0xff] %vm377, %v2321
      %2328 = vst.msk [vmem:[%s279 + $0x28] sm:$0xff] %vm377, %v2324
      %2329 = vmatprep.subr.bf16.mxu0 0
      %2330 = vmatpush1.bf16.msra.mxu0 0
      %2331 = vmatprep.subr.bf16.mxu0 0
      %2332 = vmatpush1.bf16.msra.mxu0 0
      %2333 = vmatprep.subr.bf16.mxu0 0
      %2334 = vmatpush1.bf16.msra.mxu0 0
      %2335 = vmatprep.subr.bf16.mxu0 0
      %2336 = vmatpush1.bf16.msra.mxu0 0
      %2337 = vmatprep.subr.bf16.mxu0 0
      %2338 = vmatpush1.bf16.msra.mxu0 0
      %2339 = vmatprep.subr.bf16.mxu0 0
      %2340 = vmatpush1.bf16.msra.mxu0 0
      %2341 = vmatprep.subr.bf16.mxu0 0
      %2342 = vmatpush1.bf16.msra.mxu0 0
      %2343 = vmatprep.subr.bf16.mxu0 0
      %2344 = vmatpush1.bf16.msra.mxu0 %v535
      %2345 = vmatprep.subr.bf16.mxu0 0
      %2346 = vmatpush2.bf16.msra.mxu0 0
      %2347 = vmatprep.subr.bf16.mxu0 0
      %2348 = vmatpush2.bf16.msra.mxu0 0
      %2349 = vmatprep.subr.bf16.mxu0 0
      %2350 = vmatpush2.bf16.msra.mxu0 0
      %2351 = vmatprep.subr.bf16.mxu0 0
      %2352 = vmatpush2.bf16.msra.mxu0 0
      %2353 = vmatprep.subr.bf16.mxu0 0
      %2354 = vmatpush2.bf16.msra.mxu0 0
      %2355 = vmatprep.subr.bf16.mxu0 0
      %2356 = vmatpush2.bf16.msra.mxu0 0
      %2357 = vmatprep.subr.bf16.mxu0 0
      %2358 = vmatpush2.bf16.msra.mxu0 0
      %2359 = vmatprep.subr.bf16.mxu0 0
      %2360 = vmatpush2.bf16.msra.mxu0 0
      %2361 = vmatprep.mubr.bf16.mxu0 0
      %2362 = vmatmul.mubr.bf16.gmra.mxu0 %v692
      %v2363 = vpop.f32.mrf.mxu0
      %v2364 = vadd.f32 0.0, %v2363
      %v2365 = vpop.f32.mrf.mxu0
      %v2366 = vpop.f32.mrf.mxu0
      %v2367 = vadd.f32 0.0, %v2366
      %v2368 = vpop.f32.mrf.mxu0
      %2369 = vmatprep.mubr.bf16.mxu0 0
      %2370 = vmatmul.mubr.bf16.gmra.mxu0 %v695
      %v2371 = vpop.f32.mrf.mxu0
      %v2372 = vadd.f32 0.0, %v2371
      %v2373 = vpop.f32.mrf.mxu0
      %v2374 = vpop.f32.mrf.mxu0
      %v2375 = vadd.f32 0.0, %v2374
      %v2376 = vpop.f32.mrf.mxu0
      %2377 = vdwg.mxu0
      %2378 = vmatprep.subr.bf16.mxu0 0
      %2379 = vmatpush1.bf16.msra.mxu0 0
      %2380 = vmatprep.subr.bf16.mxu0 0
      %2381 = vmatpush1.bf16.msra.mxu0 0
      %2382 = vmatprep.subr.bf16.mxu0 0
      %2383 = vmatpush1.bf16.msra.mxu0 0
      %2384 = vmatprep.subr.bf16.mxu0 0
      %2385 = vmatpush1.bf16.msra.mxu0 0
      %2386 = vmatprep.subr.bf16.mxu0 0
      %2387 = vmatpush1.bf16.msra.mxu0 0
      %2388 = vmatprep.subr.bf16.mxu0 0
      %2389 = vmatpush1.bf16.msra.mxu0 0
      %2390 = vmatprep.subr.bf16.mxu0 0
      %2391 = vmatpush1.bf16.msra.mxu0 0
      %2392 = vmatprep.subr.bf16.mxu0 0
      %2393 = vmatpush1.bf16.msra.mxu0 %v673
      %2394 = vmatprep.subr.bf16.mxu0 0
      %2395 = vmatpush2.bf16.msra.mxu0 0
      %2396 = vmatprep.subr.bf16.mxu0 0
      %2397 = vmatpush2.bf16.msra.mxu0 0
      %2398 = vmatprep.subr.bf16.mxu0 0
      %2399 = vmatpush2.bf16.msra.mxu0 0
      %2400 = vmatprep.subr.bf16.mxu0 0
      %2401 = vmatpush2.bf16.msra.mxu0 0
      %2402 = vmatprep.subr.bf16.mxu0 0
      %2403 = vmatpush2.bf16.msra.mxu0 0
      %2404 = vmatprep.subr.bf16.mxu0 0
      %2405 = vmatpush2.bf16.msra.mxu0 0
      %2406 = vmatprep.subr.bf16.mxu0 0
      %2407 = vmatpush2.bf16.msra.mxu0 0
      %2408 = vmatprep.subr.bf16.mxu0 0
      %2409 = vmatpush2.bf16.msra.mxu0 0
      %2410 = vmatprep.mubr.bf16.mxu0 0
      %2411 = vmatmul.mubr.bf16.gmra.mxu0 %v692
      %v2412 = vpop.f32.mrf.mxu0
      %v2413 = vadd.f32 0.0, %v2412
      %v2414 = vpop.f32.mrf.mxu0
      %v2415 = vpop.f32.mrf.mxu0
      %v2416 = vadd.f32 0.0, %v2415
      %v2417 = vpop.f32.mrf.mxu0
      %2418 = vmatprep.mubr.bf16.mxu0 0
      %2419 = vmatmul.mubr.bf16.gmra.mxu0 %v695
      %v2420 = vpop.f32.mrf.mxu0
      %v2421 = vadd.f32 0.0, %v2420
      %v2422 = vpop.f32.mrf.mxu0
      %v2423 = vpop.f32.mrf.mxu0
      %v2424 = vadd.f32 0.0, %v2423
      %v2425 = vpop.f32.mrf.mxu0
      %2426 = vdwg.mxu0
      %v2427 = vadd.f32 %v2364, %v2421
      %v2428 = vadd.f32 %v2367, %v2424
      %v2429 = vsub.f32 %v2413, %v2372
      %v2430 = vsub.f32 %v2416, %v2375
      %2431 = vmatprep.subr.bf16.mxu0 0
      %2432 = vmatpush1.bf16.msra.mxu0 0
      %2433 = vmatprep.subr.bf16.mxu0 0
      %2434 = vmatpush1.bf16.msra.mxu0 0
      %2435 = vmatprep.subr.bf16.mxu0 0
      %2436 = vmatpush1.bf16.msra.mxu0 0
      %2437 = vmatprep.subr.bf16.mxu0 0
      %2438 = vmatpush1.bf16.msra.mxu0 0
      %2439 = vmatprep.subr.bf16.mxu0 0
      %2440 = vmatpush1.bf16.msra.mxu0 0
      %2441 = vmatprep.subr.bf16.mxu0 0
      %2442 = vmatpush1.bf16.msra.mxu0 0
      %2443 = vmatprep.subr.bf16.mxu0 0
      %2444 = vmatpush1.bf16.msra.mxu0 0
      %2445 = vmatprep.subr.bf16.mxu0 0
      %2446 = vmatpush1.bf16.msra.mxu0 %v539
      %2447 = vmatprep.subr.bf16.mxu0 0
      %2448 = vmatpush2.bf16.msra.mxu0 0
      %2449 = vmatprep.subr.bf16.mxu0 0
      %2450 = vmatpush2.bf16.msra.mxu0 0
      %2451 = vmatprep.subr.bf16.mxu0 0
      %2452 = vmatpush2.bf16.msra.mxu0 0
      %2453 = vmatprep.subr.bf16.mxu0 0
      %2454 = vmatpush2.bf16.msra.mxu0 0
      %2455 = vmatprep.subr.bf16.mxu0 0
      %2456 = vmatpush2.bf16.msra.mxu0 0
      %2457 = vmatprep.subr.bf16.mxu0 0
      %2458 = vmatpush2.bf16.msra.mxu0 0
      %2459 = vmatprep.subr.bf16.mxu0 0
      %2460 = vmatpush2.bf16.msra.mxu0 0
      %2461 = vmatprep.subr.bf16.mxu0 0
      %2462 = vmatpush2.bf16.msra.mxu0 0
      %2463 = vmatprep.mubr.bf16.mxu0 0
      %2464 = vmatmul.mubr.bf16.gmra.mxu0 %v692
      %v2465 = vpop.f32.mrf.mxu0
      %v2466 = vadd.f32 0.0, %v2465
      %v2467 = vpop.f32.mrf.mxu0
      %v2468 = vpop.f32.mrf.mxu0
      %v2469 = vadd.f32 0.0, %v2468
      %v2470 = vpop.f32.mrf.mxu0
      %2471 = vmatprep.mubr.bf16.mxu0 0
      %2472 = vmatmul.mubr.bf16.gmra.mxu0 %v695
      %v2473 = vpop.f32.mrf.mxu0
      %v2474 = vadd.f32 0.0, %v2473
      %v2475 = vpop.f32.mrf.mxu0
      %v2476 = vpop.f32.mrf.mxu0
      %v2477 = vadd.f32 0.0, %v2476
      %v2478 = vpop.f32.mrf.mxu0
      %2479 = vdwg.mxu0
      %2480 = vmatprep.subr.bf16.mxu0 0
      %2481 = vmatpush1.bf16.msra.mxu0 0
      %2482 = vmatprep.subr.bf16.mxu0 0
      %2483 = vmatpush1.bf16.msra.mxu0 0
      %2484 = vmatprep.subr.bf16.mxu0 0
      %2485 = vmatpush1.bf16.msra.mxu0 0
      %2486 = vmatprep.subr.bf16.mxu0 0
      %2487 = vmatpush1.bf16.msra.mxu0 0
      %2488 = vmatprep.subr.bf16.mxu0 0
      %2489 = vmatpush1.bf16.msra.mxu0 0
      %2490 = vmatprep.subr.bf16.mxu0 0
      %2491 = vmatpush1.bf16.msra.mxu0 0
      %2492 = vmatprep.subr.bf16.mxu0 0
      %2493 = vmatpush1.bf16.msra.mxu0 0
      %2494 = vmatprep.subr.bf16.mxu0 0
      %2495 = vmatpush1.bf16.msra.mxu0 %v677
      %2496 = vmatprep.subr.bf16.mxu0 0
      %2497 = vmatpush2.bf16.msra.mxu0 0
      %2498 = vmatprep.subr.bf16.mxu0 0
      %2499 = vmatpush2.bf16.msra.mxu0 0
      %2500 = vmatprep.subr.bf16.mxu0 0
      %2501 = vmatpush2.bf16.msra.mxu0 0
      %2502 = vmatprep.subr.bf16.mxu0 0
      %2503 = vmatpush2.bf16.msra.mxu0 0
      %2504 = vmatprep.subr.bf16.mxu0 0
      %2505 = vmatpush2.bf16.msra.mxu0 0
      %2506 = vmatprep.subr.bf16.mxu0 0
      %2507 = vmatpush2.bf16.msra.mxu0 0
      %2508 = vmatprep.subr.bf16.mxu0 0
      %2509 = vmatpush2.bf16.msra.mxu0 0
      %2510 = vmatprep.subr.bf16.mxu0 0
      %2511 = vmatpush2.bf16.msra.mxu0 0
      %2512 = vmatprep.mubr.bf16.mxu0 0
      %2513 = vmatmul.mubr.bf16.gmra.mxu0 %v692
      %v2514 = vpop.f32.mrf.mxu0
      %v2515 = vadd.f32 0.0, %v2514
      %v2516 = vpop.f32.mrf.mxu0
      %v2517 = vpop.f32.mrf.mxu0
      %v2518 = vadd.f32 0.0, %v2517
      %v2519 = vpop.f32.mrf.mxu0
      %2520 = vmatprep.mubr.bf16.mxu0 0
      %2521 = vmatmul.mubr.bf16.gmra.mxu0 %v695
      %v2522 = vpop.f32.mrf.mxu0
      %v2523 = vadd.f32 0.0, %v2522
      %v2524 = vpop.f32.mrf.mxu0
      %v2525 = vpop.f32.mrf.mxu0
      %v2526 = vadd.f32 0.0, %v2525
      %v2527 = vpop.f32.mrf.mxu0
      %2528 = vdwg.mxu0
      %v2529 = vadd.f32 %v2466, %v2523
      %v2530 = vadd.f32 %v2469, %v2526
      %v2531 = vsub.f32 %v2515, %v2474
      %v2532 = vsub.f32 %v2518, %v2477
      %v2533 = vmul.f32 %v2529, %v2529
      %v2534 = vmul.f32 %v2530, %v2530
      %v2535 = vmul.f32 %v2531, %v2531
      %v2536 = vmul.f32 %v2532, %v2532
      %v2537 = vadd.f32 %v2533, %v2535
      %v2538 = vadd.f32 %v2534, %v2536
      %v2539 = vadd.f32 %v2537, %v1028
      %v2540 = vadd.f32 %v2538, %v1029
      %v2541 = vrcp.pop %v2539
      %v2542 = vrcp.pop %v2540
      %v2543 = vmul.f32 %v2529, %v2427
      %v2544 = vmul.f32 %v2530, %v2428
      %v2545 = vmul.f32 %v2531, %v2429
      %v2546 = vmul.f32 %v2532, %v2430
      %v2547 = vadd.f32 %v2543, %v2545
      %v2548 = vadd.f32 %v2544, %v2546
      %v2549 = vmul.f32 %v2547, %v2541
      %v2550 = vmul.f32 %v2548, %v2542
      %v2551 = vpack.c.bf16 %v2550, %v2549
      %v2552 = vmul.f32 %v2529, %v2429
      %v2553 = vmul.f32 %v2530, %v2430
      %v2554 = vmul.f32 %v2531, %v2427
      %v2555 = vmul.f32 %v2532, %v2428
      %v2556 = vsub.f32 %v2552, %v2554
      %v2557 = vsub.f32 %v2553, %v2555
      %v2558 = vmul.f32 %v2556, %v2541
      %v2559 = vmul.f32 %v2557, %v2542
      %v2560 = vpack.c.bf16 %v2559, %v2558
      %2561 = vmatprep.subr.bf16.mxu0 0
      %2562 = vmatpush1.bf16.msra.mxu0 0
      %2563 = vmatprep.subr.bf16.mxu0 0
      %2564 = vmatpush1.bf16.msra.mxu0 0
      %2565 = vmatprep.subr.bf16.mxu0 0
      %2566 = vmatpush1.bf16.msra.mxu0 0
      %2567 = vmatprep.subr.bf16.mxu0 0
      %2568 = vmatpush1.bf16.msra.mxu0 0
      %2569 = vmatprep.subr.bf16.mxu0 0
      %2570 = vmatpush1.bf16.msra.mxu0 0
      %2571 = vmatprep.subr.bf16.mxu0 0
      %2572 = vmatpush1.bf16.msra.mxu0 0
      %2573 = vmatprep.subr.bf16.mxu0 0
      %2574 = vmatpush1.bf16.msra.mxu0 0
      %2575 = vmatprep.subr.bf16.mxu0 0
      %2576 = vmatpush1.bf16.msra.mxu0 %v2551
      %2577 = vmatprep.subr.bf16.mxu0 0
      %2578 = vmatpush2.bf16.msra.mxu0 0
      %2579 = vmatprep.subr.bf16.mxu0 0
      %2580 = vmatpush2.bf16.msra.mxu0 0
      %2581 = vmatprep.subr.bf16.mxu0 0
      %2582 = vmatpush2.bf16.msra.mxu0 0
      %2583 = vmatprep.subr.bf16.mxu0 0
      %2584 = vmatpush2.bf16.msra.mxu0 0
      %2585 = vmatprep.subr.bf16.mxu0 0
      %2586 = vmatpush2.bf16.msra.mxu0 0
      %2587 = vmatprep.subr.bf16.mxu0 0
      %2588 = vmatpush2.bf16.msra.mxu0 0
      %2589 = vmatprep.subr.bf16.mxu0 0
      %2590 = vmatpush2.bf16.msra.mxu0 0
      %2591 = vmatprep.subr.bf16.mxu0 0
      %2592 = vmatpush2.bf16.msra.mxu0 0
      %2593 = vmatprep.mubr.bf16.mxu0 0
      %2594 = vmatmul.mubr.bf16.gmra.mxu0 %v692
      %v2595 = vpop.f32.mrf.mxu0
      %v2596 = vadd.f32 0.0, %v2595
      %v2597 = vpop.f32.mrf.mxu0
      %v2598 = vpop.f32.mrf.mxu0
      %v2599 = vadd.f32 0.0, %v2598
      %v2600 = vpop.f32.mrf.mxu0
      %2601 = vmatprep.mubr.bf16.mxu0 0
      %2602 = vmatmul.mubr.bf16.gmra.mxu0 %v695
      %v2603 = vpop.f32.mrf.mxu0
      %v2604 = vadd.f32 0.0, %v2603
      %v2605 = vpop.f32.mrf.mxu0
      %v2606 = vpop.f32.mrf.mxu0
      %v2607 = vadd.f32 0.0, %v2606
      %v2608 = vpop.f32.mrf.mxu0
      %2609 = vdwg.mxu0
      %2610 = vmatprep.subr.bf16.mxu0 0
      %2611 = vmatpush1.bf16.msra.mxu0 0
      %2612 = vmatprep.subr.bf16.mxu0 0
      %2613 = vmatpush1.bf16.msra.mxu0 0
      %2614 = vmatprep.subr.bf16.mxu0 0
      %2615 = vmatpush1.bf16.msra.mxu0 0
      %2616 = vmatprep.subr.bf16.mxu0 0
      %2617 = vmatpush1.bf16.msra.mxu0 0
      %2618 = vmatprep.subr.bf16.mxu0 0
      %2619 = vmatpush1.bf16.msra.mxu0 0
      %2620 = vmatprep.subr.bf16.mxu0 0
      %2621 = vmatpush1.bf16.msra.mxu0 0
      %2622 = vmatprep.subr.bf16.mxu0 0
      %2623 = vmatpush1.bf16.msra.mxu0 0
      %2624 = vmatprep.subr.bf16.mxu0 0
      %2625 = vmatpush1.bf16.msra.mxu0 %v2560
      %2626 = vmatprep.subr.bf16.mxu0 0
      %2627 = vmatpush2.bf16.msra.mxu0 0
      %2628 = vmatprep.subr.bf16.mxu0 0
      %2629 = vmatpush2.bf16.msra.mxu0 0
      %2630 = vmatprep.subr.bf16.mxu0 0
      %2631 = vmatpush2.bf16.msra.mxu0 0
      %2632 = vmatprep.subr.bf16.mxu0 0
      %2633 = vmatpush2.bf16.msra.mxu0 0
      %2634 = vmatprep.subr.bf16.mxu0 0
      %2635 = vmatpush2.bf16.msra.mxu0 0
      %2636 = vmatprep.subr.bf16.mxu0 0
      %2637 = vmatpush2.bf16.msra.mxu0 0
      %2638 = vmatprep.subr.bf16.mxu0 0
      %2639 = vmatpush2.bf16.msra.mxu0 0
      %2640 = vmatprep.subr.bf16.mxu0 0
      %2641 = vmatpush2.bf16.msra.mxu0 0
      %2642 = vmatprep.mubr.bf16.mxu0 0
      %2643 = vmatmul.mubr.bf16.gmra.mxu0 %v692
      %v2644 = vpop.f32.mrf.mxu0
      %v2645 = vadd.f32 0.0, %v2644
      %v2646 = vpop.f32.mrf.mxu0
      %v2647 = vpop.f32.mrf.mxu0
      %v2648 = vadd.f32 0.0, %v2647
      %v2649 = vpop.f32.mrf.mxu0
      %2650 = vmatprep.mubr.bf16.mxu0 0
      %2651 = vmatmul.mubr.bf16.gmra.mxu0 %v695
      %v2652 = vpop.f32.mrf.mxu0
      %v2653 = vadd.f32 0.0, %v2652
      %v2654 = vpop.f32.mrf.mxu0
      %v2655 = vpop.f32.mrf.mxu0
      %v2656 = vadd.f32 0.0, %v2655
      %v2657 = vpop.f32.mrf.mxu0
      %2658 = vdwg.mxu0
      %v2659 = vsub.f32 %v2596, %v2653
      %v2660 = vsub.f32 %v2599, %v2656
      %v2661 = vpack.c.bf16 %v2660, %v2659
      %v2662 = vadd.f32 %v2645, %v2604
      %v2663 = vadd.f32 %v2648, %v2607
      %v2664 = vpack.c.bf16 %v2663, %v2662
      %v2666 = vsel %vm1371, %v2664, 0
      %2668 = vmatprep.subr.bf16.mxu0 0
      %2669 = vmatpush1.bf16.msra.mxu0 0
      %2670 = vmatprep.subr.bf16.mxu0 0
      %2671 = vmatpush1.bf16.msra.mxu0 0
      %2672 = vmatprep.subr.bf16.mxu0 0
      %2673 = vmatpush1.bf16.msra.mxu0 0
      %2674 = vmatprep.subr.bf16.mxu0 0
      %2675 = vmatpush1.bf16.msra.mxu0 0
      %2676 = vmatprep.subr.bf16.mxu0 0
      %2677 = vmatpush1.bf16.msra.mxu0 0
      %2678 = vmatprep.subr.bf16.mxu0 0
      %2679 = vmatpush1.bf16.msra.mxu0 0
      %2680 = vmatprep.subr.bf16.mxu0 0
      %2681 = vmatpush1.bf16.msra.mxu0 0
      %2682 = vmatprep.subr.bf16.mxu0 0
      %2683 = vmatpush1.bf16.msra.mxu0 %v1380
      %2684 = vmatprep.subr.bf16.mxu0 0
      %2685 = vmatpush2.bf16.msra.mxu0 0
      %2686 = vmatprep.subr.bf16.mxu0 0
      %2687 = vmatpush2.bf16.msra.mxu0 0
      %2688 = vmatprep.subr.bf16.mxu0 0
      %2689 = vmatpush2.bf16.msra.mxu0 0
      %2690 = vmatprep.subr.bf16.mxu0 0
      %2691 = vmatpush2.bf16.msra.mxu0 0
      %2692 = vmatprep.subr.bf16.mxu0 0
      %2693 = vmatpush2.bf16.msra.mxu0 0
      %2694 = vmatprep.subr.bf16.mxu0 0
      %2695 = vmatpush2.bf16.msra.mxu0 0
      %2696 = vmatprep.subr.bf16.mxu0 0
      %2697 = vmatpush2.bf16.msra.mxu0 0
      %2698 = vmatprep.subr.bf16.mxu0 0
      %2699 = vmatpush2.bf16.msra.mxu0 0
      %2700 = vmatprep.mubr.bf16.mxu0 0
      %2701 = vmatmul.mubr.bf16.gmra.mxu0 %v2666
      %v2702 = vpop.f32.mrf.mxu0
      %v2703 = vadd.f32 0.0, %v2702
      %v2704 = vpop.f32.mrf.mxu0
      %v2705 = vpop.f32.mrf.mxu0
      %v2706 = vadd.f32 0.0, %v2705
      %v2707 = vpop.f32.mrf.mxu0
      %2708 = vdwg.mxu0
      %v2710 = vsel %vm1371, %v2661, 0
      %2712 = vmatprep.subr.bf16.mxu0 0
      %2713 = vmatpush1.bf16.msra.mxu0 0
      %2714 = vmatprep.subr.bf16.mxu0 0
      %2715 = vmatpush1.bf16.msra.mxu0 0
      %2716 = vmatprep.subr.bf16.mxu0 0
      %2717 = vmatpush1.bf16.msra.mxu0 0
      %2718 = vmatprep.subr.bf16.mxu0 0
      %2719 = vmatpush1.bf16.msra.mxu0 0
      %2720 = vmatprep.subr.bf16.mxu0 0
      %2721 = vmatpush1.bf16.msra.mxu0 0
      %2722 = vmatprep.subr.bf16.mxu0 0
      %2723 = vmatpush1.bf16.msra.mxu0 0
      %2724 = vmatprep.subr.bf16.mxu0 0
      %2725 = vmatpush1.bf16.msra.mxu0 0
      %2726 = vmatprep.subr.bf16.mxu0 0
      %2727 = vmatpush1.bf16.msra.mxu0 %v1432
      %2728 = vmatprep.subr.bf16.mxu0 0
      %2729 = vmatpush2.bf16.msra.mxu0 0
      %2730 = vmatprep.subr.bf16.mxu0 0
      %2731 = vmatpush2.bf16.msra.mxu0 0
      %2732 = vmatprep.subr.bf16.mxu0 0
      %2733 = vmatpush2.bf16.msra.mxu0 0
      %2734 = vmatprep.subr.bf16.mxu0 0
      %2735 = vmatpush2.bf16.msra.mxu0 0
      %2736 = vmatprep.subr.bf16.mxu0 0
      %2737 = vmatpush2.bf16.msra.mxu0 0
      %2738 = vmatprep.subr.bf16.mxu0 0
      %2739 = vmatpush2.bf16.msra.mxu0 0
      %2740 = vmatprep.subr.bf16.mxu0 0
      %2741 = vmatpush2.bf16.msra.mxu0 0
      %2742 = vmatprep.subr.bf16.mxu0 0
      %2743 = vmatpush2.bf16.msra.mxu0 0
      %2744 = vmatprep.mubr.bf16.mxu0 0
      %2745 = vmatmul.mubr.bf16.gmra.mxu0 %v2710
      %v2746 = vpop.f32.mrf.mxu0
      %v2747 = vadd.f32 %v2703, %v2746
      %v2748 = vpop.f32.mrf.mxu0
      %v2749 = vpop.f32.mrf.mxu0
      %v2750 = vadd.f32 %v2706, %v2749
      %v2751 = vpop.f32.mrf.mxu0
      %2752 = vdwg.mxu0
      %2753 = vst.msk [vmem:[%s279 + $0x30] sm:$0xff] %vm377, %v2747
      %2754 = vst.msk [vmem:[%s279 + $0x38] sm:$0xff] %vm377, %v2750
      %p2755 = scmp.lt.s32.totalorder %s19, 1
      %s2756 = scalar_select %p2755, %s19, 1
      %s2757 = smul.addr %s2756, 8
      %s2758 = smul.addr %s2757, 8
      %s2759 = scalar_lea.vmem %s7, %s2758
      // Predicated region
      $region49: #{tpu_custom_call.1} parent=47 // pred_check
        %p2760 = pneg %p189
      $region50: #{tpu_custom_call.1} parent=47 // pred_check_branch
        %2762 = sbr.rel (%p2760) target = $region52
      $region51: #{tpu_custom_call.1} parent=47 // pred_region
        _
      $region52: #{tpu_custom_call.1} parent=47 // pred_fallthru
        _
    $region48: #{tpu_custom_call.1} parent=5 // pred_fallthru
      _
    %p2763 = scmp.le.s32.totalorder 2, %s14
    // Predicated region
    $region53: #{tpu_custom_call.1} parent=5 // pred_check
      %p2764 = pneg %p2763
    $region54: #{tpu_custom_call.1} parent=5 // pred_check_branch
      %2766 = sbr.rel (%p2764) target = $region56
    $region55: #{tpu_custom_call.1} parent=5 // pred_region
      %s2767 = ssub.s32 %s14, 2
      // Predicated region
      $region57: #{tpu_custom_call.1} parent=55 // pred_check
        %p2768 = pneg %p195
      $region58: #{tpu_custom_call.1} parent=55 // pred_check_branch
        %2770 = sbr.rel (%p2768) target = $region60
      $region59: #{tpu_custom_call.1} parent=55 // pred_region
        %p2771 = scmp.lt.s32.totalorder %s20, 1
        %s2772 = scalar_select %p2771, %s20, 1
        %s2773 = smul.addr %s2772, 8
        %s2774 = smul.addr %s2773, 8
        %s2775 = scalar_lea.vmem %s7, %s2774
      $region60: #{tpu_custom_call.1} parent=55 // pred_fallthru
        _
    $region56: #{tpu_custom_call.1} parent=5 // pred_fallthru
      _
  $region6: #{tpu_custom_call.1} parent=0 // loop_footer
    %s18 = sadd.s32 1, %s14
  $region7: #{tpu_custom_call.1} parent=0 // loop_footer_branch
    %13 = sbr.rel target = $region3
  $region8: #{tpu_custom_call.1} parent=0 // loop_exit
    _

</llo_original>
